<compile_context>
chip_gen: v5e
topology: v5e:2x2
jax: 0.10.0
libtpu: 0.0.40
codegen_flags: <defaults>
</compile_context>

<pallas_src>
import functools

import jax
import jax.numpy as jnp
from jax.experimental import pallas as pl
from jax.experimental.pallas import tpu as pltpu

EPS = 1e-5
NEG_BIG = -1e30       # stands in for max_pool's implicit -inf padding (finite => no inf/NaN)
PAD = 4               # max halo: dil_conv_5x5 -> dilation 2 * (5 // 2) = 4

PRIMITIVES = ("none", "max_pool_3x3", "avg_pool_3x3", "skip_connect",
              "sep_conv_3x3", "sep_conv_5x5", "dil_conv_3x3", "dil_conv_5x5")

_VMEM = pl.BlockSpec(memory_space=pltpu.MemorySpace.VMEM)
_SMEM = pl.BlockSpec(memory_space=pltpu.MemorySpace.SMEM)
_CPARAMS = pltpu.CompilerParams(vmem_limit_bytes=64 * 1024 * 1024)


# ------------------------------ in-kernel helpers ------------------------------

def _shift_lanes(v, s):
    """y[..., q] = v[..., q + s] (circular).  Wrapped entries only ever land on
    halo positions whose values are never consumed (|s| <= PAD*Wp + PAD)."""
    if s == 0:
        return v
    L = v.shape[-1]
    s = s % L
    return jnp.concatenate([v[..., s:], v[..., :s]], axis=-1)


# ------------------------------ Pallas kernels ------------------------------

def _relu_pw_bn_kernel(x_ref, w_ref, o_ref, *, inv_n):
    # ReLUConvBN(1x1): ReLU -> 1x1 conv (channel matmul on MXU) -> BN(affine=False).
    # x: (Cin, S)   w: (Cout, Cin)   o: (Cout, S)     (S = N*H*W on the lane axis)
    x = jnp.maximum(x_ref[...], 0.0)
    y = jnp.dot(w_ref[...], x, preferred_element_type=jnp.float32)
    mean = jnp.sum(y, axis=-1, keepdims=True) * inv_n
    d = y - mean
    var = jnp.sum(d * d, axis=-1, keepdims=True) * inv_n
    o_ref[...] = d * jax.lax.rsqrt(var + EPS)


def _mixed_edge_kernel(alpha_ref, x_ref, mc_ref,
                       s3d1, s3p1, s3d2, s3p2,
                       s5d1, s5p1, s5d2, s5p2,
                       d3d, d3p, d5d, d5p,
                       o_ref, *, Wp, inv_n):
    """Entire MixedOp for one edge, fused.  Layout (C, L), L = N*Hp*Wp, zero halo ring."""
    x = x_ref[...]                       # (C, L) padded state, halo == 0
    mask = mc_ref[0:1, :]                # (1, L): 1.0 interior / 0.0 halo
    cnt = mc_ref[1:2, :]                 # (1, L): 3x3 valid-count (clamped >= 1)
    xr = jnp.maximum(x, 0.0)             # shared ReLU for all conv branches (halo stays 0)

    def bn(y):                           # BatchNorm(affine=False), stats over interior only
        mean = jnp.sum(y * mask, axis=-1, keepdims=True) * inv_n
        d = y - mean
        dm = d * mask                    # mask BEFORE squaring (halo garbage never squared)
        var = jnp.sum(dm * dm, axis=-1, keepdims=True) * inv_n
        return d * jax.lax.rsqrt(var + EPS)

    def dwconv(a, dw_ref, k, dil):       # depthwise KxK, stride 1, dilation `dil`
        dw = dw_ref[...]                 # (C, k*k)
        p = (k // 2) * dil
        acc = None
        for ki in range(k):
            for kj in range(k):
                s = (ki * dil - p) * Wp + (kj * dil - p)
                t = _shift_lanes(a, s) * dw[:, ki * k + kj:ki * k + kj + 1]
                acc = t if acc is None else acc + t
        return acc

    def pwconv(a, w_ref):                # 1x1 conv: (C, C) @ (C, L) on the MXU
        return jnp.dot(w_ref[...], a, preferred_element_type=jnp.float32)

    def sep_branch(dw1, pw1, dw2, pw2, k):       # DARTS SepConv, stride 1
        t = bn(pwconv(dwconv(xr, dw1, k, 1), pw1))
        t = t * mask                              # restore zero halo = zero padding of 2nd conv
        return bn(pwconv(dwconv(jnp.maximum(t, 0.0), dw2, k, 1), pw2))

    def dil_branch(dw, pwm, k):                  # DARTS DilConv, stride 1, dilation 2
        return bn(pwconv(dwconv(xr, dw, k, 2), pwm))

    # --- max_pool_3x3 (implicit -inf padding) + BN ---
    xneg = jnp.where(mask > 0.5, x, NEG_BIG)
    m = None
    for di in (-1, 0, 1):
        for dj in (-1, 0, 1):
            t = _shift_lanes(xneg, di * Wp + dj)
            m = t if m is None else jnp.maximum(m, t)
    branch_max = bn(m)

    # --- avg_pool_3x3 (count_include_pad=False) + BN ---
    ssum = None
    for di in (-1, 0, 1):
        for dj in (-1, 0, 1):
            t = _shift_lanes(x, di * Wp + dj)    # halo is 0, so plain sum is correct
            ssum = t if ssum is None else ssum + t
    branch_avg = bn(ssum / cnt)

    acc = alpha_ref[1] * branch_max
    acc = acc + alpha_ref[2] * branch_avg
    acc = acc + alpha_ref[3] * x                                     # skip_connect
    acc = acc + alpha_ref[4] * sep_branch(s3d1, s3p1, s3d2, s3p2, 3)  # sep_conv_3x3
    acc = acc + alpha_ref[5] * sep_branch(s5d1, s5p1, s5d2, s5p2, 5)  # sep_conv_5x5
    acc = acc + alpha_ref[6] * dil_branch(d3d, d3p, 3)                # dil_conv_3x3
    acc = acc + alpha_ref[7] * dil_branch(d5d, d5p, 5)                # dil_conv_5x5
    # alpha[0] * none(x) == 0: dropped (bit-identical).
    o_ref[...] = acc * mask              # zero the halo -> output is a valid padded state


# ------------------------------ kernel wrappers ------------------------------

def _relu_conv1x1_bn(x_nchw, w):
    # x: (N, Cin, H, W), w: (Cout, Cin) -> (Cout, N*H*W)   channels on sublanes, lane-dense
    N, Cin, H, W = x_nchw.shape
    Cout = w.shape[0]
    S = N * H * W
    x = jnp.transpose(x_nchw, (1, 0, 2, 3)).reshape(Cin, S).astype(jnp.float32)
    return pl.pallas_call(
        functools.partial(_relu_pw_bn_kernel, inv_n=1.0 / S),
        out_shape=jax.ShapeDtypeStruct((Cout, S), jnp.float32),
        in_specs=[_VMEM, _VMEM],
        out_specs=_VMEM,
        compiler_params=_CPARAMS,
    )(x, w.astype(jnp.float32))


def _make_edge_call(C, L, Wp, n_interior):
    kern = functools.partial(_mixed_edge_kernel, Wp=Wp, inv_n=1.0 / n_interior)
    call = pl.pallas_call(
        kern,
        out_shape=jax.ShapeDtypeStruct((C, L), jnp.float32),
        in_specs=[_SMEM] + [_VMEM] * 14,
        out_specs=_VMEM,
        compiler_params=_CPARAMS,
    )

    def edge(alpha, x, maskcnt, p):
        return call(alpha.astype(jnp.float32), x, maskcnt,
                    p["sep3"]["dw1"], p["sep3"]["pw1"], p["sep3"]["dw2"], p["sep3"]["pw2"],
                    p["sep5"]["dw1"], p["sep5"]["pw1"], p["sep5"]["dw2"], p["sep5"]["pw2"],
                    p["dil3"]["dw"], p["dil3"]["pw"],
                    p["dil5"]["dw"], p["dil5"]["pw"])
    return edge


# ------------------------------ CleanCell forward ------------------------------

def clean_cell_forward(s0_nchw, s1_nchw, weights, params, *, steps, block_multiplier):
    N, _, H, W = s0_nchw.shape
    C = params["pre0"].shape[0]
    P = PAD
    Hp, Wp = H + 2 * P, W + 2 * P
    L = N * Hp * Wp
    S = N * H * W

    def to_padded(y):                    # (C, N*H*W) -> (C, L) with a zero halo ring
        y = y.reshape(C, N, H, W)
        y = jnp.pad(y, ((0, 0), (0, 0), (P, P), (P, P)))
        return y.reshape(C, L)

    def from_padded(y):                  # (C, L) -> (N, C, H, W) interior crop
        y = y.reshape(C, N, Hp, Wp)[:, :, P:P + H, P:P + W]
        return jnp.transpose(y, (1, 0, 2, 3))

    # preprocess0 / preprocess1  (reduction_prev=False -> ReLUConvBN(1x1))
    s0 = to_padded(_relu_conv1x1_bn(s0_nchw, params["pre0"]))
    s1 = to_padded(_relu_conv1x1_bn(s1_nchw, params["pre1"]))

    # interior mask + 3x3 valid-count, shared by every edge kernel (computed once).
    mask = jnp.pad(jnp.ones((1, N, H, W), jnp.float32),
                   ((0, 0), (0, 0), (P, P), (P, P))).reshape(1, L)
    onep = jnp.pad(jnp.ones((H, W), jnp.float32), ((1, 1), (1, 1)))
    cnt_hw = sum(onep[i:i + H, j:j + W] for i in range(3) for j in range(3))
    cnt = jnp.maximum(jnp.pad(cnt_hw, ((P, P), (P, P))), 1.0)
    cnt = jnp.broadcast_to(cnt[None, None], (1, N, Hp, Wp)).reshape(1, L)
    maskcnt = jnp.concatenate([mask, cnt], axis=0)              # (2, L)

    edge = _make_edge_call(C, L, Wp, n_interior=S)

    # All strides are 1 (non-reduction cell): spatial sizes always match, so the
    # F.interpolate alignment branches of the reference are never exercised.
    states = [s0, s1]
    offset = 0
    for _ in range(steps):
        node_inputs = []
        for j in range(len(states)):
            op_idx = offset + j
            if op_idx < len(params["ops"]) and op_idx < weights.shape[0]:
                node_inputs.append(edge(weights[op_idx], states[j], maskcnt,
                                        params["ops"][op_idx]))
        if node_inputs:
            new_state = functools.reduce(jnp.add, node_inputs)
        else:
            new_state = jnp.zeros_like(states[-1])
        states.append(new_state)
        offset += len(states) - 1

    out = jnp.concatenate([from_padded(st) for st in states[-block_multiplier:]], axis=1)
    return out                           # NCHW, channels = block_multiplier * C


# ------------------------------ deterministic params ------------------------------

def init_params(key, C_pp, C_p, C, steps):
    num_edges = sum(2 + i for i in range(steps))
    keys = jax.random.split(key, 2 + num_edges)

    def nrm(k, shape, scale=0.1):
        return scale * jax.random.normal(k, shape, jnp.float32)

    # pw weights stored as (Cout, Cin); depthwise filters as (C, k*k).
    params = {"pre0": nrm(keys[0], (C, C_pp)), "pre1": nrm(keys[1], (C, C_p)), "ops": []}
    for e in range(num_edges):
        ks = jax.random.split(keys[2 + e], 12)
        params["ops"].append({
            "sep3": {"dw1": nrm(ks[0], (C, 9)),  "pw1": nrm(ks[1], (C, C)),
                     "dw2": nrm(ks[2], (C, 9)),  "pw2": nrm(ks[3], (C, C))},
            "sep5": {"dw1": nrm(ks[4], (C, 25)), "pw1": nrm(ks[5], (C, C)),
                     "dw2": nrm(ks[6], (C, 25)), "pw2": nrm(ks[7], (C, C))},
            "dil3": {"dw": nrm(ks[8], (C, 9)),   "pw": nrm(ks[9], (C, C))},
            "dil5": {"dw": nrm(ks[10], (C, 25)), "pw": nrm(ks[11], (C, C))},
        })
    return params


if __name__ == "__main__":
    steps, block_multiplier = 2, 2
    C_prev_prev, C_prev, C = 4, 4, 8
    N, H, W = 2, 16, 16

    key = jax.random.PRNGKey(0)
    k0, k1, kw, kp = jax.random.split(key, 4)
    s0 = jax.random.normal(k0, (N, C_prev_prev, H, W), jnp.float32)   # NCHW
    s1 = jax.random.normal(k1, (N, C_prev, H, W), jnp.float32)        # NCHW

    num_edges = sum(2 + i for i in range(steps))                      # 5
    weights = jax.nn.softmax(
        jax.random.normal(kw, (num_edges, len(PRIMITIVES)), jnp.float32), axis=-1)

    params = init_params(kp, C_prev_prev, C_prev, C, steps)

    fwd = jax.jit(functools.partial(clean_cell_forward,
                                    steps=steps, block_multiplier=block_multiplier))
    out = jax.block_until_ready(fwd(s0, s1, weights, params))
    assert out.shape == (N, block_multiplier * C, H, W), out.shape
    assert bool(jnp.all(jnp.isfinite(out)))
    print("KERNEL_OK")
</pallas_src>

<mosaic_0001>
module attributes {stable_mosaic.version = 11 : i64} {
  func.func @_relu_pw_bn_kernel(%arg0: memref<4x512xf32, #tpu.memory_space<vmem>>, %arg1: memref<8x4xf32, #tpu.memory_space<vmem>>, %arg2: memref<8x512xf32, #tpu.memory_space<vmem>>) attributes {dimension_semantics = [], scalar_prefetch = 0 : i64, scratch_operands = 0 : i64, tpu.core_type = #tpu.core_type<tc>} {
    %c0 = arith.constant 0 : index
    %c0_0 = arith.constant 0 : index
    %0 = vector.load %arg0[%c0, %c0_0] : memref<4x512xf32, #tpu.memory_space<vmem>>, vector<4x512xf32>
    %cst = arith.constant 0.000000e+00 : f32
    %1 = vector.broadcast %cst : f32 to vector<4x512xf32>
    %2 = arith.maximumf %0, %1 : vector<4x512xf32>
    %c0_1 = arith.constant 0 : index
    %c0_2 = arith.constant 0 : index
    %3 = vector.load %arg1[%c0_1, %c0_2] : memref<8x4xf32, #tpu.memory_space<vmem>>, vector<8x4xf32>
    %cst_3 = arith.constant dense<0.000000e+00> : vector<8x512xf32>
    %4 = tpu.matmul %3, %2, %cst_3 {dimension_numbers = #tpu.dot_dimension_numbers<[1], [0], [0], [1], [0, 0, 1, 1], [], []>} : vector<8x4xf32>, vector<4x512xf32>, vector<8x512xf32> -> vector<8x512xf32>
    %cst_4 = arith.constant dense<0.000000e+00> : vector<8xf32>
    %5 = vector.multi_reduction <add>, %4, %cst_4 [1] : vector<8x512xf32> to vector<8xf32>
    %6 = vector.shape_cast %5 : vector<8xf32> to vector<8x1xf32>
    %cst_5 = arith.constant 0.001953125 : f32
    %7 = vector.broadcast %cst_5 : f32 to vector<8x1xf32>
    %8 = arith.mulf %6, %7 : vector<8x1xf32>
    %9 = vector.broadcast %8 : vector<8x1xf32> to vector<8x512xf32>
    %10 = arith.subf %4, %9 : vector<8x512xf32>
    %11 = arith.mulf %10, %10 : vector<8x512xf32>
    %cst_6 = arith.constant dense<0.000000e+00> : vector<8xf32>
    %12 = vector.multi_reduction <add>, %11, %cst_6 [1] : vector<8x512xf32> to vector<8xf32>
    %13 = vector.shape_cast %12 : vector<8xf32> to vector<8x1xf32>
    %cst_7 = arith.constant 0.001953125 : f32
    %14 = vector.broadcast %cst_7 : f32 to vector<8x1xf32>
    %15 = arith.mulf %13, %14 : vector<8x1xf32>
    %cst_8 = arith.constant 9.99999974E-6 : f32
    %16 = vector.broadcast %cst_8 : f32 to vector<8x1xf32>
    %17 = arith.addf %15, %16 : vector<8x1xf32>
    %18 = math.rsqrt %17 : vector<8x1xf32>
    %19 = vector.broadcast %18 : vector<8x1xf32> to vector<8x512xf32>
    %20 = arith.mulf %10, %19 : vector<8x512xf32>
    %c0_9 = arith.constant 0 : index
    %c0_10 = arith.constant 0 : index
    %21 = vector.load %arg2[%c0_9, %c0_10] : memref<8x512xf32, #tpu.memory_space<vmem>>, vector<8x512xf32>
    tpu.vector_store %arg2[%c0_9, %c0_10], %20 {strides = array<i32>} : memref<8x512xf32, #tpu.memory_space<vmem>>, vector<8x512xf32>,
    return
  }
}

module attributes {stable_mosaic.version = 11 : i64} {
  func.func @_mixed_edge_kernel(%arg0: memref<8xf32, #tpu.memory_space<smem>>, %arg1: memref<8x1152xf32, #tpu.memory_space<vmem>>, %arg2: memref<2x1152xf32, #tpu.memory_space<vmem>>, %arg3: memref<8x9xf32, #tpu.memory_space<vmem>>, %arg4: memref<8x8xf32, #tpu.memory_space<vmem>>, %arg5: memref<8x9xf32, #tpu.memory_space<vmem>>, %arg6: memref<8x8xf32, #tpu.memory_space<vmem>>, %arg7: memref<8x25xf32, #tpu.memory_space<vmem>>, %arg8: memref<8x8xf32, #tpu.memory_space<vmem>>, %arg9: memref<8x25xf32, #tpu.memory_space<vmem>>, %arg10: memref<8x8xf32, #tpu.memory_space<vmem>>, %arg11: memref<8x9xf32, #tpu.memory_space<vmem>>, %arg12: memref<8x8xf32, #tpu.memory_space<vmem>>, %arg13: memref<8x25xf32, #tpu.memory_space<vmem>>, %arg14: memref<8x8xf32, #tpu.memory_space<vmem>>, %arg15: memref<8x1152xf32, #tpu.memory_space<vmem>>) attributes {dimension_semantics = [], scalar_prefetch = 0 : i64, scratch_operands = 0 : i64, tpu.core_type = #tpu.core_type<tc>} {
    %c0 = arith.constant 0 : index
    %c0_0 = arith.constant 0 : index
    %0 = vector.load %arg1[%c0, %c0_0] : memref<8x1152xf32, #tpu.memory_space<vmem>>, vector<8x1152xf32>
    %c0_1 = arith.constant 0 : index
    %c0_2 = arith.constant 0 : index
    %1 = vector.load %arg2[%c0_1, %c0_2] : memref<2x1152xf32, #tpu.memory_space<vmem>>, vector<1x1152xf32>
    %c1 = arith.constant 1 : index
    %c0_3 = arith.constant 0 : index
    %2 = vector.load %arg2[%c1, %c0_3] : memref<2x1152xf32, #tpu.memory_space<vmem>>, vector<1x1152xf32>
    %cst = arith.constant 0.000000e+00 : f32
    %3 = vector.broadcast %cst : f32 to vector<8x1152xf32>
    %4 = arith.maximumf %0, %3 : vector<8x1152xf32>
    %cst_4 = arith.constant 5.000000e-01 : f32
    %5 = vector.broadcast %cst_4 : f32 to vector<1x1152xf32>
    %6 = arith.cmpf ogt, %1, %5 : vector<1x1152xf32>
    %cst_5 = arith.constant -1.000000e+30 : f32
    %7 = vector.shape_cast %6 : vector<1x1152xi1> to vector<1x1152xi1>
    %8 = vector.broadcast %7 : vector<1x1152xi1> to vector<8x1152xi1>
    %9 = vector.broadcast %cst_5 : f32 to vector<8x1152xf32>
    %10 = arith.select %8, %0, %9 : vector<8x1152xi1>, vector<8x1152xf32>
    %11 = vector.extract_strided_slice %10 {offsets = [0, 1127], sizes = [8, 25], strides = [1, 1]} : vector<8x1152xf32> to vector<8x25xf32>
    %12 = vector.extract_strided_slice %10 {offsets = [0, 0], sizes = [8, 1127], strides = [1, 1]} : vector<8x1152xf32> to vector<8x1127xf32>
    %13 = tpu.concatenate %11, %12 in 1 : vector<8x25xf32>, vector<8x1127xf32> -> vector<8x1152xf32>
    %14 = vector.extract_strided_slice %10 {offsets = [0, 1128], sizes = [8, 24], strides = [1, 1]} : vector<8x1152xf32> to vector<8x24xf32>
    %15 = vector.extract_strided_slice %10 {offsets = [0, 0], sizes = [8, 1128], strides = [1, 1]} : vector<8x1152xf32> to vector<8x1128xf32>
    %16 = tpu.concatenate %14, %15 in 1 : vector<8x24xf32>, vector<8x1128xf32> -> vector<8x1152xf32>
    %17 = arith.maximumf %13, %16 : vector<8x1152xf32>
    %18 = vector.extract_strided_slice %10 {offsets = [0, 1129], sizes = [8, 23], strides = [1, 1]} : vector<8x1152xf32> to vector<8x23xf32>
    %19 = vector.extract_strided_slice %10 {offsets = [0, 0], sizes = [8, 1129], strides = [1, 1]} : vector<8x1152xf32> to vector<8x1129xf32>
    %20 = tpu.concatenate %18, %19 in 1 : vector<8x23xf32>, vector<8x1129xf32> -> vector<8x1152xf32>
    %21 = arith.maximumf %17, %20 : vector<8x1152xf32>
    %22 = vector.extract_strided_slice %10 {offsets = [0, 1151], sizes = [8, 1], strides = [1, 1]} : vector<8x1152xf32> to vector<8x1xf32>
    %23 = vector.extract_strided_slice %10 {offsets = [0, 0], sizes = [8, 1151], strides = [1, 1]} : vector<8x1152xf32> to vector<8x1151xf32>
    %24 = tpu.concatenate %22, %23 in 1 : vector<8x1xf32>, vector<8x1151xf32> -> vector<8x1152xf32>
    %25 = arith.maximumf %21, %24 : vector<8x1152xf32>
    %26 = arith.maximumf %25, %10 : vector<8x1152xf32>
    %27 = vector.extract_strided_slice %10 {offsets = [0, 1], sizes = [8, 1151], strides = [1, 1]} : vector<8x1152xf32> to vector<8x1151xf32>
    %28 = vector.extract_strided_slice %10 {offsets = [0, 0], sizes = [8, 1], strides = [1, 1]} : vector<8x1152xf32> to vector<8x1xf32>
    %29 = tpu.concatenate %27, %28 in 1 : vector<8x1151xf32>, vector<8x1xf32> -> vector<8x1152xf32>
    %30 = arith.maximumf %26, %29 : vector<8x1152xf32>
    %31 = vector.extract_strided_slice %10 {offsets = [0, 23], sizes = [8, 1129], strides = [1, 1]} : vector<8x1152xf32> to vector<8x1129xf32>
    %32 = vector.extract_strided_slice %10 {offsets = [0, 0], sizes = [8, 23], strides = [1, 1]} : vector<8x1152xf32> to vector<8x23xf32>
    %33 = tpu.concatenate %31, %32 in 1 : vector<8x1129xf32>, vector<8x23xf32> -> vector<8x1152xf32>
    %34 = arith.maximumf %30, %33 : vector<8x1152xf32>
    %35 = vector.extract_strided_slice %10 {offsets = [0, 24], sizes = [8, 1128], strides = [1, 1]} : vector<8x1152xf32> to vector<8x1128xf32>
    %36 = vector.extract_strided_slice %10 {offsets = [0, 0], sizes = [8, 24], strides = [1, 1]} : vector<8x1152xf32> to vector<8x24xf32>
    %37 = tpu.concatenate %35, %36 in 1 : vector<8x1128xf32>, vector<8x24xf32> -> vector<8x1152xf32>
    %38 = arith.maximumf %34, %37 : vector<8x1152xf32>
    %39 = vector.extract_strided_slice %10 {offsets = [0, 25], sizes = [8, 1127], strides = [1, 1]} : vector<8x1152xf32> to vector<8x1127xf32>
    %40 = vector.extract_strided_slice %10 {offsets = [0, 0], sizes = [8, 25], strides = [1, 1]} : vector<8x1152xf32> to vector<8x25xf32>
    %41 = tpu.concatenate %39, %40 in 1 : vector<8x1127xf32>, vector<8x25xf32> -> vector<8x1152xf32>
    %42 = arith.maximumf %38, %41 : vector<8x1152xf32>
    %43 = vector.broadcast %1 : vector<1x1152xf32> to vector<8x1152xf32>
    %44 = arith.mulf %42, %43 : vector<8x1152xf32>
    %cst_6 = arith.constant dense<0.000000e+00> : vector<8xf32>
    %45 = vector.multi_reduction <add>, %44, %cst_6 [1] : vector<8x1152xf32> to vector<8xf32>
    %46 = vector.shape_cast %45 : vector<8xf32> to vector<8x1xf32>
    %cst_7 = arith.constant 0.001953125 : f32
    %47 = vector.broadcast %cst_7 : f32 to vector<8x1xf32>
    %48 = arith.mulf %46, %47 : vector<8x1xf32>
    %49 = vector.broadcast %48 : vector<8x1xf32> to vector<8x1152xf32>
    %50 = arith.subf %42, %49 : vector<8x1152xf32>
    %51 = vector.broadcast %1 : vector<1x1152xf32> to vector<8x1152xf32>
    %52 = arith.mulf %50, %51 : vector<8x1152xf32>
    %53 = arith.mulf %52, %52 : vector<8x1152xf32>
    %cst_8 = arith.constant dense<0.000000e+00> : vector<8xf32>
    %54 = vector.multi_reduction <add>, %53, %cst_8 [1] : vector<8x1152xf32> to vector<8xf32>
    %55 = vector.shape_cast %54 : vector<8xf32> to vector<8x1xf32>
    %cst_9 = arith.constant 0.001953125 : f32
    %56 = vector.broadcast %cst_9 : f32 to vector<8x1xf32>
    %57 = arith.mulf %55, %56 : vector<8x1xf32>
    %cst_10 = arith.constant 9.99999974E-6 : f32
    %58 = vector.broadcast %cst_10 : f32 to vector<8x1xf32>
    %59 = arith.addf %57, %58 : vector<8x1xf32>
    %60 = math.rsqrt %59 : vector<8x1xf32>
    %61 = vector.broadcast %60 : vector<8x1xf32> to vector<8x1152xf32>
    %62 = arith.mulf %50, %61 : vector<8x1152xf32>
    %63 = vector.extract_strided_slice %0 {offsets = [0, 1127], sizes = [8, 25], strides = [1, 1]} : vector<8x1152xf32> to vector<8x25xf32>
    %64 = vector.extract_strided_slice %0 {offsets = [0, 0], sizes = [8, 1127], strides = [1, 1]} : vector<8x1152xf32> to vector<8x1127xf32>
    %65 = tpu.concatenate %63, %64 in 1 : vector<8x25xf32>, vector<8x1127xf32> -> vector<8x1152xf32>
    %66 = vector.extract_strided_slice %0 {offsets = [0, 1128], sizes = [8, 24], strides = [1, 1]} : vector<8x1152xf32> to vector<8x24xf32>
    %67 = vector.extract_strided_slice %0 {offsets = [0, 0], sizes = [8, 1128], strides = [1, 1]} : vector<8x1152xf32> to vector<8x1128xf32>
    %68 = tpu.concatenate %66, %67 in 1 : vector<8x24xf32>, vector<8x1128xf32> -> vector<8x1152xf32>
    %69 = arith.addf %65, %68 : vector<8x1152xf32>
    %70 = vector.extract_strided_slice %0 {offsets = [0, 1129], sizes = [8, 23], strides = [1, 1]} : vector<8x1152xf32> to vector<8x23xf32>
    %71 = vector.extract_strided_slice %0 {offsets = [0, 0], sizes = [8, 1129], strides = [1, 1]} : vector<8x1152xf32> to vector<8x1129xf32>
    %72 = tpu.concatenate %70, %71 in 1 : vector<8x23xf32>, vector<8x1129xf32> -> vector<8x1152xf32>
    %73 = arith.addf %69, %72 : vector<8x1152xf32>
    %74 = vector.extract_strided_slice %0 {offsets = [0, 1151], sizes = [8, 1], strides = [1, 1]} : vector<8x1152xf32> to vector<8x1xf32>
    %75 = vector.extract_strided_slice %0 {offsets = [0, 0], sizes = [8, 1151], strides = [1, 1]} : vector<8x1152xf32> to vector<8x1151xf32>
    %76 = tpu.concatenate %74, %75 in 1 : vector<8x1xf32>, vector<8x1151xf32> -> vector<8x1152xf32>
    %77 = arith.addf %73, %76 : vector<8x1152xf32>
    %78 = arith.addf %77, %0 : vector<8x1152xf32>
    %79 = vector.extract_strided_slice %0 {offsets = [0, 1], sizes = [8, 1151], strides = [1, 1]} : vector<8x1152xf32> to vector<8x1151xf32>
    %80 = vector.extract_strided_slice %0 {offsets = [0, 0], sizes = [8, 1], strides = [1, 1]} : vector<8x1152xf32> to vector<8x1xf32>
    %81 = tpu.concatenate %79, %80 in 1 : vector<8x1151xf32>, vector<8x1xf32> -> vector<8x1152xf32>
    %82 = arith.addf %78, %81 : vector<8x1152xf32>
    %83 = vector.extract_strided_slice %0 {offsets = [0, 23], sizes = [8, 1129], strides = [1, 1]} : vector<8x1152xf32> to vector<8x1129xf32>
    %84 = vector.extract_strided_slice %0 {offsets = [0, 0], sizes = [8, 23], strides = [1, 1]} : vector<8x1152xf32> to vector<8x23xf32>
    %85 = tpu.concatenate %83, %84 in 1 : vector<8x1129xf32>, vector<8x23xf32> -> vector<8x1152xf32>
    %86 = arith.addf %82, %85 : vector<8x1152xf32>
    %87 = vector.extract_strided_slice %0 {offsets = [0, 24], sizes = [8, 1128], strides = [1, 1]} : vector<8x1152xf32> to vector<8x1128xf32>
    %88 = vector.extract_strided_slice %0 {offsets = [0, 0], sizes = [8, 24], strides = [1, 1]} : vector<8x1152xf32> to vector<8x24xf32>
    %89 = tpu.concatenate %87, %88 in 1 : vector<8x1128xf32>, vector<8x24xf32> -> vector<8x1152xf32>
    %90 = arith.addf %86, %89 : vector<8x1152xf32>
    %91 = vector.extract_strided_slice %0 {offsets = [0, 25], sizes = [8, 1127], strides = [1, 1]} : vector<8x1152xf32> to vector<8x1127xf32>
    %92 = vector.extract_strided_slice %0 {offsets = [0, 0], sizes = [8, 25], strides = [1, 1]} : vector<8x1152xf32> to vector<8x25xf32>
    %93 = tpu.concatenate %91, %92 in 1 : vector<8x1127xf32>, vector<8x25xf32> -> vector<8x1152xf32>
    %94 = arith.addf %90, %93 : vector<8x1152xf32>
    %95 = vector.broadcast %2 : vector<1x1152xf32> to vector<8x1152xf32>
    %96 = arith.divf %94, %95 : vector<8x1152xf32>
    %97 = vector.broadcast %1 : vector<1x1152xf32> to vector<8x1152xf32>
    %98 = arith.mulf %96, %97 : vector<8x1152xf32>
    %cst_11 = arith.constant dense<0.000000e+00> : vector<8xf32>
    %99 = vector.multi_reduction <add>, %98, %cst_11 [1] : vector<8x1152xf32> to vector<8xf32>
    %100 = vector.shape_cast %99 : vector<8xf32> to vector<8x1xf32>
    %cst_12 = arith.constant 0.001953125 : f32
    %101 = vector.broadcast %cst_12 : f32 to vector<8x1xf32>
    %102 = arith.mulf %100, %101 : vector<8x1xf32>
    %103 = vector.broadcast %102 : vector<8x1xf32> to vector<8x1152xf32>
    %104 = arith.subf %96, %103 : vector<8x1152xf32>
    %105 = vector.broadcast %1 : vector<1x1152xf32> to vector<8x1152xf32>
    %106 = arith.mulf %104, %105 : vector<8x1152xf32>
    %107 = arith.mulf %106, %106 : vector<8x1152xf32>
    %cst_13 = arith.constant dense<0.000000e+00> : vector<8xf32>
    %108 = vector.multi_reduction <add>, %107, %cst_13 [1] : vector<8x1152xf32> to vector<8xf32>
    %109 = vector.shape_cast %108 : vector<8xf32> to vector<8x1xf32>
    %cst_14 = arith.constant 0.001953125 : f32
    %110 = vector.broadcast %cst_14 : f32 to vector<8x1xf32>
    %111 = arith.mulf %109, %110 : vector<8x1xf32>
    %cst_15 = arith.constant 9.99999974E-6 : f32
    %112 = vector.broadcast %cst_15 : f32 to vector<8x1xf32>
    %113 = arith.addf %111, %112 : vector<8x1xf32>
    %114 = math.rsqrt %113 : vector<8x1xf32>
    %115 = vector.broadcast %114 : vector<8x1xf32> to vector<8x1152xf32>
    %116 = arith.mulf %104, %115 : vector<8x1152xf32>
    %c1_16 = arith.constant 1 : index
    %117 = memref.load %arg0[%c1_16] : memref<8xf32, #tpu.memory_space<smem>>
    %118 = vector.broadcast %117 : f32 to vector<8x1152xf32>
    %119 = arith.mulf %118, %62 : vector<8x1152xf32>
    %c2 = arith.constant 2 : index
    %120 = memref.load %arg0[%c2] : memref<8xf32, #tpu.memory_space<smem>>
    %121 = vector.broadcast %120 : f32 to vector<8x1152xf32>
    %122 = arith.mulf %121, %116 : vector<8x1152xf32>
    %123 = arith.addf %119, %122 : vector<8x1152xf32>
    %c3 = arith.constant 3 : index
    %124 = memref.load %arg0[%c3] : memref<8xf32, #tpu.memory_space<smem>>
    %125 = vector.broadcast %124 : f32 to vector<8x1152xf32>
    %126 = arith.mulf %125, %0 : vector<8x1152xf32>
    %127 = arith.addf %123, %126 : vector<8x1152xf32>
    %c4 = arith.constant 4 : index
    %128 = memref.load %arg0[%c4] : memref<8xf32, #tpu.memory_space<smem>>
    %c0_17 = arith.constant 0 : index
    %c0_18 = arith.constant 0 : index
    %129 = vector.load %arg3[%c0_17, %c0_18] : memref<8x9xf32, #tpu.memory_space<vmem>>, vector<8x9xf32>
    %130 = vector.extract_strided_slice %4 {offsets = [0, 1127], sizes = [8, 25], strides = [1, 1]} : vector<8x1152xf32> to vector<8x25xf32>
    %131 = vector.extract_strided_slice %4 {offsets = [0, 0], sizes = [8, 1127], strides = [1, 1]} : vector<8x1152xf32> to vector<8x1127xf32>
    %132 = tpu.concatenate %130, %131 in 1 : vector<8x25xf32>, vector<8x1127xf32> -> vector<8x1152xf32>
    %133 = vector.extract_strided_slice %129 {offsets = [0, 0], sizes = [8, 1], strides = [1, 1]} : vector<8x9xf32> to vector<8x1xf32>
    %134 = vector.broadcast %133 : vector<8x1xf32> to vector<8x1152xf32>
    %135 = arith.mulf %132, %134 : vector<8x1152xf32>
    %136 = vector.extract_strided_slice %4 {offsets = [0, 1128], sizes = [8, 24], strides = [1, 1]} : vector<8x1152xf32> to vector<8x24xf32>
    %137 = vector.extract_strided_slice %4 {offsets = [0, 0], sizes = [8, 1128], strides = [1, 1]} : vector<8x1152xf32> to vector<8x1128xf32>
    %138 = tpu.concatenate %136, %137 in 1 : vector<8x24xf32>, vector<8x1128xf32> -> vector<8x1152xf32>
    %139 = vector.extract_strided_slice %129 {offsets = [0, 1], sizes = [8, 1], strides = [1, 1]} : vector<8x9xf32> to vector<8x1xf32>
    %140 = vector.broadcast %139 : vector<8x1xf32> to vector<8x1152xf32>
    %141 = arith.mulf %138, %140 : vector<8x1152xf32>
    %142 = arith.addf %135, %141 : vector<8x1152xf32>
    %143 = vector.extract_strided_slice %4 {offsets = [0, 1129], sizes = [8, 23], strides = [1, 1]} : vector<8x1152xf32> to vector<8x23xf32>
    %144 = vector.extract_strided_slice %4 {offsets = [0, 0], sizes = [8, 1129], strides = [1, 1]} : vector<8x1152xf32> to vector<8x1129xf32>
    %145 = tpu.concatenate %143, %144 in 1 : vector<8x23xf32>, vector<8x1129xf32> -> vector<8x1152xf32>
    %146 = vector.extract_strided_slice %129 {offsets = [0, 2], sizes = [8, 1], strides = [1, 1]} : vector<8x9xf32> to vector<8x1xf32>
    %147 = vector.broadcast %146 : vector<8x1xf32> to vector<8x1152xf32>
    %148 = arith.mulf %145, %147 : vector<8x1152xf32>
    %149 = arith.addf %142, %148 : vector<8x1152xf32>
    %150 = vector.extract_strided_slice %4 {offsets = [0, 1151], sizes = [8, 1], strides = [1, 1]} : vector<8x1152xf32> to vector<8x1xf32>
    %151 = vector.extract_strided_slice %4 {offsets = [0, 0], sizes = [8, 1151], strides = [1, 1]} : vector<8x1152xf32> to vector<8x1151xf32>
    %152 = tpu.concatenate %150, %151 in 1 : vector<8x1xf32>, vector<8x1151xf32> -> vector<8x1152xf32>
    %153 = vector.extract_strided_slice %129 {offsets = [0, 3], sizes = [8, 1], strides = [1, 1]} : vector<8x9xf32> to vector<8x1xf32>
    %154 = vector.broadcast %153 : vector<8x1xf32> to vector<8x1152xf32>
    %155 = arith.mulf %152, %154 : vector<8x1152xf32>
    %156 = arith.addf %149, %155 : vector<8x1152xf32>
    %157 = vector.extract_strided_slice %129 {offsets = [0, 4], sizes = [8, 1], strides = [1, 1]} : vector<8x9xf32> to vector<8x1xf32>
    %158 = vector.broadcast %157 : vector<8x1xf32> to vector<8x1152xf32>
    %159 = arith.mulf %4, %158 : vector<8x1152xf32>
    %160 = arith.addf %156, %159 : vector<8x1152xf32>
    %161 = vector.extract_strided_slice %4 {offsets = [0, 1], sizes = [8, 1151], strides = [1, 1]} : vector<8x1152xf32> to vector<8x1151xf32>
    %162 = vector.extract_strided_slice %4 {offsets = [0, 0], sizes = [8, 1], strides = [1, 1]} : vector<8x1152xf32> to vector<8x1xf32>
    %163 = tpu.concatenate %161, %162 in 1 : vector<8x1151xf32>, vector<8x1xf32> -> vector<8x1152xf32>
    %164 = vector.extract_strided_slice %129 {offsets = [0, 5], sizes = [8, 1], strides = [1, 1]} : vector<8x9xf32> to vector<8x1xf32>
    %165 = vector.broadcast %164 : vector<8x1xf32> to vector<8x1152xf32>
    %166 = arith.mulf %163, %165 : vector<8x1152xf32>
    %167 = arith.addf %160, %166 : vector<8x1152xf32>
    %168 = vector.extract_strided_slice %4 {offsets = [0, 23], sizes = [8, 1129], strides = [1, 1]} : vector<8x1152xf32> to vector<8x1129xf32>
    %169 = vector.extract_strided_slice %4 {offsets = [0, 0], sizes = [8, 23], strides = [1, 1]} : vector<8x1152xf32> to vector<8x23xf32>
    %170 = tpu.concatenate %168, %169 in 1 : vector<8x1129xf32>, vector<8x23xf32> -> vector<8x1152xf32>
    %171 = vector.extract_strided_slice %129 {offsets = [0, 6], sizes = [8, 1], strides = [1, 1]} : vector<8x9xf32> to vector<8x1xf32>
    %172 = vector.broadcast %171 : vector<8x1xf32> to vector<8x1152xf32>
    %173 = arith.mulf %170, %172 : vector<8x1152xf32>
    %174 = arith.addf %167, %173 : vector<8x1152xf32>
    %175 = vector.extract_strided_slice %4 {offsets = [0, 24], sizes = [8, 1128], strides = [1, 1]} : vector<8x1152xf32> to vector<8x1128xf32>
    %176 = vector.extract_strided_slice %4 {offsets = [0, 0], sizes = [8, 24], strides = [1, 1]} : vector<8x1152xf32> to vector<8x24xf32>
    %177 = tpu.concatenate %175, %176 in 1 : vector<8x1128xf32>, vector<8x24xf32> -> vector<8x1152xf32>
    %178 = vector.extract_strided_slice %129 {offsets = [0, 7], sizes = [8, 1], strides = [1, 1]} : vector<8x9xf32> to vector<8x1xf32>
    %179 = vector.broadcast %178 : vector<8x1xf32> to vector<8x1152xf32>
    %180 = arith.mulf %177, %179 : vector<8x1152xf32>
    %181 = arith.addf %174, %180 : vector<8x1152xf32>
    %182 = vector.extract_strided_slice %4 {offsets = [0, 25], sizes = [8, 1127], strides = [1, 1]} : vector<8x1152xf32> to vector<8x1127xf32>
    %183 = vector.extract_strided_slice %4 {offsets = [0, 0], sizes = [8, 25], strides = [1, 1]} : vector<8x1152xf32> to vector<8x25xf32>
    %184 = tpu.concatenate %182, %183 in 1 : vector<8x1127xf32>, vector<8x25xf32> -> vector<8x1152xf32>
    %185 = vector.extract_strided_slice %129 {offsets = [0, 8], sizes = [8, 1], strides = [1, 1]} : vector<8x9xf32> to vector<8x1xf32>
    %186 = vector.broadcast %185 : vector<8x1xf32> to vector<8x1152xf32>
    %187 = arith.mulf %184, %186 : vector<8x1152xf32>
    %188 = arith.addf %181, %187 : vector<8x1152xf32>
    %c0_19 = arith.constant 0 : index
    %c0_20 = arith.constant 0 : index
    %189 = vector.load %arg4[%c0_19, %c0_20] : memref<8x8xf32, #tpu.memory_space<vmem>>, vector<8x8xf32>
    %cst_21 = arith.constant dense<0.000000e+00> : vector<8x1152xf32>
    %190 = tpu.matmul %189, %188, %cst_21 {dimension_numbers = #tpu.dot_dimension_numbers<[1], [0], [0], [1], [0, 0, 1, 1], [], []>} : vector<8x8xf32>, vector<8x1152xf32>, vector<8x1152xf32> -> vector<8x1152xf32>
    %191 = vector.broadcast %1 : vector<1x1152xf32> to vector<8x1152xf32>
    %192 = arith.mulf %190, %191 : vector<8x1152xf32>
    %cst_22 = arith.constant dense<0.000000e+00> : vector<8xf32>
    %193 = vector.multi_reduction <add>, %192, %cst_22 [1] : vector<8x1152xf32> to vector<8xf32>
    %194 = vector.shape_cast %193 : vector<8xf32> to vector<8x1xf32>
    %cst_23 = arith.constant 0.001953125 : f32
    %195 = vector.broadcast %cst_23 : f32 to vector<8x1xf32>
    %196 = arith.mulf %194, %195 : vector<8x1xf32>
    %197 = vector.broadcast %196 : vector<8x1xf32> to vector<8x1152xf32>
    %198 = arith.subf %190, %197 : vector<8x1152xf32>
    %199 = vector.broadcast %1 : vector<1x1152xf32> to vector<8x1152xf32>
    %200 = arith.mulf %198, %199 : vector<8x1152xf32>
    %201 = arith.mulf %200, %200 : vector<8x1152xf32>
    %cst_24 = arith.constant dense<0.000000e+00> : vector<8xf32>
    %202 = vector.multi_reduction <add>, %201, %cst_24 [1] : vector<8x1152xf32> to vector<8xf32>
    %203 = vector.shape_cast %202 : vector<8xf32> to vector<8x1xf32>
    %cst_25 = arith.constant 0.001953125 : f32
    %204 = vector.broadcast %cst_25 : f32 to vector<8x1xf32>
    %205 = arith.mulf %203, %204 : vector<8x1xf32>
    %cst_26 = arith.constant 9.99999974E-6 : f32
    %206 = vector.broadcast %cst_26 : f32 to vector<8x1xf32>
    %207 = arith.addf %205, %206 : vector<8x1xf32>
    %208 = math.rsqrt %207 : vector<8x1xf32>
    %209 = vector.broadcast %208 : vector<8x1xf32> to vector<8x1152xf32>
    %210 = arith.mulf %198, %209 : vector<8x1152xf32>
    %211 = vector.broadcast %1 : vector<1x1152xf32> to vector<8x1152xf32>
    %212 = arith.mulf %210, %211 : vector<8x1152xf32>
    %cst_27 = arith.constant 0.000000e+00 : f32
    %213 = vector.broadcast %cst_27 : f32 to vector<8x1152xf32>
    %214 = arith.maximumf %212, %213 : vector<8x1152xf32>
    %c0_28 = arith.constant 0 : index
    %c0_29 = arith.constant 0 : index
    %215 = vector.load %arg5[%c0_28, %c0_29] : memref<8x9xf32, #tpu.memory_space<vmem>>, vector<8x9xf32>
    %216 = vector.extract_strided_slice %214 {offsets = [0, 1127], sizes = [8, 25], strides = [1, 1]} : vector<8x1152xf32> to vector<8x25xf32>
    %217 = vector.extract_strided_slice %214 {offsets = [0, 0], sizes = [8, 1127], strides = [1, 1]} : vector<8x1152xf32> to vector<8x1127xf32>
    %218 = tpu.concatenate %216, %217 in 1 : vector<8x25xf32>, vector<8x1127xf32> -> vector<8x1152xf32>
    %219 = vector.extract_strided_slice %215 {offsets = [0, 0], sizes = [8, 1], strides = [1, 1]} : vector<8x9xf32> to vector<8x1xf32>
    %220 = vector.broadcast %219 : vector<8x1xf32> to vector<8x1152xf32>
    %221 = arith.mulf %218, %220 : vector<8x1152xf32>
    %222 = vector.extract_strided_slice %214 {offsets = [0, 1128], sizes = [8, 24], strides = [1, 1]} : vector<8x1152xf32> to vector<8x24xf32>
    %223 = vector.extract_strided_slice %214 {offsets = [0, 0], sizes = [8, 1128], strides = [1, 1]} : vector<8x1152xf32> to vector<8x1128xf32>
    %224 = tpu.concatenate %222, %223 in 1 : vector<8x24xf32>, vector<8x1128xf32> -> vector<8x1152xf32>
    %225 = vector.extract_strided_slice %215 {offsets = [0, 1], sizes = [8, 1], strides = [1, 1]} : vector<8x9xf32> to vector<8x1xf32>
    %226 = vector.broadcast %225 : vector<8x1xf32> to vector<8x1152xf32>
    %227 = arith.mulf %224, %226 : vector<8x1152xf32>
    %228 = arith.addf %221, %227 : vector<8x1152xf32>
    %229 = vector.extract_strided_slice %214 {offsets = [0, 1129], sizes = [8, 23], strides = [1, 1]} : vector<8x1152xf32> to vector<8x23xf32>
    %230 = vector.extract_strided_slice %214 {offsets = [0, 0], sizes = [8, 1129], strides = [1, 1]} : vector<8x1152xf32> to vector<8x1129xf32>
    %231 = tpu.concatenate %229, %230 in 1 : vector<8x23xf32>, vector<8x1129xf32> -> vector<8x1152xf32>
    %232 = vector.extract_strided_slice %215 {offsets = [0, 2], sizes = [8, 1], strides = [1, 1]} : vector<8x9xf32> to vector<8x1xf32>
    %233 = vector.broadcast %232 : vector<8x1xf32> to vector<8x1152xf32>
    %234 = arith.mulf %231, %233 : vector<8x1152xf32>
    %235 = arith.addf %228, %234 : vector<8x1152xf32>
    %236 = vector.extract_strided_slice %214 {offsets = [0, 1151], sizes = [8, 1], strides = [1, 1]} : vector<8x1152xf32> to vector<8x1xf32>
    %237 = vector.extract_strided_slice %214 {offsets = [0, 0], sizes = [8, 1151], strides = [1, 1]} : vector<8x1152xf32> to vector<8x1151xf32>
    %238 = tpu.concatenate %236, %237 in 1 : vector<8x1xf32>, vector<8x1151xf32> -> vector<8x1152xf32>
    %239 = vector.extract_strided_slice %215 {offsets = [0, 3], sizes = [8, 1], strides = [1, 1]} : vector<8x9xf32> to vector<8x1xf32>
    %240 = vector.broadcast %239 : vector<8x1xf32> to vector<8x1152xf32>
    %241 = arith.mulf %238, %240 : vector<8x1152xf32>
    %242 = arith.addf %235, %241 : vector<8x1152xf32>
    %243 = vector.extract_strided_slice %215 {offsets = [0, 4], sizes = [8, 1], strides = [1, 1]} : vector<8x9xf32> to vector<8x1xf32>
    %244 = vector.broadcast %243 : vector<8x1xf32> to vector<8x1152xf32>
    %245 = arith.mulf %214, %244 : vector<8x1152xf32>
    %246 = arith.addf %242, %245 : vector<8x1152xf32>
    %247 = vector.extract_strided_slice %214 {offsets = [0, 1], sizes = [8, 1151], strides = [1, 1]} : vector<8x1152xf32> to vector<8x1151xf32>
    %248 = vector.extract_strided_slice %214 {offsets = [0, 0], sizes = [8, 1], strides = [1, 1]} : vector<8x1152xf32> to vector<8x1xf32>
    %249 = tpu.concatenate %247, %248 in 1 : vector<8x1151xf32>, vector<8x1xf32> -> vector<8x1152xf32>
    %250 = vector.extract_strided_slice %215 {offsets = [0, 5], sizes = [8, 1], strides = [1, 1]} : vector<8x9xf32> to vector<8x1xf32>
    %251 = vector.broadcast %250 : vector<8x1xf32> to vector<8x1152xf32>
    %252 = arith.mulf %249, %251 : vector<8x1152xf32>
    %253 = arith.addf %246, %252 : vector<8x1152xf32>
    %254 = vector.extract_strided_slice %214 {offsets = [0, 23], sizes = [8, 1129], strides = [1, 1]} : vector<8x1152xf32> to vector<8x1129xf32>
    %255 = vector.extract_strided_slice %214 {offsets = [0, 0], sizes = [8, 23], strides = [1, 1]} : vector<8x1152xf32> to vector<8x23xf32>
    %256 = tpu.concatenate %254, %255 in 1 : vector<8x1129xf32>, vector<8x23xf32> -> vector<8x1152xf32>
    %257 = vector.extract_strided_slice %215 {offsets = [0, 6], sizes = [8, 1], strides = [1, 1]} : vector<8x9xf32> to vector<8x1xf32>
    %258 = vector.broadcast %257 : vector<8x1xf32> to vector<8x1152xf32>
    %259 = arith.mulf %256, %258 : vector<8x1152xf32>
    %260 = arith.addf %253, %259 : vector<8x1152xf32>
    %261 = vector.extract_strided_slice %214 {offsets = [0, 24], sizes = [8, 1128], strides = [1, 1]} : vector<8x1152xf32> to vector<8x1128xf32>
    %262 = vector.extract_strided_slice %214 {offsets = [0, 0], sizes = [8, 24], strides = [1, 1]} : vector<8x1152xf32> to vector<8x24xf32>
    %263 = tpu.concatenate %261, %262 in 1 : vector<8x1128xf32>, vector<8x24xf32> -> vector<8x1152xf32>
    %264 = vector.extract_strided_slice %215 {offsets = [0, 7], sizes = [8, 1], strides = [1, 1]} : vector<8x9xf32> to vector<8x1xf32>
    %265 = vector.broadcast %264 : vector<8x1xf32> to vector<8x1152xf32>
    %266 = arith.mulf %263, %265 : vector<8x1152xf32>
    %267 = arith.addf %260, %266 : vector<8x1152xf32>
    %268 = vector.extract_strided_slice %214 {offsets = [0, 25], sizes = [8, 1127], strides = [1, 1]} : vector<8x1152xf32> to vector<8x1127xf32>
    %269 = vector.extract_strided_slice %214 {offsets = [0, 0], sizes = [8, 25], strides = [1, 1]} : vector<8x1152xf32> to vector<8x25xf32>
    %270 = tpu.concatenate %268, %269 in 1 : vector<8x1127xf32>, vector<8x25xf32> -> vector<8x1152xf32>
    %271 = vector.extract_strided_slice %215 {offsets = [0, 8], sizes = [8, 1], strides = [1, 1]} : vector<8x9xf32> to vector<8x1xf32>
    %272 = vector.broadcast %271 : vector<8x1xf32> to vector<8x1152xf32>
    %273 = arith.mulf %270, %272 : vector<8x1152xf32>
    %274 = arith.addf %267, %273 : vector<8x1152xf32>
    %c0_30 = arith.constant 0 : index
    %c0_31 = arith.constant 0 : index
    %275 = vector.load %arg6[%c0_30, %c0_31] : memref<8x8xf32, #tpu.memory_space<vmem>>, vector<8x8xf32>
    %cst_32 = arith.constant dense<0.000000e+00> : vector<8x1152xf32>
    %276 = tpu.matmul %275, %274, %cst_32 {dimension_numbers = #tpu.dot_dimension_numbers<[1], [0], [0], [1], [0, 0, 1, 1], [], []>} : vector<8x8xf32>, vector<8x1152xf32>, vector<8x1152xf32> -> vector<8x1152xf32>
    %277 = vector.broadcast %1 : vector<1x1152xf32> to vector<8x1152xf32>
    %278 = arith.mulf %276, %277 : vector<8x1152xf32>
    %cst_33 = arith.constant dense<0.000000e+00> : vector<8xf32>
    %279 = vector.multi_reduction <add>, %278, %cst_33 [1] : vector<8x1152xf32> to vector<8xf32>
    %280 = vector.shape_cast %279 : vector<8xf32> to vector<8x1xf32>
    %cst_34 = arith.constant 0.001953125 : f32
    %281 = vector.broadcast %cst_34 : f32 to vector<8x1xf32>
    %282 = arith.mulf %280, %281 : vector<8x1xf32>
    %283 = vector.broadcast %282 : vector<8x1xf32> to vector<8x1152xf32>
    %284 = arith.subf %276, %283 : vector<8x1152xf32>
    %285 = vector.broadcast %1 : vector<1x1152xf32> to vector<8x1152xf32>
    %286 = arith.mulf %284, %285 : vector<8x1152xf32>
    %287 = arith.mulf %286, %286 : vector<8x1152xf32>
    %cst_35 = arith.constant dense<0.000000e+00> : vector<8xf32>
    %288 = vector.multi_reduction <add>, %287, %cst_35 [1] : vector<8x1152xf32> to vector<8xf32>
    %289 = vector.shape_cast %288 : vector<8xf32> to vector<8x1xf32>
    %cst_36 = arith.constant 0.001953125 : f32
    %290 = vector.broadcast %cst_36 : f32 to vector<8x1xf32>
    %291 = arith.mulf %289, %290 : vector<8x1xf32>
    %cst_37 = arith.constant 9.99999974E-6 : f32
    %292 = vector.broadcast %cst_37 : f32 to vector<8x1xf32>
    %293 = arith.addf %291, %292 : vector<8x1xf32>
    %294 = math.rsqrt %293 : vector<8x1xf32>
    %295 = vector.broadcast %294 : vector<8x1xf32> to vector<8x1152xf32>
    %296 = arith.mulf %284, %295 : vector<8x1152xf32>
    %297 = vector.broadcast %128 : f32 to vector<8x1152xf32>
    %298 = arith.mulf %297, %296 : vector<8x1152xf32>
    %299 = arith.addf %127, %298 : vector<8x1152xf32>
    %c5 = arith.constant 5 : index
    %300 = memref.load %arg0[%c5] : memref<8xf32, #tpu.memory_space<smem>>
    %c0_38 = arith.constant 0 : index
    %c0_39 = arith.constant 0 : index
    %301 = vector.load %arg7[%c0_38, %c0_39] : memref<8x25xf32, #tpu.memory_space<vmem>>, vector<8x25xf32>
    %302 = vector.extract_strided_slice %4 {offsets = [0, 1102], sizes = [8, 50], strides = [1, 1]} : vector<8x1152xf32> to vector<8x50xf32>
    %303 = vector.extract_strided_slice %4 {offsets = [0, 0], sizes = [8, 1102], strides = [1, 1]} : vector<8x1152xf32> to vector<8x1102xf32>
    %304 = tpu.concatenate %302, %303 in 1 : vector<8x50xf32>, vector<8x1102xf32> -> vector<8x1152xf32>
    %305 = vector.extract_strided_slice %301 {offsets = [0, 0], sizes = [8, 1], strides = [1, 1]} : vector<8x25xf32> to vector<8x1xf32>
    %306 = vector.broadcast %305 : vector<8x1xf32> to vector<8x1152xf32>
    %307 = arith.mulf %304, %306 : vector<8x1152xf32>
    %308 = vector.extract_strided_slice %4 {offsets = [0, 1103], sizes = [8, 49], strides = [1, 1]} : vector<8x1152xf32> to vector<8x49xf32>
    %309 = vector.extract_strided_slice %4 {offsets = [0, 0], sizes = [8, 1103], strides = [1, 1]} : vector<8x1152xf32> to vector<8x1103xf32>
    %310 = tpu.concatenate %308, %309 in 1 : vector<8x49xf32>, vector<8x1103xf32> -> vector<8x1152xf32>
    %311 = vector.extract_strided_slice %301 {offsets = [0, 1], sizes = [8, 1], strides = [1, 1]} : vector<8x25xf32> to vector<8x1xf32>
    %312 = vector.broadcast %311 : vector<8x1xf32> to vector<8x1152xf32>
    %313 = arith.mulf %310, %312 : vector<8x1152xf32>
    %314 = arith.addf %307, %313 : vector<8x1152xf32>
    %315 = vector.extract_strided_slice %4 {offsets = [0, 1104], sizes = [8, 48], strides = [1, 1]} : vector<8x1152xf32> to vector<8x48xf32>
    %316 = vector.extract_strided_slice %4 {offsets = [0, 0], sizes = [8, 1104], strides = [1, 1]} : vector<8x1152xf32> to vector<8x1104xf32>
    %317 = tpu.concatenate %315, %316 in 1 : vector<8x48xf32>, vector<8x1104xf32> -> vector<8x1152xf32>
    %318 = vector.extract_strided_slice %301 {offsets = [0, 2], sizes = [8, 1], strides = [1, 1]} : vector<8x25xf32> to vector<8x1xf32>
    %319 = vector.broadcast %318 : vector<8x1xf32> to vector<8x1152xf32>
    %320 = arith.mulf %317, %319 : vector<8x1152xf32>
    %321 = arith.addf %314, %320 : vector<8x1152xf32>
    %322 = vector.extract_strided_slice %4 {offsets = [0, 1105], sizes = [8, 47], strides = [1, 1]} : vector<8x1152xf32> to vector<8x47xf32>
    %323 = vector.extract_strided_slice %4 {offsets = [0, 0], sizes = [8, 1105], strides = [1, 1]} : vector<8x1152xf32> to vector<8x1105xf32>
    %324 = tpu.concatenate %322, %323 in 1 : vector<8x47xf32>, vector<8x1105xf32> -> vector<8x1152xf32>
    %325 = vector.extract_strided_slice %301 {offsets = [0, 3], sizes = [8, 1], strides = [1, 1]} : vector<8x25xf32> to vector<8x1xf32>
    %326 = vector.broadcast %325 : vector<8x1xf32> to vector<8x1152xf32>
    %327 = arith.mulf %324, %326 : vector<8x1152xf32>
    %328 = arith.addf %321, %327 : vector<8x1152xf32>
    %329 = vector.extract_strided_slice %4 {offsets = [0, 1106], sizes = [8, 46], strides = [1, 1]} : vector<8x1152xf32> to vector<8x46xf32>
    %330 = vector.extract_strided_slice %4 {offsets = [0, 0], sizes = [8, 1106], strides = [1, 1]} : vector<8x1152xf32> to vector<8x1106xf32>
    %331 = tpu.concatenate %329, %330 in 1 : vector<8x46xf32>, vector<8x1106xf32> -> vector<8x1152xf32>
    %332 = vector.extract_strided_slice %301 {offsets = [0, 4], sizes = [8, 1], strides = [1, 1]} : vector<8x25xf32> to vector<8x1xf32>
    %333 = vector.broadcast %332 : vector<8x1xf32> to vector<8x1152xf32>
    %334 = arith.mulf %331, %333 : vector<8x1152xf32>
    %335 = arith.addf %328, %334 : vector<8x1152xf32>
    %336 = vector.extract_strided_slice %4 {offsets = [0, 1126], sizes = [8, 26], strides = [1, 1]} : vector<8x1152xf32> to vector<8x26xf32>
    %337 = vector.extract_strided_slice %4 {offsets = [0, 0], sizes = [8, 1126], strides = [1, 1]} : vector<8x1152xf32> to vector<8x1126xf32>
    %338 = tpu.concatenate %336, %337 in 1 : vector<8x26xf32>, vector<8x1126xf32> -> vector<8x1152xf32>
    %339 = vector.extract_strided_slice %301 {offsets = [0, 5], sizes = [8, 1], strides = [1, 1]} : vector<8x25xf32> to vector<8x1xf32>
    %340 = vector.broadcast %339 : vector<8x1xf32> to vector<8x1152xf32>
    %341 = arith.mulf %338, %340 : vector<8x1152xf32>
    %342 = arith.addf %335, %341 : vector<8x1152xf32>
    %343 = vector.extract_strided_slice %4 {offsets = [0, 1127], sizes = [8, 25], strides = [1, 1]} : vector<8x1152xf32> to vector<8x25xf32>
    %344 = vector.extract_strided_slice %4 {offsets = [0, 0], sizes = [8, 1127], strides = [1, 1]} : vector<8x1152xf32> to vector<8x1127xf32>
    %345 = tpu.concatenate %343, %344 in 1 : vector<8x25xf32>, vector<8x1127xf32> -> vector<8x1152xf32>
    %346 = vector.extract_strided_slice %301 {offsets = [0, 6], sizes = [8, 1], strides = [1, 1]} : vector<8x25xf32> to vector<8x1xf32>
    %347 = vector.broadcast %346 : vector<8x1xf32> to vector<8x1152xf32>
    %348 = arith.mulf %345, %347 : vector<8x1152xf32>
    %349 = arith.addf %342, %348 : vector<8x1152xf32>
    %350 = vector.extract_strided_slice %4 {offsets = [0, 1128], sizes = [8, 24], strides = [1, 1]} : vector<8x1152xf32> to vector<8x24xf32>
    %351 = vector.extract_strided_slice %4 {offsets = [0, 0], sizes = [8, 1128], strides = [1, 1]} : vector<8x1152xf32> to vector<8x1128xf32>
    %352 = tpu.concatenate %350, %351 in 1 : vector<8x24xf32>, vector<8x1128xf32> -> vector<8x1152xf32>
    %353 = vector.extract_strided_slice %301 {offsets = [0, 7], sizes = [8, 1], strides = [1, 1]} : vector<8x25xf32> to vector<8x1xf32>
    %354 = vector.broadcast %353 : vector<8x1xf32> to vector<8x1152xf32>
    %355 = arith.mulf %352, %354 : vector<8x1152xf32>
    %356 = arith.addf %349, %355 : vector<8x1152xf32>
    %357 = vector.extract_strided_slice %4 {offsets = [0, 1129], sizes = [8, 23], strides = [1, 1]} : vector<8x1152xf32> to vector<8x23xf32>
    %358 = vector.extract_strided_slice %4 {offsets = [0, 0], sizes = [8, 1129], strides = [1, 1]} : vector<8x1152xf32> to vector<8x1129xf32>
    %359 = tpu.concatenate %357, %358 in 1 : vector<8x23xf32>, vector<8x1129xf32> -> vector<8x1152xf32>
    %360 = vector.extract_strided_slice %301 {offsets = [0, 8], sizes = [8, 1], strides = [1, 1]} : vector<8x25xf32> to vector<8x1xf32>
    %361 = vector.broadcast %360 : vector<8x1xf32> to vector<8x1152xf32>
    %362 = arith.mulf %359, %361 : vector<8x1152xf32>
    %363 = arith.addf %356, %362 : vector<8x1152xf32>
    %364 = vector.extract_strided_slice %4 {offsets = [0, 1130], sizes = [8, 22], strides = [1, 1]} : vector<8x1152xf32> to vector<8x22xf32>
    %365 = vector.extract_strided_slice %4 {offsets = [0, 0], sizes = [8, 1130], strides = [1, 1]} : vector<8x1152xf32> to vector<8x1130xf32>
    %366 = tpu.concatenate %364, %365 in 1 : vector<8x22xf32>, vector<8x1130xf32> -> vector<8x1152xf32>
    %367 = vector.extract_strided_slice %301 {offsets = [0, 9], sizes = [8, 1], strides = [1, 1]} : vector<8x25xf32> to vector<8x1xf32>
    %368 = vector.broadcast %367 : vector<8x1xf32> to vector<8x1152xf32>
    %369 = arith.mulf %366, %368 : vector<8x1152xf32>
    %370 = arith.addf %363, %369 : vector<8x1152xf32>
    %371 = vector.extract_strided_slice %4 {offsets = [0, 1150], sizes = [8, 2], strides = [1, 1]} : vector<8x1152xf32> to vector<8x2xf32>
    %372 = vector.extract_strided_slice %4 {offsets = [0, 0], sizes = [8, 1150], strides = [1, 1]} : vector<8x1152xf32> to vector<8x1150xf32>
    %373 = tpu.concatenate %371, %372 in 1 : vector<8x2xf32>, vector<8x1150xf32> -> vector<8x1152xf32>
    %374 = vector.extract_strided_slice %301 {offsets = [0, 10], sizes = [8, 1], strides = [1, 1]} : vector<8x25xf32> to vector<8x1xf32>
    %375 = vector.broadcast %374 : vector<8x1xf32> to vector<8x1152xf32>
    %376 = arith.mulf %373, %375 : vector<8x1152xf32>
    %377 = arith.addf %370, %376 : vector<8x1152xf32>
    %378 = vector.extract_strided_slice %4 {offsets = [0, 1151], sizes = [8, 1], strides = [1, 1]} : vector<8x1152xf32> to vector<8x1xf32>
    %379 = vector.extract_strided_slice %4 {offsets = [0, 0], sizes = [8, 1151], strides = [1, 1]} : vector<8x1152xf32> to vector<8x1151xf32>
    %380 = tpu.concatenate %378, %379 in 1 : vector<8x1xf32>, vector<8x1151xf32> -> vector<8x1152xf32>
    %381 = vector.extract_strided_slice %301 {offsets = [0, 11], sizes = [8, 1], strides = [1, 1]} : vector<8x25xf32> to vector<8x1xf32>
    %382 = vector.broadcast %381 : vector<8x1xf32> to vector<8x1152xf32>
    %383 = arith.mulf %380, %382 : vector<8x1152xf32>
    %384 = arith.addf %377, %383 : vector<8x1152xf32>
    %385 = vector.extract_strided_slice %301 {offsets = [0, 12], sizes = [8, 1], strides = [1, 1]} : vector<8x25xf32> to vector<8x1xf32>
    %386 = vector.broadcast %385 : vector<8x1xf32> to vector<8x1152xf32>
    %387 = arith.mulf %4, %386 : vector<8x1152xf32>
    %388 = arith.addf %384, %387 : vector<8x1152xf32>
    %389 = vector.extract_strided_slice %4 {offsets = [0, 1], sizes = [8, 1151], strides = [1, 1]} : vector<8x1152xf32> to vector<8x1151xf32>
    %390 = vector.extract_strided_slice %4 {offsets = [0, 0], sizes = [8, 1], strides = [1, 1]} : vector<8x1152xf32> to vector<8x1xf32>
    %391 = tpu.concatenate %389, %390 in 1 : vector<8x1151xf32>, vector<8x1xf32> -> vector<8x1152xf32>
    %392 = vector.extract_strided_slice %301 {offsets = [0, 13], sizes = [8, 1], strides = [1, 1]} : vector<8x25xf32> to vector<8x1xf32>
    %393 = vector.broadcast %392 : vector<8x1xf32> to vector<8x1152xf32>
    %394 = arith.mulf %391, %393 : vector<8x1152xf32>
    %395 = arith.addf %388, %394 : vector<8x1152xf32>
    %396 = vector.extract_strided_slice %4 {offsets = [0, 2], sizes = [8, 1150], strides = [1, 1]} : vector<8x1152xf32> to vector<8x1150xf32>
    %397 = vector.extract_strided_slice %4 {offsets = [0, 0], sizes = [8, 2], strides = [1, 1]} : vector<8x1152xf32> to vector<8x2xf32>
    %398 = tpu.concatenate %396, %397 in 1 : vector<8x1150xf32>, vector<8x2xf32> -> vector<8x1152xf32>
    %399 = vector.extract_strided_slice %301 {offsets = [0, 14], sizes = [8, 1], strides = [1, 1]} : vector<8x25xf32> to vector<8x1xf32>
    %400 = vector.broadcast %399 : vector<8x1xf32> to vector<8x1152xf32>
    %401 = arith.mulf %398, %400 : vector<8x1152xf32>
    %402 = arith.addf %395, %401 : vector<8x1152xf32>
    %403 = vector.extract_strided_slice %4 {offsets = [0, 22], sizes = [8, 1130], strides = [1, 1]} : vector<8x1152xf32> to vector<8x1130xf32>
    %404 = vector.extract_strided_slice %4 {offsets = [0, 0], sizes = [8, 22], strides = [1, 1]} : vector<8x1152xf32> to vector<8x22xf32>
    %405 = tpu.concatenate %403, %404 in 1 : vector<8x1130xf32>, vector<8x22xf32> -> vector<8x1152xf32>
    %406 = vector.extract_strided_slice %301 {offsets = [0, 15], sizes = [8, 1], strides = [1, 1]} : vector<8x25xf32> to vector<8x1xf32>
    %407 = vector.broadcast %406 : vector<8x1xf32> to vector<8x1152xf32>
    %408 = arith.mulf %405, %407 : vector<8x1152xf32>
    %409 = arith.addf %402, %408 : vector<8x1152xf32>
    %410 = vector.extract_strided_slice %4 {offsets = [0, 23], sizes = [8, 1129], strides = [1, 1]} : vector<8x1152xf32> to vector<8x1129xf32>
    %411 = vector.extract_strided_slice %4 {offsets = [0, 0], sizes = [8, 23], strides = [1, 1]} : vector<8x1152xf32> to vector<8x23xf32>
    %412 = tpu.concatenate %410, %411 in 1 : vector<8x1129xf32>, vector<8x23xf32> -> vector<8x1152xf32>
    %413 = vector.extract_strided_slice %301 {offsets = [0, 16], sizes = [8, 1], strides = [1, 1]} : vector<8x25xf32> to vector<8x1xf32>
    %414 = vector.broadcast %413 : vector<8x1xf32> to vector<8x1152xf32>
    %415 = arith.mulf %412, %414 : vector<8x1152xf32>
    %416 = arith.addf %409, %415 : vector<8x1152xf32>
    %417 = vector.extract_strided_slice %4 {offsets = [0, 24], sizes = [8, 1128], strides = [1, 1]} : vector<8x1152xf32> to vector<8x1128xf32>
    %418 = vector.extract_strided_slice %4 {offsets = [0, 0], sizes = [8, 24], strides = [1, 1]} : vector<8x1152xf32> to vector<8x24xf32>
    %419 = tpu.concatenate %417, %418 in 1 : vector<8x1128xf32>, vector<8x24xf32> -> vector<8x1152xf32>
    %420 = vector.extract_strided_slice %301 {offsets = [0, 17], sizes = [8, 1], strides = [1, 1]} : vector<8x25xf32> to vector<8x1xf32>
    %421 = vector.broadcast %420 : vector<8x1xf32> to vector<8x1152xf32>
    %422 = arith.mulf %419, %421 : vector<8x1152xf32>
    %423 = arith.addf %416, %422 : vector<8x1152xf32>
    %424 = vector.extract_strided_slice %4 {offsets = [0, 25], sizes = [8, 1127], strides = [1, 1]} : vector<8x1152xf32> to vector<8x1127xf32>
    %425 = vector.extract_strided_slice %4 {offsets = [0, 0], sizes = [8, 25], strides = [1, 1]} : vector<8x1152xf32> to vector<8x25xf32>
    %426 = tpu.concatenate %424, %425 in 1 : vector<8x1127xf32>, vector<8x25xf32> -> vector<8x1152xf32>
    %427 = vector.extract_strided_slice %301 {offsets = [0, 18], sizes = [8, 1], strides = [1, 1]} : vector<8x25xf32> to vector<8x1xf32>
    %428 = vector.broadcast %427 : vector<8x1xf32> to vector<8x1152xf32>
    %429 = arith.mulf %426, %428 : vector<8x1152xf32>
    %430 = arith.addf %423, %429 : vector<8x1152xf32>
    %431 = vector.extract_strided_slice %4 {offsets = [0, 26], sizes = [8, 1126], strides = [1, 1]} : vector<8x1152xf32> to vector<8x1126xf32>
    %432 = vector.extract_strided_slice %4 {offsets = [0, 0], sizes = [8, 26], strides = [1, 1]} : vector<8x1152xf32> to vector<8x26xf32>
    %433 = tpu.concatenate %431, %432 in 1 : vector<8x1126xf32>, vector<8x26xf32> -> vector<8x1152xf32>
    %434 = vector.extract_strided_slice %301 {offsets = [0, 19], sizes = [8, 1], strides = [1, 1]} : vector<8x25xf32> to vector<8x1xf32>
    %435 = vector.broadcast %434 : vector<8x1xf32> to vector<8x1152xf32>
    %436 = arith.mulf %433, %435 : vector<8x1152xf32>
    %437 = arith.addf %430, %436 : vector<8x1152xf32>
    %438 = vector.extract_strided_slice %4 {offsets = [0, 46], sizes = [8, 1106], strides = [1, 1]} : vector<8x1152xf32> to vector<8x1106xf32>
    %439 = vector.extract_strided_slice %4 {offsets = [0, 0], sizes = [8, 46], strides = [1, 1]} : vector<8x1152xf32> to vector<8x46xf32>
    %440 = tpu.concatenate %438, %439 in 1 : vector<8x1106xf32>, vector<8x46xf32> -> vector<8x1152xf32>
    %441 = vector.extract_strided_slice %301 {offsets = [0, 20], sizes = [8, 1], strides = [1, 1]} : vector<8x25xf32> to vector<8x1xf32>
    %442 = vector.broadcast %441 : vector<8x1xf32> to vector<8x1152xf32>
    %443 = arith.mulf %440, %442 : vector<8x1152xf32>
    %444 = arith.addf %437, %443 : vector<8x1152xf32>
    %445 = vector.extract_strided_slice %4 {offsets = [0, 47], sizes = [8, 1105], strides = [1, 1]} : vector<8x1152xf32> to vector<8x1105xf32>
    %446 = vector.extract_strided_slice %4 {offsets = [0, 0], sizes = [8, 47], strides = [1, 1]} : vector<8x1152xf32> to vector<8x47xf32>
    %447 = tpu.concatenate %445, %446 in 1 : vector<8x1105xf32>, vector<8x47xf32> -> vector<8x1152xf32>
    %448 = vector.extract_strided_slice %301 {offsets = [0, 21], sizes = [8, 1], strides = [1, 1]} : vector<8x25xf32> to vector<8x1xf32>
    %449 = vector.broadcast %448 : vector<8x1xf32> to vector<8x1152xf32>
    %450 = arith.mulf %447, %449 : vector<8x1152xf32>
    %451 = arith.addf %444, %450 : vector<8x1152xf32>
    %452 = vector.extract_strided_slice %4 {offsets = [0, 48], sizes = [8, 1104], strides = [1, 1]} : vector<8x1152xf32> to vector<8x1104xf32>
    %453 = vector.extract_strided_slice %4 {offsets = [0, 0], sizes = [8, 48], strides = [1, 1]} : vector<8x1152xf32> to vector<8x48xf32>
    %454 = tpu.concatenate %452, %453 in 1 : vector<8x1104xf32>, vector<8x48xf32> -> vector<8x1152xf32>
    %455 = vector.extract_strided_slice %301 {offsets = [0, 22], sizes = [8, 1], strides = [1, 1]} : vector<8x25xf32> to vector<8x1xf32>
    %456 = vector.broadcast %455 : vector<8x1xf32> to vector<8x1152xf32>
    %457 = arith.mulf %454, %456 : vector<8x1152xf32>
    %458 = arith.addf %451, %457 : vector<8x1152xf32>
    %459 = vector.extract_strided_slice %4 {offsets = [0, 49], sizes = [8, 1103], strides = [1, 1]} : vector<8x1152xf32> to vector<8x1103xf32>
    %460 = vector.extract_strided_slice %4 {offsets = [0, 0], sizes = [8, 49], strides = [1, 1]} : vector<8x1152xf32> to vector<8x49xf32>
    %461 = tpu.concatenate %459, %460 in 1 : vector<8x1103xf32>, vector<8x49xf32> -> vector<8x1152xf32>
    %462 = vector.extract_strided_slice %301 {offsets = [0, 23], sizes = [8, 1], strides = [1, 1]} : vector<8x25xf32> to vector<8x1xf32>
    %463 = vector.broadcast %462 : vector<8x1xf32> to vector<8x1152xf32>
    %464 = arith.mulf %461, %463 : vector<8x1152xf32>
    %465 = arith.addf %458, %464 : vector<8x1152xf32>
    %466 = vector.extract_strided_slice %4 {offsets = [0, 50], sizes = [8, 1102], strides = [1, 1]} : vector<8x1152xf32> to vector<8x1102xf32>
    %467 = vector.extract_strided_slice %4 {offsets = [0, 0], sizes = [8, 50], strides = [1, 1]} : vector<8x1152xf32> to vector<8x50xf32>
    %468 = tpu.concatenate %466, %467 in 1 : vector<8x1102xf32>, vector<8x50xf32> -> vector<8x1152xf32>
    %469 = vector.extract_strided_slice %301 {offsets = [0, 24], sizes = [8, 1], strides = [1, 1]} : vector<8x25xf32> to vector<8x1xf32>
    %470 = vector.broadcast %469 : vector<8x1xf32> to vector<8x1152xf32>
    %471 = arith.mulf %468, %470 : vector<8x1152xf32>
    %472 = arith.addf %465, %471 : vector<8x1152xf32>
    %c0_40 = arith.constant 0 : index
    %c0_41 = arith.constant 0 : index
    %473 = vector.load %arg8[%c0_40, %c0_41] : memref<8x8xf32, #tpu.memory_space<vmem>>, vector<8x8xf32>
    %cst_42 = arith.constant dense<0.000000e+00> : vector<8x1152xf32>
    %474 = tpu.matmul %473, %472, %cst_42 {dimension_numbers = #tpu.dot_dimension_numbers<[1], [0], [0], [1], [0, 0, 1, 1], [], []>} : vector<8x8xf32>, vector<8x1152xf32>, vector<8x1152xf32> -> vector<8x1152xf32>
    %475 = vector.broadcast %1 : vector<1x1152xf32> to vector<8x1152xf32>
    %476 = arith.mulf %474, %475 : vector<8x1152xf32>
    %cst_43 = arith.constant dense<0.000000e+00> : vector<8xf32>
    %477 = vector.multi_reduction <add>, %476, %cst_43 [1] : vector<8x1152xf32> to vector<8xf32>
    %478 = vector.shape_cast %477 : vector<8xf32> to vector<8x1xf32>
    %cst_44 = arith.constant 0.001953125 : f32
    %479 = vector.broadcast %cst_44 : f32 to vector<8x1xf32>
    %480 = arith.mulf %478, %479 : vector<8x1xf32>
    %481 = vector.broadcast %480 : vector<8x1xf32> to vector<8x1152xf32>
    %482 = arith.subf %474, %481 : vector<8x1152xf32>
    %483 = vector.broadcast %1 : vector<1x1152xf32> to vector<8x1152xf32>
    %484 = arith.mulf %482, %483 : vector<8x1152xf32>
    %485 = arith.mulf %484, %484 : vector<8x1152xf32>
    %cst_45 = arith.constant dense<0.000000e+00> : vector<8xf32>
    %486 = vector.multi_reduction <add>, %485, %cst_45 [1] : vector<8x1152xf32> to vector<8xf32>
    %487 = vector.shape_cast %486 : vector<8xf32> to vector<8x1xf32>
    %cst_46 = arith.constant 0.001953125 : f32
    %488 = vector.broadcast %cst_46 : f32 to vector<8x1xf32>
    %489 = arith.mulf %487, %488 : vector<8x1xf32>
    %cst_47 = arith.constant 9.99999974E-6 : f32
    %490 = vector.broadcast %cst_47 : f32 to vector<8x1xf32>
    %491 = arith.addf %489, %490 : vector<8x1xf32>
    %492 = math.rsqrt %491 : vector<8x1xf32>
    %493 = vector.broadcast %492 : vector<8x1xf32> to vector<8x1152xf32>
    %494 = arith.mulf %482, %493 : vector<8x1152xf32>
    %495 = vector.broadcast %1 : vector<1x1152xf32> to vector<8x1152xf32>
    %496 = arith.mulf %494, %495 : vector<8x1152xf32>
    %cst_48 = arith.constant 0.000000e+00 : f32
    %497 = vector.broadcast %cst_48 : f32 to vector<8x1152xf32>
    %498 = arith.maximumf %496, %497 : vector<8x1152xf32>
    %c0_49 = arith.constant 0 : index
    %c0_50 = arith.constant 0 : index
    %499 = vector.load %arg9[%c0_49, %c0_50] : memref<8x25xf32, #tpu.memory_space<vmem>>, vector<8x25xf32>
    %500 = vector.extract_strided_slice %498 {offsets = [0, 1102], sizes = [8, 50], strides = [1, 1]} : vector<8x1152xf32> to vector<8x50xf32>
    %501 = vector.extract_strided_slice %498 {offsets = [0, 0], sizes = [8, 1102], strides = [1, 1]} : vector<8x1152xf32> to vector<8x1102xf32>
    %502 = tpu.concatenate %500, %501 in 1 : vector<8x50xf32>, vector<8x1102xf32> -> vector<8x1152xf32>
    %503 = vector.extract_strided_slice %499 {offsets = [0, 0], sizes = [8, 1], strides = [1, 1]} : vector<8x25xf32> to vector<8x1xf32>
    %504 = vector.broadcast %503 : vector<8x1xf32> to vector<8x1152xf32>
    %505 = arith.mulf %502, %504 : vector<8x1152xf32>
    %506 = vector.extract_strided_slice %498 {offsets = [0, 1103], sizes = [8, 49], strides = [1, 1]} : vector<8x1152xf32> to vector<8x49xf32>
    %507 = vector.extract_strided_slice %498 {offsets = [0, 0], sizes = [8, 1103], strides = [1, 1]} : vector<8x1152xf32> to vector<8x1103xf32>
    %508 = tpu.concatenate %506, %507 in 1 : vector<8x49xf32>, vector<8x1103xf32> -> vector<8x1152xf32>
    %509 = vector.extract_strided_slice %499 {offsets = [0, 1], sizes = [8, 1], strides = [1, 1]} : vector<8x25xf32> to vector<8x1xf32>
    %510 = vector.broadcast %509 : vector<8x1xf32> to vector<8x1152xf32>
    %511 = arith.mulf %508, %510 : vector<8x1152xf32>
    %512 = arith.addf %505, %511 : vector<8x1152xf32>
    %513 = vector.extract_strided_slice %498 {offsets = [0, 1104], sizes = [8, 48], strides = [1, 1]} : vector<8x1152xf32> to vector<8x48xf32>
    %514 = vector.extract_strided_slice %498 {offsets = [0, 0], sizes = [8, 1104], strides = [1, 1]} : vector<8x1152xf32> to vector<8x1104xf32>
    %515 = tpu.concatenate %513, %514 in 1 : vector<8x48xf32>, vector<8x1104xf32> -> vector<8x1152xf32>
    %516 = vector.extract_strided_slice %499 {offsets = [0, 2], sizes = [8, 1], strides = [1, 1]} : vector<8x25xf32> to vector<8x1xf32>
    %517 = vector.broadcast %516 : vector<8x1xf32> to vector<8x1152xf32>
    %518 = arith.mulf %515, %517 : vector<8x1152xf32>
    %519 = arith.addf %512, %518 : vector<8x1152xf32>
    %520 = vector.extract_strided_slice %498 {offsets = [0, 1105], sizes = [8, 47], strides = [1, 1]} : vector<8x1152xf32> to vector<8x47xf32>
    %521 = vector.extract_strided_slice %498 {offsets = [0, 0], sizes = [8, 1105], strides = [1, 1]} : vector<8x1152xf32> to vector<8x1105xf32>
    %522 = tpu.concatenate %520, %521 in 1 : vector<8x47xf32>, vector<8x1105xf32> -> vector<8x1152xf32>
    %523 = vector.extract_strided_slice %499 {offsets = [0, 3], sizes = [8, 1], strides = [1, 1]} : vector<8x25xf32> to vector<8x1xf32>
    %524 = vector.broadcast %523 : vector<8x1xf32> to vector<8x1152xf32>
    %525 = arith.mulf %522, %524 : vector<8x1152xf32>
    %526 = arith.addf %519, %525 : vector<8x1152xf32>
    %527 = vector.extract_strided_slice %498 {offsets = [0, 1106], sizes = [8, 46], strides = [1, 1]} : vector<8x1152xf32> to vector<8x46xf32>
    %528 = vector.extract_strided_slice %498 {offsets = [0, 0], sizes = [8, 1106], strides = [1, 1]} : vector<8x1152xf32> to vector<8x1106xf32>
    %529 = tpu.concatenate %527, %528 in 1 : vector<8x46xf32>, vector<8x1106xf32> -> vector<8x1152xf32>
    %530 = vector.extract_strided_slice %499 {offsets = [0, 4], sizes = [8, 1], strides = [1, 1]} : vector<8x25xf32> to vector<8x1xf32>
    %531 = vector.broadcast %530 : vector<8x1xf32> to vector<8x1152xf32>
    %532 = arith.mulf %529, %531 : vector<8x1152xf32>
    %533 = arith.addf %526, %532 : vector<8x1152xf32>
    %534 = vector.extract_strided_slice %498 {offsets = [0, 1126], sizes = [8, 26], strides = [1, 1]} : vector<8x1152xf32> to vector<8x26xf32>
    %535 = vector.extract_strided_slice %498 {offsets = [0, 0], sizes = [8, 1126], strides = [1, 1]} : vector<8x1152xf32> to vector<8x1126xf32>
    %536 = tpu.concatenate %534, %535 in 1 : vector<8x26xf32>, vector<8x1126xf32> -> vector<8x1152xf32>
    %537 = vector.extract_strided_slice %499 {offsets = [0, 5], sizes = [8, 1], strides = [1, 1]} : vector<8x25xf32> to vector<8x1xf32>
    %538 = vector.broadcast %537 : vector<8x1xf32> to vector<8x1152xf32>
    %539 = arith.mulf %536, %538 : vector<8x1152xf32>
    %540 = arith.addf %533, %539 : vector<8x1152xf32>
    %541 = vector.extract_strided_slice %498 {offsets = [0, 1127], sizes = [8, 25], strides = [1, 1]} : vector<8x1152xf32> to vector<8x25xf32>
    %542 = vector.extract_strided_slice %498 {offsets = [0, 0], sizes = [8, 1127], strides = [1, 1]} : vector<8x1152xf32> to vector<8x1127xf32>
    %543 = tpu.concatenate %541, %542 in 1 : vector<8x25xf32>, vector<8x1127xf32> -> vector<8x1152xf32>
    %544 = vector.extract_strided_slice %499 {offsets = [0, 6], sizes = [8, 1], strides = [1, 1]} : vector<8x25xf32> to vector<8x1xf32>
    %545 = vector.broadcast %544 : vector<8x1xf32> to vector<8x1152xf32>
    %546 = arith.mulf %543, %545 : vector<8x1152xf32>
    %547 = arith.addf %540, %546 : vector<8x1152xf32>
    %548 = vector.extract_strided_slice %498 {offsets = [0, 1128], sizes = [8, 24], strides = [1, 1]} : vector<8x1152xf32> to vector<8x24xf32>
    %549 = vector.extract_strided_slice %498 {offsets = [0, 0], sizes = [8, 1128], strides = [1, 1]} : vector<8x1152xf32> to vector<8x1128xf32>
    %550 = tpu.concatenate %548, %549 in 1 : vector<8x24xf32>, vector<8x1128xf32> -> vector<8x1152xf32>
    %551 = vector.extract_strided_slice %499 {offsets = [0, 7], sizes = [8, 1], strides = [1, 1]} : vector<8x25xf32> to vector<8x1xf32>
    %552 = vector.broadcast %551 : vector<8x1xf32> to vector<8x1152xf32>
    %553 = arith.mulf %550, %552 : vector<8x1152xf32>
    %554 = arith.addf %547, %553 : vector<8x1152xf32>
    %555 = vector.extract_strided_slice %498 {offsets = [0, 1129], sizes = [8, 23], strides = [1, 1]} : vector<8x1152xf32> to vector<8x23xf32>
    %556 = vector.extract_strided_slice %498 {offsets = [0, 0], sizes = [8, 1129], strides = [1, 1]} : vector<8x1152xf32> to vector<8x1129xf32>
    %557 = tpu.concatenate %555, %556 in 1 : vector<8x23xf32>, vector<8x1129xf32> -> vector<8x1152xf32>
    %558 = vector.extract_strided_slice %499 {offsets = [0, 8], sizes = [8, 1], strides = [1, 1]} : vector<8x25xf32> to vector<8x1xf32>
    %559 = vector.broadcast %558 : vector<8x1xf32> to vector<8x1152xf32>
    %560 = arith.mulf %557, %559 : vector<8x1152xf32>
    %561 = arith.addf %554, %560 : vector<8x1152xf32>
    %562 = vector.extract_strided_slice %498 {offsets = [0, 1130], sizes = [8, 22], strides = [1, 1]} : vector<8x1152xf32> to vector<8x22xf32>
    %563 = vector.extract_strided_slice %498 {offsets = [0, 0], sizes = [8, 1130], strides = [1, 1]} : vector<8x1152xf32> to vector<8x1130xf32>
    %564 = tpu.concatenate %562, %563 in 1 : vector<8x22xf32>, vector<8x1130xf32> -> vector<8x1152xf32>
    %565 = vector.extract_strided_slice %499 {offsets = [0, 9], sizes = [8, 1], strides = [1, 1]} : vector<8x25xf32> to vector<8x1xf32>
    %566 = vector.broadcast %565 : vector<8x1xf32> to vector<8x1152xf32>
    %567 = arith.mulf %564, %566 : vector<8x1152xf32>
    %568 = arith.addf %561, %567 : vector<8x1152xf32>
    %569 = vector.extract_strided_slice %498 {offsets = [0, 1150], sizes = [8, 2], strides = [1, 1]} : vector<8x1152xf32> to vector<8x2xf32>
    %570 = vector.extract_strided_slice %498 {offsets = [0, 0], sizes = [8, 1150], strides = [1, 1]} : vector<8x1152xf32> to vector<8x1150xf32>
    %571 = tpu.concatenate %569, %570 in 1 : vector<8x2xf32>, vector<8x1150xf32> -> vector<8x1152xf32>
    %572 = vector.extract_strided_slice %499 {offsets = [0, 10], sizes = [8, 1], strides = [1, 1]} : vector<8x25xf32> to vector<8x1xf32>
    %573 = vector.broadcast %572 : vector<8x1xf32> to vector<8x1152xf32>
    %574 = arith.mulf %571, %573 : vector<8x1152xf32>
    %575 = arith.addf %568, %574 : vector<8x1152xf32>
    %576 = vector.extract_strided_slice %498 {offsets = [0, 1151], sizes = [8, 1], strides = [1, 1]} : vector<8x1152xf32> to vector<8x1xf32>
    %577 = vector.extract_strided_slice %498 {offsets = [0, 0], sizes = [8, 1151], strides = [1, 1]} : vector<8x1152xf32> to vector<8x1151xf32>
    %578 = tpu.concatenate %576, %577 in 1 : vector<8x1xf32>, vector<8x1151xf32> -> vector<8x1152xf32>
    %579 = vector.extract_strided_slice %499 {offsets = [0, 11], sizes = [8, 1], strides = [1, 1]} : vector<8x25xf32> to vector<8x1xf32>
    %580 = vector.broadcast %579 : vector<8x1xf32> to vector<8x1152xf32>
    %581 = arith.mulf %578, %580 : vector<8x1152xf32>
    %582 = arith.addf %575, %581 : vector<8x1152xf32>
    %583 = vector.extract_strided_slice %499 {offsets = [0, 12], sizes = [8, 1], strides = [1, 1]} : vector<8x25xf32> to vector<8x1xf32>
    %584 = vector.broadcast %583 : vector<8x1xf32> to vector<8x1152xf32>
    %585 = arith.mulf %498, %584 : vector<8x1152xf32>
    %586 = arith.addf %582, %585 : vector<8x1152xf32>
    %587 = vector.extract_strided_slice %498 {offsets = [0, 1], sizes = [8, 1151], strides = [1, 1]} : vector<8x1152xf32> to vector<8x1151xf32>
    %588 = vector.extract_strided_slice %498 {offsets = [0, 0], sizes = [8, 1], strides = [1, 1]} : vector<8x1152xf32> to vector<8x1xf32>
    %589 = tpu.concatenate %587, %588 in 1 : vector<8x1151xf32>, vector<8x1xf32> -> vector<8x1152xf32>
    %590 = vector.extract_strided_slice %499 {offsets = [0, 13], sizes = [8, 1], strides = [1, 1]} : vector<8x25xf32> to vector<8x1xf32>
    %591 = vector.broadcast %590 : vector<8x1xf32> to vector<8x1152xf32>
    %592 = arith.mulf %589, %591 : vector<8x1152xf32>
    %593 = arith.addf %586, %592 : vector<8x1152xf32>
    %594 = vector.extract_strided_slice %498 {offsets = [0, 2], sizes = [8, 1150], strides = [1, 1]} : vector<8x1152xf32> to vector<8x1150xf32>
    %595 = vector.extract_strided_slice %498 {offsets = [0, 0], sizes = [8, 2], strides = [1, 1]} : vector<8x1152xf32> to vector<8x2xf32>
    %596 = tpu.concatenate %594, %595 in 1 : vector<8x1150xf32>, vector<8x2xf32> -> vector<8x1152xf32>
    %597 = vector.extract_strided_slice %499 {offsets = [0, 14], sizes = [8, 1], strides = [1, 1]} : vector<8x25xf32> to vector<8x1xf32>
    %598 = vector.broadcast %597 : vector<8x1xf32> to vector<8x1152xf32>
    %599 = arith.mulf %596, %598 : vector<8x1152xf32>
    %600 = arith.addf %593, %599 : vector<8x1152xf32>
    %601 = vector.extract_strided_slice %498 {offsets = [0, 22], sizes = [8, 1130], strides = [1, 1]} : vector<8x1152xf32> to vector<8x1130xf32>
    %602 = vector.extract_strided_slice %498 {offsets = [0, 0], sizes = [8, 22], strides = [1, 1]} : vector<8x1152xf32> to vector<8x22xf32>
    %603 = tpu.concatenate %601, %602 in 1 : vector<8x1130xf32>, vector<8x22xf32> -> vector<8x1152xf32>
    %604 = vector.extract_strided_slice %499 {offsets = [0, 15], sizes = [8, 1], strides = [1, 1]} : vector<8x25xf32> to vector<8x1xf32>
    %605 = vector.broadcast %604 : vector<8x1xf32> to vector<8x1152xf32>
    %606 = arith.mulf %603, %605 : vector<8x1152xf32>
    %607 = arith.addf %600, %606 : vector<8x1152xf32>
    %608 = vector.extract_strided_slice %498 {offsets = [0, 23], sizes = [8, 1129], strides = [1, 1]} : vector<8x1152xf32> to vector<8x1129xf32>
    %609 = vector.extract_strided_slice %498 {offsets = [0, 0], sizes = [8, 23], strides = [1, 1]} : vector<8x1152xf32> to vector<8x23xf32>
    %610 = tpu.concatenate %608, %609 in 1 : vector<8x1129xf32>, vector<8x23xf32> -> vector<8x1152xf32>
    %611 = vector.extract_strided_slice %499 {offsets = [0, 16], sizes = [8, 1], strides = [1, 1]} : vector<8x25xf32> to vector<8x1xf32>
    %612 = vector.broadcast %611 : vector<8x1xf32> to vector<8x1152xf32>
    %613 = arith.mulf %610, %612 : vector<8x1152xf32>
    %614 = arith.addf %607, %613 : vector<8x1152xf32>
    %615 = vector.extract_strided_slice %498 {offsets = [0, 24], sizes = [8, 1128], strides = [1, 1]} : vector<8x1152xf32> to vector<8x1128xf32>
    %616 = vector.extract_strided_slice %498 {offsets = [0, 0], sizes = [8, 24], strides = [1, 1]} : vector<8x1152xf32> to vector<8x24xf32>
    %617 = tpu.concatenate %615, %616 in 1 : vector<8x1128xf32>, vector<8x24xf32> -> vector<8x1152xf32>
    %618 = vector.extract_strided_slice %499 {offsets = [0, 17], sizes = [8, 1], strides = [1, 1]} : vector<8x25xf32> to vector<8x1xf32>
    %619 = vector.broadcast %618 : vector<8x1xf32> to vector<8x1152xf32>
    %620 = arith.mulf %617, %619 : vector<8x1152xf32>
    %621 = arith.addf %614, %620 : vector<8x1152xf32>
    %622 = vector.extract_strided_slice %498 {offsets = [0, 25], sizes = [8, 1127], strides = [1, 1]} : vector<8x1152xf32> to vector<8x1127xf32>
    %623 = vector.extract_strided_slice %498 {offsets = [0, 0], sizes = [8, 25], strides = [1, 1]} : vector<8x1152xf32> to vector<8x25xf32>
    %624 = tpu.concatenate %622, %623 in 1 : vector<8x1127xf32>, vector<8x25xf32> -> vector<8x1152xf32>
    %625 = vector.extract_strided_slice %499 {offsets = [0, 18], sizes = [8, 1], strides = [1, 1]} : vector<8x25xf32> to vector<8x1xf32>
    %626 = vector.broadcast %625 : vector<8x1xf32> to vector<8x1152xf32>
    %627 = arith.mulf %624, %626 : vector<8x1152xf32>
    %628 = arith.addf %621, %627 : vector<8x1152xf32>
    %629 = vector.extract_strided_slice %498 {offsets = [0, 26], sizes = [8, 1126], strides = [1, 1]} : vector<8x1152xf32> to vector<8x1126xf32>
    %630 = vector.extract_strided_slice %498 {offsets = [0, 0], sizes = [8, 26], strides = [1, 1]} : vector<8x1152xf32> to vector<8x26xf32>
    %631 = tpu.concatenate %629, %630 in 1 : vector<8x1126xf32>, vector<8x26xf32> -> vector<8x1152xf32>
    %632 = vector.extract_strided_slice %499 {offsets = [0, 19], sizes = [8, 1], strides = [1, 1]} : vector<8x25xf32> to vector<8x1xf32>
    %633 = vector.broadcast %632 : vector<8x1xf32> to vector<8x1152xf32>
    %634 = arith.mulf %631, %633 : vector<8x1152xf32>
    %635 = arith.addf %628, %634 : vector<8x1152xf32>
    %636 = vector.extract_strided_slice %498 {offsets = [0, 46], sizes = [8, 1106], strides = [1, 1]} : vector<8x1152xf32> to vector<8x1106xf32>
    %637 = vector.extract_strided_slice %498 {offsets = [0, 0], sizes = [8, 46], strides = [1, 1]} : vector<8x1152xf32> to vector<8x46xf32>
    %638 = tpu.concatenate %636, %637 in 1 : vector<8x1106xf32>, vector<8x46xf32> -> vector<8x1152xf32>
    %639 = vector.extract_strided_slice %499 {offsets = [0, 20], sizes = [8, 1], strides = [1, 1]} : vector<8x25xf32> to vector<8x1xf32>
    %640 = vector.broadcast %639 : vector<8x1xf32> to vector<8x1152xf32>
    %641 = arith.mulf %638, %640 : vector<8x1152xf32>
    %642 = arith.addf %635, %641 : vector<8x1152xf32>
    %643 = vector.extract_strided_slice %498 {offsets = [0, 47], sizes = [8, 1105], strides = [1, 1]} : vector<8x1152xf32> to vector<8x1105xf32>
    %644 = vector.extract_strided_slice %498 {offsets = [0, 0], sizes = [8, 47], strides = [1, 1]} : vector<8x1152xf32> to vector<8x47xf32>
    %645 = tpu.concatenate %643, %644 in 1 : vector<8x1105xf32>, vector<8x47xf32> -> vector<8x1152xf32>
    %646 = vector.extract_strided_slice %499 {offsets = [0, 21], sizes = [8, 1], strides = [1, 1]} : vector<8x25xf32> to vector<8x1xf32>
    %647 = vector.broadcast %646 : vector<8x1xf32> to vector<8x1152xf32>
    %648 = arith.mulf %645, %647 : vector<8x1152xf32>
    %649 = arith.addf %642, %648 : vector<8x1152xf32>
    %650 = vector.extract_strided_slice %498 {offsets = [0, 48], sizes = [8, 1104], strides = [1, 1]} : vector<8x1152xf32> to vector<8x1104xf32>
    %651 = vector.extract_strided_slice %498 {offsets = [0, 0], sizes = [8, 48], strides = [1, 1]} : vector<8x1152xf32> to vector<8x48xf32>
    %652 = tpu.concatenate %650, %651 in 1 : vector<8x1104xf32>, vector<8x48xf32> -> vector<8x1152xf32>
    %653 = vector.extract_strided_slice %499 {offsets = [0, 22], sizes = [8, 1], strides = [1, 1]} : vector<8x25xf32> to vector<8x1xf32>
    %654 = vector.broadcast %653 : vector<8x1xf32> to vector<8x1152xf32>
    %655 = arith.mulf %652, %654 : vector<8x1152xf32>
    %656 = arith.addf %649, %655 : vector<8x1152xf32>
    %657 = vector.extract_strided_slice %498 {offsets = [0, 49], sizes = [8, 1103], strides = [1, 1]} : vector<8x1152xf32> to vector<8x1103xf32>
    %658 = vector.extract_strided_slice %498 {offsets = [0, 0], sizes = [8, 49], strides = [1, 1]} : vector<8x1152xf32> to vector<8x49xf32>
    %659 = tpu.concatenate %657, %658 in 1 : vector<8x1103xf32>, vector<8x49xf32> -> vector<8x1152xf32>
    %660 = vector.extract_strided_slice %499 {offsets = [0, 23], sizes = [8, 1], strides = [1, 1]} : vector<8x25xf32> to vector<8x1xf32>
    %661 = vector.broadcast %660 : vector<8x1xf32> to vector<8x1152xf32>
    %662 = arith.mulf %659, %661 : vector<8x1152xf32>
    %663 = arith.addf %656, %662 : vector<8x1152xf32>
    %664 = vector.extract_strided_slice %498 {offsets = [0, 50], sizes = [8, 1102], strides = [1, 1]} : vector<8x1152xf32> to vector<8x1102xf32>
    %665 = vector.extract_strided_slice %498 {offsets = [0, 0], sizes = [8, 50], strides = [1, 1]} : vector<8x1152xf32> to vector<8x50xf32>
    %666 = tpu.concatenate %664, %665 in 1 : vector<8x1102xf32>, vector<8x50xf32> -> vector<8x1152xf32>
    %667 = vector.extract_strided_slice %499 {offsets = [0, 24], sizes = [8, 1], strides = [1, 1]} : vector<8x25xf32> to vector<8x1xf32>
    %668 = vector.broadcast %667 : vector<8x1xf32> to vector<8x1152xf32>
    %669 = arith.mulf %666, %668 : vector<8x1152xf32>
    %670 = arith.addf %663, %669 : vector<8x1152xf32>
    %c0_51 = arith.constant 0 : index
    %c0_52 = arith.constant 0 : index
    %671 = vector.load %arg10[%c0_51, %c0_52] : memref<8x8xf32, #tpu.memory_space<vmem>>, vector<8x8xf32>
    %cst_53 = arith.constant dense<0.000000e+00> : vector<8x1152xf32>
    %672 = tpu.matmul %671, %670, %cst_53 {dimension_numbers = #tpu.dot_dimension_numbers<[1], [0], [0], [1], [0, 0, 1, 1], [], []>} : vector<8x8xf32>, vector<8x1152xf32>, vector<8x1152xf32> -> vector<8x1152xf32>
    %673 = vector.broadcast %1 : vector<1x1152xf32> to vector<8x1152xf32>
    %674 = arith.mulf %672, %673 : vector<8x1152xf32>
    %cst_54 = arith.constant dense<0.000000e+00> : vector<8xf32>
    %675 = vector.multi_reduction <add>, %674, %cst_54 [1] : vector<8x1152xf32> to vector<8xf32>
    %676 = vector.shape_cast %675 : vector<8xf32> to vector<8x1xf32>
    %cst_55 = arith.constant 0.001953125 : f32
    %677 = vector.broadcast %cst_55 : f32 to vector<8x1xf32>
    %678 = arith.mulf %676, %677 : vector<8x1xf32>
    %679 = vector.broadcast %678 : vector<8x1xf32> to vector<8x1152xf32>
    %680 = arith.subf %672, %679 : vector<8x1152xf32>
    %681 = vector.broadcast %1 : vector<1x1152xf32> to vector<8x1152xf32>
    %682 = arith.mulf %680, %681 : vector<8x1152xf32>
    %683 = arith.mulf %682, %682 : vector<8x1152xf32>
    %cst_56 = arith.constant dense<0.000000e+00> : vector<8xf32>
    %684 = vector.multi_reduction <add>, %683, %cst_56 [1] : vector<8x1152xf32> to vector<8xf32>
    %685 = vector.shape_cast %684 : vector<8xf32> to vector<8x1xf32>
    %cst_57 = arith.constant 0.001953125 : f32
    %686 = vector.broadcast %cst_57 : f32 to vector<8x1xf32>
    %687 = arith.mulf %685, %686 : vector<8x1xf32>
    %cst_58 = arith.constant 9.99999974E-6 : f32
    %688 = vector.broadcast %cst_58 : f32 to vector<8x1xf32>
    %689 = arith.addf %687, %688 : vector<8x1xf32>
    %690 = math.rsqrt %689 : vector<8x1xf32>
    %691 = vector.broadcast %690 : vector<8x1xf32> to vector<8x1152xf32>
    %692 = arith.mulf %680, %691 : vector<8x1152xf32>
    %693 = vector.broadcast %300 : f32 to vector<8x1152xf32>
    %694 = arith.mulf %693, %692 : vector<8x1152xf32>
    %695 = arith.addf %299, %694 : vector<8x1152xf32>
    %c6 = arith.constant 6 : index
    %696 = memref.load %arg0[%c6] : memref<8xf32, #tpu.memory_space<smem>>
    %c0_59 = arith.constant 0 : index
    %c0_60 = arith.constant 0 : index
    %697 = vector.load %arg11[%c0_59, %c0_60] : memref<8x9xf32, #tpu.memory_space<vmem>>, vector<8x9xf32>
    %698 = vector.extract_strided_slice %4 {offsets = [0, 1102], sizes = [8, 50], strides = [1, 1]} : vector<8x1152xf32> to vector<8x50xf32>
    %699 = vector.extract_strided_slice %4 {offsets = [0, 0], sizes = [8, 1102], strides = [1, 1]} : vector<8x1152xf32> to vector<8x1102xf32>
    %700 = tpu.concatenate %698, %699 in 1 : vector<8x50xf32>, vector<8x1102xf32> -> vector<8x1152xf32>
    %701 = vector.extract_strided_slice %697 {offsets = [0, 0], sizes = [8, 1], strides = [1, 1]} : vector<8x9xf32> to vector<8x1xf32>
    %702 = vector.broadcast %701 : vector<8x1xf32> to vector<8x1152xf32>
    %703 = arith.mulf %700, %702 : vector<8x1152xf32>
    %704 = vector.extract_strided_slice %4 {offsets = [0, 1104], sizes = [8, 48], strides = [1, 1]} : vector<8x1152xf32> to vector<8x48xf32>
    %705 = vector.extract_strided_slice %4 {offsets = [0, 0], sizes = [8, 1104], strides = [1, 1]} : vector<8x1152xf32> to vector<8x1104xf32>
    %706 = tpu.concatenate %704, %705 in 1 : vector<8x48xf32>, vector<8x1104xf32> -> vector<8x1152xf32>
    %707 = vector.extract_strided_slice %697 {offsets = [0, 1], sizes = [8, 1], strides = [1, 1]} : vector<8x9xf32> to vector<8x1xf32>
    %708 = vector.broadcast %707 : vector<8x1xf32> to vector<8x1152xf32>
    %709 = arith.mulf %706, %708 : vector<8x1152xf32>
    %710 = arith.addf %703, %709 : vector<8x1152xf32>
    %711 = vector.extract_strided_slice %4 {offsets = [0, 1106], sizes = [8, 46], strides = [1, 1]} : vector<8x1152xf32> to vector<8x46xf32>
    %712 = vector.extract_strided_slice %4 {offsets = [0, 0], sizes = [8, 1106], strides = [1, 1]} : vector<8x1152xf32> to vector<8x1106xf32>
    %713 = tpu.concatenate %711, %712 in 1 : vector<8x46xf32>, vector<8x1106xf32> -> vector<8x1152xf32>
    %714 = vector.extract_strided_slice %697 {offsets = [0, 2], sizes = [8, 1], strides = [1, 1]} : vector<8x9xf32> to vector<8x1xf32>
    %715 = vector.broadcast %714 : vector<8x1xf32> to vector<8x1152xf32>
    %716 = arith.mulf %713, %715 : vector<8x1152xf32>
    %717 = arith.addf %710, %716 : vector<8x1152xf32>
    %718 = vector.extract_strided_slice %4 {offsets = [0, 1150], sizes = [8, 2], strides = [1, 1]} : vector<8x1152xf32> to vector<8x2xf32>
    %719 = vector.extract_strided_slice %4 {offsets = [0, 0], sizes = [8, 1150], strides = [1, 1]} : vector<8x1152xf32> to vector<8x1150xf32>
    %720 = tpu.concatenate %718, %719 in 1 : vector<8x2xf32>, vector<8x1150xf32> -> vector<8x1152xf32>
    %721 = vector.extract_strided_slice %697 {offsets = [0, 3], sizes = [8, 1], strides = [1, 1]} : vector<8x9xf32> to vector<8x1xf32>
    %722 = vector.broadcast %721 : vector<8x1xf32> to vector<8x1152xf32>
    %723 = arith.mulf %720, %722 : vector<8x1152xf32>
    %724 = arith.addf %717, %723 : vector<8x1152xf32>
    %725 = vector.extract_strided_slice %697 {offsets = [0, 4], sizes = [8, 1], strides = [1, 1]} : vector<8x9xf32> to vector<8x1xf32>
    %726 = vector.broadcast %725 : vector<8x1xf32> to vector<8x1152xf32>
    %727 = arith.mulf %4, %726 : vector<8x1152xf32>
    %728 = arith.addf %724, %727 : vector<8x1152xf32>
    %729 = vector.extract_strided_slice %4 {offsets = [0, 2], sizes = [8, 1150], strides = [1, 1]} : vector<8x1152xf32> to vector<8x1150xf32>
    %730 = vector.extract_strided_slice %4 {offsets = [0, 0], sizes = [8, 2], strides = [1, 1]} : vector<8x1152xf32> to vector<8x2xf32>
    %731 = tpu.concatenate %729, %730 in 1 : vector<8x1150xf32>, vector<8x2xf32> -> vector<8x1152xf32>
    %732 = vector.extract_strided_slice %697 {offsets = [0, 5], sizes = [8, 1], strides = [1, 1]} : vector<8x9xf32> to vector<8x1xf32>
    %733 = vector.broadcast %732 : vector<8x1xf32> to vector<8x1152xf32>
    %734 = arith.mulf %731, %733 : vector<8x1152xf32>
    %735 = arith.addf %728, %734 : vector<8x1152xf32>
    %736 = vector.extract_strided_slice %4 {offsets = [0, 46], sizes = [8, 1106], strides = [1, 1]} : vector<8x1152xf32> to vector<8x1106xf32>
    %737 = vector.extract_strided_slice %4 {offsets = [0, 0], sizes = [8, 46], strides = [1, 1]} : vector<8x1152xf32> to vector<8x46xf32>
    %738 = tpu.concatenate %736, %737 in 1 : vector<8x1106xf32>, vector<8x46xf32> -> vector<8x1152xf32>
    %739 = vector.extract_strided_slice %697 {offsets = [0, 6], sizes = [8, 1], strides = [1, 1]} : vector<8x9xf32> to vector<8x1xf32>
    %740 = vector.broadcast %739 : vector<8x1xf32> to vector<8x1152xf32>
    %741 = arith.mulf %738, %740 : vector<8x1152xf32>
    %742 = arith.addf %735, %741 : vector<8x1152xf32>
    %743 = vector.extract_strided_slice %4 {offsets = [0, 48], sizes = [8, 1104], strides = [1, 1]} : vector<8x1152xf32> to vector<8x1104xf32>
    %744 = vector.extract_strided_slice %4 {offsets = [0, 0], sizes = [8, 48], strides = [1, 1]} : vector<8x1152xf32> to vector<8x48xf32>
    %745 = tpu.concatenate %743, %744 in 1 : vector<8x1104xf32>, vector<8x48xf32> -> vector<8x1152xf32>
    %746 = vector.extract_strided_slice %697 {offsets = [0, 7], sizes = [8, 1], strides = [1, 1]} : vector<8x9xf32> to vector<8x1xf32>
    %747 = vector.broadcast %746 : vector<8x1xf32> to vector<8x1152xf32>
    %748 = arith.mulf %745, %747 : vector<8x1152xf32>
    %749 = arith.addf %742, %748 : vector<8x1152xf32>
    %750 = vector.extract_strided_slice %4 {offsets = [0, 50], sizes = [8, 1102], strides = [1, 1]} : vector<8x1152xf32> to vector<8x1102xf32>
    %751 = vector.extract_strided_slice %4 {offsets = [0, 0], sizes = [8, 50], strides = [1, 1]} : vector<8x1152xf32> to vector<8x50xf32>
    %752 = tpu.concatenate %750, %751 in 1 : vector<8x1102xf32>, vector<8x50xf32> -> vector<8x1152xf32>
    %753 = vector.extract_strided_slice %697 {offsets = [0, 8], sizes = [8, 1], strides = [1, 1]} : vector<8x9xf32> to vector<8x1xf32>
    %754 = vector.broadcast %753 : vector<8x1xf32> to vector<8x1152xf32>
    %755 = arith.mulf %752, %754 : vector<8x1152xf32>
    %756 = arith.addf %749, %755 : vector<8x1152xf32>
    %c0_61 = arith.constant 0 : index
    %c0_62 = arith.constant 0 : index
    %757 = vector.load %arg12[%c0_61, %c0_62] : memref<8x8xf32, #tpu.memory_space<vmem>>, vector<8x8xf32>
    %cst_63 = arith.constant dense<0.000000e+00> : vector<8x1152xf32>
    %758 = tpu.matmul %757, %756, %cst_63 {dimension_numbers = #tpu.dot_dimension_numbers<[1], [0], [0], [1], [0, 0, 1, 1], [], []>} : vector<8x8xf32>, vector<8x1152xf32>, vector<8x1152xf32> -> vector<8x1152xf32>
    %759 = vector.broadcast %1 : vector<1x1152xf32> to vector<8x1152xf32>
    %760 = arith.mulf %758, %759 : vector<8x1152xf32>
    %cst_64 = arith.constant dense<0.000000e+00> : vector<8xf32>
    %761 = vector.multi_reduction <add>, %760, %cst_64 [1] : vector<8x1152xf32> to vector<8xf32>
    %762 = vector.shape_cast %761 : vector<8xf32> to vector<8x1xf32>
    %cst_65 = arith.constant 0.001953125 : f32
    %763 = vector.broadcast %cst_65 : f32 to vector<8x1xf32>
    %764 = arith.mulf %762, %763 : vector<8x1xf32>
    %765 = vector.broadcast %764 : vector<8x1xf32> to vector<8x1152xf32>
    %766 = arith.subf %758, %765 : vector<8x1152xf32>
    %767 = vector.broadcast %1 : vector<1x1152xf32> to vector<8x1152xf32>
    %768 = arith.mulf %766, %767 : vector<8x1152xf32>
    %769 = arith.mulf %768, %768 : vector<8x1152xf32>
    %cst_66 = arith.constant dense<0.000000e+00> : vector<8xf32>
    %770 = vector.multi_reduction <add>, %769, %cst_66 [1] : vector<8x1152xf32> to vector<8xf32>
    %771 = vector.shape_cast %770 : vector<8xf32> to vector<8x1xf32>
    %cst_67 = arith.constant 0.001953125 : f32
    %772 = vector.broadcast %cst_67 : f32 to vector<8x1xf32>
    %773 = arith.mulf %771, %772 : vector<8x1xf32>
    %cst_68 = arith.constant 9.99999974E-6 : f32
    %774 = vector.broadcast %cst_68 : f32 to vector<8x1xf32>
    %775 = arith.addf %773, %774 : vector<8x1xf32>
    %776 = math.rsqrt %775 : vector<8x1xf32>
    %777 = vector.broadcast %776 : vector<8x1xf32> to vector<8x1152xf32>
    %778 = arith.mulf %766, %777 : vector<8x1152xf32>
    %779 = vector.broadcast %696 : f32 to vector<8x1152xf32>
    %780 = arith.mulf %779, %778 : vector<8x1152xf32>
    %781 = arith.addf %695, %780 : vector<8x1152xf32>
    %c7 = arith.constant 7 : index
    %782 = memref.load %arg0[%c7] : memref<8xf32, #tpu.memory_space<smem>>
    %c0_69 = arith.constant 0 : index
    %c0_70 = arith.constant 0 : index
    %783 = vector.load %arg13[%c0_69, %c0_70] : memref<8x25xf32, #tpu.memory_space<vmem>>, vector<8x25xf32>
    %784 = vector.extract_strided_slice %4 {offsets = [0, 1052], sizes = [8, 100], strides = [1, 1]} : vector<8x1152xf32> to vector<8x100xf32>
    %785 = vector.extract_strided_slice %4 {offsets = [0, 0], sizes = [8, 1052], strides = [1, 1]} : vector<8x1152xf32> to vector<8x1052xf32>
    %786 = tpu.concatenate %784, %785 in 1 : vector<8x100xf32>, vector<8x1052xf32> -> vector<8x1152xf32>
    %787 = vector.extract_strided_slice %783 {offsets = [0, 0], sizes = [8, 1], strides = [1, 1]} : vector<8x25xf32> to vector<8x1xf32>
    %788 = vector.broadcast %787 : vector<8x1xf32> to vector<8x1152xf32>
    %789 = arith.mulf %786, %788 : vector<8x1152xf32>
    %790 = vector.extract_strided_slice %4 {offsets = [0, 1054], sizes = [8, 98], strides = [1, 1]} : vector<8x1152xf32> to vector<8x98xf32>
    %791 = vector.extract_strided_slice %4 {offsets = [0, 0], sizes = [8, 1054], strides = [1, 1]} : vector<8x1152xf32> to vector<8x1054xf32>
    %792 = tpu.concatenate %790, %791 in 1 : vector<8x98xf32>, vector<8x1054xf32> -> vector<8x1152xf32>
    %793 = vector.extract_strided_slice %783 {offsets = [0, 1], sizes = [8, 1], strides = [1, 1]} : vector<8x25xf32> to vector<8x1xf32>
    %794 = vector.broadcast %793 : vector<8x1xf32> to vector<8x1152xf32>
    %795 = arith.mulf %792, %794 : vector<8x1152xf32>
    %796 = arith.addf %789, %795 : vector<8x1152xf32>
    %797 = vector.extract_strided_slice %4 {offsets = [0, 1056], sizes = [8, 96], strides = [1, 1]} : vector<8x1152xf32> to vector<8x96xf32>
    %798 = vector.extract_strided_slice %4 {offsets = [0, 0], sizes = [8, 1056], strides = [1, 1]} : vector<8x1152xf32> to vector<8x1056xf32>
    %799 = tpu.concatenate %797, %798 in 1 : vector<8x96xf32>, vector<8x1056xf32> -> vector<8x1152xf32>
    %800 = vector.extract_strided_slice %783 {offsets = [0, 2], sizes = [8, 1], strides = [1, 1]} : vector<8x25xf32> to vector<8x1xf32>
    %801 = vector.broadcast %800 : vector<8x1xf32> to vector<8x1152xf32>
    %802 = arith.mulf %799, %801 : vector<8x1152xf32>
    %803 = arith.addf %796, %802 : vector<8x1152xf32>
    %804 = vector.extract_strided_slice %4 {offsets = [0, 1058], sizes = [8, 94], strides = [1, 1]} : vector<8x1152xf32> to vector<8x94xf32>
    %805 = vector.extract_strided_slice %4 {offsets = [0, 0], sizes = [8, 1058], strides = [1, 1]} : vector<8x1152xf32> to vector<8x1058xf32>
    %806 = tpu.concatenate %804, %805 in 1 : vector<8x94xf32>, vector<8x1058xf32> -> vector<8x1152xf32>
    %807 = vector.extract_strided_slice %783 {offsets = [0, 3], sizes = [8, 1], strides = [1, 1]} : vector<8x25xf32> to vector<8x1xf32>
    %808 = vector.broadcast %807 : vector<8x1xf32> to vector<8x1152xf32>
    %809 = arith.mulf %806, %808 : vector<8x1152xf32>
    %810 = arith.addf %803, %809 : vector<8x1152xf32>
    %811 = vector.extract_strided_slice %4 {offsets = [0, 1060], sizes = [8, 92], strides = [1, 1]} : vector<8x1152xf32> to vector<8x92xf32>
    %812 = vector.extract_strided_slice %4 {offsets = [0, 0], sizes = [8, 1060], strides = [1, 1]} : vector<8x1152xf32> to vector<8x1060xf32>
    %813 = tpu.concatenate %811, %812 in 1 : vector<8x92xf32>, vector<8x1060xf32> -> vector<8x1152xf32>
    %814 = vector.extract_strided_slice %783 {offsets = [0, 4], sizes = [8, 1], strides = [1, 1]} : vector<8x25xf32> to vector<8x1xf32>
    %815 = vector.broadcast %814 : vector<8x1xf32> to vector<8x1152xf32>
    %816 = arith.mulf %813, %815 : vector<8x1152xf32>
    %817 = arith.addf %810, %816 : vector<8x1152xf32>
    %818 = vector.extract_strided_slice %4 {offsets = [0, 1100], sizes = [8, 52], strides = [1, 1]} : vector<8x1152xf32> to vector<8x52xf32>
    %819 = vector.extract_strided_slice %4 {offsets = [0, 0], sizes = [8, 1100], strides = [1, 1]} : vector<8x1152xf32> to vector<8x1100xf32>
    %820 = tpu.concatenate %818, %819 in 1 : vector<8x52xf32>, vector<8x1100xf32> -> vector<8x1152xf32>
    %821 = vector.extract_strided_slice %783 {offsets = [0, 5], sizes = [8, 1], strides = [1, 1]} : vector<8x25xf32> to vector<8x1xf32>
    %822 = vector.broadcast %821 : vector<8x1xf32> to vector<8x1152xf32>
    %823 = arith.mulf %820, %822 : vector<8x1152xf32>
    %824 = arith.addf %817, %823 : vector<8x1152xf32>
    %825 = vector.extract_strided_slice %4 {offsets = [0, 1102], sizes = [8, 50], strides = [1, 1]} : vector<8x1152xf32> to vector<8x50xf32>
    %826 = vector.extract_strided_slice %4 {offsets = [0, 0], sizes = [8, 1102], strides = [1, 1]} : vector<8x1152xf32> to vector<8x1102xf32>
    %827 = tpu.concatenate %825, %826 in 1 : vector<8x50xf32>, vector<8x1102xf32> -> vector<8x1152xf32>
    %828 = vector.extract_strided_slice %783 {offsets = [0, 6], sizes = [8, 1], strides = [1, 1]} : vector<8x25xf32> to vector<8x1xf32>
    %829 = vector.broadcast %828 : vector<8x1xf32> to vector<8x1152xf32>
    %830 = arith.mulf %827, %829 : vector<8x1152xf32>
    %831 = arith.addf %824, %830 : vector<8x1152xf32>
    %832 = vector.extract_strided_slice %4 {offsets = [0, 1104], sizes = [8, 48], strides = [1, 1]} : vector<8x1152xf32> to vector<8x48xf32>
    %833 = vector.extract_strided_slice %4 {offsets = [0, 0], sizes = [8, 1104], strides = [1, 1]} : vector<8x1152xf32> to vector<8x1104xf32>
    %834 = tpu.concatenate %832, %833 in 1 : vector<8x48xf32>, vector<8x1104xf32> -> vector<8x1152xf32>
    %835 = vector.extract_strided_slice %783 {offsets = [0, 7], sizes = [8, 1], strides = [1, 1]} : vector<8x25xf32> to vector<8x1xf32>
    %836 = vector.broadcast %835 : vector<8x1xf32> to vector<8x1152xf32>
    %837 = arith.mulf %834, %836 : vector<8x1152xf32>
    %838 = arith.addf %831, %837 : vector<8x1152xf32>
    %839 = vector.extract_strided_slice %4 {offsets = [0, 1106], sizes = [8, 46], strides = [1, 1]} : vector<8x1152xf32> to vector<8x46xf32>
    %840 = vector.extract_strided_slice %4 {offsets = [0, 0], sizes = [8, 1106], strides = [1, 1]} : vector<8x1152xf32> to vector<8x1106xf32>
    %841 = tpu.concatenate %839, %840 in 1 : vector<8x46xf32>, vector<8x1106xf32> -> vector<8x1152xf32>
    %842 = vector.extract_strided_slice %783 {offsets = [0, 8], sizes = [8, 1], strides = [1, 1]} : vector<8x25xf32> to vector<8x1xf32>
    %843 = vector.broadcast %842 : vector<8x1xf32> to vector<8x1152xf32>
    %844 = arith.mulf %841, %843 : vector<8x1152xf32>
    %845 = arith.addf %838, %844 : vector<8x1152xf32>
    %846 = vector.extract_strided_slice %4 {offsets = [0, 1108], sizes = [8, 44], strides = [1, 1]} : vector<8x1152xf32> to vector<8x44xf32>
    %847 = vector.extract_strided_slice %4 {offsets = [0, 0], sizes = [8, 1108], strides = [1, 1]} : vector<8x1152xf32> to vector<8x1108xf32>
    %848 = tpu.concatenate %846, %847 in 1 : vector<8x44xf32>, vector<8x1108xf32> -> vector<8x1152xf32>
    %849 = vector.extract_strided_slice %783 {offsets = [0, 9], sizes = [8, 1], strides = [1, 1]} : vector<8x25xf32> to vector<8x1xf32>
    %850 = vector.broadcast %849 : vector<8x1xf32> to vector<8x1152xf32>
    %851 = arith.mulf %848, %850 : vector<8x1152xf32>
    %852 = arith.addf %845, %851 : vector<8x1152xf32>
    %853 = vector.extract_strided_slice %4 {offsets = [0, 1148], sizes = [8, 4], strides = [1, 1]} : vector<8x1152xf32> to vector<8x4xf32>
    %854 = vector.extract_strided_slice %4 {offsets = [0, 0], sizes = [8, 1148], strides = [1, 1]} : vector<8x1152xf32> to vector<8x1148xf32>
    %855 = tpu.concatenate %853, %854 in 1 : vector<8x4xf32>, vector<8x1148xf32> -> vector<8x1152xf32>
    %856 = vector.extract_strided_slice %783 {offsets = [0, 10], sizes = [8, 1], strides = [1, 1]} : vector<8x25xf32> to vector<8x1xf32>
    %857 = vector.broadcast %856 : vector<8x1xf32> to vector<8x1152xf32>
    %858 = arith.mulf %855, %857 : vector<8x1152xf32>
    %859 = arith.addf %852, %858 : vector<8x1152xf32>
    %860 = vector.extract_strided_slice %4 {offsets = [0, 1150], sizes = [8, 2], strides = [1, 1]} : vector<8x1152xf32> to vector<8x2xf32>
    %861 = vector.extract_strided_slice %4 {offsets = [0, 0], sizes = [8, 1150], strides = [1, 1]} : vector<8x1152xf32> to vector<8x1150xf32>
    %862 = tpu.concatenate %860, %861 in 1 : vector<8x2xf32>, vector<8x1150xf32> -> vector<8x1152xf32>
    %863 = vector.extract_strided_slice %783 {offsets = [0, 11], sizes = [8, 1], strides = [1, 1]} : vector<8x25xf32> to vector<8x1xf32>
    %864 = vector.broadcast %863 : vector<8x1xf32> to vector<8x1152xf32>
    %865 = arith.mulf %862, %864 : vector<8x1152xf32>
    %866 = arith.addf %859, %865 : vector<8x1152xf32>
    %867 = vector.extract_strided_slice %783 {offsets = [0, 12], sizes = [8, 1], strides = [1, 1]} : vector<8x25xf32> to vector<8x1xf32>
    %868 = vector.broadcast %867 : vector<8x1xf32> to vector<8x1152xf32>
    %869 = arith.mulf %4, %868 : vector<8x1152xf32>
    %870 = arith.addf %866, %869 : vector<8x1152xf32>
    %871 = vector.extract_strided_slice %4 {offsets = [0, 2], sizes = [8, 1150], strides = [1, 1]} : vector<8x1152xf32> to vector<8x1150xf32>
    %872 = vector.extract_strided_slice %4 {offsets = [0, 0], sizes = [8, 2], strides = [1, 1]} : vector<8x1152xf32> to vector<8x2xf32>
    %873 = tpu.concatenate %871, %872 in 1 : vector<8x1150xf32>, vector<8x2xf32> -> vector<8x1152xf32>
    %874 = vector.extract_strided_slice %783 {offsets = [0, 13], sizes = [8, 1], strides = [1, 1]} : vector<8x25xf32> to vector<8x1xf32>
    %875 = vector.broadcast %874 : vector<8x1xf32> to vector<8x1152xf32>
    %876 = arith.mulf %873, %875 : vector<8x1152xf32>
    %877 = arith.addf %870, %876 : vector<8x1152xf32>
    %878 = vector.extract_strided_slice %4 {offsets = [0, 4], sizes = [8, 1148], strides = [1, 1]} : vector<8x1152xf32> to vector<8x1148xf32>
    %879 = vector.extract_strided_slice %4 {offsets = [0, 0], sizes = [8, 4], strides = [1, 1]} : vector<8x1152xf32> to vector<8x4xf32>
    %880 = tpu.concatenate %878, %879 in 1 : vector<8x1148xf32>, vector<8x4xf32> -> vector<8x1152xf32>
    %881 = vector.extract_strided_slice %783 {offsets = [0, 14], sizes = [8, 1], strides = [1, 1]} : vector<8x25xf32> to vector<8x1xf32>
    %882 = vector.broadcast %881 : vector<8x1xf32> to vector<8x1152xf32>
    %883 = arith.mulf %880, %882 : vector<8x1152xf32>
    %884 = arith.addf %877, %883 : vector<8x1152xf32>
    %885 = vector.extract_strided_slice %4 {offsets = [0, 44], sizes = [8, 1108], strides = [1, 1]} : vector<8x1152xf32> to vector<8x1108xf32>
    %886 = vector.extract_strided_slice %4 {offsets = [0, 0], sizes = [8, 44], strides = [1, 1]} : vector<8x1152xf32> to vector<8x44xf32>
    %887 = tpu.concatenate %885, %886 in 1 : vector<8x1108xf32>, vector<8x44xf32> -> vector<8x1152xf32>
    %888 = vector.extract_strided_slice %783 {offsets = [0, 15], sizes = [8, 1], strides = [1, 1]} : vector<8x25xf32> to vector<8x1xf32>
    %889 = vector.broadcast %888 : vector<8x1xf32> to vector<8x1152xf32>
    %890 = arith.mulf %887, %889 : vector<8x1152xf32>
    %891 = arith.addf %884, %890 : vector<8x1152xf32>
    %892 = vector.extract_strided_slice %4 {offsets = [0, 46], sizes = [8, 1106], strides = [1, 1]} : vector<8x1152xf32> to vector<8x1106xf32>
    %893 = vector.extract_strided_slice %4 {offsets = [0, 0], sizes = [8, 46], strides = [1, 1]} : vector<8x1152xf32> to vector<8x46xf32>
    %894 = tpu.concatenate %892, %893 in 1 : vector<8x1106xf32>, vector<8x46xf32> -> vector<8x1152xf32>
    %895 = vector.extract_strided_slice %783 {offsets = [0, 16], sizes = [8, 1], strides = [1, 1]} : vector<8x25xf32> to vector<8x1xf32>
    %896 = vector.broadcast %895 : vector<8x1xf32> to vector<8x1152xf32>
    %897 = arith.mulf %894, %896 : vector<8x1152xf32>
    %898 = arith.addf %891, %897 : vector<8x1152xf32>
    %899 = vector.extract_strided_slice %4 {offsets = [0, 48], sizes = [8, 1104], strides = [1, 1]} : vector<8x1152xf32> to vector<8x1104xf32>
    %900 = vector.extract_strided_slice %4 {offsets = [0, 0], sizes = [8, 48], strides = [1, 1]} : vector<8x1152xf32> to vector<8x48xf32>
    %901 = tpu.concatenate %899, %900 in 1 : vector<8x1104xf32>, vector<8x48xf32> -> vector<8x1152xf32>
    %902 = vector.extract_strided_slice %783 {offsets = [0, 17], sizes = [8, 1], strides = [1, 1]} : vector<8x25xf32> to vector<8x1xf32>
    %903 = vector.broadcast %902 : vector<8x1xf32> to vector<8x1152xf32>
    %904 = arith.mulf %901, %903 : vector<8x1152xf32>
    %905 = arith.addf %898, %904 : vector<8x1152xf32>
    %906 = vector.extract_strided_slice %4 {offsets = [0, 50], sizes = [8, 1102], strides = [1, 1]} : vector<8x1152xf32> to vector<8x1102xf32>
    %907 = vector.extract_strided_slice %4 {offsets = [0, 0], sizes = [8, 50], strides = [1, 1]} : vector<8x1152xf32> to vector<8x50xf32>
    %908 = tpu.concatenate %906, %907 in 1 : vector<8x1102xf32>, vector<8x50xf32> -> vector<8x1152xf32>
    %909 = vector.extract_strided_slice %783 {offsets = [0, 18], sizes = [8, 1], strides = [1, 1]} : vector<8x25xf32> to vector<8x1xf32>
    %910 = vector.broadcast %909 : vector<8x1xf32> to vector<8x1152xf32>
    %911 = arith.mulf %908, %910 : vector<8x1152xf32>
    %912 = arith.addf %905, %911 : vector<8x1152xf32>
    %913 = vector.extract_strided_slice %4 {offsets = [0, 52], sizes = [8, 1100], strides = [1, 1]} : vector<8x1152xf32> to vector<8x1100xf32>
    %914 = vector.extract_strided_slice %4 {offsets = [0, 0], sizes = [8, 52], strides = [1, 1]} : vector<8x1152xf32> to vector<8x52xf32>
    %915 = tpu.concatenate %913, %914 in 1 : vector<8x1100xf32>, vector<8x52xf32> -> vector<8x1152xf32>
    %916 = vector.extract_strided_slice %783 {offsets = [0, 19], sizes = [8, 1], strides = [1, 1]} : vector<8x25xf32> to vector<8x1xf32>
    %917 = vector.broadcast %916 : vector<8x1xf32> to vector<8x1152xf32>
    %918 = arith.mulf %915, %917 : vector<8x1152xf32>
    %919 = arith.addf %912, %918 : vector<8x1152xf32>
    %920 = vector.extract_strided_slice %4 {offsets = [0, 92], sizes = [8, 1060], strides = [1, 1]} : vector<8x1152xf32> to vector<8x1060xf32>
    %921 = vector.extract_strided_slice %4 {offsets = [0, 0], sizes = [8, 92], strides = [1, 1]} : vector<8x1152xf32> to vector<8x92xf32>
    %922 = tpu.concatenate %920, %921 in 1 : vector<8x1060xf32>, vector<8x92xf32> -> vector<8x1152xf32>
    %923 = vector.extract_strided_slice %783 {offsets = [0, 20], sizes = [8, 1], strides = [1, 1]} : vector<8x25xf32> to vector<8x1xf32>
    %924 = vector.broadcast %923 : vector<8x1xf32> to vector<8x1152xf32>
    %925 = arith.mulf %922, %924 : vector<8x1152xf32>
    %926 = arith.addf %919, %925 : vector<8x1152xf32>
    %927 = vector.extract_strided_slice %4 {offsets = [0, 94], sizes = [8, 1058], strides = [1, 1]} : vector<8x1152xf32> to vector<8x1058xf32>
    %928 = vector.extract_strided_slice %4 {offsets = [0, 0], sizes = [8, 94], strides = [1, 1]} : vector<8x1152xf32> to vector<8x94xf32>
    %929 = tpu.concatenate %927, %928 in 1 : vector<8x1058xf32>, vector<8x94xf32> -> vector<8x1152xf32>
    %930 = vector.extract_strided_slice %783 {offsets = [0, 21], sizes = [8, 1], strides = [1, 1]} : vector<8x25xf32> to vector<8x1xf32>
    %931 = vector.broadcast %930 : vector<8x1xf32> to vector<8x1152xf32>
    %932 = arith.mulf %929, %931 : vector<8x1152xf32>
    %933 = arith.addf %926, %932 : vector<8x1152xf32>
    %934 = vector.extract_strided_slice %4 {offsets = [0, 96], sizes = [8, 1056], strides = [1, 1]} : vector<8x1152xf32> to vector<8x1056xf32>
    %935 = vector.extract_strided_slice %4 {offsets = [0, 0], sizes = [8, 96], strides = [1, 1]} : vector<8x1152xf32> to vector<8x96xf32>
    %936 = tpu.concatenate %934, %935 in 1 : vector<8x1056xf32>, vector<8x96xf32> -> vector<8x1152xf32>
    %937 = vector.extract_strided_slice %783 {offsets = [0, 22], sizes = [8, 1], strides = [1, 1]} : vector<8x25xf32> to vector<8x1xf32>
    %938 = vector.broadcast %937 : vector<8x1xf32> to vector<8x1152xf32>
    %939 = arith.mulf %936, %938 : vector<8x1152xf32>
    %940 = arith.addf %933, %939 : vector<8x1152xf32>
    %941 = vector.extract_strided_slice %4 {offsets = [0, 98], sizes = [8, 1054], strides = [1, 1]} : vector<8x1152xf32> to vector<8x1054xf32>
    %942 = vector.extract_strided_slice %4 {offsets = [0, 0], sizes = [8, 98], strides = [1, 1]} : vector<8x1152xf32> to vector<8x98xf32>
    %943 = tpu.concatenate %941, %942 in 1 : vector<8x1054xf32>, vector<8x98xf32> -> vector<8x1152xf32>
    %944 = vector.extract_strided_slice %783 {offsets = [0, 23], sizes = [8, 1], strides = [1, 1]} : vector<8x25xf32> to vector<8x1xf32>
    %945 = vector.broadcast %944 : vector<8x1xf32> to vector<8x1152xf32>
    %946 = arith.mulf %943, %945 : vector<8x1152xf32>
    %947 = arith.addf %940, %946 : vector<8x1152xf32>
    %948 = vector.extract_strided_slice %4 {offsets = [0, 100], sizes = [8, 1052], strides = [1, 1]} : vector<8x1152xf32> to vector<8x1052xf32>
    %949 = vector.extract_strided_slice %4 {offsets = [0, 0], sizes = [8, 100], strides = [1, 1]} : vector<8x1152xf32> to vector<8x100xf32>
    %950 = tpu.concatenate %948, %949 in 1 : vector<8x1052xf32>, vector<8x100xf32> -> vector<8x1152xf32>
    %951 = vector.extract_strided_slice %783 {offsets = [0, 24], sizes = [8, 1], strides = [1, 1]} : vector<8x25xf32> to vector<8x1xf32>
    %952 = vector.broadcast %951 : vector<8x1xf32> to vector<8x1152xf32>
    %953 = arith.mulf %950, %952 : vector<8x1152xf32>
    %954 = arith.addf %947, %953 : vector<8x1152xf32>
    %c0_71 = arith.constant 0 : index
    %c0_72 = arith.constant 0 : index
    %955 = vector.load %arg14[%c0_71, %c0_72] : memref<8x8xf32, #tpu.memory_space<vmem>>, vector<8x8xf32>
    %cst_73 = arith.constant dense<0.000000e+00> : vector<8x1152xf32>
    %956 = tpu.matmul %955, %954, %cst_73 {dimension_numbers = #tpu.dot_dimension_numbers<[1], [0], [0], [1], [0, 0, 1, 1], [], []>} : vector<8x8xf32>, vector<8x1152xf32>, vector<8x1152xf32> -> vector<8x1152xf32>
    %957 = vector.broadcast %1 : vector<1x1152xf32> to vector<8x1152xf32>
    %958 = arith.mulf %956, %957 : vector<8x1152xf32>
    %cst_74 = arith.constant dense<0.000000e+00> : vector<8xf32>
    %959 = vector.multi_reduction <add>, %958, %cst_74 [1] : vector<8x1152xf32> to vector<8xf32>
    %960 = vector.shape_cast %959 : vector<8xf32> to vector<8x1xf32>
    %cst_75 = arith.constant 0.001953125 : f32
    %961 = vector.broadcast %cst_75 : f32 to vector<8x1xf32>
    %962 = arith.mulf %960, %961 : vector<8x1xf32>
    %963 = vector.broadcast %962 : vector<8x1xf32> to vector<8x1152xf32>
    %964 = arith.subf %956, %963 : vector<8x1152xf32>
    %965 = vector.broadcast %1 : vector<1x1152xf32> to vector<8x1152xf32>
    %966 = arith.mulf %964, %965 : vector<8x1152xf32>
    %967 = arith.mulf %966, %966 : vector<8x1152xf32>
    %cst_76 = arith.constant dense<0.000000e+00> : vector<8xf32>
    %968 = vector.multi_reduction <add>, %967, %cst_76 [1] : vector<8x1152xf32> to vector<8xf32>
    %969 = vector.shape_cast %968 : vector<8xf32> to vector<8x1xf32>
    %cst_77 = arith.constant 0.001953125 : f32
    %970 = vector.broadcast %cst_77 : f32 to vector<8x1xf32>
    %971 = arith.mulf %969, %970 : vector<8x1xf32>
    %cst_78 = arith.constant 9.99999974E-6 : f32
    %972 = vector.broadcast %cst_78 : f32 to vector<8x1xf32>
    %973 = arith.addf %971, %972 : vector<8x1xf32>
    %974 = math.rsqrt %973 : vector<8x1xf32>
    %975 = vector.broadcast %974 : vector<8x1xf32> to vector<8x1152xf32>
    %976 = arith.mulf %964, %975 : vector<8x1152xf32>
    %977 = vector.broadcast %782 : f32 to vector<8x1152xf32>
    %978 = arith.mulf %977, %976 : vector<8x1152xf32>
    %979 = arith.addf %781, %978 : vector<8x1152xf32>
    %980 = vector.broadcast %1 : vector<1x1152xf32> to vector<8x1152xf32>
    %981 = arith.mulf %979, %980 : vector<8x1152xf32>
    %c0_79 = arith.constant 0 : index
    %c0_80 = arith.constant 0 : index
    %982 = vector.load %arg15[%c0_79, %c0_80] : memref<8x1152xf32, #tpu.memory_space<vmem>>, vector<8x1152xf32>
    tpu.vector_store %arg15[%c0_79, %c0_80], %981 {strides = array<i32>} : memref<8x1152xf32, #tpu.memory_space<vmem>>, vector<8x1152xf32>,
    return
  }
}

</mosaic_0001>

<llo_original>
// kernel: clean_cell_forward.7
$region0: #{clean_cell_forward.7}
  #allocation0 [shape = 'u32[]', space=smem, size = 0x4, offset = 0x4, fixed_abs, tag = 'smem constant byte address 0x4 - core index']
  #allocation1 [shape = 'u32[72,128]{1,0:T(1,128)}', space=vmem, size = 0x9000, scoped, tag = 'internal scratch']
  %s0 = inlined_call_operand.vmem [shape: f32[4,512], index: 0, kind: input, shape index: {}]
  %s1 = inlined_call_operand.vmem [shape: f32[8,4], index: 1, kind: input, shape index: {}]
  %s2 = inlined_call_operand.vmem [shape: f32[8,512], index: 2, kind: output, shape index: {}]
  %s3 = sld [smem:[#allocation0]]
  $region18: #{clean_cell_forward.7} parent=0
    _
  %s5 = ssub.s32 1, %s3
  %s6 = scalar_select 0, %s5, %s3
  // Predicated region
  $region2: #{clean_cell_forward.7} parent=0 // pred_check
    _
  $region3: #{clean_cell_forward.7} parent=0 // pred_check_branch
    %8 = sbr.rel (0) target = $region5
  $region4: #{clean_cell_forward.7} parent=0 // pred_region
    _
  $region5: #{clean_cell_forward.7} parent=0 // pred_fallthru
    _
  // Predicated region
  $region6: #{clean_cell_forward.7} parent=0 // pred_check
    _
  $region7: #{clean_cell_forward.7} parent=0 // pred_check_branch
    %10 = sbr.rel (0) target = $region9
  $region8: #{clean_cell_forward.7} parent=0 // pred_region
    _
  $region9: #{clean_cell_forward.7} parent=0 // pred_fallthru
    _
  %v11 = vld [vmem:[%s0] sm:$0xff]
  %v12 = vld [vmem:[%s0 + $0x8] sm:$0xff]
  %v13 = vmax.f32 %v11, 0.0
  %v14 = vmax.f32 %v12, 0.0
  %v15 = vld [vmem:[%s1] sm:$0xff]
  %18 = vst [vmem:[#allocation1] ss:$2 sm:$0xff] %v13
  %s19 = scalar_lea.vmem [#allocation1], 16
  %20 = vst [vmem:[%s19] ss:$2 sm:$0xff] %v14
  %v21 = vld.sshfl [vmem:[#allocation1] sm:$0xff pattern:$0x75316420]
  %v22 = vld.sshfl [vmem:[#allocation1 + $0x8] sm:$0xff pattern:$0x75316420]
  %v23 = vld.sshfl [vmem:[#allocation1 + $0x10] sm:$0xff pattern:$0x75316420]
  %v24 = vld.sshfl [vmem:[#allocation1 + $0x18] sm:$0xff pattern:$0x75316420]
  %vm25 = vcmask 31744
  %v27 = vsel %vm25, %v15, 0
  %vm29 = vcmask 1043456
  %v30 = vsel %vm29, %v21, 0
  %v32 = vsel %vm29, %v22, 0
  %v34 = vsel %vm29, %v23, 0
  %v36 = vsel %vm29, %v24, 0
  %38 = vmatpush.msra.mxu0 0.0
  %39 = vmatpush.msra.mxu0 0.0
  %40 = vmatpush.msra.mxu0 0.0
  %41 = vmatpush.msra.mxu0 0.0
  %42 = vmatpush.msra.mxu0 0.0
  %43 = vmatpush.msra.mxu0 0.0
  %44 = vmatpush.msra.mxu0 0.0
  %45 = vmatpush.msra.mxu0 0.0
  %46 = vmatpush.msra.mxu0 0.0
  %47 = vmatpush.msra.mxu0 0.0
  %48 = vmatpush.msra.mxu0 0.0
  %49 = vmatpush.msra.mxu0 0.0
  %50 = vmatpush.msra.mxu0 0.0
  %51 = vmatpush.msra.mxu0 0.0
  %52 = vmatpush.msra.mxu0 0.0
  %53 = vmatpush.msra.mxu0 %v30
  %54 = vmatmul.f32.gmra.mxu0 %v27
  %v55 = vpop.f32.mrf.mxu0
  %v56 = vadd.f32 0.0, %v55
  %57 = vdwg.mxu0
  %58 = vmatpush.msra.mxu0 0.0
  %59 = vmatpush.msra.mxu0 0.0
  %60 = vmatpush.msra.mxu0 0.0
  %61 = vmatpush.msra.mxu0 0.0
  %62 = vmatpush.msra.mxu0 0.0
  %63 = vmatpush.msra.mxu0 0.0
  %64 = vmatpush.msra.mxu0 0.0
  %65 = vmatpush.msra.mxu0 0.0
  %66 = vmatpush.msra.mxu0 0.0
  %67 = vmatpush.msra.mxu0 0.0
  %68 = vmatpush.msra.mxu0 0.0
  %69 = vmatpush.msra.mxu0 0.0
  %70 = vmatpush.msra.mxu0 0.0
  %71 = vmatpush.msra.mxu0 0.0
  %72 = vmatpush.msra.mxu0 0.0
  %73 = vmatpush.msra.mxu0 %v32
  %74 = vmatmul.f32.gmra.mxu0 %v27
  %v75 = vpop.f32.mrf.mxu0
  %v76 = vadd.f32 0.0, %v75
  %77 = vdwg.mxu0
  %78 = vmatpush.msra.mxu0 0.0
  %79 = vmatpush.msra.mxu0 0.0
  %80 = vmatpush.msra.mxu0 0.0
  %81 = vmatpush.msra.mxu0 0.0
  %82 = vmatpush.msra.mxu0 0.0
  %83 = vmatpush.msra.mxu0 0.0
  %84 = vmatpush.msra.mxu0 0.0
  %85 = vmatpush.msra.mxu0 0.0
  %86 = vmatpush.msra.mxu0 0.0
  %87 = vmatpush.msra.mxu0 0.0
  %88 = vmatpush.msra.mxu0 0.0
  %89 = vmatpush.msra.mxu0 0.0
  %90 = vmatpush.msra.mxu0 0.0
  %91 = vmatpush.msra.mxu0 0.0
  %92 = vmatpush.msra.mxu0 0.0
  %93 = vmatpush.msra.mxu0 %v34
  %94 = vmatmul.f32.gmra.mxu0 %v27
  %v95 = vpop.f32.mrf.mxu0
  %v96 = vadd.f32 0.0, %v95
  %97 = vdwg.mxu0
  %98 = vmatpush.msra.mxu0 0.0
  %99 = vmatpush.msra.mxu0 0.0
  %100 = vmatpush.msra.mxu0 0.0
  %101 = vmatpush.msra.mxu0 0.0
  %102 = vmatpush.msra.mxu0 0.0
  %103 = vmatpush.msra.mxu0 0.0
  %104 = vmatpush.msra.mxu0 0.0
  %105 = vmatpush.msra.mxu0 0.0
  %106 = vmatpush.msra.mxu0 0.0
  %107 = vmatpush.msra.mxu0 0.0
  %108 = vmatpush.msra.mxu0 0.0
  %109 = vmatpush.msra.mxu0 0.0
  %110 = vmatpush.msra.mxu0 0.0
  %111 = vmatpush.msra.mxu0 0.0
  %112 = vmatpush.msra.mxu0 0.0
  %113 = vmatpush.msra.mxu0 %v36
  %114 = vmatmul.f32.gmra.mxu0 %v27
  %v115 = vpop.f32.mrf.mxu0
  %v116 = vadd.f32 0.0, %v115
  %117 = vdwg.mxu0
  %v118 = vadd.f32 %v56, %v76
  %v119 = vadd.f32 %v118, %v96
  %v120 = vadd.f32 %v119, %v116
  %121 = vadd.xlane.f32.xlu0 %v120
  %v122 = vpop.xlane.xlu0 %121
  %v123 = vmul.f32 %v122, 0.001953125
  %v124 = vsub.f32 %v56, %v123
  %v125 = vsub.f32 %v76, %v123
  %v126 = vsub.f32 %v96, %v123
  %v127 = vsub.f32 %v116, %v123
  %v128 = vmul.f32 %v124, %v124
  %v129 = vmul.f32 %v125, %v125
  %v130 = vmul.f32 %v126, %v126
  %v131 = vmul.f32 %v127, %v127
  %v132 = vadd.f32 %v128, %v129
  %v133 = vadd.f32 %v132, %v130
  %v134 = vadd.f32 %v133, %v131
  %135 = vadd.xlane.f32.xlu0 %v134
  %v136 = vpop.xlane.xlu0 %135
  %v137 = vmul.f32 %v136, 0.001953125
  %v138 = vadd.f32 %v137, 1e-05
  %v139 = vrsqrt.pop %v138
  %v140 = vmul.f32 %v139, %v138
  %v141 = vmul.f32 %v140, %v139
  %v142 = vmul.f32 0.5, %v141
  %v143 = vsub.f32 1.5, %v142
  %v144 = vmul.f32 %v139, %v143
  %vm145 = vweird.f32 %v138
  %vm146 = vweird.f32 %v139
  %vm147 = vmor %vm145, %vm146
  %v148 = vsel %vm147, %v139, %v144
  %v149 = vmul.f32 %v124, %v148
  %v150 = vmul.f32 %v125, %v148
  %v151 = vmul.f32 %v126, %v148
  %v152 = vmul.f32 %v127, %v148
  %153 = vst [vmem:[%s2] sm:$0xff] %v149
  %154 = vst [vmem:[%s2 + $0x8] sm:$0xff] %v150
  %155 = vst [vmem:[%s2 + $0x10] sm:$0xff] %v151
  %156 = vst [vmem:[%s2 + $0x18] sm:$0xff] %v152
  // Predicated region
  $region10: #{clean_cell_forward.7} parent=0 // pred_check
    _
  $region11: #{clean_cell_forward.7} parent=0 // pred_check_branch
    %158 = sbr.rel (0) target = $region13
  $region12: #{clean_cell_forward.7} parent=0 // pred_region
    _
  $region13: #{clean_cell_forward.7} parent=0 // pred_fallthru
    _
  // Predicated region
  $region14: #{clean_cell_forward.7} parent=0 // pred_check
    _
  $region15: #{clean_cell_forward.7} parent=0 // pred_check_branch
    %160 = sbr.rel (0) target = $region17
  $region16: #{clean_cell_forward.7} parent=0 // pred_region
    _
  $region17: #{clean_cell_forward.7} parent=0 // pred_fallthru
    _

// kernel: clean_cell_forward.12
$region0: #{clean_cell_forward.12}
  #allocation0 [shape = 'u32[]', space=smem, size = 0x4, offset = 0x4, fixed_abs, tag = 'smem constant byte address 0x4 - core index']
  #allocation1 [shape = 'u32[72,128]{1,0:T(1,128)}', space=vmem, size = 0x9000, scoped, tag = 'internal scratch']
  %s0 = inlined_call_operand.vmem [shape: f32[8], index: 0, kind: input, shape index: {}]
  %s1 = inlined_call_operand.vmem [shape: f32[8,1152], index: 1, kind: input, shape index: {}]
  %s2 = inlined_call_operand.vmem [shape: f32[2,1152], index: 2, kind: input, shape index: {}]
  %s3 = inlined_call_operand.vmem [shape: f32[8,9], index: 3, kind: input, shape index: {}]
  %s4 = inlined_call_operand.vmem [shape: f32[8,8], index: 4, kind: input, shape index: {}]
  %s5 = inlined_call_operand.vmem [shape: f32[8,9], index: 5, kind: input, shape index: {}]
  %s6 = inlined_call_operand.vmem [shape: f32[8,8], index: 6, kind: input, shape index: {}]
  %s7 = inlined_call_operand.vmem [shape: f32[8,25], index: 7, kind: input, shape index: {}]
  %s8 = inlined_call_operand.vmem [shape: f32[8,8], index: 8, kind: input, shape index: {}]
  %s9 = inlined_call_operand.vmem [shape: f32[8,25], index: 9, kind: input, shape index: {}]
  %s10 = inlined_call_operand.vmem [shape: f32[8,8], index: 10, kind: input, shape index: {}]
  %s11 = inlined_call_operand.vmem [shape: f32[8,9], index: 11, kind: input, shape index: {}]
  %s12 = inlined_call_operand.vmem [shape: f32[8,8], index: 12, kind: input, shape index: {}]
  %s13 = inlined_call_operand.vmem [shape: f32[8,25], index: 13, kind: input, shape index: {}]
  %s14 = inlined_call_operand.vmem [shape: f32[8,8], index: 14, kind: input, shape index: {}]
  %s15 = inlined_call_operand.vmem [shape: f32[8,1152], index: 15, kind: output, shape index: {}]
  %s16 = sld [smem:[#allocation0]]
  $region74: #{clean_cell_forward.12} parent=0
    _
  %s18 = ssub.s32 1, %s16
  %s19 = scalar_select 0, %s18, %s16
  $region1: #{clean_cell_forward.12} parent=0
    #allocation2 [shape = 'u8[512]{0}', space=smem, size = 0x200, scoped, tag = 'input window, operand 0, single buffered']
    #allocation3 [shape = 's32[1]{0}', space=sflag, size = 0x4, scoped, tag = 'scoped memory for clean_cell_forward.12']
    %20 = vsyncpa [#allocation3], 0
    // Predicated region
    $region2: #{clean_cell_forward.12} parent=1 // pred_check
      _
    $region3: #{clean_cell_forward.12} parent=1 // pred_check_branch
      %22 = sbr.rel (0) target = $region5
    $region4: #{clean_cell_forward.12} parent=1 // pred_region
      %24 = vsyncadd [#allocation3], 0
      %s26 = sshll.u32 %s0, 4
      %s27 = int_to_ptr.vmem [resolvable:$true] %s26
      %29 = dma.vmem_to_smem %s27, 16, [#allocation2], [#allocation3]
    $region5: #{clean_cell_forward.12} parent=1 // pred_fallthru
      _
    // Predicated region
    $region6: #{clean_cell_forward.12} parent=1 // pred_check
      _
    $region7: #{clean_cell_forward.12} parent=1 // pred_check_branch
      %31 = sbr.rel (0) target = $region9
    $region8: #{clean_cell_forward.12} parent=1 // pred_region
      _
    $region9: #{clean_cell_forward.12} parent=1 // pred_fallthru
      _
    // Predicated region
    $region10: #{clean_cell_forward.12} parent=1 // pred_check
      _
    $region11: #{clean_cell_forward.12} parent=1 // pred_check_branch
      %33 = sbr.rel (0) target = $region13
    $region12: #{clean_cell_forward.12} parent=1 // pred_region
      _
    $region13: #{clean_cell_forward.12} parent=1 // pred_fallthru
      _
    // Predicated region
    $region14: #{clean_cell_forward.12} parent=1 // pred_check
      _
    $region15: #{clean_cell_forward.12} parent=1 // pred_check_branch
      %35 = sbr.rel (0) target = $region17
    $region16: #{clean_cell_forward.12} parent=1 // pred_region
      _
    $region17: #{clean_cell_forward.12} parent=1 // pred_fallthru
      _
    // Predicated region
    $region18: #{clean_cell_forward.12} parent=1 // pred_check
      _
    $region19: #{clean_cell_forward.12} parent=1 // pred_check_branch
      %37 = sbr.rel (0) target = $region21
    $region20: #{clean_cell_forward.12} parent=1 // pred_region
      _
    $region21: #{clean_cell_forward.12} parent=1 // pred_fallthru
      _
    // Predicated region
    $region22: #{clean_cell_forward.12} parent=1 // pred_check
      _
    $region23: #{clean_cell_forward.12} parent=1 // pred_check_branch
      %39 = sbr.rel (0) target = $region25
    $region24: #{clean_cell_forward.12} parent=1 // pred_region
      _
    $region25: #{clean_cell_forward.12} parent=1 // pred_fallthru
      _
    // Predicated region
    $region26: #{clean_cell_forward.12} parent=1 // pred_check
      _
    $region27: #{clean_cell_forward.12} parent=1 // pred_check_branch
      %41 = sbr.rel (0) target = $region29
    $region28: #{clean_cell_forward.12} parent=1 // pred_region
      _
    $region29: #{clean_cell_forward.12} parent=1 // pred_fallthru
      _
    // Predicated region
    $region30: #{clean_cell_forward.12} parent=1 // pred_check
      _
    $region31: #{clean_cell_forward.12} parent=1 // pred_check_branch
      %43 = sbr.rel (0) target = $region33
    $region32: #{clean_cell_forward.12} parent=1 // pred_region
      _
    $region33: #{clean_cell_forward.12} parent=1 // pred_fallthru
      _
    // Predicated region
    $region34: #{clean_cell_forward.12} parent=1 // pred_check
      _
    $region35: #{clean_cell_forward.12} parent=1 // pred_check_branch
      %45 = sbr.rel (0) target = $region37
    $region36: #{clean_cell_forward.12} parent=1 // pred_region
      _
    $region37: #{clean_cell_forward.12} parent=1 // pred_fallthru
      _
    // Predicated region
    $region38: #{clean_cell_forward.12} parent=1 // pred_check
      _
    $region39: #{clean_cell_forward.12} parent=1 // pred_check_branch
      %47 = sbr.rel (0) target = $region41
    $region40: #{clean_cell_forward.12} parent=1 // pred_region
      _
    $region41: #{clean_cell_forward.12} parent=1 // pred_fallthru
      _
    // Predicated region
    $region42: #{clean_cell_forward.12} parent=1 // pred_check
      _
    $region43: #{clean_cell_forward.12} parent=1 // pred_check_branch
      %49 = sbr.rel (0) target = $region45
    $region44: #{clean_cell_forward.12} parent=1 // pred_region
      _
    $region45: #{clean_cell_forward.12} parent=1 // pred_fallthru
      _
    // Predicated region
    $region46: #{clean_cell_forward.12} parent=1 // pred_check
      _
    $region47: #{clean_cell_forward.12} parent=1 // pred_check_branch
      %51 = sbr.rel (0) target = $region49
    $region48: #{clean_cell_forward.12} parent=1 // pred_region
      _
    $region49: #{clean_cell_forward.12} parent=1 // pred_fallthru
      _
    // Predicated region
    $region50: #{clean_cell_forward.12} parent=1 // pred_check
      _
    $region51: #{clean_cell_forward.12} parent=1 // pred_check_branch
      %53 = sbr.rel (0) target = $region53
    $region52: #{clean_cell_forward.12} parent=1 // pred_region
      _
    $region53: #{clean_cell_forward.12} parent=1 // pred_fallthru
      _
    // Predicated region
    $region54: #{clean_cell_forward.12} parent=1 // pred_check
      _
    $region55: #{clean_cell_forward.12} parent=1 // pred_check_branch
      %55 = sbr.rel (0) target = $region57
    $region56: #{clean_cell_forward.12} parent=1 // pred_region
      _
    $region57: #{clean_cell_forward.12} parent=1 // pred_fallthru
      _
    // Predicated region
    $region58: #{clean_cell_forward.12} parent=1 // pred_check
      _
    $region59: #{clean_cell_forward.12} parent=1 // pred_check_branch
      %57 = sbr.rel (0) target = $region61
    $region60: #{clean_cell_forward.12} parent=1 // pred_region
      _
    $region61: #{clean_cell_forward.12} parent=1 // pred_fallthru
      _
    // Predicated region
    $region62: #{clean_cell_forward.12} parent=1 // pred_check
      _
    $region63: #{clean_cell_forward.12} parent=1 // pred_check_branch
      %59 = sbr.rel (0) target = $region65
    $region64: #{clean_cell_forward.12} parent=1 // pred_region
      %61 = dma.done [#allocation3], 16
    $region65: #{clean_cell_forward.12} parent=1 // pred_fallthru
      _
    %62 = sfence
    %v63 = vld [vmem:[%s1] sm:$0xff]
    %v64 = vld [vmem:[%s1 + $0x8] sm:$0xff]
    %v65 = vld [vmem:[%s1 + $0x10] sm:$0xff]
    %v66 = vld [vmem:[%s1 + $0x18] sm:$0xff]
    %v67 = vld [vmem:[%s1 + $0x20] sm:$0xff]
    %v68 = vld [vmem:[%s1 + $0x28] sm:$0xff]
    %v69 = vld [vmem:[%s1 + $0x30] sm:$0xff]
    %v70 = vld [vmem:[%s1 + $0x38] sm:$0xff]
    %v71 = vld [vmem:[%s1 + $0x40] sm:$0xff]
    %v72 = vld [vmem:[%s2] ss:$2 sm:$0xff]
    %s73 = scalar_lea.vmem %s2, 16
    %v74 = vld [vmem:[%s73] ss:$2 sm:$0x1]
    %s75 = scalar_lea.vmem %s2, 1
    %v76 = vld [vmem:[%s75] ss:$2 sm:$0xff]
    %s77 = scalar_lea.vmem %s2, 17
    %v78 = vld [vmem:[%s77] ss:$2 sm:$0x1]
    %v79 = vmax.f32 %v63, 0.0
    %v80 = vmax.f32 %v64, 0.0
    %v81 = vmax.f32 %v65, 0.0
    %v82 = vmax.f32 %v66, 0.0
    %v83 = vmax.f32 %v67, 0.0
    %v84 = vmax.f32 %v68, 0.0
    %v85 = vmax.f32 %v69, 0.0
    %v86 = vmax.f32 %v70, 0.0
    %v87 = vmax.f32 %v71, 0.0
    %vm88 = vcmp.gt.f32.partialorder %v72, 0.5
    %vm89 = vcmp.gt.f32.partialorder %v74, 0.5
    %v90 = vsel %vm88, 1, 0
    %v91 = vsel %vm89, 1, 0
    %v92 = vperm.slane %v90, 0
    %v93 = vperm.slane %v90, 1
    %v94 = vperm.slane %v90, 2
    %v95 = vperm.slane %v90, 3
    %v96 = vperm.slane %v90, 4
    %v97 = vperm.slane %v90, 5
    %v98 = vperm.slane %v90, 6
    %v99 = vperm.slane %v90, 7
    %v100 = vperm.slane %v91, 0
    %vm101 = vcmp.eq.s32.totalorder %v92, 1
    %vm102 = vcmp.eq.s32.totalorder %v93, 1
    %vm103 = vcmp.eq.s32.totalorder %v94, 1
    %vm104 = vcmp.eq.s32.totalorder %v95, 1
    %vm105 = vcmp.eq.s32.totalorder %v96, 1
    %vm106 = vcmp.eq.s32.totalorder %v97, 1
    %vm107 = vcmp.eq.s32.totalorder %v98, 1
    %vm108 = vcmp.eq.s32.totalorder %v99, 1
    %vm109 = vcmp.eq.s32.totalorder %v100, 1
    %v110 = vsel %vm101, %v63, -1e+30
    %v111 = vsel %vm102, %v64, -1e+30
    %v112 = vsel %vm103, %v65, -1e+30
    %v113 = vsel %vm104, %v66, -1e+30
    %v114 = vsel %vm105, %v67, -1e+30
    %v115 = vsel %vm106, %v68, -1e+30
    %v116 = vsel %vm107, %v69, -1e+30
    %v117 = vsel %vm108, %v70, -1e+30
    %v118 = vsel %vm109, %v71, -1e+30
    %120 = vrot.lane.b32.xlu0 %v118, 25
    %v121 = vpop.permute.xlu0 %120
    %131 = vrot.lane.b32.xlu0 %v110, 25
    %v132 = vpop.permute.xlu0 %131
    %133 = vrot.lane.b32.xlu0 %v111, 25
    %v134 = vpop.permute.xlu0 %133
    %135 = vrot.lane.b32.xlu0 %v112, 25
    %v136 = vpop.permute.xlu0 %135
    %137 = vrot.lane.b32.xlu0 %v113, 25
    %v138 = vpop.permute.xlu0 %137
    %139 = vrot.lane.b32.xlu0 %v114, 25
    %v140 = vpop.permute.xlu0 %139
    %141 = vrot.lane.b32.xlu0 %v115, 25
    %v142 = vpop.permute.xlu0 %141
    %143 = vrot.lane.b32.xlu0 %v116, 25
    %v144 = vpop.permute.xlu0 %143
    %145 = vrot.lane.b32.xlu0 %v117, 25
    %v146 = vpop.permute.xlu0 %145
    %vm147 = vcmask 203776
    %v148 = vsel %vm147, %v132, %v134
    %v149 = vsel %vm147, %v134, %v136
    %v150 = vsel %vm147, %v136, %v138
    %v151 = vsel %vm147, %v138, %v140
    %v152 = vsel %vm147, %v140, %v142
    %v153 = vsel %vm147, %v142, %v144
    %v154 = vsel %vm147, %v144, %v146
    %v155 = vsel %vm147, %v146, %v121
    %v165 = vsel %vm147, %v121, %v132
    %166 = vrot.lane.b32.xlu0 %v118, 24
    %v167 = vpop.permute.xlu0 %166
    %169 = vrot.lane.b32.xlu0 %v110, 24
    %v170 = vpop.permute.xlu0 %169
    %171 = vrot.lane.b32.xlu0 %v111, 24
    %v172 = vpop.permute.xlu0 %171
    %173 = vrot.lane.b32.xlu0 %v112, 24
    %v174 = vpop.permute.xlu0 %173
    %175 = vrot.lane.b32.xlu0 %v113, 24
    %v176 = vpop.permute.xlu0 %175
    %177 = vrot.lane.b32.xlu0 %v114, 24
    %v178 = vpop.permute.xlu0 %177
    %179 = vrot.lane.b32.xlu0 %v115, 24
    %v180 = vpop.permute.xlu0 %179
    %181 = vrot.lane.b32.xlu0 %v116, 24
    %v182 = vpop.permute.xlu0 %181
    %183 = vrot.lane.b32.xlu0 %v117, 24
    %v184 = vpop.permute.xlu0 %183
    %vm185 = vcmask 195584
    %v186 = vsel %vm185, %v170, %v172
    %v187 = vsel %vm185, %v172, %v174
    %v188 = vsel %vm185, %v174, %v176
    %v189 = vsel %vm185, %v176, %v178
    %v190 = vsel %vm185, %v178, %v180
    %v191 = vsel %vm185, %v180, %v182
    %v192 = vsel %vm185, %v182, %v184
    %v193 = vsel %vm185, %v184, %v167
    %v203 = vsel %vm185, %v167, %v170
    %v204 = vmax.f32 %v165, %v203
    %v205 = vmax.f32 %v148, %v186
    %v206 = vmax.f32 %v149, %v187
    %v207 = vmax.f32 %v150, %v188
    %v208 = vmax.f32 %v151, %v189
    %v209 = vmax.f32 %v152, %v190
    %v210 = vmax.f32 %v153, %v191
    %v211 = vmax.f32 %v154, %v192
    %v212 = vmax.f32 %v155, %v193
    %213 = vrot.lane.b32.xlu0 %v118, 23
    %v214 = vpop.permute.xlu0 %213
    %216 = vrot.lane.b32.xlu0 %v110, 23
    %v217 = vpop.permute.xlu0 %216
    %218 = vrot.lane.b32.xlu0 %v111, 23
    %v219 = vpop.permute.xlu0 %218
    %220 = vrot.lane.b32.xlu0 %v112, 23
    %v221 = vpop.permute.xlu0 %220
    %222 = vrot.lane.b32.xlu0 %v113, 23
    %v223 = vpop.permute.xlu0 %222
    %224 = vrot.lane.b32.xlu0 %v114, 23
    %v225 = vpop.permute.xlu0 %224
    %226 = vrot.lane.b32.xlu0 %v115, 23
    %v227 = vpop.permute.xlu0 %226
    %228 = vrot.lane.b32.xlu0 %v116, 23
    %v229 = vpop.permute.xlu0 %228
    %230 = vrot.lane.b32.xlu0 %v117, 23
    %v231 = vpop.permute.xlu0 %230
    %vm232 = vcmask 187392
    %v233 = vsel %vm232, %v217, %v219
    %v234 = vsel %vm232, %v219, %v221
    %v235 = vsel %vm232, %v221, %v223
    %v236 = vsel %vm232, %v223, %v225
    %v237 = vsel %vm232, %v225, %v227
    %v238 = vsel %vm232, %v227, %v229
    %v239 = vsel %vm232, %v229, %v231
    %v240 = vsel %vm232, %v231, %v214
    %v250 = vsel %vm232, %v214, %v217
    %v251 = vmax.f32 %v204, %v250
    %v252 = vmax.f32 %v205, %v233
    %v253 = vmax.f32 %v206, %v234
    %v254 = vmax.f32 %v207, %v235
    %v255 = vmax.f32 %v208, %v236
    %v256 = vmax.f32 %v209, %v237
    %v257 = vmax.f32 %v210, %v238
    %v258 = vmax.f32 %v211, %v239
    %v259 = vmax.f32 %v212, %v240
    %260 = vrot.lane.b32.xlu0 %v118, 1
    %v261 = vpop.permute.xlu0 %260
    %263 = vrot.lane.b32.xlu0 %v110, 1
    %v264 = vpop.permute.xlu0 %263
    %265 = vrot.lane.b32.xlu0 %v111, 1
    %v266 = vpop.permute.xlu0 %265
    %267 = vrot.lane.b32.xlu0 %v112, 1
    %v268 = vpop.permute.xlu0 %267
    %269 = vrot.lane.b32.xlu0 %v113, 1
    %v270 = vpop.permute.xlu0 %269
    %271 = vrot.lane.b32.xlu0 %v114, 1
    %v272 = vpop.permute.xlu0 %271
    %273 = vrot.lane.b32.xlu0 %v115, 1
    %v274 = vpop.permute.xlu0 %273
    %275 = vrot.lane.b32.xlu0 %v116, 1
    %v276 = vpop.permute.xlu0 %275
    %277 = vrot.lane.b32.xlu0 %v117, 1
    %v278 = vpop.permute.xlu0 %277
    %vm279 = vcmask 7168
    %v280 = vsel %vm279, %v264, %v266
    %v281 = vsel %vm279, %v266, %v268
    %v282 = vsel %vm279, %v268, %v270
    %v283 = vsel %vm279, %v270, %v272
    %v284 = vsel %vm279, %v272, %v274
    %v285 = vsel %vm279, %v274, %v276
    %v286 = vsel %vm279, %v276, %v278
    %v287 = vsel %vm279, %v278, %v261
    %v297 = vsel %vm279, %v261, %v264
    %v298 = vmax.f32 %v251, %v297
    %v299 = vmax.f32 %v252, %v280
    %v300 = vmax.f32 %v253, %v281
    %v301 = vmax.f32 %v254, %v282
    %v302 = vmax.f32 %v255, %v283
    %v303 = vmax.f32 %v256, %v284
    %v304 = vmax.f32 %v257, %v285
    %v305 = vmax.f32 %v258, %v286
    %v306 = vmax.f32 %v259, %v287
    %v307 = vmax.f32 %v298, %v110
    %v308 = vmax.f32 %v299, %v111
    %v309 = vmax.f32 %v300, %v112
    %v310 = vmax.f32 %v301, %v113
    %v311 = vmax.f32 %v302, %v114
    %v312 = vmax.f32 %v303, %v115
    %v313 = vmax.f32 %v304, %v116
    %v314 = vmax.f32 %v305, %v117
    %v315 = vmax.f32 %v306, %v118
    %316 = vrot.lane.b32.xlu0 %v110, 127
    %v317 = vpop.permute.xlu0 %316
    %318 = vrot.lane.b32.xlu0 %v111, 127
    %v319 = vpop.permute.xlu0 %318
    %320 = vrot.lane.b32.xlu0 %v112, 127
    %v321 = vpop.permute.xlu0 %320
    %322 = vrot.lane.b32.xlu0 %v113, 127
    %v323 = vpop.permute.xlu0 %322
    %324 = vrot.lane.b32.xlu0 %v114, 127
    %v325 = vpop.permute.xlu0 %324
    %326 = vrot.lane.b32.xlu0 %v115, 127
    %v327 = vpop.permute.xlu0 %326
    %328 = vrot.lane.b32.xlu0 %v116, 127
    %v329 = vpop.permute.xlu0 %328
    %330 = vrot.lane.b32.xlu0 %v117, 127
    %v331 = vpop.permute.xlu0 %330
    %332 = vrot.lane.b32.xlu0 %v118, 127
    %v333 = vpop.permute.xlu0 %332
    %vm334 = vcmask 1039360
    %v335 = vsel %vm334, %v317, %v319
    %v336 = vsel %vm334, %v319, %v321
    %v337 = vsel %vm334, %v321, %v323
    %v338 = vsel %vm334, %v323, %v325
    %v339 = vsel %vm334, %v325, %v327
    %v340 = vsel %vm334, %v327, %v329
    %v341 = vsel %vm334, %v329, %v331
    %v342 = vsel %vm334, %v331, %v333
    %v353 = vsel %vm334, %v333, %v317
    %v354 = vmax.f32 %v307, %v335
    %v355 = vmax.f32 %v308, %v336
    %v356 = vmax.f32 %v309, %v337
    %v357 = vmax.f32 %v310, %v338
    %v358 = vmax.f32 %v311, %v339
    %v359 = vmax.f32 %v312, %v340
    %v360 = vmax.f32 %v313, %v341
    %v361 = vmax.f32 %v314, %v342
    %v362 = vmax.f32 %v315, %v353
    %363 = vrot.lane.b32.xlu0 %v110, 105
    %v364 = vpop.permute.xlu0 %363
    %365 = vrot.lane.b32.xlu0 %v111, 105
    %v366 = vpop.permute.xlu0 %365
    %367 = vrot.lane.b32.xlu0 %v112, 105
    %v368 = vpop.permute.xlu0 %367
    %369 = vrot.lane.b32.xlu0 %v113, 105
    %v370 = vpop.permute.xlu0 %369
    %371 = vrot.lane.b32.xlu0 %v114, 105
    %v372 = vpop.permute.xlu0 %371
    %373 = vrot.lane.b32.xlu0 %v115, 105
    %v374 = vpop.permute.xlu0 %373
    %375 = vrot.lane.b32.xlu0 %v116, 105
    %v376 = vpop.permute.xlu0 %375
    %377 = vrot.lane.b32.xlu0 %v117, 105
    %v378 = vpop.permute.xlu0 %377
    %379 = vrot.lane.b32.xlu0 %v118, 105
    %v380 = vpop.permute.xlu0 %379
    %vm381 = vcmask 859136
    %v382 = vsel %vm381, %v364, %v366
    %v383 = vsel %vm381, %v366, %v368
    %v384 = vsel %vm381, %v368, %v370
    %v385 = vsel %vm381, %v370, %v372
    %v386 = vsel %vm381, %v372, %v374
    %v387 = vsel %vm381, %v374, %v376
    %v388 = vsel %vm381, %v376, %v378
    %v389 = vsel %vm381, %v378, %v380
    %v400 = vsel %vm381, %v380, %v364
    %v401 = vmax.f32 %v354, %v382
    %v402 = vmax.f32 %v355, %v383
    %v403 = vmax.f32 %v356, %v384
    %v404 = vmax.f32 %v357, %v385
    %v405 = vmax.f32 %v358, %v386
    %v406 = vmax.f32 %v359, %v387
    %v407 = vmax.f32 %v360, %v388
    %v408 = vmax.f32 %v361, %v389
    %v409 = vmax.f32 %v362, %v400
    %410 = vrot.lane.b32.xlu0 %v110, 104
    %v411 = vpop.permute.xlu0 %410
    %412 = vrot.lane.b32.xlu0 %v111, 104
    %v413 = vpop.permute.xlu0 %412
    %414 = vrot.lane.b32.xlu0 %v112, 104
    %v415 = vpop.permute.xlu0 %414
    %416 = vrot.lane.b32.xlu0 %v113, 104
    %v417 = vpop.permute.xlu0 %416
    %418 = vrot.lane.b32.xlu0 %v114, 104
    %v419 = vpop.permute.xlu0 %418
    %420 = vrot.lane.b32.xlu0 %v115, 104
    %v421 = vpop.permute.xlu0 %420
    %422 = vrot.lane.b32.xlu0 %v116, 104
    %v423 = vpop.permute.xlu0 %422
    %424 = vrot.lane.b32.xlu0 %v117, 104
    %v425 = vpop.permute.xlu0 %424
    %426 = vrot.lane.b32.xlu0 %v118, 104
    %v427 = vpop.permute.xlu0 %426
    %vm428 = vcmask 850944
    %v429 = vsel %vm428, %v411, %v413
    %v430 = vsel %vm428, %v413, %v415
    %v431 = vsel %vm428, %v415, %v417
    %v432 = vsel %vm428, %v417, %v419
    %v433 = vsel %vm428, %v419, %v421
    %v434 = vsel %vm428, %v421, %v423
    %v435 = vsel %vm428, %v423, %v425
    %v436 = vsel %vm428, %v425, %v427
    %v447 = vsel %vm428, %v427, %v411
    %v448 = vmax.f32 %v401, %v429
    %v449 = vmax.f32 %v402, %v430
    %v450 = vmax.f32 %v403, %v431
    %v451 = vmax.f32 %v404, %v432
    %v452 = vmax.f32 %v405, %v433
    %v453 = vmax.f32 %v406, %v434
    %v454 = vmax.f32 %v407, %v435
    %v455 = vmax.f32 %v408, %v436
    %v456 = vmax.f32 %v409, %v447
    %457 = vrot.lane.b32.xlu0 %v110, 103
    %v458 = vpop.permute.xlu0 %457
    %459 = vrot.lane.b32.xlu0 %v111, 103
    %v460 = vpop.permute.xlu0 %459
    %461 = vrot.lane.b32.xlu0 %v112, 103
    %v462 = vpop.permute.xlu0 %461
    %463 = vrot.lane.b32.xlu0 %v113, 103
    %v464 = vpop.permute.xlu0 %463
    %465 = vrot.lane.b32.xlu0 %v114, 103
    %v466 = vpop.permute.xlu0 %465
    %467 = vrot.lane.b32.xlu0 %v115, 103
    %v468 = vpop.permute.xlu0 %467
    %469 = vrot.lane.b32.xlu0 %v116, 103
    %v470 = vpop.permute.xlu0 %469
    %471 = vrot.lane.b32.xlu0 %v117, 103
    %v472 = vpop.permute.xlu0 %471
    %473 = vrot.lane.b32.xlu0 %v118, 103
    %v474 = vpop.permute.xlu0 %473
    %vm475 = vcmask 842752
    %v476 = vsel %vm475, %v458, %v460
    %v477 = vsel %vm475, %v460, %v462
    %v478 = vsel %vm475, %v462, %v464
    %v479 = vsel %vm475, %v464, %v466
    %v480 = vsel %vm475, %v466, %v468
    %v481 = vsel %vm475, %v468, %v470
    %v482 = vsel %vm475, %v470, %v472
    %v483 = vsel %vm475, %v472, %v474
    %v494 = vsel %vm475, %v474, %v458
    %v495 = vmax.f32 %v448, %v476
    %v496 = vmax.f32 %v449, %v477
    %v497 = vmax.f32 %v450, %v478
    %v498 = vmax.f32 %v451, %v479
    %v499 = vmax.f32 %v452, %v480
    %v500 = vmax.f32 %v453, %v481
    %v501 = vmax.f32 %v454, %v482
    %v502 = vmax.f32 %v455, %v483
    %v503 = vmax.f32 %v456, %v494
    %v506 = vperm.slane %v72, 0
    %v507 = vperm.slane %v72, 1
    %v508 = vperm.slane %v72, 2
    %v509 = vperm.slane %v72, 3
    %v510 = vperm.slane %v72, 4
    %v511 = vperm.slane %v72, 5
    %v512 = vperm.slane %v72, 6
    %v513 = vperm.slane %v72, 7
    %v514 = vperm.slane %v74, 0
    %v524 = vmul.f32 %v495, %v506
    %v525 = vmul.f32 %v496, %v507
    %v526 = vmul.f32 %v497, %v508
    %v527 = vmul.f32 %v498, %v509
    %v528 = vmul.f32 %v499, %v510
    %v529 = vmul.f32 %v500, %v511
    %v530 = vmul.f32 %v501, %v512
    %v531 = vmul.f32 %v502, %v513
    %v532 = vmul.f32 %v503, %v514
    %v533 = vadd.f32 %v524, %v525
    %v534 = vadd.f32 %v533, %v526
    %v535 = vadd.f32 %v534, %v527
    %v536 = vadd.f32 %v535, %v528
    %v537 = vadd.f32 %v536, %v529
    %v538 = vadd.f32 %v537, %v530
    %v539 = vadd.f32 %v538, %v531
    %v540 = vadd.f32 %v539, %v532
    %541 = vadd.xlane.f32.xlu0 %v540
    %v542 = vpop.xlane.xlu0 %541
    %v543 = vmul.f32 %v542, 0.001953125
    %v544 = vsub.f32 %v495, %v543
    %v545 = vsub.f32 %v496, %v543
    %v546 = vsub.f32 %v497, %v543
    %v547 = vsub.f32 %v498, %v543
    %v548 = vsub.f32 %v499, %v543
    %v549 = vsub.f32 %v500, %v543
    %v550 = vsub.f32 %v501, %v543
    %v551 = vsub.f32 %v502, %v543
    %v552 = vsub.f32 %v503, %v543
    %v553 = vmul.f32 %v544, %v506
    %v554 = vmul.f32 %v545, %v507
    %v555 = vmul.f32 %v546, %v508
    %v556 = vmul.f32 %v547, %v509
    %v557 = vmul.f32 %v548, %v510
    %v558 = vmul.f32 %v549, %v511
    %v559 = vmul.f32 %v550, %v512
    %v560 = vmul.f32 %v551, %v513
    %v561 = vmul.f32 %v552, %v514
    %v562 = vmul.f32 %v553, %v553
    %v563 = vmul.f32 %v554, %v554
    %v564 = vmul.f32 %v555, %v555
    %v565 = vmul.f32 %v556, %v556
    %v566 = vmul.f32 %v557, %v557
    %v567 = vmul.f32 %v558, %v558
    %v568 = vmul.f32 %v559, %v559
    %v569 = vmul.f32 %v560, %v560
    %v570 = vmul.f32 %v561, %v561
    %v571 = vadd.f32 %v562, %v563
    %v572 = vadd.f32 %v571, %v564
    %v573 = vadd.f32 %v572, %v565
    %v574 = vadd.f32 %v573, %v566
    %v575 = vadd.f32 %v574, %v567
    %v576 = vadd.f32 %v575, %v568
    %v577 = vadd.f32 %v576, %v569
    %v578 = vadd.f32 %v577, %v570
    %579 = vadd.xlane.f32.xlu0 %v578
    %v580 = vpop.xlane.xlu0 %579
    %v581 = vmul.f32 %v580, 0.001953125
    %v582 = vadd.f32 %v581, 1e-05
    %v583 = vrsqrt.pop %v582
    %v584 = vmul.f32 %v583, %v582
    %v585 = vmul.f32 %v584, %v583
    %v586 = vmul.f32 0.5, %v585
    %v587 = vsub.f32 1.5, %v586
    %v588 = vmul.f32 %v583, %v587
    %vm589 = vweird.f32 %v582
    %vm590 = vweird.f32 %v583
    %vm591 = vmor %vm589, %vm590
    %v592 = vsel %vm591, %v583, %v588
    %v593 = vmul.f32 %v544, %v592
    %v594 = vmul.f32 %v545, %v592
    %v595 = vmul.f32 %v546, %v592
    %v596 = vmul.f32 %v547, %v592
    %v597 = vmul.f32 %v548, %v592
    %v598 = vmul.f32 %v549, %v592
    %v599 = vmul.f32 %v550, %v592
    %v600 = vmul.f32 %v551, %v592
    %v601 = vmul.f32 %v552, %v592
    %603 = vrot.lane.b32.xlu0 %v71, 25
    %v604 = vpop.permute.xlu0 %603
    %614 = vrot.lane.b32.xlu0 %v63, 25
    %v615 = vpop.permute.xlu0 %614
    %616 = vrot.lane.b32.xlu0 %v64, 25
    %v617 = vpop.permute.xlu0 %616
    %618 = vrot.lane.b32.xlu0 %v65, 25
    %v619 = vpop.permute.xlu0 %618
    %620 = vrot.lane.b32.xlu0 %v66, 25
    %v621 = vpop.permute.xlu0 %620
    %622 = vrot.lane.b32.xlu0 %v67, 25
    %v623 = vpop.permute.xlu0 %622
    %624 = vrot.lane.b32.xlu0 %v68, 25
    %v625 = vpop.permute.xlu0 %624
    %626 = vrot.lane.b32.xlu0 %v69, 25
    %v627 = vpop.permute.xlu0 %626
    %628 = vrot.lane.b32.xlu0 %v70, 25
    %v629 = vpop.permute.xlu0 %628
    %v630 = vsel %vm147, %v615, %v617
    %v631 = vsel %vm147, %v617, %v619
    %v632 = vsel %vm147, %v619, %v621
    %v633 = vsel %vm147, %v621, %v623
    %v634 = vsel %vm147, %v623, %v625
    %v635 = vsel %vm147, %v625, %v627
    %v636 = vsel %vm147, %v627, %v629
    %v637 = vsel %vm147, %v629, %v604
    %v647 = vsel %vm147, %v604, %v615
    %648 = vrot.lane.b32.xlu0 %v71, 24
    %v649 = vpop.permute.xlu0 %648
    %651 = vrot.lane.b32.xlu0 %v63, 24
    %v652 = vpop.permute.xlu0 %651
    %653 = vrot.lane.b32.xlu0 %v64, 24
    %v654 = vpop.permute.xlu0 %653
    %655 = vrot.lane.b32.xlu0 %v65, 24
    %v656 = vpop.permute.xlu0 %655
    %657 = vrot.lane.b32.xlu0 %v66, 24
    %v658 = vpop.permute.xlu0 %657
    %659 = vrot.lane.b32.xlu0 %v67, 24
    %v660 = vpop.permute.xlu0 %659
    %661 = vrot.lane.b32.xlu0 %v68, 24
    %v662 = vpop.permute.xlu0 %661
    %663 = vrot.lane.b32.xlu0 %v69, 24
    %v664 = vpop.permute.xlu0 %663
    %665 = vrot.lane.b32.xlu0 %v70, 24
    %v666 = vpop.permute.xlu0 %665
    %v667 = vsel %vm185, %v652, %v654
    %v668 = vsel %vm185, %v654, %v656
    %v669 = vsel %vm185, %v656, %v658
    %v670 = vsel %vm185, %v658, %v660
    %v671 = vsel %vm185, %v660, %v662
    %v672 = vsel %vm185, %v662, %v664
    %v673 = vsel %vm185, %v664, %v666
    %v674 = vsel %vm185, %v666, %v649
    %v684 = vsel %vm185, %v649, %v652
    %v685 = vadd.f32 %v647, %v684
    %v686 = vadd.f32 %v630, %v667
    %v687 = vadd.f32 %v631, %v668
    %v688 = vadd.f32 %v632, %v669
    %v689 = vadd.f32 %v633, %v670
    %v690 = vadd.f32 %v634, %v671
    %v691 = vadd.f32 %v635, %v672
    %v692 = vadd.f32 %v636, %v673
    %v693 = vadd.f32 %v637, %v674
    %694 = vrot.lane.b32.xlu0 %v71, 23
    %v695 = vpop.permute.xlu0 %694
    %697 = vrot.lane.b32.xlu0 %v63, 23
    %v698 = vpop.permute.xlu0 %697
    %699 = vrot.lane.b32.xlu0 %v64, 23
    %v700 = vpop.permute.xlu0 %699
    %701 = vrot.lane.b32.xlu0 %v65, 23
    %v702 = vpop.permute.xlu0 %701
    %703 = vrot.lane.b32.xlu0 %v66, 23
    %v704 = vpop.permute.xlu0 %703
    %705 = vrot.lane.b32.xlu0 %v67, 23
    %v706 = vpop.permute.xlu0 %705
    %707 = vrot.lane.b32.xlu0 %v68, 23
    %v708 = vpop.permute.xlu0 %707
    %709 = vrot.lane.b32.xlu0 %v69, 23
    %v710 = vpop.permute.xlu0 %709
    %711 = vrot.lane.b32.xlu0 %v70, 23
    %v712 = vpop.permute.xlu0 %711
    %v713 = vsel %vm232, %v698, %v700
    %v714 = vsel %vm232, %v700, %v702
    %v715 = vsel %vm232, %v702, %v704
    %v716 = vsel %vm232, %v704, %v706
    %v717 = vsel %vm232, %v706, %v708
    %v718 = vsel %vm232, %v708, %v710
    %v719 = vsel %vm232, %v710, %v712
    %v720 = vsel %vm232, %v712, %v695
    %v730 = vsel %vm232, %v695, %v698
    %v731 = vadd.f32 %v685, %v730
    %v732 = vadd.f32 %v686, %v713
    %v733 = vadd.f32 %v687, %v714
    %v734 = vadd.f32 %v688, %v715
    %v735 = vadd.f32 %v689, %v716
    %v736 = vadd.f32 %v690, %v717
    %v737 = vadd.f32 %v691, %v718
    %v738 = vadd.f32 %v692, %v719
    %v739 = vadd.f32 %v693, %v720
    %740 = vrot.lane.b32.xlu0 %v71, 1
    %v741 = vpop.permute.xlu0 %740
    %743 = vrot.lane.b32.xlu0 %v63, 1
    %v744 = vpop.permute.xlu0 %743
    %745 = vrot.lane.b32.xlu0 %v64, 1
    %v746 = vpop.permute.xlu0 %745
    %747 = vrot.lane.b32.xlu0 %v65, 1
    %v748 = vpop.permute.xlu0 %747
    %749 = vrot.lane.b32.xlu0 %v66, 1
    %v750 = vpop.permute.xlu0 %749
    %751 = vrot.lane.b32.xlu0 %v67, 1
    %v752 = vpop.permute.xlu0 %751
    %753 = vrot.lane.b32.xlu0 %v68, 1
    %v754 = vpop.permute.xlu0 %753
    %755 = vrot.lane.b32.xlu0 %v69, 1
    %v756 = vpop.permute.xlu0 %755
    %757 = vrot.lane.b32.xlu0 %v70, 1
    %v758 = vpop.permute.xlu0 %757
    %v759 = vsel %vm279, %v744, %v746
    %v760 = vsel %vm279, %v746, %v748
    %v761 = vsel %vm279, %v748, %v750
    %v762 = vsel %vm279, %v750, %v752
    %v763 = vsel %vm279, %v752, %v754
    %v764 = vsel %vm279, %v754, %v756
    %v765 = vsel %vm279, %v756, %v758
    %v766 = vsel %vm279, %v758, %v741
    %v776 = vsel %vm279, %v741, %v744
    %v777 = vadd.f32 %v731, %v776
    %v778 = vadd.f32 %v732, %v759
    %v779 = vadd.f32 %v733, %v760
    %v780 = vadd.f32 %v734, %v761
    %v781 = vadd.f32 %v735, %v762
    %v782 = vadd.f32 %v736, %v763
    %v783 = vadd.f32 %v737, %v764
    %v784 = vadd.f32 %v738, %v765
    %v785 = vadd.f32 %v739, %v766
    %v786 = vadd.f32 %v777, %v63
    %v787 = vadd.f32 %v778, %v64
    %v788 = vadd.f32 %v779, %v65
    %v789 = vadd.f32 %v780, %v66
    %v790 = vadd.f32 %v781, %v67
    %v791 = vadd.f32 %v782, %v68
    %v792 = vadd.f32 %v783, %v69
    %v793 = vadd.f32 %v784, %v70
    %v794 = vadd.f32 %v785, %v71
    %795 = vrot.lane.b32.xlu0 %v63, 127
    %v796 = vpop.permute.xlu0 %795
    %797 = vrot.lane.b32.xlu0 %v64, 127
    %v798 = vpop.permute.xlu0 %797
    %799 = vrot.lane.b32.xlu0 %v65, 127
    %v800 = vpop.permute.xlu0 %799
    %801 = vrot.lane.b32.xlu0 %v66, 127
    %v802 = vpop.permute.xlu0 %801
    %803 = vrot.lane.b32.xlu0 %v67, 127
    %v804 = vpop.permute.xlu0 %803
    %805 = vrot.lane.b32.xlu0 %v68, 127
    %v806 = vpop.permute.xlu0 %805
    %807 = vrot.lane.b32.xlu0 %v69, 127
    %v808 = vpop.permute.xlu0 %807
    %809 = vrot.lane.b32.xlu0 %v70, 127
    %v810 = vpop.permute.xlu0 %809
    %811 = vrot.lane.b32.xlu0 %v71, 127
    %v812 = vpop.permute.xlu0 %811
    %v813 = vsel %vm334, %v796, %v798
    %v814 = vsel %vm334, %v798, %v800
    %v815 = vsel %vm334, %v800, %v802
    %v816 = vsel %vm334, %v802, %v804
    %v817 = vsel %vm334, %v804, %v806
    %v818 = vsel %vm334, %v806, %v808
    %v819 = vsel %vm334, %v808, %v810
    %v820 = vsel %vm334, %v810, %v812
    %v831 = vsel %vm334, %v812, %v796
    %v832 = vadd.f32 %v786, %v813
    %v833 = vadd.f32 %v787, %v814
    %v834 = vadd.f32 %v788, %v815
    %v835 = vadd.f32 %v789, %v816
    %v836 = vadd.f32 %v790, %v817
    %v837 = vadd.f32 %v791, %v818
    %v838 = vadd.f32 %v792, %v819
    %v839 = vadd.f32 %v793, %v820
    %v840 = vadd.f32 %v794, %v831
    %841 = vrot.lane.b32.xlu0 %v63, 105
    %v842 = vpop.permute.xlu0 %841
    %843 = vrot.lane.b32.xlu0 %v64, 105
    %v844 = vpop.permute.xlu0 %843
    %845 = vrot.lane.b32.xlu0 %v65, 105
    %v846 = vpop.permute.xlu0 %845
    %847 = vrot.lane.b32.xlu0 %v66, 105
    %v848 = vpop.permute.xlu0 %847
    %849 = vrot.lane.b32.xlu0 %v67, 105
    %v850 = vpop.permute.xlu0 %849
    %851 = vrot.lane.b32.xlu0 %v68, 105
    %v852 = vpop.permute.xlu0 %851
    %853 = vrot.lane.b32.xlu0 %v69, 105
    %v854 = vpop.permute.xlu0 %853
    %855 = vrot.lane.b32.xlu0 %v70, 105
    %v856 = vpop.permute.xlu0 %855
    %857 = vrot.lane.b32.xlu0 %v71, 105
    %v858 = vpop.permute.xlu0 %857
    %v859 = vsel %vm381, %v842, %v844
    %v860 = vsel %vm381, %v844, %v846
    %v861 = vsel %vm381, %v846, %v848
    %v862 = vsel %vm381, %v848, %v850
    %v863 = vsel %vm381, %v850, %v852
    %v864 = vsel %vm381, %v852, %v854
    %v865 = vsel %vm381, %v854, %v856
    %v866 = vsel %vm381, %v856, %v858
    %v877 = vsel %vm381, %v858, %v842
    %v878 = vadd.f32 %v832, %v859
    %v879 = vadd.f32 %v833, %v860
    %v880 = vadd.f32 %v834, %v861
    %v881 = vadd.f32 %v835, %v862
    %v882 = vadd.f32 %v836, %v863
    %v883 = vadd.f32 %v837, %v864
    %v884 = vadd.f32 %v838, %v865
    %v885 = vadd.f32 %v839, %v866
    %v886 = vadd.f32 %v840, %v877
    %887 = vrot.lane.b32.xlu0 %v63, 104
    %v888 = vpop.permute.xlu0 %887
    %889 = vrot.lane.b32.xlu0 %v64, 104
    %v890 = vpop.permute.xlu0 %889
    %891 = vrot.lane.b32.xlu0 %v65, 104
    %v892 = vpop.permute.xlu0 %891
    %893 = vrot.lane.b32.xlu0 %v66, 104
    %v894 = vpop.permute.xlu0 %893
    %895 = vrot.lane.b32.xlu0 %v67, 104
    %v896 = vpop.permute.xlu0 %895
    %897 = vrot.lane.b32.xlu0 %v68, 104
    %v898 = vpop.permute.xlu0 %897
    %899 = vrot.lane.b32.xlu0 %v69, 104
    %v900 = vpop.permute.xlu0 %899
    %901 = vrot.lane.b32.xlu0 %v70, 104
    %v902 = vpop.permute.xlu0 %901
    %903 = vrot.lane.b32.xlu0 %v71, 104
    %v904 = vpop.permute.xlu0 %903
    %v905 = vsel %vm428, %v888, %v890
    %v906 = vsel %vm428, %v890, %v892
    %v907 = vsel %vm428, %v892, %v894
    %v908 = vsel %vm428, %v894, %v896
    %v909 = vsel %vm428, %v896, %v898
    %v910 = vsel %vm428, %v898, %v900
    %v911 = vsel %vm428, %v900, %v902
    %v912 = vsel %vm428, %v902, %v904
    %v923 = vsel %vm428, %v904, %v888
    %v924 = vadd.f32 %v878, %v905
    %v925 = vadd.f32 %v879, %v906
    %v926 = vadd.f32 %v880, %v907
    %v927 = vadd.f32 %v881, %v908
    %v928 = vadd.f32 %v882, %v909
    %v929 = vadd.f32 %v883, %v910
    %v930 = vadd.f32 %v884, %v911
    %v931 = vadd.f32 %v885, %v912
    %v932 = vadd.f32 %v886, %v923
    %933 = vrot.lane.b32.xlu0 %v63, 103
    %v934 = vpop.permute.xlu0 %933
    %935 = vrot.lane.b32.xlu0 %v64, 103
    %v936 = vpop.permute.xlu0 %935
    %937 = vrot.lane.b32.xlu0 %v65, 103
    %v938 = vpop.permute.xlu0 %937
    %939 = vrot.lane.b32.xlu0 %v66, 103
    %v940 = vpop.permute.xlu0 %939
    %941 = vrot.lane.b32.xlu0 %v67, 103
    %v942 = vpop.permute.xlu0 %941
    %943 = vrot.lane.b32.xlu0 %v68, 103
    %v944 = vpop.permute.xlu0 %943
    %945 = vrot.lane.b32.xlu0 %v69, 103
    %v946 = vpop.permute.xlu0 %945
    %947 = vrot.lane.b32.xlu0 %v70, 103
    %v948 = vpop.permute.xlu0 %947
    %949 = vrot.lane.b32.xlu0 %v71, 103
    %v950 = vpop.permute.xlu0 %949
    %v951 = vsel %vm475, %v934, %v936
    %v952 = vsel %vm475, %v936, %v938
    %v953 = vsel %vm475, %v938, %v940
    %v954 = vsel %vm475, %v940, %v942
    %v955 = vsel %vm475, %v942, %v944
    %v956 = vsel %vm475, %v944, %v946
    %v957 = vsel %vm475, %v946, %v948
    %v958 = vsel %vm475, %v948, %v950
    %v969 = vsel %vm475, %v950, %v934
    %v970 = vadd.f32 %v924, %v951
    %v971 = vadd.f32 %v925, %v952
    %v972 = vadd.f32 %v926, %v953
    %v973 = vadd.f32 %v927, %v954
    %v974 = vadd.f32 %v928, %v955
    %v975 = vadd.f32 %v929, %v956
    %v976 = vadd.f32 %v930, %v957
    %v977 = vadd.f32 %v931, %v958
    %v978 = vadd.f32 %v932, %v969
    %v981 = vperm.slane %v76, 0
    %v982 = vperm.slane %v76, 1
    %v983 = vperm.slane %v76, 2
    %v984 = vperm.slane %v76, 3
    %v985 = vperm.slane %v76, 4
    %v986 = vperm.slane %v76, 5
    %v987 = vperm.slane %v76, 6
    %v988 = vperm.slane %v76, 7
    %v989 = vperm.slane %v78, 0
    %v999 = vrcp.pop %v981
    %v1000 = vmul.f32 %v981, %v999
    %v1001 = vsub.f32 1.0, %v1000
    %v1002 = vmul.f32 %v999, %v1001
    %v1003 = vadd.f32 %v999, %v1002
    %vm1004 = vweird.f32 %v981
    %vm1005 = vweird.f32 %v999
    %vm1006 = vmor %vm1004, %vm1005
    %v1007 = vsel %vm1006, %v999, %v1003
    %v1008 = vand.u32 2147483647, %v981
    %vm1009 = vcmp.eq.f32.partialorder %v1008, 8.507059e+37
    %v1010 = vand.u32 %v981, 2147483648
    %v1011 = vor.u32 1.1754944e-38, %v1010
    %v1012 = vsel %vm1009, %v1011, %v1007
    %v1013 = vmul.f32 %v970, %v1012
    %v1014 = vrcp.pop %v982
    %v1015 = vmul.f32 %v982, %v1014
    %v1016 = vsub.f32 1.0, %v1015
    %v1017 = vmul.f32 %v1014, %v1016
    %v1018 = vadd.f32 %v1014, %v1017
    %vm1019 = vweird.f32 %v982
    %vm1020 = vweird.f32 %v1014
    %vm1021 = vmor %vm1019, %vm1020
    %v1022 = vsel %vm1021, %v1014, %v1018
    %v1023 = vand.u32 2147483647, %v982
    %vm1024 = vcmp.eq.f32.partialorder %v1023, 8.507059e+37
    %v1025 = vand.u32 %v982, 2147483648
    %v1026 = vor.u32 1.1754944e-38, %v1025
    %v1027 = vsel %vm1024, %v1026, %v1022
    %v1028 = vmul.f32 %v971, %v1027
    %v1029 = vrcp.pop %v983
    %v1030 = vmul.f32 %v983, %v1029
    %v1031 = vsub.f32 1.0, %v1030
    %v1032 = vmul.f32 %v1029, %v1031
    %v1033 = vadd.f32 %v1029, %v1032
    %vm1034 = vweird.f32 %v983
    %vm1035 = vweird.f32 %v1029
    %vm1036 = vmor %vm1034, %vm1035
    %v1037 = vsel %vm1036, %v1029, %v1033
    %v1038 = vand.u32 2147483647, %v983
    %vm1039 = vcmp.eq.f32.partialorder %v1038, 8.507059e+37
    %v1040 = vand.u32 %v983, 2147483648
    %v1041 = vor.u32 1.1754944e-38, %v1040
    %v1042 = vsel %vm1039, %v1041, %v1037
    %v1043 = vmul.f32 %v972, %v1042
    %v1044 = vrcp.pop %v984
    %v1045 = vmul.f32 %v984, %v1044
    %v1046 = vsub.f32 1.0, %v1045
    %v1047 = vmul.f32 %v1044, %v1046
    %v1048 = vadd.f32 %v1044, %v1047
    %vm1049 = vweird.f32 %v984
    %vm1050 = vweird.f32 %v1044
    %vm1051 = vmor %vm1049, %vm1050
    %v1052 = vsel %vm1051, %v1044, %v1048
    %v1053 = vand.u32 2147483647, %v984
    %vm1054 = vcmp.eq.f32.partialorder %v1053, 8.507059e+37
    %v1055 = vand.u32 %v984, 2147483648
    %v1056 = vor.u32 1.1754944e-38, %v1055
    %v1057 = vsel %vm1054, %v1056, %v1052
    %v1058 = vmul.f32 %v973, %v1057
    %v1059 = vrcp.pop %v985
    %v1060 = vmul.f32 %v985, %v1059
    %v1061 = vsub.f32 1.0, %v1060
    %v1062 = vmul.f32 %v1059, %v1061
    %v1063 = vadd.f32 %v1059, %v1062
    %vm1064 = vweird.f32 %v985
    %vm1065 = vweird.f32 %v1059
    %vm1066 = vmor %vm1064, %vm1065
    %v1067 = vsel %vm1066, %v1059, %v1063
    %v1068 = vand.u32 2147483647, %v985
    %vm1069 = vcmp.eq.f32.partialorder %v1068, 8.507059e+37
    %v1070 = vand.u32 %v985, 2147483648
    %v1071 = vor.u32 1.1754944e-38, %v1070
    %v1072 = vsel %vm1069, %v1071, %v1067
    %v1073 = vmul.f32 %v974, %v1072
    %v1074 = vrcp.pop %v986
    %v1075 = vmul.f32 %v986, %v1074
    %v1076 = vsub.f32 1.0, %v1075
    %v1077 = vmul.f32 %v1074, %v1076
    %v1078 = vadd.f32 %v1074, %v1077
    %vm1079 = vweird.f32 %v986
    %vm1080 = vweird.f32 %v1074
    %vm1081 = vmor %vm1079, %vm1080
    %v1082 = vsel %vm1081, %v1074, %v1078
    %v1083 = vand.u32 2147483647, %v986
    %vm1084 = vcmp.eq.f32.partialorder %v1083, 8.507059e+37
    %v1085 = vand.u32 %v986, 2147483648
    %v1086 = vor.u32 1.1754944e-38, %v1085
    %v1087 = vsel %vm1084, %v1086, %v1082
    %v1088 = vmul.f32 %v975, %v1087
    %v1089 = vrcp.pop %v987
    %v1090 = vmul.f32 %v987, %v1089
    %v1091 = vsub.f32 1.0, %v1090
    %v1092 = vmul.f32 %v1089, %v1091
    %v1093 = vadd.f32 %v1089, %v1092
    %vm1094 = vweird.f32 %v987
    %vm1095 = vweird.f32 %v1089
    %vm1096 = vmor %vm1094, %vm1095
    %v1097 = vsel %vm1096, %v1089, %v1093
    %v1098 = vand.u32 2147483647, %v987
    %vm1099 = vcmp.eq.f32.partialorder %v1098, 8.507059e+37
    %v1100 = vand.u32 %v987, 2147483648
    %v1101 = vor.u32 1.1754944e-38, %v1100
    %v1102 = vsel %vm1099, %v1101, %v1097
    %v1103 = vmul.f32 %v976, %v1102
    %v1104 = vrcp.pop %v988
    %v1105 = vmul.f32 %v988, %v1104
    %v1106 = vsub.f32 1.0, %v1105
    %v1107 = vmul.f32 %v1104, %v1106
    %v1108 = vadd.f32 %v1104, %v1107
    %vm1109 = vweird.f32 %v988
    %vm1110 = vweird.f32 %v1104
    %vm1111 = vmor %vm1109, %vm1110
    %v1112 = vsel %vm1111, %v1104, %v1108
    %v1113 = vand.u32 2147483647, %v988
    %vm1114 = vcmp.eq.f32.partialorder %v1113, 8.507059e+37
    %v1115 = vand.u32 %v988, 2147483648
    %v1116 = vor.u32 1.1754944e-38, %v1115
    %v1117 = vsel %vm1114, %v1116, %v1112
    %v1118 = vmul.f32 %v977, %v1117
    %v1119 = vrcp.pop %v989
    %v1120 = vmul.f32 %v989, %v1119
    %v1121 = vsub.f32 1.0, %v1120
    %v1122 = vmul.f32 %v1119, %v1121
    %v1123 = vadd.f32 %v1119, %v1122
    %vm1124 = vweird.f32 %v989
    %vm1125 = vweird.f32 %v1119
    %vm1126 = vmor %vm1124, %vm1125
    %v1127 = vsel %vm1126, %v1119, %v1123
    %v1128 = vand.u32 2147483647, %v989
    %vm1129 = vcmp.eq.f32.partialorder %v1128, 8.507059e+37
    %v1130 = vand.u32 %v989, 2147483648
    %v1131 = vor.u32 1.1754944e-38, %v1130
    %v1132 = vsel %vm1129, %v1131, %v1127
    %v1133 = vmul.f32 %v978, %v1132
    %v1134 = vmul.f32 %v1013, %v506
    %v1135 = vmul.f32 %v1028, %v507
    %v1136 = vmul.f32 %v1043, %v508
    %v1137 = vmul.f32 %v1058, %v509
    %v1138 = vmul.f32 %v1073, %v510
    %v1139 = vmul.f32 %v1088, %v511
    %v1140 = vmul.f32 %v1103, %v512
    %v1141 = vmul.f32 %v1118, %v513
    %v1142 = vmul.f32 %v1133, %v514
    %v1143 = vadd.f32 %v1134, %v1135
    %v1144 = vadd.f32 %v1143, %v1136
    %v1145 = vadd.f32 %v1144, %v1137
    %v1146 = vadd.f32 %v1145, %v1138
    %v1147 = vadd.f32 %v1146, %v1139
    %v1148 = vadd.f32 %v1147, %v1140
    %v1149 = vadd.f32 %v1148, %v1141
    %v1150 = vadd.f32 %v1149, %v1142
    %1151 = vadd.xlane.f32.xlu0 %v1150
    %v1152 = vpop.xlane.xlu0 %1151
    %v1153 = vmul.f32 %v1152, 0.001953125
    %v1154 = vsub.f32 %v1013, %v1153
    %v1155 = vsub.f32 %v1028, %v1153
    %v1156 = vsub.f32 %v1043, %v1153
    %v1157 = vsub.f32 %v1058, %v1153
    %v1158 = vsub.f32 %v1073, %v1153
    %v1159 = vsub.f32 %v1088, %v1153
    %v1160 = vsub.f32 %v1103, %v1153
    %v1161 = vsub.f32 %v1118, %v1153
    %v1162 = vsub.f32 %v1133, %v1153
    %v1163 = vmul.f32 %v1154, %v506
    %v1164 = vmul.f32 %v1155, %v507
    %v1165 = vmul.f32 %v1156, %v508
    %v1166 = vmul.f32 %v1157, %v509
    %v1167 = vmul.f32 %v1158, %v510
    %v1168 = vmul.f32 %v1159, %v511
    %v1169 = vmul.f32 %v1160, %v512
    %v1170 = vmul.f32 %v1161, %v513
    %v1171 = vmul.f32 %v1162, %v514
    %v1172 = vmul.f32 %v1163, %v1163
    %v1173 = vmul.f32 %v1164, %v1164
    %v1174 = vmul.f32 %v1165, %v1165
    %v1175 = vmul.f32 %v1166, %v1166
    %v1176 = vmul.f32 %v1167, %v1167
    %v1177 = vmul.f32 %v1168, %v1168
    %v1178 = vmul.f32 %v1169, %v1169
    %v1179 = vmul.f32 %v1170, %v1170
    %v1180 = vmul.f32 %v1171, %v1171
    %v1181 = vadd.f32 %v1172, %v1173
    %v1182 = vadd.f32 %v1181, %v1174
    %v1183 = vadd.f32 %v1182, %v1175
    %v1184 = vadd.f32 %v1183, %v1176
    %v1185 = vadd.f32 %v1184, %v1177
    %v1186 = vadd.f32 %v1185, %v1178
    %v1187 = vadd.f32 %v1186, %v1179
    %v1188 = vadd.f32 %v1187, %v1180
    %1189 = vadd.xlane.f32.xlu0 %v1188
    %v1190 = vpop.xlane.xlu0 %1189
    %v1191 = vmul.f32 %v1190, 0.001953125
    %v1192 = vadd.f32 %v1191, 1e-05
    %v1193 = vrsqrt.pop %v1192
    %v1194 = vmul.f32 %v1193, %v1192
    %v1195 = vmul.f32 %v1194, %v1193
    %v1196 = vmul.f32 0.5, %v1195
    %v1197 = vsub.f32 1.5, %v1196
    %v1198 = vmul.f32 %v1193, %v1197
    %vm1199 = vweird.f32 %v1192
    %vm1200 = vweird.f32 %v1193
    %vm1201 = vmor %vm1199, %vm1200
    %v1202 = vsel %vm1201, %v1193, %v1198
    %v1203 = vmul.f32 %v1154, %v1202
    %v1204 = vmul.f32 %v1155, %v1202
    %v1205 = vmul.f32 %v1156, %v1202
    %v1206 = vmul.f32 %v1157, %v1202
    %v1207 = vmul.f32 %v1158, %v1202
    %v1208 = vmul.f32 %v1159, %v1202
    %v1209 = vmul.f32 %v1160, %v1202
    %v1210 = vmul.f32 %v1161, %v1202
    %v1211 = vmul.f32 %v1162, %v1202
    %s1212 = sld [smem:[#allocation2 + $0x1]]
    %v1213 = vstv %s1212
    %v1214 = vmul.f32 %v1213, %v593
    %v1215 = vmul.f32 %v1213, %v594
    %v1216 = vmul.f32 %v1213, %v595
    %v1217 = vmul.f32 %v1213, %v596
    %v1218 = vmul.f32 %v1213, %v597
    %v1219 = vmul.f32 %v1213, %v598
    %v1220 = vmul.f32 %v1213, %v599
    %v1221 = vmul.f32 %v1213, %v600
    %v1222 = vmul.f32 %v1213, %v601
    %s1223 = sld [smem:[#allocation2 + $0x2]]
    %v1224 = vstv %s1223
    %v1225 = vmul.f32 %v1224, %v1203
    %v1226 = vmul.f32 %v1224, %v1204
    %v1227 = vmul.f32 %v1224, %v1205
    %v1228 = vmul.f32 %v1224, %v1206
    %v1229 = vmul.f32 %v1224, %v1207
    %v1230 = vmul.f32 %v1224, %v1208
    %v1231 = vmul.f32 %v1224, %v1209
    %v1232 = vmul.f32 %v1224, %v1210
    %v1233 = vmul.f32 %v1224, %v1211
    %v1234 = vadd.f32 %v1214, %v1225
    %v1235 = vadd.f32 %v1215, %v1226
    %v1236 = vadd.f32 %v1216, %v1227
    %v1237 = vadd.f32 %v1217, %v1228
    %v1238 = vadd.f32 %v1218, %v1229
    %v1239 = vadd.f32 %v1219, %v1230
    %v1240 = vadd.f32 %v1220, %v1231
    %v1241 = vadd.f32 %v1221, %v1232
    %v1242 = vadd.f32 %v1222, %v1233
    %s1243 = sld [smem:[#allocation2 + $0x3]]
    %v1244 = vstv %s1243
    %v1245 = vmul.f32 %v1244, %v63
    %v1246 = vmul.f32 %v1244, %v64
    %v1247 = vmul.f32 %v1244, %v65
    %v1248 = vmul.f32 %v1244, %v66
    %v1249 = vmul.f32 %v1244, %v67
    %v1250 = vmul.f32 %v1244, %v68
    %v1251 = vmul.f32 %v1244, %v69
    %v1252 = vmul.f32 %v1244, %v70
    %v1253 = vmul.f32 %v1244, %v71
    %v1254 = vadd.f32 %v1234, %v1245
    %v1255 = vadd.f32 %v1235, %v1246
    %v1256 = vadd.f32 %v1236, %v1247
    %v1257 = vadd.f32 %v1237, %v1248
    %v1258 = vadd.f32 %v1238, %v1249
    %v1259 = vadd.f32 %v1239, %v1250
    %v1260 = vadd.f32 %v1240, %v1251
    %v1261 = vadd.f32 %v1241, %v1252
    %v1262 = vadd.f32 %v1242, %v1253
    %s1263 = sld [smem:[#allocation2 + $0x4]]
    %v1264 = vld [vmem:[%s3] sm:$0xff]
    %1266 = vrot.lane.b32.xlu0 %v87, 25
    %v1267 = vpop.permute.xlu0 %1266
    %1277 = vrot.lane.b32.xlu0 %v79, 25
    %v1278 = vpop.permute.xlu0 %1277
    %1279 = vrot.lane.b32.xlu0 %v80, 25
    %v1280 = vpop.permute.xlu0 %1279
    %1281 = vrot.lane.b32.xlu0 %v81, 25
    %v1282 = vpop.permute.xlu0 %1281
    %1283 = vrot.lane.b32.xlu0 %v82, 25
    %v1284 = vpop.permute.xlu0 %1283
    %1285 = vrot.lane.b32.xlu0 %v83, 25
    %v1286 = vpop.permute.xlu0 %1285
    %1287 = vrot.lane.b32.xlu0 %v84, 25
    %v1288 = vpop.permute.xlu0 %1287
    %1289 = vrot.lane.b32.xlu0 %v85, 25
    %v1290 = vpop.permute.xlu0 %1289
    %1291 = vrot.lane.b32.xlu0 %v86, 25
    %v1292 = vpop.permute.xlu0 %1291
    %v1293 = vsel %vm147, %v1278, %v1280
    %v1294 = vsel %vm147, %v1280, %v1282
    %v1295 = vsel %vm147, %v1282, %v1284
    %v1296 = vsel %vm147, %v1284, %v1286
    %v1297 = vsel %vm147, %v1286, %v1288
    %v1298 = vsel %vm147, %v1288, %v1290
    %v1299 = vsel %vm147, %v1290, %v1292
    %v1300 = vsel %vm147, %v1292, %v1267
    %v1310 = vsel %vm147, %v1267, %v1278
    %1312 = vset.pattern.permute.xlu0 0
    %1313 = vperm.xlu0 %1312, %v1264
    %v1314 = vpop.permute.xlu0 %1313
    %v1316 = vmul.f32 %v1310, %v1314
    %v1317 = vmul.f32 %v1293, %v1314
    %v1318 = vmul.f32 %v1294, %v1314
    %v1319 = vmul.f32 %v1295, %v1314
    %v1320 = vmul.f32 %v1296, %v1314
    %v1321 = vmul.f32 %v1297, %v1314
    %v1322 = vmul.f32 %v1298, %v1314
    %v1323 = vmul.f32 %v1299, %v1314
    %v1324 = vmul.f32 %v1300, %v1314
    %1325 = vrot.lane.b32.xlu0 %v87, 24
    %v1326 = vpop.permute.xlu0 %1325
    %1328 = vrot.lane.b32.xlu0 %v79, 24
    %v1329 = vpop.permute.xlu0 %1328
    %1330 = vrot.lane.b32.xlu0 %v80, 24
    %v1331 = vpop.permute.xlu0 %1330
    %1332 = vrot.lane.b32.xlu0 %v81, 24
    %v1333 = vpop.permute.xlu0 %1332
    %1334 = vrot.lane.b32.xlu0 %v82, 24
    %v1335 = vpop.permute.xlu0 %1334
    %1336 = vrot.lane.b32.xlu0 %v83, 24
    %v1337 = vpop.permute.xlu0 %1336
    %1338 = vrot.lane.b32.xlu0 %v84, 24
    %v1339 = vpop.permute.xlu0 %1338
    %1340 = vrot.lane.b32.xlu0 %v85, 24
    %v1341 = vpop.permute.xlu0 %1340
    %1342 = vrot.lane.b32.xlu0 %v86, 24
    %v1343 = vpop.permute.xlu0 %1342
    %v1344 = vsel %vm185, %v1329, %v1331
    %v1345 = vsel %vm185, %v1331, %v1333
    %v1346 = vsel %vm185, %v1333, %v1335
    %v1347 = vsel %vm185, %v1335, %v1337
    %v1348 = vsel %vm185, %v1337, %v1339
    %v1349 = vsel %vm185, %v1339, %v1341
    %v1350 = vsel %vm185, %v1341, %v1343
    %v1351 = vsel %vm185, %v1343, %v1326
    %v1361 = vsel %vm185, %v1326, %v1329
    %1362 = vset.pattern.permute.xlu0 1
    %1363 = vperm.xlu0 %1362, %v1264
    %v1364 = vpop.permute.xlu0 %1363
    %v1366 = vmul.f32 %v1361, %v1364
    %v1367 = vmul.f32 %v1344, %v1364
    %v1368 = vmul.f32 %v1345, %v1364
    %v1369 = vmul.f32 %v1346, %v1364
    %v1370 = vmul.f32 %v1347, %v1364
    %v1371 = vmul.f32 %v1348, %v1364
    %v1372 = vmul.f32 %v1349, %v1364
    %v1373 = vmul.f32 %v1350, %v1364
    %v1374 = vmul.f32 %v1351, %v1364
    %v1375 = vadd.f32 %v1316, %v1366
    %v1376 = vadd.f32 %v1317, %v1367
    %v1377 = vadd.f32 %v1318, %v1368
    %v1378 = vadd.f32 %v1319, %v1369
    %v1379 = vadd.f32 %v1320, %v1370
    %v1380 = vadd.f32 %v1321, %v1371
    %v1381 = vadd.f32 %v1322, %v1372
    %v1382 = vadd.f32 %v1323, %v1373
    %v1383 = vadd.f32 %v1324, %v1374
    %1384 = vrot.lane.b32.xlu0 %v87, 23
    %v1385 = vpop.permute.xlu0 %1384
    %1387 = vrot.lane.b32.xlu0 %v79, 23
    %v1388 = vpop.permute.xlu0 %1387
    %1389 = vrot.lane.b32.xlu0 %v80, 23
    %v1390 = vpop.permute.xlu0 %1389
    %1391 = vrot.lane.b32.xlu0 %v81, 23
    %v1392 = vpop.permute.xlu0 %1391
    %1393 = vrot.lane.b32.xlu0 %v82, 23
    %v1394 = vpop.permute.xlu0 %1393
    %1395 = vrot.lane.b32.xlu0 %v83, 23
    %v1396 = vpop.permute.xlu0 %1395
    %1397 = vrot.lane.b32.xlu0 %v84, 23
    %v1398 = vpop.permute.xlu0 %1397
    %1399 = vrot.lane.b32.xlu0 %v85, 23
    %v1400 = vpop.permute.xlu0 %1399
    %1401 = vrot.lane.b32.xlu0 %v86, 23
    %v1402 = vpop.permute.xlu0 %1401
    %v1403 = vsel %vm232, %v1388, %v1390
    %v1404 = vsel %vm232, %v1390, %v1392
    %v1405 = vsel %vm232, %v1392, %v1394
    %v1406 = vsel %vm232, %v1394, %v1396
    %v1407 = vsel %vm232, %v1396, %v1398
    %v1408 = vsel %vm232, %v1398, %v1400
    %v1409 = vsel %vm232, %v1400, %v1402
    %v1410 = vsel %vm232, %v1402, %v1385
    %v1420 = vsel %vm232, %v1385, %v1388
    %1421 = vset.pattern.permute.xlu0 2
    %1422 = vperm.xlu0 %1421, %v1264
    %v1423 = vpop.permute.xlu0 %1422
    %v1425 = vmul.f32 %v1420, %v1423
    %v1426 = vmul.f32 %v1403, %v1423
    %v1427 = vmul.f32 %v1404, %v1423
    %v1428 = vmul.f32 %v1405, %v1423
    %v1429 = vmul.f32 %v1406, %v1423
    %v1430 = vmul.f32 %v1407, %v1423
    %v1431 = vmul.f32 %v1408, %v1423
    %v1432 = vmul.f32 %v1409, %v1423
    %v1433 = vmul.f32 %v1410, %v1423
    %v1434 = vadd.f32 %v1375, %v1425
    %v1435 = vadd.f32 %v1376, %v1426
    %v1436 = vadd.f32 %v1377, %v1427
    %v1437 = vadd.f32 %v1378, %v1428
    %v1438 = vadd.f32 %v1379, %v1429
    %v1439 = vadd.f32 %v1380, %v1430
    %v1440 = vadd.f32 %v1381, %v1431
    %v1441 = vadd.f32 %v1382, %v1432
    %v1442 = vadd.f32 %v1383, %v1433
    %1443 = vrot.lane.b32.xlu0 %v87, 1
    %v1444 = vpop.permute.xlu0 %1443
    %1446 = vrot.lane.b32.xlu0 %v79, 1
    %v1447 = vpop.permute.xlu0 %1446
    %1448 = vrot.lane.b32.xlu0 %v80, 1
    %v1449 = vpop.permute.xlu0 %1448
    %1450 = vrot.lane.b32.xlu0 %v81, 1
    %v1451 = vpop.permute.xlu0 %1450
    %1452 = vrot.lane.b32.xlu0 %v82, 1
    %v1453 = vpop.permute.xlu0 %1452
    %1454 = vrot.lane.b32.xlu0 %v83, 1
    %v1455 = vpop.permute.xlu0 %1454
    %1456 = vrot.lane.b32.xlu0 %v84, 1
    %v1457 = vpop.permute.xlu0 %1456
    %1458 = vrot.lane.b32.xlu0 %v85, 1
    %v1459 = vpop.permute.xlu0 %1458
    %1460 = vrot.lane.b32.xlu0 %v86, 1
    %v1461 = vpop.permute.xlu0 %1460
    %v1462 = vsel %vm279, %v1447, %v1449
    %v1463 = vsel %vm279, %v1449, %v1451
    %v1464 = vsel %vm279, %v1451, %v1453
    %v1465 = vsel %vm279, %v1453, %v1455
    %v1466 = vsel %vm279, %v1455, %v1457
    %v1467 = vsel %vm279, %v1457, %v1459
    %v1468 = vsel %vm279, %v1459, %v1461
    %v1469 = vsel %vm279, %v1461, %v1444
    %v1479 = vsel %vm279, %v1444, %v1447
    %1480 = vset.pattern.permute.xlu0 3
    %1481 = vperm.xlu0 %1480, %v1264
    %v1482 = vpop.permute.xlu0 %1481
    %v1484 = vmul.f32 %v1479, %v1482
    %v1485 = vmul.f32 %v1462, %v1482
    %v1486 = vmul.f32 %v1463, %v1482
    %v1487 = vmul.f32 %v1464, %v1482
    %v1488 = vmul.f32 %v1465, %v1482
    %v1489 = vmul.f32 %v1466, %v1482
    %v1490 = vmul.f32 %v1467, %v1482
    %v1491 = vmul.f32 %v1468, %v1482
    %v1492 = vmul.f32 %v1469, %v1482
    %v1493 = vadd.f32 %v1434, %v1484
    %v1494 = vadd.f32 %v1435, %v1485
    %v1495 = vadd.f32 %v1436, %v1486
    %v1496 = vadd.f32 %v1437, %v1487
    %v1497 = vadd.f32 %v1438, %v1488
    %v1498 = vadd.f32 %v1439, %v1489
    %v1499 = vadd.f32 %v1440, %v1490
    %v1500 = vadd.f32 %v1441, %v1491
    %v1501 = vadd.f32 %v1442, %v1492
    %1502 = vset.pattern.permute.xlu0 4
    %1503 = vperm.xlu0 %1502, %v1264
    %v1504 = vpop.permute.xlu0 %1503
    %v1506 = vmul.f32 %v79, %v1504
    %v1507 = vmul.f32 %v80, %v1504
    %v1508 = vmul.f32 %v81, %v1504
    %v1509 = vmul.f32 %v82, %v1504
    %v1510 = vmul.f32 %v83, %v1504
    %v1511 = vmul.f32 %v84, %v1504
    %v1512 = vmul.f32 %v85, %v1504
    %v1513 = vmul.f32 %v86, %v1504
    %v1514 = vmul.f32 %v87, %v1504
    %v1515 = vadd.f32 %v1493, %v1506
    %v1516 = vadd.f32 %v1494, %v1507
    %v1517 = vadd.f32 %v1495, %v1508
    %v1518 = vadd.f32 %v1496, %v1509
    %v1519 = vadd.f32 %v1497, %v1510
    %v1520 = vadd.f32 %v1498, %v1511
    %v1521 = vadd.f32 %v1499, %v1512
    %v1522 = vadd.f32 %v1500, %v1513
    %v1523 = vadd.f32 %v1501, %v1514
    %1524 = vrot.lane.b32.xlu0 %v79, 127
    %v1525 = vpop.permute.xlu0 %1524
    %1526 = vrot.lane.b32.xlu0 %v80, 127
    %v1527 = vpop.permute.xlu0 %1526
    %1528 = vrot.lane.b32.xlu0 %v81, 127
    %v1529 = vpop.permute.xlu0 %1528
    %1530 = vrot.lane.b32.xlu0 %v82, 127
    %v1531 = vpop.permute.xlu0 %1530
    %1532 = vrot.lane.b32.xlu0 %v83, 127
    %v1533 = vpop.permute.xlu0 %1532
    %1534 = vrot.lane.b32.xlu0 %v84, 127
    %v1535 = vpop.permute.xlu0 %1534
    %1536 = vrot.lane.b32.xlu0 %v85, 127
    %v1537 = vpop.permute.xlu0 %1536
    %1538 = vrot.lane.b32.xlu0 %v86, 127
    %v1539 = vpop.permute.xlu0 %1538
    %1540 = vrot.lane.b32.xlu0 %v87, 127
    %v1541 = vpop.permute.xlu0 %1540
    %v1542 = vsel %vm334, %v1525, %v1527
    %v1543 = vsel %vm334, %v1527, %v1529
    %v1544 = vsel %vm334, %v1529, %v1531
    %v1545 = vsel %vm334, %v1531, %v1533
    %v1546 = vsel %vm334, %v1533, %v1535
    %v1547 = vsel %vm334, %v1535, %v1537
    %v1548 = vsel %vm334, %v1537, %v1539
    %v1549 = vsel %vm334, %v1539, %v1541
    %v1560 = vsel %vm334, %v1541, %v1525
    %1561 = vset.pattern.permute.xlu0 5
    %1562 = vperm.xlu0 %1561, %v1264
    %v1563 = vpop.permute.xlu0 %1562
    %v1565 = vmul.f32 %v1542, %v1563
    %v1566 = vmul.f32 %v1543, %v1563
    %v1567 = vmul.f32 %v1544, %v1563
    %v1568 = vmul.f32 %v1545, %v1563
    %v1569 = vmul.f32 %v1546, %v1563
    %v1570 = vmul.f32 %v1547, %v1563
    %v1571 = vmul.f32 %v1548, %v1563
    %v1572 = vmul.f32 %v1549, %v1563
    %v1573 = vmul.f32 %v1560, %v1563
    %v1574 = vadd.f32 %v1515, %v1565
    %v1575 = vadd.f32 %v1516, %v1566
    %v1576 = vadd.f32 %v1517, %v1567
    %v1577 = vadd.f32 %v1518, %v1568
    %v1578 = vadd.f32 %v1519, %v1569
    %v1579 = vadd.f32 %v1520, %v1570
    %v1580 = vadd.f32 %v1521, %v1571
    %v1581 = vadd.f32 %v1522, %v1572
    %v1582 = vadd.f32 %v1523, %v1573
    %1583 = vrot.lane.b32.xlu0 %v79, 105
    %v1584 = vpop.permute.xlu0 %1583
    %1585 = vrot.lane.b32.xlu0 %v80, 105
    %v1586 = vpop.permute.xlu0 %1585
    %1587 = vrot.lane.b32.xlu0 %v81, 105
    %v1588 = vpop.permute.xlu0 %1587
    %1589 = vrot.lane.b32.xlu0 %v82, 105
    %v1590 = vpop.permute.xlu0 %1589
    %1591 = vrot.lane.b32.xlu0 %v83, 105
    %v1592 = vpop.permute.xlu0 %1591
    %1593 = vrot.lane.b32.xlu0 %v84, 105
    %v1594 = vpop.permute.xlu0 %1593
    %1595 = vrot.lane.b32.xlu0 %v85, 105
    %v1596 = vpop.permute.xlu0 %1595
    %1597 = vrot.lane.b32.xlu0 %v86, 105
    %v1598 = vpop.permute.xlu0 %1597
    %1599 = vrot.lane.b32.xlu0 %v87, 105
    %v1600 = vpop.permute.xlu0 %1599
    %v1601 = vsel %vm381, %v1584, %v1586
    %v1602 = vsel %vm381, %v1586, %v1588
    %v1603 = vsel %vm381, %v1588, %v1590
    %v1604 = vsel %vm381, %v1590, %v1592
    %v1605 = vsel %vm381, %v1592, %v1594
    %v1606 = vsel %vm381, %v1594, %v1596
    %v1607 = vsel %vm381, %v1596, %v1598
    %v1608 = vsel %vm381, %v1598, %v1600
    %v1619 = vsel %vm381, %v1600, %v1584
    %1620 = vset.pattern.permute.xlu0 6
    %1621 = vperm.xlu0 %1620, %v1264
    %v1622 = vpop.permute.xlu0 %1621
    %v1624 = vmul.f32 %v1601, %v1622
    %v1625 = vmul.f32 %v1602, %v1622
    %v1626 = vmul.f32 %v1603, %v1622
    %v1627 = vmul.f32 %v1604, %v1622
    %v1628 = vmul.f32 %v1605, %v1622
    %v1629 = vmul.f32 %v1606, %v1622
    %v1630 = vmul.f32 %v1607, %v1622
    %v1631 = vmul.f32 %v1608, %v1622
    %v1632 = vmul.f32 %v1619, %v1622
    %v1633 = vadd.f32 %v1574, %v1624
    %v1634 = vadd.f32 %v1575, %v1625
    %v1635 = vadd.f32 %v1576, %v1626
    %v1636 = vadd.f32 %v1577, %v1627
    %v1637 = vadd.f32 %v1578, %v1628
    %v1638 = vadd.f32 %v1579, %v1629
    %v1639 = vadd.f32 %v1580, %v1630
    %v1640 = vadd.f32 %v1581, %v1631
    %v1641 = vadd.f32 %v1582, %v1632
    %1642 = vrot.lane.b32.xlu0 %v79, 104
    %v1643 = vpop.permute.xlu0 %1642
    %1644 = vrot.lane.b32.xlu0 %v80, 104
    %v1645 = vpop.permute.xlu0 %1644
    %1646 = vrot.lane.b32.xlu0 %v81, 104
    %v1647 = vpop.permute.xlu0 %1646
    %1648 = vrot.lane.b32.xlu0 %v82, 104
    %v1649 = vpop.permute.xlu0 %1648
    %1650 = vrot.lane.b32.xlu0 %v83, 104
    %v1651 = vpop.permute.xlu0 %1650
    %1652 = vrot.lane.b32.xlu0 %v84, 104
    %v1653 = vpop.permute.xlu0 %1652
    %1654 = vrot.lane.b32.xlu0 %v85, 104
    %v1655 = vpop.permute.xlu0 %1654
    %1656 = vrot.lane.b32.xlu0 %v86, 104
    %v1657 = vpop.permute.xlu0 %1656
    %1658 = vrot.lane.b32.xlu0 %v87, 104
    %v1659 = vpop.permute.xlu0 %1658
    %v1660 = vsel %vm428, %v1643, %v1645
    %v1661 = vsel %vm428, %v1645, %v1647
    %v1662 = vsel %vm428, %v1647, %v1649
    %v1663 = vsel %vm428, %v1649, %v1651
    %v1664 = vsel %vm428, %v1651, %v1653
    %v1665 = vsel %vm428, %v1653, %v1655
    %v1666 = vsel %vm428, %v1655, %v1657
    %v1667 = vsel %vm428, %v1657, %v1659
    %v1678 = vsel %vm428, %v1659, %v1643
    %1679 = vset.pattern.permute.xlu0 7
    %1680 = vperm.xlu0 %1679, %v1264
    %v1681 = vpop.permute.xlu0 %1680
    %v1683 = vmul.f32 %v1660, %v1681
    %v1684 = vmul.f32 %v1661, %v1681
    %v1685 = vmul.f32 %v1662, %v1681
    %v1686 = vmul.f32 %v1663, %v1681
    %v1687 = vmul.f32 %v1664, %v1681
    %v1688 = vmul.f32 %v1665, %v1681
    %v1689 = vmul.f32 %v1666, %v1681
    %v1690 = vmul.f32 %v1667, %v1681
    %v1691 = vmul.f32 %v1678, %v1681
    %v1692 = vadd.f32 %v1633, %v1683
    %v1693 = vadd.f32 %v1634, %v1684
    %v1694 = vadd.f32 %v1635, %v1685
    %v1695 = vadd.f32 %v1636, %v1686
    %v1696 = vadd.f32 %v1637, %v1687
    %v1697 = vadd.f32 %v1638, %v1688
    %v1698 = vadd.f32 %v1639, %v1689
    %v1699 = vadd.f32 %v1640, %v1690
    %v1700 = vadd.f32 %v1641, %v1691
    %1701 = vrot.lane.b32.xlu0 %v79, 103
    %v1702 = vpop.permute.xlu0 %1701
    %1703 = vrot.lane.b32.xlu0 %v80, 103
    %v1704 = vpop.permute.xlu0 %1703
    %1705 = vrot.lane.b32.xlu0 %v81, 103
    %v1706 = vpop.permute.xlu0 %1705
    %1707 = vrot.lane.b32.xlu0 %v82, 103
    %v1708 = vpop.permute.xlu0 %1707
    %1709 = vrot.lane.b32.xlu0 %v83, 103
    %v1710 = vpop.permute.xlu0 %1709
    %1711 = vrot.lane.b32.xlu0 %v84, 103
    %v1712 = vpop.permute.xlu0 %1711
    %1713 = vrot.lane.b32.xlu0 %v85, 103
    %v1714 = vpop.permute.xlu0 %1713
    %1715 = vrot.lane.b32.xlu0 %v86, 103
    %v1716 = vpop.permute.xlu0 %1715
    %1717 = vrot.lane.b32.xlu0 %v87, 103
    %v1718 = vpop.permute.xlu0 %1717
    %v1719 = vsel %vm475, %v1702, %v1704
    %v1720 = vsel %vm475, %v1704, %v1706
    %v1721 = vsel %vm475, %v1706, %v1708
    %v1722 = vsel %vm475, %v1708, %v1710
    %v1723 = vsel %vm475, %v1710, %v1712
    %v1724 = vsel %vm475, %v1712, %v1714
    %v1725 = vsel %vm475, %v1714, %v1716
    %v1726 = vsel %vm475, %v1716, %v1718
    %v1737 = vsel %vm475, %v1718, %v1702
    %1738 = vset.pattern.permute.xlu0 8
    %1739 = vperm.xlu0 %1738, %v1264
    %v1740 = vpop.permute.xlu0 %1739
    %v1742 = vmul.f32 %v1719, %v1740
    %v1743 = vmul.f32 %v1720, %v1740
    %v1744 = vmul.f32 %v1721, %v1740
    %v1745 = vmul.f32 %v1722, %v1740
    %v1746 = vmul.f32 %v1723, %v1740
    %v1747 = vmul.f32 %v1724, %v1740
    %v1748 = vmul.f32 %v1725, %v1740
    %v1749 = vmul.f32 %v1726, %v1740
    %v1750 = vmul.f32 %v1737, %v1740
    %v1751 = vadd.f32 %v1692, %v1742
    %v1752 = vadd.f32 %v1693, %v1743
    %v1753 = vadd.f32 %v1694, %v1744
    %v1754 = vadd.f32 %v1695, %v1745
    %v1755 = vadd.f32 %v1696, %v1746
    %v1756 = vadd.f32 %v1697, %v1747
    %v1757 = vadd.f32 %v1698, %v1748
    %v1758 = vadd.f32 %v1699, %v1749
    %v1759 = vadd.f32 %v1700, %v1750
    %v1760 = vld [vmem:[%s4] sm:$0xff]
    %vm1761 = vcmask 64512
    %v1763 = vsel %vm1761, %v1760, 0
    %1765 = vmatpush.msra.mxu0 0.0
    %1766 = vmatpush.msra.mxu0 0.0
    %1767 = vmatpush.msra.mxu0 0.0
    %1768 = vmatpush.msra.mxu0 0.0
    %1769 = vmatpush.msra.mxu0 0.0
    %1770 = vmatpush.msra.mxu0 0.0
    %1771 = vmatpush.msra.mxu0 0.0
    %1772 = vmatpush.msra.mxu0 0.0
    %1773 = vmatpush.msra.mxu0 0.0
    %1774 = vmatpush.msra.mxu0 0.0
    %1775 = vmatpush.msra.mxu0 0.0
    %1776 = vmatpush.msra.mxu0 0.0
    %1777 = vmatpush.msra.mxu0 0.0
    %1778 = vmatpush.msra.mxu0 0.0
    %1779 = vmatpush.msra.mxu0 0.0
    %1780 = vmatpush.msra.mxu0 %v1751
    %1781 = vmatmul.f32.gmra.mxu0 %v1763
    %v1782 = vpop.f32.mrf.mxu0
    %v1783 = vadd.f32 0.0, %v1782
    %1784 = vdwg.mxu0
    %1785 = vmatpush.msra.mxu0 0.0
    %1786 = vmatpush.msra.mxu0 0.0
    %1787 = vmatpush.msra.mxu0 0.0
    %1788 = vmatpush.msra.mxu0 0.0
    %1789 = vmatpush.msra.mxu0 0.0
    %1790 = vmatpush.msra.mxu0 0.0
    %1791 = vmatpush.msra.mxu0 0.0
    %1792 = vmatpush.msra.mxu0 0.0
    %1793 = vmatpush.msra.mxu0 0.0
    %1794 = vmatpush.msra.mxu0 0.0
    %1795 = vmatpush.msra.mxu0 0.0
    %1796 = vmatpush.msra.mxu0 0.0
    %1797 = vmatpush.msra.mxu0 0.0
    %1798 = vmatpush.msra.mxu0 0.0
    %1799 = vmatpush.msra.mxu0 0.0
    %1800 = vmatpush.msra.mxu0 %v1752
    %1801 = vmatmul.f32.gmra.mxu0 %v1763
    %v1802 = vpop.f32.mrf.mxu0
    %v1803 = vadd.f32 0.0, %v1802
    %1804 = vdwg.mxu0
    %1805 = vmatpush.msra.mxu0 0.0
    %1806 = vmatpush.msra.mxu0 0.0
    %1807 = vmatpush.msra.mxu0 0.0
    %1808 = vmatpush.msra.mxu0 0.0
    %1809 = vmatpush.msra.mxu0 0.0
    %1810 = vmatpush.msra.mxu0 0.0
    %1811 = vmatpush.msra.mxu0 0.0
    %1812 = vmatpush.msra.mxu0 0.0
    %1813 = vmatpush.msra.mxu0 0.0
    %1814 = vmatpush.msra.mxu0 0.0
    %1815 = vmatpush.msra.mxu0 0.0
    %1816 = vmatpush.msra.mxu0 0.0
    %1817 = vmatpush.msra.mxu0 0.0
    %1818 = vmatpush.msra.mxu0 0.0
    %1819 = vmatpush.msra.mxu0 0.0
    %1820 = vmatpush.msra.mxu0 %v1753
    %1821 = vmatmul.f32.gmra.mxu0 %v1763
    %v1822 = vpop.f32.mrf.mxu0
    %v1823 = vadd.f32 0.0, %v1822
    %1824 = vdwg.mxu0
    %1825 = vmatpush.msra.mxu0 0.0
    %1826 = vmatpush.msra.mxu0 0.0
    %1827 = vmatpush.msra.mxu0 0.0
    %1828 = vmatpush.msra.mxu0 0.0
    %1829 = vmatpush.msra.mxu0 0.0
    %1830 = vmatpush.msra.mxu0 0.0
    %1831 = vmatpush.msra.mxu0 0.0
    %1832 = vmatpush.msra.mxu0 0.0
    %1833 = vmatpush.msra.mxu0 0.0
    %1834 = vmatpush.msra.mxu0 0.0
    %1835 = vmatpush.msra.mxu0 0.0
    %1836 = vmatpush.msra.mxu0 0.0
    %1837 = vmatpush.msra.mxu0 0.0
    %1838 = vmatpush.msra.mxu0 0.0
    %1839 = vmatpush.msra.mxu0 0.0
    %1840 = vmatpush.msra.mxu0 %v1754
    %1841 = vmatmul.f32.gmra.mxu0 %v1763
    %v1842 = vpop.f32.mrf.mxu0
    %v1843 = vadd.f32 0.0, %v1842
    %1844 = vdwg.mxu0
    %1845 = vmatpush.msra.mxu0 0.0
    %1846 = vmatpush.msra.mxu0 0.0
    %1847 = vmatpush.msra.mxu0 0.0
    %1848 = vmatpush.msra.mxu0 0.0
    %1849 = vmatpush.msra.mxu0 0.0
    %1850 = vmatpush.msra.mxu0 0.0
    %1851 = vmatpush.msra.mxu0 0.0
    %1852 = vmatpush.msra.mxu0 0.0
    %1853 = vmatpush.msra.mxu0 0.0
    %1854 = vmatpush.msra.mxu0 0.0
    %1855 = vmatpush.msra.mxu0 0.0
    %1856 = vmatpush.msra.mxu0 0.0
    %1857 = vmatpush.msra.mxu0 0.0
    %1858 = vmatpush.msra.mxu0 0.0
    %1859 = vmatpush.msra.mxu0 0.0
    %1860 = vmatpush.msra.mxu0 %v1755
    %1861 = vmatmul.f32.gmra.mxu0 %v1763
    %v1862 = vpop.f32.mrf.mxu0
    %v1863 = vadd.f32 0.0, %v1862
    %1864 = vdwg.mxu0
    %1865 = vmatpush.msra.mxu0 0.0
    %1866 = vmatpush.msra.mxu0 0.0
    %1867 = vmatpush.msra.mxu0 0.0
    %1868 = vmatpush.msra.mxu0 0.0
    %1869 = vmatpush.msra.mxu0 0.0
    %1870 = vmatpush.msra.mxu0 0.0
    %1871 = vmatpush.msra.mxu0 0.0
    %1872 = vmatpush.msra.mxu0 0.0
    %1873 = vmatpush.msra.mxu0 0.0
    %1874 = vmatpush.msra.mxu0 0.0
    %1875 = vmatpush.msra.mxu0 0.0
    %1876 = vmatpush.msra.mxu0 0.0
    %1877 = vmatpush.msra.mxu0 0.0
    %1878 = vmatpush.msra.mxu0 0.0
    %1879 = vmatpush.msra.mxu0 0.0
    %1880 = vmatpush.msra.mxu0 %v1756
    %1881 = vmatmul.f32.gmra.mxu0 %v1763
    %v1882 = vpop.f32.mrf.mxu0
    %v1883 = vadd.f32 0.0, %v1882
    %1884 = vdwg.mxu0
    %1885 = vmatpush.msra.mxu0 0.0
    %1886 = vmatpush.msra.mxu0 0.0
    %1887 = vmatpush.msra.mxu0 0.0
    %1888 = vmatpush.msra.mxu0 0.0
    %1889 = vmatpush.msra.mxu0 0.0
    %1890 = vmatpush.msra.mxu0 0.0
    %1891 = vmatpush.msra.mxu0 0.0
    %1892 = vmatpush.msra.mxu0 0.0
    %1893 = vmatpush.msra.mxu0 0.0
    %1894 = vmatpush.msra.mxu0 0.0
    %1895 = vmatpush.msra.mxu0 0.0
    %1896 = vmatpush.msra.mxu0 0.0
    %1897 = vmatpush.msra.mxu0 0.0
    %1898 = vmatpush.msra.mxu0 0.0
    %1899 = vmatpush.msra.mxu0 0.0
    %1900 = vmatpush.msra.mxu0 %v1757
    %1901 = vmatmul.f32.gmra.mxu0 %v1763
    %v1902 = vpop.f32.mrf.mxu0
    %v1903 = vadd.f32 0.0, %v1902
    %1904 = vdwg.mxu0
    %1905 = vmatpush.msra.mxu0 0.0
    %1906 = vmatpush.msra.mxu0 0.0
    %1907 = vmatpush.msra.mxu0 0.0
    %1908 = vmatpush.msra.mxu0 0.0
    %1909 = vmatpush.msra.mxu0 0.0
    %1910 = vmatpush.msra.mxu0 0.0
    %1911 = vmatpush.msra.mxu0 0.0
    %1912 = vmatpush.msra.mxu0 0.0
    %1913 = vmatpush.msra.mxu0 0.0
    %1914 = vmatpush.msra.mxu0 0.0
    %1915 = vmatpush.msra.mxu0 0.0
    %1916 = vmatpush.msra.mxu0 0.0
    %1917 = vmatpush.msra.mxu0 0.0
    %1918 = vmatpush.msra.mxu0 0.0
    %1919 = vmatpush.msra.mxu0 0.0
    %1920 = vmatpush.msra.mxu0 %v1758
    %1921 = vmatmul.f32.gmra.mxu0 %v1763
    %v1922 = vpop.f32.mrf.mxu0
    %v1923 = vadd.f32 0.0, %v1922
    %1924 = vdwg.mxu0
    %1925 = vmatpush.msra.mxu0 0.0
    %1926 = vmatpush.msra.mxu0 0.0
    %1927 = vmatpush.msra.mxu0 0.0
    %1928 = vmatpush.msra.mxu0 0.0
    %1929 = vmatpush.msra.mxu0 0.0
    %1930 = vmatpush.msra.mxu0 0.0
    %1931 = vmatpush.msra.mxu0 0.0
    %1932 = vmatpush.msra.mxu0 0.0
    %1933 = vmatpush.msra.mxu0 0.0
    %1934 = vmatpush.msra.mxu0 0.0
    %1935 = vmatpush.msra.mxu0 0.0
    %1936 = vmatpush.msra.mxu0 0.0
    %1937 = vmatpush.msra.mxu0 0.0
    %1938 = vmatpush.msra.mxu0 0.0
    %1939 = vmatpush.msra.mxu0 0.0
    %1940 = vmatpush.msra.mxu0 %v1759
    %1941 = vmatmul.f32.gmra.mxu0 %v1763
    %v1942 = vpop.f32.mrf.mxu0
    %v1943 = vadd.f32 0.0, %v1942
    %1944 = vdwg.mxu0
    %v1945 = vmul.f32 %v1783, %v506
    %v1946 = vmul.f32 %v1803, %v507
    %v1947 = vmul.f32 %v1823, %v508
    %v1948 = vmul.f32 %v1843, %v509
    %v1949 = vmul.f32 %v1863, %v510
    %v1950 = vmul.f32 %v1883, %v511
    %v1951 = vmul.f32 %v1903, %v512
    %v1952 = vmul.f32 %v1923, %v513
    %v1953 = vmul.f32 %v1943, %v514
    %v1954 = vadd.f32 %v1945, %v1946
    %v1955 = vadd.f32 %v1954, %v1947
    %v1956 = vadd.f32 %v1955, %v1948
    %v1957 = vadd.f32 %v1956, %v1949
    %v1958 = vadd.f32 %v1957, %v1950
    %v1959 = vadd.f32 %v1958, %v1951
    %v1960 = vadd.f32 %v1959, %v1952
    %v1961 = vadd.f32 %v1960, %v1953
    %1962 = vadd.xlane.f32.xlu0 %v1961
    %v1963 = vpop.xlane.xlu0 %1962
    %v1964 = vmul.f32 %v1963, 0.001953125
    %v1965 = vsub.f32 %v1783, %v1964
    %v1966 = vsub.f32 %v1803, %v1964
    %v1967 = vsub.f32 %v1823, %v1964
    %v1968 = vsub.f32 %v1843, %v1964
    %v1969 = vsub.f32 %v1863, %v1964
    %v1970 = vsub.f32 %v1883, %v1964
    %v1971 = vsub.f32 %v1903, %v1964
    %v1972 = vsub.f32 %v1923, %v1964
    %v1973 = vsub.f32 %v1943, %v1964
    %v1974 = vmul.f32 %v1965, %v506
    %v1975 = vmul.f32 %v1966, %v507
    %v1976 = vmul.f32 %v1967, %v508
    %v1977 = vmul.f32 %v1968, %v509
    %v1978 = vmul.f32 %v1969, %v510
    %v1979 = vmul.f32 %v1970, %v511
    %v1980 = vmul.f32 %v1971, %v512
    %v1981 = vmul.f32 %v1972, %v513
    %v1982 = vmul.f32 %v1973, %v514
    %v1983 = vmul.f32 %v1974, %v1974
    %v1984 = vmul.f32 %v1975, %v1975
    %v1985 = vmul.f32 %v1976, %v1976
    %v1986 = vmul.f32 %v1977, %v1977
    %v1987 = vmul.f32 %v1978, %v1978
    %v1988 = vmul.f32 %v1979, %v1979
    %v1989 = vmul.f32 %v1980, %v1980
    %v1990 = vmul.f32 %v1981, %v1981
    %v1991 = vmul.f32 %v1982, %v1982
    %v1992 = vadd.f32 %v1983, %v1984
    %v1993 = vadd.f32 %v1992, %v1985
    %v1994 = vadd.f32 %v1993, %v1986
    %v1995 = vadd.f32 %v1994, %v1987
    %v1996 = vadd.f32 %v1995, %v1988
    %v1997 = vadd.f32 %v1996, %v1989
    %v1998 = vadd.f32 %v1997, %v1990
    %v1999 = vadd.f32 %v1998, %v1991
    %2000 = vadd.xlane.f32.xlu0 %v1999
    %v2001 = vpop.xlane.xlu0 %2000
    %v2002 = vmul.f32 %v2001, 0.001953125
    %v2003 = vadd.f32 %v2002, 1e-05
    %v2004 = vrsqrt.pop %v2003
    %v2005 = vmul.f32 %v2004, %v2003
    %v2006 = vmul.f32 %v2005, %v2004
    %v2007 = vmul.f32 0.5, %v2006
    %v2008 = vsub.f32 1.5, %v2007
    %v2009 = vmul.f32 %v2004, %v2008
    %vm2010 = vweird.f32 %v2003
    %vm2011 = vweird.f32 %v2004
    %vm2012 = vmor %vm2010, %vm2011
    %v2013 = vsel %vm2012, %v2004, %v2009
    %v2014 = vmul.f32 %v1965, %v2013
    %v2015 = vmul.f32 %v1966, %v2013
    %v2016 = vmul.f32 %v1967, %v2013
    %v2017 = vmul.f32 %v1968, %v2013
    %v2018 = vmul.f32 %v1969, %v2013
    %v2019 = vmul.f32 %v1970, %v2013
    %v2020 = vmul.f32 %v1971, %v2013
    %v2021 = vmul.f32 %v1972, %v2013
    %v2022 = vmul.f32 %v1973, %v2013
    %v2023 = vmul.f32 %v2014, %v506
    %v2024 = vmul.f32 %v2015, %v507
    %v2025 = vmul.f32 %v2016, %v508
    %v2026 = vmul.f32 %v2017, %v509
    %v2027 = vmul.f32 %v2018, %v510
    %v2028 = vmul.f32 %v2019, %v511
    %v2029 = vmul.f32 %v2020, %v512
    %v2030 = vmul.f32 %v2021, %v513
    %v2031 = vmul.f32 %v2022, %v514
    %v2032 = vmax.f32 %v2023, 0.0
    %v2033 = vmax.f32 %v2024, 0.0
    %v2034 = vmax.f32 %v2025, 0.0
    %v2035 = vmax.f32 %v2026, 0.0
    %v2036 = vmax.f32 %v2027, 0.0
    %v2037 = vmax.f32 %v2028, 0.0
    %v2038 = vmax.f32 %v2029, 0.0
    %v2039 = vmax.f32 %v2030, 0.0
    %v2040 = vmax.f32 %v2031, 0.0
    %v2041 = vld [vmem:[%s5] sm:$0xff]
    %2043 = vrot.lane.b32.xlu0 %v2040, 25
    %v2044 = vpop.permute.xlu0 %2043
    %2054 = vrot.lane.b32.xlu0 %v2032, 25
    %v2055 = vpop.permute.xlu0 %2054
    %2056 = vrot.lane.b32.xlu0 %v2033, 25
    %v2057 = vpop.permute.xlu0 %2056
    %2058 = vrot.lane.b32.xlu0 %v2034, 25
    %v2059 = vpop.permute.xlu0 %2058
    %2060 = vrot.lane.b32.xlu0 %v2035, 25
    %v2061 = vpop.permute.xlu0 %2060
    %2062 = vrot.lane.b32.xlu0 %v2036, 25
    %v2063 = vpop.permute.xlu0 %2062
    %2064 = vrot.lane.b32.xlu0 %v2037, 25
    %v2065 = vpop.permute.xlu0 %2064
    %2066 = vrot.lane.b32.xlu0 %v2038, 25
    %v2067 = vpop.permute.xlu0 %2066
    %2068 = vrot.lane.b32.xlu0 %v2039, 25
    %v2069 = vpop.permute.xlu0 %2068
    %v2070 = vsel %vm147, %v2055, %v2057
    %v2071 = vsel %vm147, %v2057, %v2059
    %v2072 = vsel %vm147, %v2059, %v2061
    %v2073 = vsel %vm147, %v2061, %v2063
    %v2074 = vsel %vm147, %v2063, %v2065
    %v2075 = vsel %vm147, %v2065, %v2067
    %v2076 = vsel %vm147, %v2067, %v2069
    %v2077 = vsel %vm147, %v2069, %v2044
    %v2087 = vsel %vm147, %v2044, %v2055
    %2089 = vset.pattern.permute.xlu0 0
    %2090 = vperm.xlu0 %2089, %v2041
    %v2091 = vpop.permute.xlu0 %2090
    %v2093 = vmul.f32 %v2087, %v2091
    %v2094 = vmul.f32 %v2070, %v2091
    %v2095 = vmul.f32 %v2071, %v2091
    %v2096 = vmul.f32 %v2072, %v2091
    %v2097 = vmul.f32 %v2073, %v2091
    %v2098 = vmul.f32 %v2074, %v2091
    %v2099 = vmul.f32 %v2075, %v2091
    %v2100 = vmul.f32 %v2076, %v2091
    %v2101 = vmul.f32 %v2077, %v2091
    %2102 = vrot.lane.b32.xlu0 %v2040, 24
    %v2103 = vpop.permute.xlu0 %2102
    %2105 = vrot.lane.b32.xlu0 %v2032, 24
    %v2106 = vpop.permute.xlu0 %2105
    %2107 = vrot.lane.b32.xlu0 %v2033, 24
    %v2108 = vpop.permute.xlu0 %2107
    %2109 = vrot.lane.b32.xlu0 %v2034, 24
    %v2110 = vpop.permute.xlu0 %2109
    %2111 = vrot.lane.b32.xlu0 %v2035, 24
    %v2112 = vpop.permute.xlu0 %2111
    %2113 = vrot.lane.b32.xlu0 %v2036, 24
    %v2114 = vpop.permute.xlu0 %2113
    %2115 = vrot.lane.b32.xlu0 %v2037, 24
    %v2116 = vpop.permute.xlu0 %2115
    %2117 = vrot.lane.b32.xlu0 %v2038, 24
    %v2118 = vpop.permute.xlu0 %2117
    %2119 = vrot.lane.b32.xlu0 %v2039, 24
    %v2120 = vpop.permute.xlu0 %2119
    %v2121 = vsel %vm185, %v2106, %v2108
    %v2122 = vsel %vm185, %v2108, %v2110
    %v2123 = vsel %vm185, %v2110, %v2112
    %v2124 = vsel %vm185, %v2112, %v2114
    %v2125 = vsel %vm185, %v2114, %v2116
    %v2126 = vsel %vm185, %v2116, %v2118
    %v2127 = vsel %vm185, %v2118, %v2120
    %v2128 = vsel %vm185, %v2120, %v2103
    %v2138 = vsel %vm185, %v2103, %v2106
    %2139 = vset.pattern.permute.xlu0 1
    %2140 = vperm.xlu0 %2139, %v2041
    %v2141 = vpop.permute.xlu0 %2140
    %v2143 = vmul.f32 %v2138, %v2141
    %v2144 = vmul.f32 %v2121, %v2141
    %v2145 = vmul.f32 %v2122, %v2141
    %v2146 = vmul.f32 %v2123, %v2141
    %v2147 = vmul.f32 %v2124, %v2141
    %v2148 = vmul.f32 %v2125, %v2141
    %v2149 = vmul.f32 %v2126, %v2141
    %v2150 = vmul.f32 %v2127, %v2141
    %v2151 = vmul.f32 %v2128, %v2141
    %v2152 = vadd.f32 %v2093, %v2143
    %v2153 = vadd.f32 %v2094, %v2144
    %v2154 = vadd.f32 %v2095, %v2145
    %v2155 = vadd.f32 %v2096, %v2146
    %v2156 = vadd.f32 %v2097, %v2147
    %v2157 = vadd.f32 %v2098, %v2148
    %v2158 = vadd.f32 %v2099, %v2149
    %v2159 = vadd.f32 %v2100, %v2150
    %v2160 = vadd.f32 %v2101, %v2151
    %2161 = vrot.lane.b32.xlu0 %v2040, 23
    %v2162 = vpop.permute.xlu0 %2161
    %2164 = vrot.lane.b32.xlu0 %v2032, 23
    %v2165 = vpop.permute.xlu0 %2164
    %2166 = vrot.lane.b32.xlu0 %v2033, 23
    %v2167 = vpop.permute.xlu0 %2166
    %2168 = vrot.lane.b32.xlu0 %v2034, 23
    %v2169 = vpop.permute.xlu0 %2168
    %2170 = vrot.lane.b32.xlu0 %v2035, 23
    %v2171 = vpop.permute.xlu0 %2170
    %2172 = vrot.lane.b32.xlu0 %v2036, 23
    %v2173 = vpop.permute.xlu0 %2172
    %2174 = vrot.lane.b32.xlu0 %v2037, 23
    %v2175 = vpop.permute.xlu0 %2174
    %2176 = vrot.lane.b32.xlu0 %v2038, 23
    %v2177 = vpop.permute.xlu0 %2176
    %2178 = vrot.lane.b32.xlu0 %v2039, 23
    %v2179 = vpop.permute.xlu0 %2178
    %v2180 = vsel %vm232, %v2165, %v2167
    %v2181 = vsel %vm232, %v2167, %v2169
    %v2182 = vsel %vm232, %v2169, %v2171
    %v2183 = vsel %vm232, %v2171, %v2173
    %v2184 = vsel %vm232, %v2173, %v2175
    %v2185 = vsel %vm232, %v2175, %v2177
    %v2186 = vsel %vm232, %v2177, %v2179
    %v2187 = vsel %vm232, %v2179, %v2162
    %v2197 = vsel %vm232, %v2162, %v2165
    %2198 = vset.pattern.permute.xlu0 2
    %2199 = vperm.xlu0 %2198, %v2041
    %v2200 = vpop.permute.xlu0 %2199
    %v2202 = vmul.f32 %v2197, %v2200
    %v2203 = vmul.f32 %v2180, %v2200
    %v2204 = vmul.f32 %v2181, %v2200
    %v2205 = vmul.f32 %v2182, %v2200
    %v2206 = vmul.f32 %v2183, %v2200
    %v2207 = vmul.f32 %v2184, %v2200
    %v2208 = vmul.f32 %v2185, %v2200
    %v2209 = vmul.f32 %v2186, %v2200
    %v2210 = vmul.f32 %v2187, %v2200
    %v2211 = vadd.f32 %v2152, %v2202
    %v2212 = vadd.f32 %v2153, %v2203
    %v2213 = vadd.f32 %v2154, %v2204
    %v2214 = vadd.f32 %v2155, %v2205
    %v2215 = vadd.f32 %v2156, %v2206
    %v2216 = vadd.f32 %v2157, %v2207
    %v2217 = vadd.f32 %v2158, %v2208
    %v2218 = vadd.f32 %v2159, %v2209
    %v2219 = vadd.f32 %v2160, %v2210
    %2220 = vrot.lane.b32.xlu0 %v2040, 1
    %v2221 = vpop.permute.xlu0 %2220
    %2223 = vrot.lane.b32.xlu0 %v2032, 1
    %v2224 = vpop.permute.xlu0 %2223
    %2225 = vrot.lane.b32.xlu0 %v2033, 1
    %v2226 = vpop.permute.xlu0 %2225
    %2227 = vrot.lane.b32.xlu0 %v2034, 1
    %v2228 = vpop.permute.xlu0 %2227
    %2229 = vrot.lane.b32.xlu0 %v2035, 1
    %v2230 = vpop.permute.xlu0 %2229
    %2231 = vrot.lane.b32.xlu0 %v2036, 1
    %v2232 = vpop.permute.xlu0 %2231
    %2233 = vrot.lane.b32.xlu0 %v2037, 1
    %v2234 = vpop.permute.xlu0 %2233
    %2235 = vrot.lane.b32.xlu0 %v2038, 1
    %v2236 = vpop.permute.xlu0 %2235
    %2237 = vrot.lane.b32.xlu0 %v2039, 1
    %v2238 = vpop.permute.xlu0 %2237
    %v2239 = vsel %vm279, %v2224, %v2226
    %v2240 = vsel %vm279, %v2226, %v2228
    %v2241 = vsel %vm279, %v2228, %v2230
    %v2242 = vsel %vm279, %v2230, %v2232
    %v2243 = vsel %vm279, %v2232, %v2234
    %v2244 = vsel %vm279, %v2234, %v2236
    %v2245 = vsel %vm279, %v2236, %v2238
    %v2246 = vsel %vm279, %v2238, %v2221
    %v2256 = vsel %vm279, %v2221, %v2224
    %2257 = vset.pattern.permute.xlu0 3
    %2258 = vperm.xlu0 %2257, %v2041
    %v2259 = vpop.permute.xlu0 %2258
    %v2261 = vmul.f32 %v2256, %v2259
    %v2262 = vmul.f32 %v2239, %v2259
    %v2263 = vmul.f32 %v2240, %v2259
    %v2264 = vmul.f32 %v2241, %v2259
    %v2265 = vmul.f32 %v2242, %v2259
    %v2266 = vmul.f32 %v2243, %v2259
    %v2267 = vmul.f32 %v2244, %v2259
    %v2268 = vmul.f32 %v2245, %v2259
    %v2269 = vmul.f32 %v2246, %v2259
    %v2270 = vadd.f32 %v2211, %v2261
    %v2271 = vadd.f32 %v2212, %v2262
    %v2272 = vadd.f32 %v2213, %v2263
    %v2273 = vadd.f32 %v2214, %v2264
    %v2274 = vadd.f32 %v2215, %v2265
    %v2275 = vadd.f32 %v2216, %v2266
    %v2276 = vadd.f32 %v2217, %v2267
    %v2277 = vadd.f32 %v2218, %v2268
    %v2278 = vadd.f32 %v2219, %v2269
    %2279 = vset.pattern.permute.xlu0 4
    %2280 = vperm.xlu0 %2279, %v2041
    %v2281 = vpop.permute.xlu0 %2280
    %v2283 = vmul.f32 %v2032, %v2281
    %v2284 = vmul.f32 %v2033, %v2281
    %v2285 = vmul.f32 %v2034, %v2281
    %v2286 = vmul.f32 %v2035, %v2281
    %v2287 = vmul.f32 %v2036, %v2281
    %v2288 = vmul.f32 %v2037, %v2281
    %v2289 = vmul.f32 %v2038, %v2281
    %v2290 = vmul.f32 %v2039, %v2281
    %v2291 = vmul.f32 %v2040, %v2281
    %v2292 = vadd.f32 %v2270, %v2283
    %v2293 = vadd.f32 %v2271, %v2284
    %v2294 = vadd.f32 %v2272, %v2285
    %v2295 = vadd.f32 %v2273, %v2286
    %v2296 = vadd.f32 %v2274, %v2287
    %v2297 = vadd.f32 %v2275, %v2288
    %v2298 = vadd.f32 %v2276, %v2289
    %v2299 = vadd.f32 %v2277, %v2290
    %v2300 = vadd.f32 %v2278, %v2291
    %2301 = vrot.lane.b32.xlu0 %v2032, 127
    %v2302 = vpop.permute.xlu0 %2301
    %2303 = vrot.lane.b32.xlu0 %v2033, 127
    %v2304 = vpop.permute.xlu0 %2303
    %2305 = vrot.lane.b32.xlu0 %v2034, 127
    %v2306 = vpop.permute.xlu0 %2305
    %2307 = vrot.lane.b32.xlu0 %v2035, 127
    %v2308 = vpop.permute.xlu0 %2307
    %2309 = vrot.lane.b32.xlu0 %v2036, 127
    %v2310 = vpop.permute.xlu0 %2309
    %2311 = vrot.lane.b32.xlu0 %v2037, 127
    %v2312 = vpop.permute.xlu0 %2311
    %2313 = vrot.lane.b32.xlu0 %v2038, 127
    %v2314 = vpop.permute.xlu0 %2313
    %2315 = vrot.lane.b32.xlu0 %v2039, 127
    %v2316 = vpop.permute.xlu0 %2315
    %2317 = vrot.lane.b32.xlu0 %v2040, 127
    %v2318 = vpop.permute.xlu0 %2317
    %v2319 = vsel %vm334, %v2302, %v2304
    %v2320 = vsel %vm334, %v2304, %v2306
    %v2321 = vsel %vm334, %v2306, %v2308
    %v2322 = vsel %vm334, %v2308, %v2310
    %v2323 = vsel %vm334, %v2310, %v2312
    %v2324 = vsel %vm334, %v2312, %v2314
    %v2325 = vsel %vm334, %v2314, %v2316
    %v2326 = vsel %vm334, %v2316, %v2318
    %v2337 = vsel %vm334, %v2318, %v2302
    %2338 = vset.pattern.permute.xlu0 5
    %2339 = vperm.xlu0 %2338, %v2041
    %v2340 = vpop.permute.xlu0 %2339
    %v2342 = vmul.f32 %v2319, %v2340
    %v2343 = vmul.f32 %v2320, %v2340
    %v2344 = vmul.f32 %v2321, %v2340
    %v2345 = vmul.f32 %v2322, %v2340
    %v2346 = vmul.f32 %v2323, %v2340
    %v2347 = vmul.f32 %v2324, %v2340
    %v2348 = vmul.f32 %v2325, %v2340
    %v2349 = vmul.f32 %v2326, %v2340
    %v2350 = vmul.f32 %v2337, %v2340
    %v2351 = vadd.f32 %v2292, %v2342
    %v2352 = vadd.f32 %v2293, %v2343
    %v2353 = vadd.f32 %v2294, %v2344
    %v2354 = vadd.f32 %v2295, %v2345
    %v2355 = vadd.f32 %v2296, %v2346
    %v2356 = vadd.f32 %v2297, %v2347
    %v2357 = vadd.f32 %v2298, %v2348
    %v2358 = vadd.f32 %v2299, %v2349
    %v2359 = vadd.f32 %v2300, %v2350
    %2360 = vrot.lane.b32.xlu0 %v2032, 105
    %v2361 = vpop.permute.xlu0 %2360
    %2362 = vrot.lane.b32.xlu0 %v2033, 105
    %v2363 = vpop.permute.xlu0 %2362
    %2364 = vrot.lane.b32.xlu0 %v2034, 105
    %v2365 = vpop.permute.xlu0 %2364
    %2366 = vrot.lane.b32.xlu0 %v2035, 105
    %v2367 = vpop.permute.xlu0 %2366
    %2368 = vrot.lane.b32.xlu0 %v2036, 105
    %v2369 = vpop.permute.xlu0 %2368
    %2370 = vrot.lane.b32.xlu0 %v2037, 105
    %v2371 = vpop.permute.xlu0 %2370
    %2372 = vrot.lane.b32.xlu0 %v2038, 105
    %v2373 = vpop.permute.xlu0 %2372
    %2374 = vrot.lane.b32.xlu0 %v2039, 105
    %v2375 = vpop.permute.xlu0 %2374
    %2376 = vrot.lane.b32.xlu0 %v2040, 105
    %v2377 = vpop.permute.xlu0 %2376
    %v2378 = vsel %vm381, %v2361, %v2363
    %v2379 = vsel %vm381, %v2363, %v2365
    %v2380 = vsel %vm381, %v2365, %v2367
    %v2381 = vsel %vm381, %v2367, %v2369
    %v2382 = vsel %vm381, %v2369, %v2371
    %v2383 = vsel %vm381, %v2371, %v2373
    %v2384 = vsel %vm381, %v2373, %v2375
    %v2385 = vsel %vm381, %v2375, %v2377
    %v2396 = vsel %vm381, %v2377, %v2361
    %2397 = vset.pattern.permute.xlu0 6
    %2398 = vperm.xlu0 %2397, %v2041
    %v2399 = vpop.permute.xlu0 %2398
    %v2401 = vmul.f32 %v2378, %v2399
    %v2402 = vmul.f32 %v2379, %v2399
    %v2403 = vmul.f32 %v2380, %v2399
    %v2404 = vmul.f32 %v2381, %v2399
    %v2405 = vmul.f32 %v2382, %v2399
    %v2406 = vmul.f32 %v2383, %v2399
    %v2407 = vmul.f32 %v2384, %v2399
    %v2408 = vmul.f32 %v2385, %v2399
    %v2409 = vmul.f32 %v2396, %v2399
    %v2410 = vadd.f32 %v2351, %v2401
    %v2411 = vadd.f32 %v2352, %v2402
    %v2412 = vadd.f32 %v2353, %v2403
    %v2413 = vadd.f32 %v2354, %v2404
    %v2414 = vadd.f32 %v2355, %v2405
    %v2415 = vadd.f32 %v2356, %v2406
    %v2416 = vadd.f32 %v2357, %v2407
    %v2417 = vadd.f32 %v2358, %v2408
    %v2418 = vadd.f32 %v2359, %v2409
    %2419 = vrot.lane.b32.xlu0 %v2032, 104
    %v2420 = vpop.permute.xlu0 %2419
    %2421 = vrot.lane.b32.xlu0 %v2033, 104
    %v2422 = vpop.permute.xlu0 %2421
    %2423 = vrot.lane.b32.xlu0 %v2034, 104
    %v2424 = vpop.permute.xlu0 %2423
    %2425 = vrot.lane.b32.xlu0 %v2035, 104
    %v2426 = vpop.permute.xlu0 %2425
    %2427 = vrot.lane.b32.xlu0 %v2036, 104
    %v2428 = vpop.permute.xlu0 %2427
    %2429 = vrot.lane.b32.xlu0 %v2037, 104
    %v2430 = vpop.permute.xlu0 %2429
    %2431 = vrot.lane.b32.xlu0 %v2038, 104
    %v2432 = vpop.permute.xlu0 %2431
    %2433 = vrot.lane.b32.xlu0 %v2039, 104
    %v2434 = vpop.permute.xlu0 %2433
    %2435 = vrot.lane.b32.xlu0 %v2040, 104
    %v2436 = vpop.permute.xlu0 %2435
    %v2437 = vsel %vm428, %v2420, %v2422
    %v2438 = vsel %vm428, %v2422, %v2424
    %v2439 = vsel %vm428, %v2424, %v2426
    %v2440 = vsel %vm428, %v2426, %v2428
    %v2441 = vsel %vm428, %v2428, %v2430
    %v2442 = vsel %vm428, %v2430, %v2432
    %v2443 = vsel %vm428, %v2432, %v2434
    %v2444 = vsel %vm428, %v2434, %v2436
    %v2455 = vsel %vm428, %v2436, %v2420
    %2456 = vset.pattern.permute.xlu0 7
    %2457 = vperm.xlu0 %2456, %v2041
    %v2458 = vpop.permute.xlu0 %2457
    %v2460 = vmul.f32 %v2437, %v2458
    %v2461 = vmul.f32 %v2438, %v2458
    %v2462 = vmul.f32 %v2439, %v2458
    %v2463 = vmul.f32 %v2440, %v2458
    %v2464 = vmul.f32 %v2441, %v2458
    %v2465 = vmul.f32 %v2442, %v2458
    %v2466 = vmul.f32 %v2443, %v2458
    %v2467 = vmul.f32 %v2444, %v2458
    %v2468 = vmul.f32 %v2455, %v2458
    %v2469 = vadd.f32 %v2410, %v2460
    %v2470 = vadd.f32 %v2411, %v2461
    %v2471 = vadd.f32 %v2412, %v2462
    %v2472 = vadd.f32 %v2413, %v2463
    %v2473 = vadd.f32 %v2414, %v2464
    %v2474 = vadd.f32 %v2415, %v2465
    %v2475 = vadd.f32 %v2416, %v2466
    %v2476 = vadd.f32 %v2417, %v2467
    %v2477 = vadd.f32 %v2418, %v2468
    %2478 = vrot.lane.b32.xlu0 %v2032, 103
    %v2479 = vpop.permute.xlu0 %2478
    %2480 = vrot.lane.b32.xlu0 %v2033, 103
    %v2481 = vpop.permute.xlu0 %2480
    %2482 = vrot.lane.b32.xlu0 %v2034, 103
    %v2483 = vpop.permute.xlu0 %2482
    %2484 = vrot.lane.b32.xlu0 %v2035, 103
    %v2485 = vpop.permute.xlu0 %2484
    %2486 = vrot.lane.b32.xlu0 %v2036, 103
    %v2487 = vpop.permute.xlu0 %2486
    %2488 = vrot.lane.b32.xlu0 %v2037, 103
    %v2489 = vpop.permute.xlu0 %2488
    %2490 = vrot.lane.b32.xlu0 %v2038, 103
    %v2491 = vpop.permute.xlu0 %2490
    %2492 = vrot.lane.b32.xlu0 %v2039, 103
    %v2493 = vpop.permute.xlu0 %2492
    %2494 = vrot.lane.b32.xlu0 %v2040, 103
    %v2495 = vpop.permute.xlu0 %2494
    %v2496 = vsel %vm475, %v2479, %v2481
    %v2497 = vsel %vm475, %v2481, %v2483
    %v2498 = vsel %vm475, %v2483, %v2485
    %v2499 = vsel %vm475, %v2485, %v2487
    %v2500 = vsel %vm475, %v2487, %v2489
    %v2501 = vsel %vm475, %v2489, %v2491
    %v2502 = vsel %vm475, %v2491, %v2493
    %v2503 = vsel %vm475, %v2493, %v2495
    %v2514 = vsel %vm475, %v2495, %v2479
    %2515 = vset.pattern.permute.xlu0 8
    %2516 = vperm.xlu0 %2515, %v2041
    %v2517 = vpop.permute.xlu0 %2516
    %v2519 = vmul.f32 %v2496, %v2517
    %v2520 = vmul.f32 %v2497, %v2517
    %v2521 = vmul.f32 %v2498, %v2517
    %v2522 = vmul.f32 %v2499, %v2517
    %v2523 = vmul.f32 %v2500, %v2517
    %v2524 = vmul.f32 %v2501, %v2517
    %v2525 = vmul.f32 %v2502, %v2517
    %v2526 = vmul.f32 %v2503, %v2517
    %v2527 = vmul.f32 %v2514, %v2517
    %v2528 = vadd.f32 %v2469, %v2519
    %v2529 = vadd.f32 %v2470, %v2520
    %v2530 = vadd.f32 %v2471, %v2521
    %v2531 = vadd.f32 %v2472, %v2522
    %v2532 = vadd.f32 %v2473, %v2523
    %v2533 = vadd.f32 %v2474, %v2524
    %v2534 = vadd.f32 %v2475, %v2525
    %v2535 = vadd.f32 %v2476, %v2526
    %v2536 = vadd.f32 %v2477, %v2527
    %v2537 = vld [vmem:[%s6] sm:$0xff]
    %v2539 = vsel %vm1761, %v2537, 0
    %2541 = vmatpush.msra.mxu0 0.0
    %2542 = vmatpush.msra.mxu0 0.0
    %2543 = vmatpush.msra.mxu0 0.0
    %2544 = vmatpush.msra.mxu0 0.0
    %2545 = vmatpush.msra.mxu0 0.0
    %2546 = vmatpush.msra.mxu0 0.0
    %2547 = vmatpush.msra.mxu0 0.0
    %2548 = vmatpush.msra.mxu0 0.0
    %2549 = vmatpush.msra.mxu0 0.0
    %2550 = vmatpush.msra.mxu0 0.0
    %2551 = vmatpush.msra.mxu0 0.0
    %2552 = vmatpush.msra.mxu0 0.0
    %2553 = vmatpush.msra.mxu0 0.0
    %2554 = vmatpush.msra.mxu0 0.0
    %2555 = vmatpush.msra.mxu0 0.0
    %2556 = vmatpush.msra.mxu0 %v2528
    %2557 = vmatmul.f32.gmra.mxu0 %v2539
    %v2558 = vpop.f32.mrf.mxu0
    %v2559 = vadd.f32 0.0, %v2558
    %2560 = vdwg.mxu0
    %2561 = vmatpush.msra.mxu0 0.0
    %2562 = vmatpush.msra.mxu0 0.0
    %2563 = vmatpush.msra.mxu0 0.0
    %2564 = vmatpush.msra.mxu0 0.0
    %2565 = vmatpush.msra.mxu0 0.0
    %2566 = vmatpush.msra.mxu0 0.0
    %2567 = vmatpush.msra.mxu0 0.0
    %2568 = vmatpush.msra.mxu0 0.0
    %2569 = vmatpush.msra.mxu0 0.0
    %2570 = vmatpush.msra.mxu0 0.0
    %2571 = vmatpush.msra.mxu0 0.0
    %2572 = vmatpush.msra.mxu0 0.0
    %2573 = vmatpush.msra.mxu0 0.0
    %2574 = vmatpush.msra.mxu0 0.0
    %2575 = vmatpush.msra.mxu0 0.0
    %2576 = vmatpush.msra.mxu0 %v2529
    %2577 = vmatmul.f32.gmra.mxu0 %v2539
    %v2578 = vpop.f32.mrf.mxu0
    %v2579 = vadd.f32 0.0, %v2578
    %2580 = vdwg.mxu0
    %2581 = vmatpush.msra.mxu0 0.0
    %2582 = vmatpush.msra.mxu0 0.0
    %2583 = vmatpush.msra.mxu0 0.0
    %2584 = vmatpush.msra.mxu0 0.0
    %2585 = vmatpush.msra.mxu0 0.0
    %2586 = vmatpush.msra.mxu0 0.0
    %2587 = vmatpush.msra.mxu0 0.0
    %2588 = vmatpush.msra.mxu0 0.0
    %2589 = vmatpush.msra.mxu0 0.0
    %2590 = vmatpush.msra.mxu0 0.0
    %2591 = vmatpush.msra.mxu0 0.0
    %2592 = vmatpush.msra.mxu0 0.0
    %2593 = vmatpush.msra.mxu0 0.0
    %2594 = vmatpush.msra.mxu0 0.0
    %2595 = vmatpush.msra.mxu0 0.0
    %2596 = vmatpush.msra.mxu0 %v2530
    %2597 = vmatmul.f32.gmra.mxu0 %v2539
    %v2598 = vpop.f32.mrf.mxu0
    %v2599 = vadd.f32 0.0, %v2598
    %2600 = vdwg.mxu0
    %2601 = vmatpush.msra.mxu0 0.0
    %2602 = vmatpush.msra.mxu0 0.0
    %2603 = vmatpush.msra.mxu0 0.0
    %2604 = vmatpush.msra.mxu0 0.0
    %2605 = vmatpush.msra.mxu0 0.0
    %2606 = vmatpush.msra.mxu0 0.0
    %2607 = vmatpush.msra.mxu0 0.0
    %2608 = vmatpush.msra.mxu0 0.0
    %2609 = vmatpush.msra.mxu0 0.0
    %2610 = vmatpush.msra.mxu0 0.0
    %2611 = vmatpush.msra.mxu0 0.0
    %2612 = vmatpush.msra.mxu0 0.0
    %2613 = vmatpush.msra.mxu0 0.0
    %2614 = vmatpush.msra.mxu0 0.0
    %2615 = vmatpush.msra.mxu0 0.0
    %2616 = vmatpush.msra.mxu0 %v2531
    %2617 = vmatmul.f32.gmra.mxu0 %v2539
    %v2618 = vpop.f32.mrf.mxu0
    %v2619 = vadd.f32 0.0, %v2618
    %2620 = vdwg.mxu0
    %2621 = vmatpush.msra.mxu0 0.0
    %2622 = vmatpush.msra.mxu0 0.0
    %2623 = vmatpush.msra.mxu0 0.0
    %2624 = vmatpush.msra.mxu0 0.0
    %2625 = vmatpush.msra.mxu0 0.0
    %2626 = vmatpush.msra.mxu0 0.0
    %2627 = vmatpush.msra.mxu0 0.0
    %2628 = vmatpush.msra.mxu0 0.0
    %2629 = vmatpush.msra.mxu0 0.0
    %2630 = vmatpush.msra.mxu0 0.0
    %2631 = vmatpush.msra.mxu0 0.0
    %2632 = vmatpush.msra.mxu0 0.0
    %2633 = vmatpush.msra.mxu0 0.0
    %2634 = vmatpush.msra.mxu0 0.0
    %2635 = vmatpush.msra.mxu0 0.0
    %2636 = vmatpush.msra.mxu0 %v2532
    %2637 = vmatmul.f32.gmra.mxu0 %v2539
    %v2638 = vpop.f32.mrf.mxu0
    %v2639 = vadd.f32 0.0, %v2638
    %2640 = vdwg.mxu0
    %2641 = vmatpush.msra.mxu0 0.0
    %2642 = vmatpush.msra.mxu0 0.0
    %2643 = vmatpush.msra.mxu0 0.0
    %2644 = vmatpush.msra.mxu0 0.0
    %2645 = vmatpush.msra.mxu0 0.0
    %2646 = vmatpush.msra.mxu0 0.0
    %2647 = vmatpush.msra.mxu0 0.0
    %2648 = vmatpush.msra.mxu0 0.0
    %2649 = vmatpush.msra.mxu0 0.0
    %2650 = vmatpush.msra.mxu0 0.0
    %2651 = vmatpush.msra.mxu0 0.0
    %2652 = vmatpush.msra.mxu0 0.0
    %2653 = vmatpush.msra.mxu0 0.0
    %2654 = vmatpush.msra.mxu0 0.0
    %2655 = vmatpush.msra.mxu0 0.0
    %2656 = vmatpush.msra.mxu0 %v2533
    %2657 = vmatmul.f32.gmra.mxu0 %v2539
    %v2658 = vpop.f32.mrf.mxu0
    %v2659 = vadd.f32 0.0, %v2658
    %2660 = vdwg.mxu0
    %2661 = vmatpush.msra.mxu0 0.0
    %2662 = vmatpush.msra.mxu0 0.0
    %2663 = vmatpush.msra.mxu0 0.0
    %2664 = vmatpush.msra.mxu0 0.0
    %2665 = vmatpush.msra.mxu0 0.0
    %2666 = vmatpush.msra.mxu0 0.0
    %2667 = vmatpush.msra.mxu0 0.0
    %2668 = vmatpush.msra.mxu0 0.0
    %2669 = vmatpush.msra.mxu0 0.0
    %2670 = vmatpush.msra.mxu0 0.0
    %2671 = vmatpush.msra.mxu0 0.0
    %2672 = vmatpush.msra.mxu0 0.0
    %2673 = vmatpush.msra.mxu0 0.0
    %2674 = vmatpush.msra.mxu0 0.0
    %2675 = vmatpush.msra.mxu0 0.0
    %2676 = vmatpush.msra.mxu0 %v2534
    %2677 = vmatmul.f32.gmra.mxu0 %v2539
    %v2678 = vpop.f32.mrf.mxu0
    %v2679 = vadd.f32 0.0, %v2678
    %2680 = vdwg.mxu0
    %2681 = vmatpush.msra.mxu0 0.0
    %2682 = vmatpush.msra.mxu0 0.0
    %2683 = vmatpush.msra.mxu0 0.0
    %2684 = vmatpush.msra.mxu0 0.0
    %2685 = vmatpush.msra.mxu0 0.0
    %2686 = vmatpush.msra.mxu0 0.0
    %2687 = vmatpush.msra.mxu0 0.0
    %2688 = vmatpush.msra.mxu0 0.0
    %2689 = vmatpush.msra.mxu0 0.0
    %2690 = vmatpush.msra.mxu0 0.0
    %2691 = vmatpush.msra.mxu0 0.0
    %2692 = vmatpush.msra.mxu0 0.0
    %2693 = vmatpush.msra.mxu0 0.0
    %2694 = vmatpush.msra.mxu0 0.0
    %2695 = vmatpush.msra.mxu0 0.0
    %2696 = vmatpush.msra.mxu0 %v2535
    %2697 = vmatmul.f32.gmra.mxu0 %v2539
    %v2698 = vpop.f32.mrf.mxu0
    %v2699 = vadd.f32 0.0, %v2698
    %2700 = vdwg.mxu0
    %2701 = vmatpush.msra.mxu0 0.0
    %2702 = vmatpush.msra.mxu0 0.0
    %2703 = vmatpush.msra.mxu0 0.0
    %2704 = vmatpush.msra.mxu0 0.0
    %2705 = vmatpush.msra.mxu0 0.0
    %2706 = vmatpush.msra.mxu0 0.0
    %2707 = vmatpush.msra.mxu0 0.0
    %2708 = vmatpush.msra.mxu0 0.0
    %2709 = vmatpush.msra.mxu0 0.0
    %2710 = vmatpush.msra.mxu0 0.0
    %2711 = vmatpush.msra.mxu0 0.0
    %2712 = vmatpush.msra.mxu0 0.0
    %2713 = vmatpush.msra.mxu0 0.0
    %2714 = vmatpush.msra.mxu0 0.0
    %2715 = vmatpush.msra.mxu0 0.0
    %2716 = vmatpush.msra.mxu0 %v2536
    %2717 = vmatmul.f32.gmra.mxu0 %v2539
    %v2718 = vpop.f32.mrf.mxu0
    %v2719 = vadd.f32 0.0, %v2718
    %2720 = vdwg.mxu0
    %v2721 = vmul.f32 %v2559, %v506
    %v2722 = vmul.f32 %v2579, %v507
    %v2723 = vmul.f32 %v2599, %v508
    %v2724 = vmul.f32 %v2619, %v509
    %v2725 = vmul.f32 %v2639, %v510
    %v2726 = vmul.f32 %v2659, %v511
    %v2727 = vmul.f32 %v2679, %v512
    %v2728 = vmul.f32 %v2699, %v513
    %v2729 = vmul.f32 %v2719, %v514
    %v2730 = vadd.f32 %v2721, %v2722
    %v2731 = vadd.f32 %v2730, %v2723
    %v2732 = vadd.f32 %v2731, %v2724
    %v2733 = vadd.f32 %v2732, %v2725
    %v2734 = vadd.f32 %v2733, %v2726
    %v2735 = vadd.f32 %v2734, %v2727
    %v2736 = vadd.f32 %v2735, %v2728
    %v2737 = vadd.f32 %v2736, %v2729
    %2738 = vadd.xlane.f32.xlu0 %v2737
    %v2739 = vpop.xlane.xlu0 %2738
    %v2740 = vmul.f32 %v2739, 0.001953125
    %v2741 = vsub.f32 %v2559, %v2740
    %v2742 = vsub.f32 %v2579, %v2740
    %v2743 = vsub.f32 %v2599, %v2740
    %v2744 = vsub.f32 %v2619, %v2740
    %v2745 = vsub.f32 %v2639, %v2740
    %v2746 = vsub.f32 %v2659, %v2740
    %v2747 = vsub.f32 %v2679, %v2740
    %v2748 = vsub.f32 %v2699, %v2740
    %v2749 = vsub.f32 %v2719, %v2740
    %v2750 = vmul.f32 %v2741, %v506
    %v2751 = vmul.f32 %v2742, %v507
    %v2752 = vmul.f32 %v2743, %v508
    %v2753 = vmul.f32 %v2744, %v509
    %v2754 = vmul.f32 %v2745, %v510
    %v2755 = vmul.f32 %v2746, %v511
    %v2756 = vmul.f32 %v2747, %v512
    %v2757 = vmul.f32 %v2748, %v513
    %v2758 = vmul.f32 %v2749, %v514
    %v2759 = vmul.f32 %v2750, %v2750
    %v2760 = vmul.f32 %v2751, %v2751
    %v2761 = vmul.f32 %v2752, %v2752
    %v2762 = vmul.f32 %v2753, %v2753
    %v2763 = vmul.f32 %v2754, %v2754
    %v2764 = vmul.f32 %v2755, %v2755
    %v2765 = vmul.f32 %v2756, %v2756
    %v2766 = vmul.f32 %v2757, %v2757
    %v2767 = vmul.f32 %v2758, %v2758
    %v2768 = vadd.f32 %v2759, %v2760
    %v2769 = vadd.f32 %v2768, %v2761
    %v2770 = vadd.f32 %v2769, %v2762
    %v2771 = vadd.f32 %v2770, %v2763
    %v2772 = vadd.f32 %v2771, %v2764
    %v2773 = vadd.f32 %v2772, %v2765
    %v2774 = vadd.f32 %v2773, %v2766
    %v2775 = vadd.f32 %v2774, %v2767
    %2776 = vadd.xlane.f32.xlu0 %v2775
    %v2777 = vpop.xlane.xlu0 %2776
    %v2778 = vmul.f32 %v2777, 0.001953125
    %v2779 = vadd.f32 %v2778, 1e-05
    %v2780 = vrsqrt.pop %v2779
    %v2781 = vmul.f32 %v2780, %v2779
    %v2782 = vmul.f32 %v2781, %v2780
    %v2783 = vmul.f32 0.5, %v2782
    %v2784 = vsub.f32 1.5, %v2783
    %v2785 = vmul.f32 %v2780, %v2784
    %vm2786 = vweird.f32 %v2779
    %vm2787 = vweird.f32 %v2780
    %vm2788 = vmor %vm2786, %vm2787
    %v2789 = vsel %vm2788, %v2780, %v2785
    %v2790 = vmul.f32 %v2741, %v2789
    %v2791 = vmul.f32 %v2742, %v2789
    %v2792 = vmul.f32 %v2743, %v2789
    %v2793 = vmul.f32 %v2744, %v2789
    %v2794 = vmul.f32 %v2745, %v2789
    %v2795 = vmul.f32 %v2746, %v2789
    %v2796 = vmul.f32 %v2747, %v2789
    %v2797 = vmul.f32 %v2748, %v2789
    %v2798 = vmul.f32 %v2749, %v2789
    %v2799 = vstv %s1263
    %v2800 = vmul.f32 %v2799, %v2790
    %v2801 = vmul.f32 %v2799, %v2791
    %v2802 = vmul.f32 %v2799, %v2792
    %v2803 = vmul.f32 %v2799, %v2793
    %v2804 = vmul.f32 %v2799, %v2794
    %v2805 = vmul.f32 %v2799, %v2795
    %v2806 = vmul.f32 %v2799, %v2796
    %v2807 = vmul.f32 %v2799, %v2797
    %v2808 = vmul.f32 %v2799, %v2798
    %v2809 = vadd.f32 %v1254, %v2800
    %v2810 = vadd.f32 %v1255, %v2801
    %v2811 = vadd.f32 %v1256, %v2802
    %v2812 = vadd.f32 %v1257, %v2803
    %v2813 = vadd.f32 %v1258, %v2804
    %v2814 = vadd.f32 %v1259, %v2805
    %v2815 = vadd.f32 %v1260, %v2806
    %v2816 = vadd.f32 %v1261, %v2807
    %v2817 = vadd.f32 %v1262, %v2808
    %s2818 = sld [smem:[#allocation2 + $0x5]]
    %v2819 = vld [vmem:[%s7] sm:$0xff]
    %2820 = vrot.lane.b32.xlu0 %v87, 50
    %v2821 = vpop.permute.xlu0 %2820
    %2823 = vrot.lane.b32.xlu0 %v79, 50
    %v2824 = vpop.permute.xlu0 %2823
    %2825 = vrot.lane.b32.xlu0 %v80, 50
    %v2826 = vpop.permute.xlu0 %2825
    %2827 = vrot.lane.b32.xlu0 %v81, 50
    %v2828 = vpop.permute.xlu0 %2827
    %2829 = vrot.lane.b32.xlu0 %v82, 50
    %v2830 = vpop.permute.xlu0 %2829
    %2831 = vrot.lane.b32.xlu0 %v83, 50
    %v2832 = vpop.permute.xlu0 %2831
    %2833 = vrot.lane.b32.xlu0 %v84, 50
    %v2834 = vpop.permute.xlu0 %2833
    %2835 = vrot.lane.b32.xlu0 %v85, 50
    %v2836 = vpop.permute.xlu0 %2835
    %2837 = vrot.lane.b32.xlu0 %v86, 50
    %v2838 = vpop.permute.xlu0 %2837
    %vm2839 = vcmask 408576
    %v2840 = vsel %vm2839, %v2824, %v2826
    %v2841 = vsel %vm2839, %v2826, %v2828
    %v2842 = vsel %vm2839, %v2828, %v2830
    %v2843 = vsel %vm2839, %v2830, %v2832
    %v2844 = vsel %vm2839, %v2832, %v2834
    %v2845 = vsel %vm2839, %v2834, %v2836
    %v2846 = vsel %vm2839, %v2836, %v2838
    %v2847 = vsel %vm2839, %v2838, %v2821
    %v2857 = vsel %vm2839, %v2821, %v2824
    %2859 = vset.pattern.permute.xlu0 0
    %2860 = vperm.xlu0 %2859, %v2819
    %v2861 = vpop.permute.xlu0 %2860
    %v2863 = vmul.f32 %v2857, %v2861
    %v2864 = vmul.f32 %v2840, %v2861
    %v2865 = vmul.f32 %v2841, %v2861
    %v2866 = vmul.f32 %v2842, %v2861
    %v2867 = vmul.f32 %v2843, %v2861
    %v2868 = vmul.f32 %v2844, %v2861
    %v2869 = vmul.f32 %v2845, %v2861
    %v2870 = vmul.f32 %v2846, %v2861
    %v2871 = vmul.f32 %v2847, %v2861
    %2872 = vrot.lane.b32.xlu0 %v87, 49
    %v2873 = vpop.permute.xlu0 %2872
    %2875 = vrot.lane.b32.xlu0 %v79, 49
    %v2876 = vpop.permute.xlu0 %2875
    %2877 = vrot.lane.b32.xlu0 %v80, 49
    %v2878 = vpop.permute.xlu0 %2877
    %2879 = vrot.lane.b32.xlu0 %v81, 49
    %v2880 = vpop.permute.xlu0 %2879
    %2881 = vrot.lane.b32.xlu0 %v82, 49
    %v2882 = vpop.permute.xlu0 %2881
    %2883 = vrot.lane.b32.xlu0 %v83, 49
    %v2884 = vpop.permute.xlu0 %2883
    %2885 = vrot.lane.b32.xlu0 %v84, 49
    %v2886 = vpop.permute.xlu0 %2885
    %2887 = vrot.lane.b32.xlu0 %v85, 49
    %v2888 = vpop.permute.xlu0 %2887
    %2889 = vrot.lane.b32.xlu0 %v86, 49
    %v2890 = vpop.permute.xlu0 %2889
    %vm2891 = vcmask 400384
    %v2892 = vsel %vm2891, %v2876, %v2878
    %v2893 = vsel %vm2891, %v2878, %v2880
    %v2894 = vsel %vm2891, %v2880, %v2882
    %v2895 = vsel %vm2891, %v2882, %v2884
    %v2896 = vsel %vm2891, %v2884, %v2886
    %v2897 = vsel %vm2891, %v2886, %v2888
    %v2898 = vsel %vm2891, %v2888, %v2890
    %v2899 = vsel %vm2891, %v2890, %v2873
    %v2909 = vsel %vm2891, %v2873, %v2876
    %2910 = vset.pattern.permute.xlu0 1
    %2911 = vperm.xlu0 %2910, %v2819
    %v2912 = vpop.permute.xlu0 %2911
    %v2914 = vmul.f32 %v2909, %v2912
    %v2915 = vmul.f32 %v2892, %v2912
    %v2916 = vmul.f32 %v2893, %v2912
    %v2917 = vmul.f32 %v2894, %v2912
    %v2918 = vmul.f32 %v2895, %v2912
    %v2919 = vmul.f32 %v2896, %v2912
    %v2920 = vmul.f32 %v2897, %v2912
    %v2921 = vmul.f32 %v2898, %v2912
    %v2922 = vmul.f32 %v2899, %v2912
    %v2923 = vadd.f32 %v2863, %v2914
    %v2924 = vadd.f32 %v2864, %v2915
    %v2925 = vadd.f32 %v2865, %v2916
    %v2926 = vadd.f32 %v2866, %v2917
    %v2927 = vadd.f32 %v2867, %v2918
    %v2928 = vadd.f32 %v2868, %v2919
    %v2929 = vadd.f32 %v2869, %v2920
    %v2930 = vadd.f32 %v2870, %v2921
    %v2931 = vadd.f32 %v2871, %v2922
    %2932 = vrot.lane.b32.xlu0 %v87, 48
    %v2933 = vpop.permute.xlu0 %2932
    %2935 = vrot.lane.b32.xlu0 %v79, 48
    %v2936 = vpop.permute.xlu0 %2935
    %2937 = vrot.lane.b32.xlu0 %v80, 48
    %v2938 = vpop.permute.xlu0 %2937
    %2939 = vrot.lane.b32.xlu0 %v81, 48
    %v2940 = vpop.permute.xlu0 %2939
    %2941 = vrot.lane.b32.xlu0 %v82, 48
    %v2942 = vpop.permute.xlu0 %2941
    %2943 = vrot.lane.b32.xlu0 %v83, 48
    %v2944 = vpop.permute.xlu0 %2943
    %2945 = vrot.lane.b32.xlu0 %v84, 48
    %v2946 = vpop.permute.xlu0 %2945
    %2947 = vrot.lane.b32.xlu0 %v85, 48
    %v2948 = vpop.permute.xlu0 %2947
    %2949 = vrot.lane.b32.xlu0 %v86, 48
    %v2950 = vpop.permute.xlu0 %2949
    %vm2951 = vcmask 392192
    %v2952 = vsel %vm2951, %v2936, %v2938
    %v2953 = vsel %vm2951, %v2938, %v2940
    %v2954 = vsel %vm2951, %v2940, %v2942
    %v2955 = vsel %vm2951, %v2942, %v2944
    %v2956 = vsel %vm2951, %v2944, %v2946
    %v2957 = vsel %vm2951, %v2946, %v2948
    %v2958 = vsel %vm2951, %v2948, %v2950
    %v2959 = vsel %vm2951, %v2950, %v2933
    %v2969 = vsel %vm2951, %v2933, %v2936
    %2970 = vset.pattern.permute.xlu0 2
    %2971 = vperm.xlu0 %2970, %v2819
    %v2972 = vpop.permute.xlu0 %2971
    %v2974 = vmul.f32 %v2969, %v2972
    %v2975 = vmul.f32 %v2952, %v2972
    %v2976 = vmul.f32 %v2953, %v2972
    %v2977 = vmul.f32 %v2954, %v2972
    %v2978 = vmul.f32 %v2955, %v2972
    %v2979 = vmul.f32 %v2956, %v2972
    %v2980 = vmul.f32 %v2957, %v2972
    %v2981 = vmul.f32 %v2958, %v2972
    %v2982 = vmul.f32 %v2959, %v2972
    %v2983 = vadd.f32 %v2923, %v2974
    %v2984 = vadd.f32 %v2924, %v2975
    %v2985 = vadd.f32 %v2925, %v2976
    %v2986 = vadd.f32 %v2926, %v2977
    %v2987 = vadd.f32 %v2927, %v2978
    %v2988 = vadd.f32 %v2928, %v2979
    %v2989 = vadd.f32 %v2929, %v2980
    %v2990 = vadd.f32 %v2930, %v2981
    %v2991 = vadd.f32 %v2931, %v2982
    %2992 = vrot.lane.b32.xlu0 %v87, 47
    %v2993 = vpop.permute.xlu0 %2992
    %2995 = vrot.lane.b32.xlu0 %v79, 47
    %v2996 = vpop.permute.xlu0 %2995
    %2997 = vrot.lane.b32.xlu0 %v80, 47
    %v2998 = vpop.permute.xlu0 %2997
    %2999 = vrot.lane.b32.xlu0 %v81, 47
    %v3000 = vpop.permute.xlu0 %2999
    %3001 = vrot.lane.b32.xlu0 %v82, 47
    %v3002 = vpop.permute.xlu0 %3001
    %3003 = vrot.lane.b32.xlu0 %v83, 47
    %v3004 = vpop.permute.xlu0 %3003
    %3005 = vrot.lane.b32.xlu0 %v84, 47
    %v3006 = vpop.permute.xlu0 %3005
    %3007 = vrot.lane.b32.xlu0 %v85, 47
    %v3008 = vpop.permute.xlu0 %3007
    %3009 = vrot.lane.b32.xlu0 %v86, 47
    %v3010 = vpop.permute.xlu0 %3009
    %vm3011 = vcmask 384000
    %v3012 = vsel %vm3011, %v2996, %v2998
    %v3013 = vsel %vm3011, %v2998, %v3000
    %v3014 = vsel %vm3011, %v3000, %v3002
    %v3015 = vsel %vm3011, %v3002, %v3004
    %v3016 = vsel %vm3011, %v3004, %v3006
    %v3017 = vsel %vm3011, %v3006, %v3008
    %v3018 = vsel %vm3011, %v3008, %v3010
    %v3019 = vsel %vm3011, %v3010, %v2993
    %v3029 = vsel %vm3011, %v2993, %v2996
    %3030 = vset.pattern.permute.xlu0 3
    %3031 = vperm.xlu0 %3030, %v2819
    %v3032 = vpop.permute.xlu0 %3031
    %v3034 = vmul.f32 %v3029, %v3032
    %v3035 = vmul.f32 %v3012, %v3032
    %v3036 = vmul.f32 %v3013, %v3032
    %v3037 = vmul.f32 %v3014, %v3032
    %v3038 = vmul.f32 %v3015, %v3032
    %v3039 = vmul.f32 %v3016, %v3032
    %v3040 = vmul.f32 %v3017, %v3032
    %v3041 = vmul.f32 %v3018, %v3032
    %v3042 = vmul.f32 %v3019, %v3032
    %v3043 = vadd.f32 %v2983, %v3034
    %v3044 = vadd.f32 %v2984, %v3035
    %v3045 = vadd.f32 %v2985, %v3036
    %v3046 = vadd.f32 %v2986, %v3037
    %v3047 = vadd.f32 %v2987, %v3038
    %v3048 = vadd.f32 %v2988, %v3039
    %v3049 = vadd.f32 %v2989, %v3040
    %v3050 = vadd.f32 %v2990, %v3041
    %v3051 = vadd.f32 %v2991, %v3042
    %3052 = vrot.lane.b32.xlu0 %v87, 46
    %v3053 = vpop.permute.xlu0 %3052
    %3055 = vrot.lane.b32.xlu0 %v79, 46
    %v3056 = vpop.permute.xlu0 %3055
    %3057 = vrot.lane.b32.xlu0 %v80, 46
    %v3058 = vpop.permute.xlu0 %3057
    %3059 = vrot.lane.b32.xlu0 %v81, 46
    %v3060 = vpop.permute.xlu0 %3059
    %3061 = vrot.lane.b32.xlu0 %v82, 46
    %v3062 = vpop.permute.xlu0 %3061
    %3063 = vrot.lane.b32.xlu0 %v83, 46
    %v3064 = vpop.permute.xlu0 %3063
    %3065 = vrot.lane.b32.xlu0 %v84, 46
    %v3066 = vpop.permute.xlu0 %3065
    %3067 = vrot.lane.b32.xlu0 %v85, 46
    %v3068 = vpop.permute.xlu0 %3067
    %3069 = vrot.lane.b32.xlu0 %v86, 46
    %v3070 = vpop.permute.xlu0 %3069
    %vm3071 = vcmask 375808
    %v3072 = vsel %vm3071, %v3056, %v3058
    %v3073 = vsel %vm3071, %v3058, %v3060
    %v3074 = vsel %vm3071, %v3060, %v3062
    %v3075 = vsel %vm3071, %v3062, %v3064
    %v3076 = vsel %vm3071, %v3064, %v3066
    %v3077 = vsel %vm3071, %v3066, %v3068
    %v3078 = vsel %vm3071, %v3068, %v3070
    %v3079 = vsel %vm3071, %v3070, %v3053
    %v3089 = vsel %vm3071, %v3053, %v3056
    %3090 = vset.pattern.permute.xlu0 4
    %3091 = vperm.xlu0 %3090, %v2819
    %v3092 = vpop.permute.xlu0 %3091
    %v3094 = vmul.f32 %v3089, %v3092
    %v3095 = vmul.f32 %v3072, %v3092
    %v3096 = vmul.f32 %v3073, %v3092
    %v3097 = vmul.f32 %v3074, %v3092
    %v3098 = vmul.f32 %v3075, %v3092
    %v3099 = vmul.f32 %v3076, %v3092
    %v3100 = vmul.f32 %v3077, %v3092
    %v3101 = vmul.f32 %v3078, %v3092
    %v3102 = vmul.f32 %v3079, %v3092
    %v3103 = vadd.f32 %v3043, %v3094
    %v3104 = vadd.f32 %v3044, %v3095
    %v3105 = vadd.f32 %v3045, %v3096
    %v3106 = vadd.f32 %v3046, %v3097
    %v3107 = vadd.f32 %v3047, %v3098
    %v3108 = vadd.f32 %v3048, %v3099
    %v3109 = vadd.f32 %v3049, %v3100
    %v3110 = vadd.f32 %v3050, %v3101
    %v3111 = vadd.f32 %v3051, %v3102
    %3112 = vrot.lane.b32.xlu0 %v87, 26
    %v3113 = vpop.permute.xlu0 %3112
    %3115 = vrot.lane.b32.xlu0 %v79, 26
    %v3116 = vpop.permute.xlu0 %3115
    %3117 = vrot.lane.b32.xlu0 %v80, 26
    %v3118 = vpop.permute.xlu0 %3117
    %3119 = vrot.lane.b32.xlu0 %v81, 26
    %v3120 = vpop.permute.xlu0 %3119
    %3121 = vrot.lane.b32.xlu0 %v82, 26
    %v3122 = vpop.permute.xlu0 %3121
    %3123 = vrot.lane.b32.xlu0 %v83, 26
    %v3124 = vpop.permute.xlu0 %3123
    %3125 = vrot.lane.b32.xlu0 %v84, 26
    %v3126 = vpop.permute.xlu0 %3125
    %3127 = vrot.lane.b32.xlu0 %v85, 26
    %v3128 = vpop.permute.xlu0 %3127
    %3129 = vrot.lane.b32.xlu0 %v86, 26
    %v3130 = vpop.permute.xlu0 %3129
    %vm3131 = vcmask 211968
    %v3132 = vsel %vm3131, %v3116, %v3118
    %v3133 = vsel %vm3131, %v3118, %v3120
    %v3134 = vsel %vm3131, %v3120, %v3122
    %v3135 = vsel %vm3131, %v3122, %v3124
    %v3136 = vsel %vm3131, %v3124, %v3126
    %v3137 = vsel %vm3131, %v3126, %v3128
    %v3138 = vsel %vm3131, %v3128, %v3130
    %v3139 = vsel %vm3131, %v3130, %v3113
    %v3149 = vsel %vm3131, %v3113, %v3116
    %3150 = vset.pattern.permute.xlu0 5
    %3151 = vperm.xlu0 %3150, %v2819
    %v3152 = vpop.permute.xlu0 %3151
    %v3154 = vmul.f32 %v3149, %v3152
    %v3155 = vmul.f32 %v3132, %v3152
    %v3156 = vmul.f32 %v3133, %v3152
    %v3157 = vmul.f32 %v3134, %v3152
    %v3158 = vmul.f32 %v3135, %v3152
    %v3159 = vmul.f32 %v3136, %v3152
    %v3160 = vmul.f32 %v3137, %v3152
    %v3161 = vmul.f32 %v3138, %v3152
    %v3162 = vmul.f32 %v3139, %v3152
    %v3163 = vadd.f32 %v3103, %v3154
    %v3164 = vadd.f32 %v3104, %v3155
    %v3165 = vadd.f32 %v3105, %v3156
    %v3166 = vadd.f32 %v3106, %v3157
    %v3167 = vadd.f32 %v3107, %v3158
    %v3168 = vadd.f32 %v3108, %v3159
    %v3169 = vadd.f32 %v3109, %v3160
    %v3170 = vadd.f32 %v3110, %v3161
    %v3171 = vadd.f32 %v3111, %v3162
    %3172 = vset.pattern.permute.xlu0 6
    %3173 = vperm.xlu0 %3172, %v2819
    %v3174 = vpop.permute.xlu0 %3173
    %v3176 = vmul.f32 %v1310, %v3174
    %v3177 = vmul.f32 %v1293, %v3174
    %v3178 = vmul.f32 %v1294, %v3174
    %v3179 = vmul.f32 %v1295, %v3174
    %v3180 = vmul.f32 %v1296, %v3174
    %v3181 = vmul.f32 %v1297, %v3174
    %v3182 = vmul.f32 %v1298, %v3174
    %v3183 = vmul.f32 %v1299, %v3174
    %v3184 = vmul.f32 %v1300, %v3174
    %v3185 = vadd.f32 %v3163, %v3176
    %v3186 = vadd.f32 %v3164, %v3177
    %v3187 = vadd.f32 %v3165, %v3178
    %v3188 = vadd.f32 %v3166, %v3179
    %v3189 = vadd.f32 %v3167, %v3180
    %v3190 = vadd.f32 %v3168, %v3181
    %v3191 = vadd.f32 %v3169, %v3182
    %v3192 = vadd.f32 %v3170, %v3183
    %v3193 = vadd.f32 %v3171, %v3184
    %3194 = vset.pattern.permute.xlu0 7
    %3195 = vperm.xlu0 %3194, %v2819
    %v3196 = vpop.permute.xlu0 %3195
    %v3198 = vmul.f32 %v1361, %v3196
    %v3199 = vmul.f32 %v1344, %v3196
    %v3200 = vmul.f32 %v1345, %v3196
    %v3201 = vmul.f32 %v1346, %v3196
    %v3202 = vmul.f32 %v1347, %v3196
    %v3203 = vmul.f32 %v1348, %v3196
    %v3204 = vmul.f32 %v1349, %v3196
    %v3205 = vmul.f32 %v1350, %v3196
    %v3206 = vmul.f32 %v1351, %v3196
    %v3207 = vadd.f32 %v3185, %v3198
    %v3208 = vadd.f32 %v3186, %v3199
    %v3209 = vadd.f32 %v3187, %v3200
    %v3210 = vadd.f32 %v3188, %v3201
    %v3211 = vadd.f32 %v3189, %v3202
    %v3212 = vadd.f32 %v3190, %v3203
    %v3213 = vadd.f32 %v3191, %v3204
    %v3214 = vadd.f32 %v3192, %v3205
    %v3215 = vadd.f32 %v3193, %v3206
    %3216 = vset.pattern.permute.xlu0 8
    %3217 = vperm.xlu0 %3216, %v2819
    %v3218 = vpop.permute.xlu0 %3217
    %v3220 = vmul.f32 %v1420, %v3218
    %v3221 = vmul.f32 %v1403, %v3218
    %v3222 = vmul.f32 %v1404, %v3218
    %v3223 = vmul.f32 %v1405, %v3218
    %v3224 = vmul.f32 %v1406, %v3218
    %v3225 = vmul.f32 %v1407, %v3218
    %v3226 = vmul.f32 %v1408, %v3218
    %v3227 = vmul.f32 %v1409, %v3218
    %v3228 = vmul.f32 %v1410, %v3218
    %v3229 = vadd.f32 %v3207, %v3220
    %v3230 = vadd.f32 %v3208, %v3221
    %v3231 = vadd.f32 %v3209, %v3222
    %v3232 = vadd.f32 %v3210, %v3223
    %v3233 = vadd.f32 %v3211, %v3224
    %v3234 = vadd.f32 %v3212, %v3225
    %v3235 = vadd.f32 %v3213, %v3226
    %v3236 = vadd.f32 %v3214, %v3227
    %v3237 = vadd.f32 %v3215, %v3228
    %3238 = vrot.lane.b32.xlu0 %v87, 22
    %v3239 = vpop.permute.xlu0 %3238
    %3241 = vrot.lane.b32.xlu0 %v79, 22
    %v3242 = vpop.permute.xlu0 %3241
    %3243 = vrot.lane.b32.xlu0 %v80, 22
    %v3244 = vpop.permute.xlu0 %3243
    %3245 = vrot.lane.b32.xlu0 %v81, 22
    %v3246 = vpop.permute.xlu0 %3245
    %3247 = vrot.lane.b32.xlu0 %v82, 22
    %v3248 = vpop.permute.xlu0 %3247
    %3249 = vrot.lane.b32.xlu0 %v83, 22
    %v3250 = vpop.permute.xlu0 %3249
    %3251 = vrot.lane.b32.xlu0 %v84, 22
    %v3252 = vpop.permute.xlu0 %3251
    %3253 = vrot.lane.b32.xlu0 %v85, 22
    %v3254 = vpop.permute.xlu0 %3253
    %3255 = vrot.lane.b32.xlu0 %v86, 22
    %v3256 = vpop.permute.xlu0 %3255
    %vm3257 = vcmask 179200
    %v3258 = vsel %vm3257, %v3242, %v3244
    %v3259 = vsel %vm3257, %v3244, %v3246
    %v3260 = vsel %vm3257, %v3246, %v3248
    %v3261 = vsel %vm3257, %v3248, %v3250
    %v3262 = vsel %vm3257, %v3250, %v3252
    %v3263 = vsel %vm3257, %v3252, %v3254
    %v3264 = vsel %vm3257, %v3254, %v3256
    %v3265 = vsel %vm3257, %v3256, %v3239
    %v3275 = vsel %vm3257, %v3239, %v3242
    %3276 = vset.pattern.permute.xlu0 9
    %3277 = vperm.xlu0 %3276, %v2819
    %v3278 = vpop.permute.xlu0 %3277
    %v3280 = vmul.f32 %v3275, %v3278
    %v3281 = vmul.f32 %v3258, %v3278
    %v3282 = vmul.f32 %v3259, %v3278
    %v3283 = vmul.f32 %v3260, %v3278
    %v3284 = vmul.f32 %v3261, %v3278
    %v3285 = vmul.f32 %v3262, %v3278
    %v3286 = vmul.f32 %v3263, %v3278
    %v3287 = vmul.f32 %v3264, %v3278
    %v3288 = vmul.f32 %v3265, %v3278
    %v3289 = vadd.f32 %v3229, %v3280
    %v3290 = vadd.f32 %v3230, %v3281
    %v3291 = vadd.f32 %v3231, %v3282
    %v3292 = vadd.f32 %v3232, %v3283
    %v3293 = vadd.f32 %v3233, %v3284
    %v3294 = vadd.f32 %v3234, %v3285
    %v3295 = vadd.f32 %v3235, %v3286
    %v3296 = vadd.f32 %v3236, %v3287
    %v3297 = vadd.f32 %v3237, %v3288
    %3298 = vrot.lane.b32.xlu0 %v87, 2
    %v3299 = vpop.permute.xlu0 %3298
    %3301 = vrot.lane.b32.xlu0 %v79, 2
    %v3302 = vpop.permute.xlu0 %3301
    %3303 = vrot.lane.b32.xlu0 %v80, 2
    %v3304 = vpop.permute.xlu0 %3303
    %3305 = vrot.lane.b32.xlu0 %v81, 2
    %v3306 = vpop.permute.xlu0 %3305
    %3307 = vrot.lane.b32.xlu0 %v82, 2
    %v3308 = vpop.permute.xlu0 %3307
    %3309 = vrot.lane.b32.xlu0 %v83, 2
    %v3310 = vpop.permute.xlu0 %3309
    %3311 = vrot.lane.b32.xlu0 %v84, 2
    %v3312 = vpop.permute.xlu0 %3311
    %3313 = vrot.lane.b32.xlu0 %v85, 2
    %v3314 = vpop.permute.xlu0 %3313
    %3315 = vrot.lane.b32.xlu0 %v86, 2
    %v3316 = vpop.permute.xlu0 %3315
    %vm3317 = vcmask 15360
    %v3318 = vsel %vm3317, %v3302, %v3304
    %v3319 = vsel %vm3317, %v3304, %v3306
    %v3320 = vsel %vm3317, %v3306, %v3308
    %v3321 = vsel %vm3317, %v3308, %v3310
    %v3322 = vsel %vm3317, %v3310, %v3312
    %v3323 = vsel %vm3317, %v3312, %v3314
    %v3324 = vsel %vm3317, %v3314, %v3316
    %v3325 = vsel %vm3317, %v3316, %v3299
    %v3335 = vsel %vm3317, %v3299, %v3302
    %3336 = vset.pattern.permute.xlu0 10
    %3337 = vperm.xlu0 %3336, %v2819
    %v3338 = vpop.permute.xlu0 %3337
    %v3340 = vmul.f32 %v3335, %v3338
    %v3341 = vmul.f32 %v3318, %v3338
    %v3342 = vmul.f32 %v3319, %v3338
    %v3343 = vmul.f32 %v3320, %v3338
    %v3344 = vmul.f32 %v3321, %v3338
    %v3345 = vmul.f32 %v3322, %v3338
    %v3346 = vmul.f32 %v3323, %v3338
    %v3347 = vmul.f32 %v3324, %v3338
    %v3348 = vmul.f32 %v3325, %v3338
    %v3349 = vadd.f32 %v3289, %v3340
    %v3350 = vadd.f32 %v3290, %v3341
    %v3351 = vadd.f32 %v3291, %v3342
    %v3352 = vadd.f32 %v3292, %v3343
    %v3353 = vadd.f32 %v3293, %v3344
    %v3354 = vadd.f32 %v3294, %v3345
    %v3355 = vadd.f32 %v3295, %v3346
    %v3356 = vadd.f32 %v3296, %v3347
    %v3357 = vadd.f32 %v3297, %v3348
    %3358 = vset.pattern.permute.xlu0 11
    %3359 = vperm.xlu0 %3358, %v2819
    %v3360 = vpop.permute.xlu0 %3359
    %v3362 = vmul.f32 %v1479, %v3360
    %v3363 = vmul.f32 %v1462, %v3360
    %v3364 = vmul.f32 %v1463, %v3360
    %v3365 = vmul.f32 %v1464, %v3360
    %v3366 = vmul.f32 %v1465, %v3360
    %v3367 = vmul.f32 %v1466, %v3360
    %v3368 = vmul.f32 %v1467, %v3360
    %v3369 = vmul.f32 %v1468, %v3360
    %v3370 = vmul.f32 %v1469, %v3360
    %v3371 = vadd.f32 %v3349, %v3362
    %v3372 = vadd.f32 %v3350, %v3363
    %v3373 = vadd.f32 %v3351, %v3364
    %v3374 = vadd.f32 %v3352, %v3365
    %v3375 = vadd.f32 %v3353, %v3366
    %v3376 = vadd.f32 %v3354, %v3367
    %v3377 = vadd.f32 %v3355, %v3368
    %v3378 = vadd.f32 %v3356, %v3369
    %v3379 = vadd.f32 %v3357, %v3370
    %3380 = vset.pattern.permute.xlu0 12
    %3381 = vperm.xlu0 %3380, %v2819
    %v3382 = vpop.permute.xlu0 %3381
    %v3384 = vmul.f32 %v79, %v3382
    %v3385 = vmul.f32 %v80, %v3382
    %v3386 = vmul.f32 %v81, %v3382
    %v3387 = vmul.f32 %v82, %v3382
    %v3388 = vmul.f32 %v83, %v3382
    %v3389 = vmul.f32 %v84, %v3382
    %v3390 = vmul.f32 %v85, %v3382
    %v3391 = vmul.f32 %v86, %v3382
    %v3392 = vmul.f32 %v87, %v3382
    %v3393 = vadd.f32 %v3371, %v3384
    %v3394 = vadd.f32 %v3372, %v3385
    %v3395 = vadd.f32 %v3373, %v3386
    %v3396 = vadd.f32 %v3374, %v3387
    %v3397 = vadd.f32 %v3375, %v3388
    %v3398 = vadd.f32 %v3376, %v3389
    %v3399 = vadd.f32 %v3377, %v3390
    %v3400 = vadd.f32 %v3378, %v3391
    %v3401 = vadd.f32 %v3379, %v3392
    %3402 = vset.pattern.permute.xlu0 13
    %3403 = vperm.xlu0 %3402, %v2819
    %v3404 = vpop.permute.xlu0 %3403
    %v3406 = vmul.f32 %v1542, %v3404
    %v3407 = vmul.f32 %v1543, %v3404
    %v3408 = vmul.f32 %v1544, %v3404
    %v3409 = vmul.f32 %v1545, %v3404
    %v3410 = vmul.f32 %v1546, %v3404
    %v3411 = vmul.f32 %v1547, %v3404
    %v3412 = vmul.f32 %v1548, %v3404
    %v3413 = vmul.f32 %v1549, %v3404
    %v3414 = vmul.f32 %v1560, %v3404
    %v3415 = vadd.f32 %v3393, %v3406
    %v3416 = vadd.f32 %v3394, %v3407
    %v3417 = vadd.f32 %v3395, %v3408
    %v3418 = vadd.f32 %v3396, %v3409
    %v3419 = vadd.f32 %v3397, %v3410
    %v3420 = vadd.f32 %v3398, %v3411
    %v3421 = vadd.f32 %v3399, %v3412
    %v3422 = vadd.f32 %v3400, %v3413
    %v3423 = vadd.f32 %v3401, %v3414
    %3424 = vrot.lane.b32.xlu0 %v79, 126
    %v3425 = vpop.permute.xlu0 %3424
    %3426 = vrot.lane.b32.xlu0 %v80, 126
    %v3427 = vpop.permute.xlu0 %3426
    %3428 = vrot.lane.b32.xlu0 %v81, 126
    %v3429 = vpop.permute.xlu0 %3428
    %3430 = vrot.lane.b32.xlu0 %v82, 126
    %v3431 = vpop.permute.xlu0 %3430
    %3432 = vrot.lane.b32.xlu0 %v83, 126
    %v3433 = vpop.permute.xlu0 %3432
    %3434 = vrot.lane.b32.xlu0 %v84, 126
    %v3435 = vpop.permute.xlu0 %3434
    %3436 = vrot.lane.b32.xlu0 %v85, 126
    %v3437 = vpop.permute.xlu0 %3436
    %3438 = vrot.lane.b32.xlu0 %v86, 126
    %v3439 = vpop.permute.xlu0 %3438
    %3440 = vrot.lane.b32.xlu0 %v87, 126
    %v3441 = vpop.permute.xlu0 %3440
    %vm3442 = vcmask 1031168
    %v3443 = vsel %vm3442, %v3425, %v3427
    %v3444 = vsel %vm3442, %v3427, %v3429
    %v3445 = vsel %vm3442, %v3429, %v3431
    %v3446 = vsel %vm3442, %v3431, %v3433
    %v3447 = vsel %vm3442, %v3433, %v3435
    %v3448 = vsel %vm3442, %v3435, %v3437
    %v3449 = vsel %vm3442, %v3437, %v3439
    %v3450 = vsel %vm3442, %v3439, %v3441
    %v3461 = vsel %vm3442, %v3441, %v3425
    %3462 = vset.pattern.permute.xlu0 14
    %3463 = vperm.xlu0 %3462, %v2819
    %v3464 = vpop.permute.xlu0 %3463
    %v3466 = vmul.f32 %v3443, %v3464
    %v3467 = vmul.f32 %v3444, %v3464
    %v3468 = vmul.f32 %v3445, %v3464
    %v3469 = vmul.f32 %v3446, %v3464
    %v3470 = vmul.f32 %v3447, %v3464
    %v3471 = vmul.f32 %v3448, %v3464
    %v3472 = vmul.f32 %v3449, %v3464
    %v3473 = vmul.f32 %v3450, %v3464
    %v3474 = vmul.f32 %v3461, %v3464
    %v3475 = vadd.f32 %v3415, %v3466
    %v3476 = vadd.f32 %v3416, %v3467
    %v3477 = vadd.f32 %v3417, %v3468
    %v3478 = vadd.f32 %v3418, %v3469
    %v3479 = vadd.f32 %v3419, %v3470
    %v3480 = vadd.f32 %v3420, %v3471
    %v3481 = vadd.f32 %v3421, %v3472
    %v3482 = vadd.f32 %v3422, %v3473
    %v3483 = vadd.f32 %v3423, %v3474
    %3484 = vrot.lane.b32.xlu0 %v79, 106
    %v3485 = vpop.permute.xlu0 %3484
    %3486 = vrot.lane.b32.xlu0 %v80, 106
    %v3487 = vpop.permute.xlu0 %3486
    %3488 = vrot.lane.b32.xlu0 %v81, 106
    %v3489 = vpop.permute.xlu0 %3488
    %3490 = vrot.lane.b32.xlu0 %v82, 106
    %v3491 = vpop.permute.xlu0 %3490
    %3492 = vrot.lane.b32.xlu0 %v83, 106
    %v3493 = vpop.permute.xlu0 %3492
    %3494 = vrot.lane.b32.xlu0 %v84, 106
    %v3495 = vpop.permute.xlu0 %3494
    %3496 = vrot.lane.b32.xlu0 %v85, 106
    %v3497 = vpop.permute.xlu0 %3496
    %3498 = vrot.lane.b32.xlu0 %v86, 106
    %v3499 = vpop.permute.xlu0 %3498
    %3500 = vrot.lane.b32.xlu0 %v87, 106
    %v3501 = vpop.permute.xlu0 %3500
    %vm3502 = vcmask 867328
    %v3503 = vsel %vm3502, %v3485, %v3487
    %v3504 = vsel %vm3502, %v3487, %v3489
    %v3505 = vsel %vm3502, %v3489, %v3491
    %v3506 = vsel %vm3502, %v3491, %v3493
    %v3507 = vsel %vm3502, %v3493, %v3495
    %v3508 = vsel %vm3502, %v3495, %v3497
    %v3509 = vsel %vm3502, %v3497, %v3499
    %v3510 = vsel %vm3502, %v3499, %v3501
    %v3521 = vsel %vm3502, %v3501, %v3485
    %3522 = vset.pattern.permute.xlu0 15
    %3523 = vperm.xlu0 %3522, %v2819
    %v3524 = vpop.permute.xlu0 %3523
    %v3526 = vmul.f32 %v3503, %v3524
    %v3527 = vmul.f32 %v3504, %v3524
    %v3528 = vmul.f32 %v3505, %v3524
    %v3529 = vmul.f32 %v3506, %v3524
    %v3530 = vmul.f32 %v3507, %v3524
    %v3531 = vmul.f32 %v3508, %v3524
    %v3532 = vmul.f32 %v3509, %v3524
    %v3533 = vmul.f32 %v3510, %v3524
    %v3534 = vmul.f32 %v3521, %v3524
    %v3535 = vadd.f32 %v3475, %v3526
    %v3536 = vadd.f32 %v3476, %v3527
    %v3537 = vadd.f32 %v3477, %v3528
    %v3538 = vadd.f32 %v3478, %v3529
    %v3539 = vadd.f32 %v3479, %v3530
    %v3540 = vadd.f32 %v3480, %v3531
    %v3541 = vadd.f32 %v3481, %v3532
    %v3542 = vadd.f32 %v3482, %v3533
    %v3543 = vadd.f32 %v3483, %v3534
    %3544 = vset.pattern.permute.xlu0 16
    %3545 = vperm.xlu0 %3544, %v2819
    %v3546 = vpop.permute.xlu0 %3545
    %v3548 = vmul.f32 %v1601, %v3546
    %v3549 = vmul.f32 %v1602, %v3546
    %v3550 = vmul.f32 %v1603, %v3546
    %v3551 = vmul.f32 %v1604, %v3546
    %v3552 = vmul.f32 %v1605, %v3546
    %v3553 = vmul.f32 %v1606, %v3546
    %v3554 = vmul.f32 %v1607, %v3546
    %v3555 = vmul.f32 %v1608, %v3546
    %v3556 = vmul.f32 %v1619, %v3546
    %v3557 = vadd.f32 %v3535, %v3548
    %v3558 = vadd.f32 %v3536, %v3549
    %v3559 = vadd.f32 %v3537, %v3550
    %v3560 = vadd.f32 %v3538, %v3551
    %v3561 = vadd.f32 %v3539, %v3552
    %v3562 = vadd.f32 %v3540, %v3553
    %v3563 = vadd.f32 %v3541, %v3554
    %v3564 = vadd.f32 %v3542, %v3555
    %v3565 = vadd.f32 %v3543, %v3556
    %3566 = vset.pattern.permute.xlu0 17
    %3567 = vperm.xlu0 %3566, %v2819
    %v3568 = vpop.permute.xlu0 %3567
    %v3570 = vmul.f32 %v1660, %v3568
    %v3571 = vmul.f32 %v1661, %v3568
    %v3572 = vmul.f32 %v1662, %v3568
    %v3573 = vmul.f32 %v1663, %v3568
    %v3574 = vmul.f32 %v1664, %v3568
    %v3575 = vmul.f32 %v1665, %v3568
    %v3576 = vmul.f32 %v1666, %v3568
    %v3577 = vmul.f32 %v1667, %v3568
    %v3578 = vmul.f32 %v1678, %v3568
    %v3579 = vadd.f32 %v3557, %v3570
    %v3580 = vadd.f32 %v3558, %v3571
    %v3581 = vadd.f32 %v3559, %v3572
    %v3582 = vadd.f32 %v3560, %v3573
    %v3583 = vadd.f32 %v3561, %v3574
    %v3584 = vadd.f32 %v3562, %v3575
    %v3585 = vadd.f32 %v3563, %v3576
    %v3586 = vadd.f32 %v3564, %v3577
    %v3587 = vadd.f32 %v3565, %v3578
    %3588 = vset.pattern.permute.xlu0 18
    %3589 = vperm.xlu0 %3588, %v2819
    %v3590 = vpop.permute.xlu0 %3589
    %v3592 = vmul.f32 %v1719, %v3590
    %v3593 = vmul.f32 %v1720, %v3590
    %v3594 = vmul.f32 %v1721, %v3590
    %v3595 = vmul.f32 %v1722, %v3590
    %v3596 = vmul.f32 %v1723, %v3590
    %v3597 = vmul.f32 %v1724, %v3590
    %v3598 = vmul.f32 %v1725, %v3590
    %v3599 = vmul.f32 %v1726, %v3590
    %v3600 = vmul.f32 %v1737, %v3590
    %v3601 = vadd.f32 %v3579, %v3592
    %v3602 = vadd.f32 %v3580, %v3593
    %v3603 = vadd.f32 %v3581, %v3594
    %v3604 = vadd.f32 %v3582, %v3595
    %v3605 = vadd.f32 %v3583, %v3596
    %v3606 = vadd.f32 %v3584, %v3597
    %v3607 = vadd.f32 %v3585, %v3598
    %v3608 = vadd.f32 %v3586, %v3599
    %v3609 = vadd.f32 %v3587, %v3600
    %3610 = vrot.lane.b32.xlu0 %v79, 102
    %v3611 = vpop.permute.xlu0 %3610
    %3612 = vrot.lane.b32.xlu0 %v80, 102
    %v3613 = vpop.permute.xlu0 %3612
    %3614 = vrot.lane.b32.xlu0 %v81, 102
    %v3615 = vpop.permute.xlu0 %3614
    %3616 = vrot.lane.b32.xlu0 %v82, 102
    %v3617 = vpop.permute.xlu0 %3616
    %3618 = vrot.lane.b32.xlu0 %v83, 102
    %v3619 = vpop.permute.xlu0 %3618
    %3620 = vrot.lane.b32.xlu0 %v84, 102
    %v3621 = vpop.permute.xlu0 %3620
    %3622 = vrot.lane.b32.xlu0 %v85, 102
    %v3623 = vpop.permute.xlu0 %3622
    %3624 = vrot.lane.b32.xlu0 %v86, 102
    %v3625 = vpop.permute.xlu0 %3624
    %3626 = vrot.lane.b32.xlu0 %v87, 102
    %v3627 = vpop.permute.xlu0 %3626
    %vm3628 = vcmask 834560
    %v3629 = vsel %vm3628, %v3611, %v3613
    %v3630 = vsel %vm3628, %v3613, %v3615
    %v3631 = vsel %vm3628, %v3615, %v3617
    %v3632 = vsel %vm3628, %v3617, %v3619
    %v3633 = vsel %vm3628, %v3619, %v3621
    %v3634 = vsel %vm3628, %v3621, %v3623
    %v3635 = vsel %vm3628, %v3623, %v3625
    %v3636 = vsel %vm3628, %v3625, %v3627
    %v3647 = vsel %vm3628, %v3627, %v3611
    %3648 = vset.pattern.permute.xlu0 19
    %3649 = vperm.xlu0 %3648, %v2819
    %v3650 = vpop.permute.xlu0 %3649
    %v3652 = vmul.f32 %v3629, %v3650
    %v3653 = vmul.f32 %v3630, %v3650
    %v3654 = vmul.f32 %v3631, %v3650
    %v3655 = vmul.f32 %v3632, %v3650
    %v3656 = vmul.f32 %v3633, %v3650
    %v3657 = vmul.f32 %v3634, %v3650
    %v3658 = vmul.f32 %v3635, %v3650
    %v3659 = vmul.f32 %v3636, %v3650
    %v3660 = vmul.f32 %v3647, %v3650
    %v3661 = vadd.f32 %v3601, %v3652
    %v3662 = vadd.f32 %v3602, %v3653
    %v3663 = vadd.f32 %v3603, %v3654
    %v3664 = vadd.f32 %v3604, %v3655
    %v3665 = vadd.f32 %v3605, %v3656
    %v3666 = vadd.f32 %v3606, %v3657
    %v3667 = vadd.f32 %v3607, %v3658
    %v3668 = vadd.f32 %v3608, %v3659
    %v3669 = vadd.f32 %v3609, %v3660
    %3670 = vrot.lane.b32.xlu0 %v79, 82
    %v3671 = vpop.permute.xlu0 %3670
    %3672 = vrot.lane.b32.xlu0 %v80, 82
    %v3673 = vpop.permute.xlu0 %3672
    %3674 = vrot.lane.b32.xlu0 %v81, 82
    %v3675 = vpop.permute.xlu0 %3674
    %3676 = vrot.lane.b32.xlu0 %v82, 82
    %v3677 = vpop.permute.xlu0 %3676
    %3678 = vrot.lane.b32.xlu0 %v83, 82
    %v3679 = vpop.permute.xlu0 %3678
    %3680 = vrot.lane.b32.xlu0 %v84, 82
    %v3681 = vpop.permute.xlu0 %3680
    %3682 = vrot.lane.b32.xlu0 %v85, 82
    %v3683 = vpop.permute.xlu0 %3682
    %3684 = vrot.lane.b32.xlu0 %v86, 82
    %v3685 = vpop.permute.xlu0 %3684
    %3686 = vrot.lane.b32.xlu0 %v87, 82
    %v3687 = vpop.permute.xlu0 %3686
    %vm3688 = vcmask 670720
    %v3689 = vsel %vm3688, %v3671, %v3673
    %v3690 = vsel %vm3688, %v3673, %v3675
    %v3691 = vsel %vm3688, %v3675, %v3677
    %v3692 = vsel %vm3688, %v3677, %v3679
    %v3693 = vsel %vm3688, %v3679, %v3681
    %v3694 = vsel %vm3688, %v3681, %v3683
    %v3695 = vsel %vm3688, %v3683, %v3685
    %v3696 = vsel %vm3688, %v3685, %v3687
    %v3707 = vsel %vm3688, %v3687, %v3671
    %3708 = vset.pattern.permute.xlu0 20
    %3709 = vperm.xlu0 %3708, %v2819
    %v3710 = vpop.permute.xlu0 %3709
    %v3712 = vmul.f32 %v3689, %v3710
    %v3713 = vmul.f32 %v3690, %v3710
    %v3714 = vmul.f32 %v3691, %v3710
    %v3715 = vmul.f32 %v3692, %v3710
    %v3716 = vmul.f32 %v3693, %v3710
    %v3717 = vmul.f32 %v3694, %v3710
    %v3718 = vmul.f32 %v3695, %v3710
    %v3719 = vmul.f32 %v3696, %v3710
    %v3720 = vmul.f32 %v3707, %v3710
    %v3721 = vadd.f32 %v3661, %v3712
    %v3722 = vadd.f32 %v3662, %v3713
    %v3723 = vadd.f32 %v3663, %v3714
    %v3724 = vadd.f32 %v3664, %v3715
    %v3725 = vadd.f32 %v3665, %v3716
    %v3726 = vadd.f32 %v3666, %v3717
    %v3727 = vadd.f32 %v3667, %v3718
    %v3728 = vadd.f32 %v3668, %v3719
    %v3729 = vadd.f32 %v3669, %v3720
    %3730 = vrot.lane.b32.xlu0 %v79, 81
    %v3731 = vpop.permute.xlu0 %3730
    %3732 = vrot.lane.b32.xlu0 %v80, 81
    %v3733 = vpop.permute.xlu0 %3732
    %3734 = vrot.lane.b32.xlu0 %v81, 81
    %v3735 = vpop.permute.xlu0 %3734
    %3736 = vrot.lane.b32.xlu0 %v82, 81
    %v3737 = vpop.permute.xlu0 %3736
    %3738 = vrot.lane.b32.xlu0 %v83, 81
    %v3739 = vpop.permute.xlu0 %3738
    %3740 = vrot.lane.b32.xlu0 %v84, 81
    %v3741 = vpop.permute.xlu0 %3740
    %3742 = vrot.lane.b32.xlu0 %v85, 81
    %v3743 = vpop.permute.xlu0 %3742
    %3744 = vrot.lane.b32.xlu0 %v86, 81
    %v3745 = vpop.permute.xlu0 %3744
    %3746 = vrot.lane.b32.xlu0 %v87, 81
    %v3747 = vpop.permute.xlu0 %3746
    %vm3748 = vcmask 662528
    %v3749 = vsel %vm3748, %v3731, %v3733
    %v3750 = vsel %vm3748, %v3733, %v3735
    %v3751 = vsel %vm3748, %v3735, %v3737
    %v3752 = vsel %vm3748, %v3737, %v3739
    %v3753 = vsel %vm3748, %v3739, %v3741
    %v3754 = vsel %vm3748, %v3741, %v3743
    %v3755 = vsel %vm3748, %v3743, %v3745
    %v3756 = vsel %vm3748, %v3745, %v3747
    %v3767 = vsel %vm3748, %v3747, %v3731
    %3768 = vset.pattern.permute.xlu0 21
    %3769 = vperm.xlu0 %3768, %v2819
    %v3770 = vpop.permute.xlu0 %3769
    %v3772 = vmul.f32 %v3749, %v3770
    %v3773 = vmul.f32 %v3750, %v3770
    %v3774 = vmul.f32 %v3751, %v3770
    %v3775 = vmul.f32 %v3752, %v3770
    %v3776 = vmul.f32 %v3753, %v3770
    %v3777 = vmul.f32 %v3754, %v3770
    %v3778 = vmul.f32 %v3755, %v3770
    %v3779 = vmul.f32 %v3756, %v3770
    %v3780 = vmul.f32 %v3767, %v3770
    %v3781 = vadd.f32 %v3721, %v3772
    %v3782 = vadd.f32 %v3722, %v3773
    %v3783 = vadd.f32 %v3723, %v3774
    %v3784 = vadd.f32 %v3724, %v3775
    %v3785 = vadd.f32 %v3725, %v3776
    %v3786 = vadd.f32 %v3726, %v3777
    %v3787 = vadd.f32 %v3727, %v3778
    %v3788 = vadd.f32 %v3728, %v3779
    %v3789 = vadd.f32 %v3729, %v3780
    %3790 = vrot.lane.b32.xlu0 %v79, 80
    %v3791 = vpop.permute.xlu0 %3790
    %3792 = vrot.lane.b32.xlu0 %v80, 80
    %v3793 = vpop.permute.xlu0 %3792
    %3794 = vrot.lane.b32.xlu0 %v81, 80
    %v3795 = vpop.permute.xlu0 %3794
    %3796 = vrot.lane.b32.xlu0 %v82, 80
    %v3797 = vpop.permute.xlu0 %3796
    %3798 = vrot.lane.b32.xlu0 %v83, 80
    %v3799 = vpop.permute.xlu0 %3798
    %3800 = vrot.lane.b32.xlu0 %v84, 80
    %v3801 = vpop.permute.xlu0 %3800
    %3802 = vrot.lane.b32.xlu0 %v85, 80
    %v3803 = vpop.permute.xlu0 %3802
    %3804 = vrot.lane.b32.xlu0 %v86, 80
    %v3805 = vpop.permute.xlu0 %3804
    %3806 = vrot.lane.b32.xlu0 %v87, 80
    %v3807 = vpop.permute.xlu0 %3806
    %vm3808 = vcmask 654336
    %v3809 = vsel %vm3808, %v3791, %v3793
    %v3810 = vsel %vm3808, %v3793, %v3795
    %v3811 = vsel %vm3808, %v3795, %v3797
    %v3812 = vsel %vm3808, %v3797, %v3799
    %v3813 = vsel %vm3808, %v3799, %v3801
    %v3814 = vsel %vm3808, %v3801, %v3803
    %v3815 = vsel %vm3808, %v3803, %v3805
    %v3816 = vsel %vm3808, %v3805, %v3807
    %v3827 = vsel %vm3808, %v3807, %v3791
    %3828 = vset.pattern.permute.xlu0 22
    %3829 = vperm.xlu0 %3828, %v2819
    %v3830 = vpop.permute.xlu0 %3829
    %v3832 = vmul.f32 %v3809, %v3830
    %v3833 = vmul.f32 %v3810, %v3830
    %v3834 = vmul.f32 %v3811, %v3830
    %v3835 = vmul.f32 %v3812, %v3830
    %v3836 = vmul.f32 %v3813, %v3830
    %v3837 = vmul.f32 %v3814, %v3830
    %v3838 = vmul.f32 %v3815, %v3830
    %v3839 = vmul.f32 %v3816, %v3830
    %v3840 = vmul.f32 %v3827, %v3830
    %v3841 = vadd.f32 %v3781, %v3832
    %v3842 = vadd.f32 %v3782, %v3833
    %v3843 = vadd.f32 %v3783, %v3834
    %v3844 = vadd.f32 %v3784, %v3835
    %v3845 = vadd.f32 %v3785, %v3836
    %v3846 = vadd.f32 %v3786, %v3837
    %v3847 = vadd.f32 %v3787, %v3838
    %v3848 = vadd.f32 %v3788, %v3839
    %v3849 = vadd.f32 %v3789, %v3840
    %3850 = vrot.lane.b32.xlu0 %v79, 79
    %v3851 = vpop.permute.xlu0 %3850
    %3852 = vrot.lane.b32.xlu0 %v80, 79
    %v3853 = vpop.permute.xlu0 %3852
    %3854 = vrot.lane.b32.xlu0 %v81, 79
    %v3855 = vpop.permute.xlu0 %3854
    %3856 = vrot.lane.b32.xlu0 %v82, 79
    %v3857 = vpop.permute.xlu0 %3856
    %3858 = vrot.lane.b32.xlu0 %v83, 79
    %v3859 = vpop.permute.xlu0 %3858
    %3860 = vrot.lane.b32.xlu0 %v84, 79
    %v3861 = vpop.permute.xlu0 %3860
    %3862 = vrot.lane.b32.xlu0 %v85, 79
    %v3863 = vpop.permute.xlu0 %3862
    %3864 = vrot.lane.b32.xlu0 %v86, 79
    %v3865 = vpop.permute.xlu0 %3864
    %3866 = vrot.lane.b32.xlu0 %v87, 79
    %v3867 = vpop.permute.xlu0 %3866
    %vm3868 = vcmask 646144
    %v3869 = vsel %vm3868, %v3851, %v3853
    %v3870 = vsel %vm3868, %v3853, %v3855
    %v3871 = vsel %vm3868, %v3855, %v3857
    %v3872 = vsel %vm3868, %v3857, %v3859
    %v3873 = vsel %vm3868, %v3859, %v3861
    %v3874 = vsel %vm3868, %v3861, %v3863
    %v3875 = vsel %vm3868, %v3863, %v3865
    %v3876 = vsel %vm3868, %v3865, %v3867
    %v3887 = vsel %vm3868, %v3867, %v3851
    %3888 = vset.pattern.permute.xlu0 23
    %3889 = vperm.xlu0 %3888, %v2819
    %v3890 = vpop.permute.xlu0 %3889
    %v3892 = vmul.f32 %v3869, %v3890
    %v3893 = vmul.f32 %v3870, %v3890
    %v3894 = vmul.f32 %v3871, %v3890
    %v3895 = vmul.f32 %v3872, %v3890
    %v3896 = vmul.f32 %v3873, %v3890
    %v3897 = vmul.f32 %v3874, %v3890
    %v3898 = vmul.f32 %v3875, %v3890
    %v3899 = vmul.f32 %v3876, %v3890
    %v3900 = vmul.f32 %v3887, %v3890
    %v3901 = vadd.f32 %v3841, %v3892
    %v3902 = vadd.f32 %v3842, %v3893
    %v3903 = vadd.f32 %v3843, %v3894
    %v3904 = vadd.f32 %v3844, %v3895
    %v3905 = vadd.f32 %v3845, %v3896
    %v3906 = vadd.f32 %v3846, %v3897
    %v3907 = vadd.f32 %v3847, %v3898
    %v3908 = vadd.f32 %v3848, %v3899
    %v3909 = vadd.f32 %v3849, %v3900
    %3910 = vrot.lane.b32.xlu0 %v79, 78
    %v3911 = vpop.permute.xlu0 %3910
    %3912 = vrot.lane.b32.xlu0 %v80, 78
    %v3913 = vpop.permute.xlu0 %3912
    %3914 = vrot.lane.b32.xlu0 %v81, 78
    %v3915 = vpop.permute.xlu0 %3914
    %3916 = vrot.lane.b32.xlu0 %v82, 78
    %v3917 = vpop.permute.xlu0 %3916
    %3918 = vrot.lane.b32.xlu0 %v83, 78
    %v3919 = vpop.permute.xlu0 %3918
    %3920 = vrot.lane.b32.xlu0 %v84, 78
    %v3921 = vpop.permute.xlu0 %3920
    %3922 = vrot.lane.b32.xlu0 %v85, 78
    %v3923 = vpop.permute.xlu0 %3922
    %3924 = vrot.lane.b32.xlu0 %v86, 78
    %v3925 = vpop.permute.xlu0 %3924
    %3926 = vrot.lane.b32.xlu0 %v87, 78
    %v3927 = vpop.permute.xlu0 %3926
    %vm3928 = vcmask 637952
    %v3929 = vsel %vm3928, %v3911, %v3913
    %v3930 = vsel %vm3928, %v3913, %v3915
    %v3931 = vsel %vm3928, %v3915, %v3917
    %v3932 = vsel %vm3928, %v3917, %v3919
    %v3933 = vsel %vm3928, %v3919, %v3921
    %v3934 = vsel %vm3928, %v3921, %v3923
    %v3935 = vsel %vm3928, %v3923, %v3925
    %v3936 = vsel %vm3928, %v3925, %v3927
    %v3947 = vsel %vm3928, %v3927, %v3911
    %3948 = vset.pattern.permute.xlu0 24
    %3949 = vperm.xlu0 %3948, %v2819
    %v3950 = vpop.permute.xlu0 %3949
    %v3952 = vmul.f32 %v3929, %v3950
    %v3953 = vmul.f32 %v3930, %v3950
    %v3954 = vmul.f32 %v3931, %v3950
    %v3955 = vmul.f32 %v3932, %v3950
    %v3956 = vmul.f32 %v3933, %v3950
    %v3957 = vmul.f32 %v3934, %v3950
    %v3958 = vmul.f32 %v3935, %v3950
    %v3959 = vmul.f32 %v3936, %v3950
    %v3960 = vmul.f32 %v3947, %v3950
    %v3961 = vadd.f32 %v3901, %v3952
    %v3962 = vadd.f32 %v3902, %v3953
    %v3963 = vadd.f32 %v3903, %v3954
    %v3964 = vadd.f32 %v3904, %v3955
    %v3965 = vadd.f32 %v3905, %v3956
    %v3966 = vadd.f32 %v3906, %v3957
    %v3967 = vadd.f32 %v3907, %v3958
    %v3968 = vadd.f32 %v3908, %v3959
    %v3969 = vadd.f32 %v3909, %v3960
    %v3970 = vld [vmem:[%s8] sm:$0xff]
    %v3972 = vsel %vm1761, %v3970, 0
    %3974 = vmatpush.msra.mxu0 0.0
    %3975 = vmatpush.msra.mxu0 0.0
    %3976 = vmatpush.msra.mxu0 0.0
    %3977 = vmatpush.msra.mxu0 0.0
    %3978 = vmatpush.msra.mxu0 0.0
    %3979 = vmatpush.msra.mxu0 0.0
    %3980 = vmatpush.msra.mxu0 0.0
    %3981 = vmatpush.msra.mxu0 0.0
    %3982 = vmatpush.msra.mxu0 0.0
    %3983 = vmatpush.msra.mxu0 0.0
    %3984 = vmatpush.msra.mxu0 0.0
    %3985 = vmatpush.msra.mxu0 0.0
    %3986 = vmatpush.msra.mxu0 0.0
    %3987 = vmatpush.msra.mxu0 0.0
    %3988 = vmatpush.msra.mxu0 0.0
    %3989 = vmatpush.msra.mxu0 %v3961
    %3990 = vmatmul.f32.gmra.mxu0 %v3972
    %v3991 = vpop.f32.mrf.mxu0
    %v3992 = vadd.f32 0.0, %v3991
    %3993 = vdwg.mxu0
    %3994 = vmatpush.msra.mxu0 0.0
    %3995 = vmatpush.msra.mxu0 0.0
    %3996 = vmatpush.msra.mxu0 0.0
    %3997 = vmatpush.msra.mxu0 0.0
    %3998 = vmatpush.msra.mxu0 0.0
    %3999 = vmatpush.msra.mxu0 0.0
    %4000 = vmatpush.msra.mxu0 0.0
    %4001 = vmatpush.msra.mxu0 0.0
    %4002 = vmatpush.msra.mxu0 0.0
    %4003 = vmatpush.msra.mxu0 0.0
    %4004 = vmatpush.msra.mxu0 0.0
    %4005 = vmatpush.msra.mxu0 0.0
    %4006 = vmatpush.msra.mxu0 0.0
    %4007 = vmatpush.msra.mxu0 0.0
    %4008 = vmatpush.msra.mxu0 0.0
    %4009 = vmatpush.msra.mxu0 %v3962
    %4010 = vmatmul.f32.gmra.mxu0 %v3972
    %v4011 = vpop.f32.mrf.mxu0
    %v4012 = vadd.f32 0.0, %v4011
    %4013 = vdwg.mxu0
    %4014 = vmatpush.msra.mxu0 0.0
    %4015 = vmatpush.msra.mxu0 0.0
    %4016 = vmatpush.msra.mxu0 0.0
    %4017 = vmatpush.msra.mxu0 0.0
    %4018 = vmatpush.msra.mxu0 0.0
    %4019 = vmatpush.msra.mxu0 0.0
    %4020 = vmatpush.msra.mxu0 0.0
    %4021 = vmatpush.msra.mxu0 0.0
    %4022 = vmatpush.msra.mxu0 0.0
    %4023 = vmatpush.msra.mxu0 0.0
    %4024 = vmatpush.msra.mxu0 0.0
    %4025 = vmatpush.msra.mxu0 0.0
    %4026 = vmatpush.msra.mxu0 0.0
    %4027 = vmatpush.msra.mxu0 0.0
    %4028 = vmatpush.msra.mxu0 0.0
    %4029 = vmatpush.msra.mxu0 %v3963
    %4030 = vmatmul.f32.gmra.mxu0 %v3972
    %v4031 = vpop.f32.mrf.mxu0
    %v4032 = vadd.f32 0.0, %v4031
    %4033 = vdwg.mxu0
    %4034 = vmatpush.msra.mxu0 0.0
    %4035 = vmatpush.msra.mxu0 0.0
    %4036 = vmatpush.msra.mxu0 0.0
    %4037 = vmatpush.msra.mxu0 0.0
    %4038 = vmatpush.msra.mxu0 0.0
    %4039 = vmatpush.msra.mxu0 0.0
    %4040 = vmatpush.msra.mxu0 0.0
    %4041 = vmatpush.msra.mxu0 0.0
    %4042 = vmatpush.msra.mxu0 0.0
    %4043 = vmatpush.msra.mxu0 0.0
    %4044 = vmatpush.msra.mxu0 0.0
    %4045 = vmatpush.msra.mxu0 0.0
    %4046 = vmatpush.msra.mxu0 0.0
    %4047 = vmatpush.msra.mxu0 0.0
    %4048 = vmatpush.msra.mxu0 0.0
    %4049 = vmatpush.msra.mxu0 %v3964
    %4050 = vmatmul.f32.gmra.mxu0 %v3972
    %v4051 = vpop.f32.mrf.mxu0
    %v4052 = vadd.f32 0.0, %v4051
    %4053 = vdwg.mxu0
    %4054 = vmatpush.msra.mxu0 0.0
    %4055 = vmatpush.msra.mxu0 0.0
    %4056 = vmatpush.msra.mxu0 0.0
    %4057 = vmatpush.msra.mxu0 0.0
    %4058 = vmatpush.msra.mxu0 0.0
    %4059 = vmatpush.msra.mxu0 0.0
    %4060 = vmatpush.msra.mxu0 0.0
    %4061 = vmatpush.msra.mxu0 0.0
    %4062 = vmatpush.msra.mxu0 0.0
    %4063 = vmatpush.msra.mxu0 0.0
    %4064 = vmatpush.msra.mxu0 0.0
    %4065 = vmatpush.msra.mxu0 0.0
    %4066 = vmatpush.msra.mxu0 0.0
    %4067 = vmatpush.msra.mxu0 0.0
    %4068 = vmatpush.msra.mxu0 0.0
    %4069 = vmatpush.msra.mxu0 %v3965
    %4070 = vmatmul.f32.gmra.mxu0 %v3972
    %v4071 = vpop.f32.mrf.mxu0
    %v4072 = vadd.f32 0.0, %v4071
    %4073 = vdwg.mxu0
    %4074 = vmatpush.msra.mxu0 0.0
    %4075 = vmatpush.msra.mxu0 0.0
    %4076 = vmatpush.msra.mxu0 0.0
    %4077 = vmatpush.msra.mxu0 0.0
    %4078 = vmatpush.msra.mxu0 0.0
    %4079 = vmatpush.msra.mxu0 0.0
    %4080 = vmatpush.msra.mxu0 0.0
    %4081 = vmatpush.msra.mxu0 0.0
    %4082 = vmatpush.msra.mxu0 0.0
    %4083 = vmatpush.msra.mxu0 0.0
    %4084 = vmatpush.msra.mxu0 0.0
    %4085 = vmatpush.msra.mxu0 0.0
    %4086 = vmatpush.msra.mxu0 0.0
    %4087 = vmatpush.msra.mxu0 0.0
    %4088 = vmatpush.msra.mxu0 0.0
    %4089 = vmatpush.msra.mxu0 %v3966
    %4090 = vmatmul.f32.gmra.mxu0 %v3972
    %v4091 = vpop.f32.mrf.mxu0
    %v4092 = vadd.f32 0.0, %v4091
    %4093 = vdwg.mxu0
    %4094 = vmatpush.msra.mxu0 0.0
    %4095 = vmatpush.msra.mxu0 0.0
    %4096 = vmatpush.msra.mxu0 0.0
    %4097 = vmatpush.msra.mxu0 0.0
    %4098 = vmatpush.msra.mxu0 0.0
    %4099 = vmatpush.msra.mxu0 0.0
    %4100 = vmatpush.msra.mxu0 0.0
    %4101 = vmatpush.msra.mxu0 0.0
    %4102 = vmatpush.msra.mxu0 0.0
    %4103 = vmatpush.msra.mxu0 0.0
    %4104 = vmatpush.msra.mxu0 0.0
    %4105 = vmatpush.msra.mxu0 0.0
    %4106 = vmatpush.msra.mxu0 0.0
    %4107 = vmatpush.msra.mxu0 0.0
    %4108 = vmatpush.msra.mxu0 0.0
    %4109 = vmatpush.msra.mxu0 %v3967
    %4110 = vmatmul.f32.gmra.mxu0 %v3972
    %v4111 = vpop.f32.mrf.mxu0
    %v4112 = vadd.f32 0.0, %v4111
    %4113 = vdwg.mxu0
    %4114 = vmatpush.msra.mxu0 0.0
    %4115 = vmatpush.msra.mxu0 0.0
    %4116 = vmatpush.msra.mxu0 0.0
    %4117 = vmatpush.msra.mxu0 0.0
    %4118 = vmatpush.msra.mxu0 0.0
    %4119 = vmatpush.msra.mxu0 0.0
    %4120 = vmatpush.msra.mxu0 0.0
    %4121 = vmatpush.msra.mxu0 0.0
    %4122 = vmatpush.msra.mxu0 0.0
    %4123 = vmatpush.msra.mxu0 0.0
    %4124 = vmatpush.msra.mxu0 0.0
    %4125 = vmatpush.msra.mxu0 0.0
    %4126 = vmatpush.msra.mxu0 0.0
    %4127 = vmatpush.msra.mxu0 0.0
    %4128 = vmatpush.msra.mxu0 0.0
    %4129 = vmatpush.msra.mxu0 %v3968
    %4130 = vmatmul.f32.gmra.mxu0 %v3972
    %v4131 = vpop.f32.mrf.mxu0
    %v4132 = vadd.f32 0.0, %v4131
    %4133 = vdwg.mxu0
    %4134 = vmatpush.msra.mxu0 0.0
    %4135 = vmatpush.msra.mxu0 0.0
    %4136 = vmatpush.msra.mxu0 0.0
    %4137 = vmatpush.msra.mxu0 0.0
    %4138 = vmatpush.msra.mxu0 0.0
    %4139 = vmatpush.msra.mxu0 0.0
    %4140 = vmatpush.msra.mxu0 0.0
    %4141 = vmatpush.msra.mxu0 0.0
    %4142 = vmatpush.msra.mxu0 0.0
    %4143 = vmatpush.msra.mxu0 0.0
    %4144 = vmatpush.msra.mxu0 0.0
    %4145 = vmatpush.msra.mxu0 0.0
    %4146 = vmatpush.msra.mxu0 0.0
    %4147 = vmatpush.msra.mxu0 0.0
    %4148 = vmatpush.msra.mxu0 0.0
    %4149 = vmatpush.msra.mxu0 %v3969
    %4150 = vmatmul.f32.gmra.mxu0 %v3972
    %v4151 = vpop.f32.mrf.mxu0
    %v4152 = vadd.f32 0.0, %v4151
    %4153 = vdwg.mxu0
    %v4154 = vmul.f32 %v3992, %v506
    %v4155 = vmul.f32 %v4012, %v507
    %v4156 = vmul.f32 %v4032, %v508
    %v4157 = vmul.f32 %v4052, %v509
    %v4158 = vmul.f32 %v4072, %v510
    %v4159 = vmul.f32 %v4092, %v511
    %v4160 = vmul.f32 %v4112, %v512
    %v4161 = vmul.f32 %v4132, %v513
    %v4162 = vmul.f32 %v4152, %v514
    %v4163 = vadd.f32 %v4154, %v4155
    %v4164 = vadd.f32 %v4163, %v4156
    %v4165 = vadd.f32 %v4164, %v4157
    %v4166 = vadd.f32 %v4165, %v4158
    %v4167 = vadd.f32 %v4166, %v4159
    %v4168 = vadd.f32 %v4167, %v4160
    %v4169 = vadd.f32 %v4168, %v4161
    %v4170 = vadd.f32 %v4169, %v4162
    %4171 = vadd.xlane.f32.xlu0 %v4170
    %v4172 = vpop.xlane.xlu0 %4171
    %v4173 = vmul.f32 %v4172, 0.001953125
    %v4174 = vsub.f32 %v3992, %v4173
    %v4175 = vsub.f32 %v4012, %v4173
    %v4176 = vsub.f32 %v4032, %v4173
    %v4177 = vsub.f32 %v4052, %v4173
    %v4178 = vsub.f32 %v4072, %v4173
    %v4179 = vsub.f32 %v4092, %v4173
    %v4180 = vsub.f32 %v4112, %v4173
    %v4181 = vsub.f32 %v4132, %v4173
    %v4182 = vsub.f32 %v4152, %v4173
    %v4183 = vmul.f32 %v4174, %v506
    %v4184 = vmul.f32 %v4175, %v507
    %v4185 = vmul.f32 %v4176, %v508
    %v4186 = vmul.f32 %v4177, %v509
    %v4187 = vmul.f32 %v4178, %v510
    %v4188 = vmul.f32 %v4179, %v511
    %v4189 = vmul.f32 %v4180, %v512
    %v4190 = vmul.f32 %v4181, %v513
    %v4191 = vmul.f32 %v4182, %v514
    %v4192 = vmul.f32 %v4183, %v4183
    %v4193 = vmul.f32 %v4184, %v4184
    %v4194 = vmul.f32 %v4185, %v4185
    %v4195 = vmul.f32 %v4186, %v4186
    %v4196 = vmul.f32 %v4187, %v4187
    %v4197 = vmul.f32 %v4188, %v4188
    %v4198 = vmul.f32 %v4189, %v4189
    %v4199 = vmul.f32 %v4190, %v4190
    %v4200 = vmul.f32 %v4191, %v4191
    %v4201 = vadd.f32 %v4192, %v4193
    %v4202 = vadd.f32 %v4201, %v4194
    %v4203 = vadd.f32 %v4202, %v4195
    %v4204 = vadd.f32 %v4203, %v4196
    %v4205 = vadd.f32 %v4204, %v4197
    %v4206 = vadd.f32 %v4205, %v4198
    %v4207 = vadd.f32 %v4206, %v4199
    %v4208 = vadd.f32 %v4207, %v4200
    %4209 = vadd.xlane.f32.xlu0 %v4208
    %v4210 = vpop.xlane.xlu0 %4209
    %v4211 = vmul.f32 %v4210, 0.001953125
    %v4212 = vadd.f32 %v4211, 1e-05
    %v4213 = vrsqrt.pop %v4212
    %v4214 = vmul.f32 %v4213, %v4212
    %v4215 = vmul.f32 %v4214, %v4213
    %v4216 = vmul.f32 0.5, %v4215
    %v4217 = vsub.f32 1.5, %v4216
    %v4218 = vmul.f32 %v4213, %v4217
    %vm4219 = vweird.f32 %v4212
    %vm4220 = vweird.f32 %v4213
    %vm4221 = vmor %vm4219, %vm4220
    %v4222 = vsel %vm4221, %v4213, %v4218
    %v4223 = vmul.f32 %v4174, %v4222
    %v4224 = vmul.f32 %v4175, %v4222
    %v4225 = vmul.f32 %v4176, %v4222
    %v4226 = vmul.f32 %v4177, %v4222
    %v4227 = vmul.f32 %v4178, %v4222
    %v4228 = vmul.f32 %v4179, %v4222
    %v4229 = vmul.f32 %v4180, %v4222
    %v4230 = vmul.f32 %v4181, %v4222
    %v4231 = vmul.f32 %v4182, %v4222
    %v4232 = vmul.f32 %v4223, %v506
    %v4233 = vmul.f32 %v4224, %v507
    %v4234 = vmul.f32 %v4225, %v508
    %v4235 = vmul.f32 %v4226, %v509
    %v4236 = vmul.f32 %v4227, %v510
    %v4237 = vmul.f32 %v4228, %v511
    %v4238 = vmul.f32 %v4229, %v512
    %v4239 = vmul.f32 %v4230, %v513
    %v4240 = vmul.f32 %v4231, %v514
    %v4241 = vmax.f32 %v4232, 0.0
    %v4242 = vmax.f32 %v4233, 0.0
    %v4243 = vmax.f32 %v4234, 0.0
    %v4244 = vmax.f32 %v4235, 0.0
    %v4245 = vmax.f32 %v4236, 0.0
    %v4246 = vmax.f32 %v4237, 0.0
    %v4247 = vmax.f32 %v4238, 0.0
    %v4248 = vmax.f32 %v4239, 0.0
    %v4249 = vmax.f32 %v4240, 0.0
    %v4250 = vld [vmem:[%s9] sm:$0xff]
    %4252 = vrot.lane.b32.xlu0 %v4249, 50
    %v4253 = vpop.permute.xlu0 %4252
    %4263 = vrot.lane.b32.xlu0 %v4241, 50
    %v4264 = vpop.permute.xlu0 %4263
    %4265 = vrot.lane.b32.xlu0 %v4242, 50
    %v4266 = vpop.permute.xlu0 %4265
    %4267 = vrot.lane.b32.xlu0 %v4243, 50
    %v4268 = vpop.permute.xlu0 %4267
    %4269 = vrot.lane.b32.xlu0 %v4244, 50
    %v4270 = vpop.permute.xlu0 %4269
    %4271 = vrot.lane.b32.xlu0 %v4245, 50
    %v4272 = vpop.permute.xlu0 %4271
    %4273 = vrot.lane.b32.xlu0 %v4246, 50
    %v4274 = vpop.permute.xlu0 %4273
    %4275 = vrot.lane.b32.xlu0 %v4247, 50
    %v4276 = vpop.permute.xlu0 %4275
    %4277 = vrot.lane.b32.xlu0 %v4248, 50
    %v4278 = vpop.permute.xlu0 %4277
    %v4279 = vsel %vm2839, %v4264, %v4266
    %v4280 = vsel %vm2839, %v4266, %v4268
    %v4281 = vsel %vm2839, %v4268, %v4270
    %v4282 = vsel %vm2839, %v4270, %v4272
    %v4283 = vsel %vm2839, %v4272, %v4274
    %v4284 = vsel %vm2839, %v4274, %v4276
    %v4285 = vsel %vm2839, %v4276, %v4278
    %v4286 = vsel %vm2839, %v4278, %v4253
    %v4296 = vsel %vm2839, %v4253, %v4264
    %4298 = vset.pattern.permute.xlu0 0
    %4299 = vperm.xlu0 %4298, %v4250
    %v4300 = vpop.permute.xlu0 %4299
    %v4302 = vmul.f32 %v4296, %v4300
    %v4303 = vmul.f32 %v4279, %v4300
    %v4304 = vmul.f32 %v4280, %v4300
    %v4305 = vmul.f32 %v4281, %v4300
    %v4306 = vmul.f32 %v4282, %v4300
    %v4307 = vmul.f32 %v4283, %v4300
    %v4308 = vmul.f32 %v4284, %v4300
    %v4309 = vmul.f32 %v4285, %v4300
    %v4310 = vmul.f32 %v4286, %v4300
    %4311 = vrot.lane.b32.xlu0 %v4249, 49
    %v4312 = vpop.permute.xlu0 %4311
    %4314 = vrot.lane.b32.xlu0 %v4241, 49
    %v4315 = vpop.permute.xlu0 %4314
    %4316 = vrot.lane.b32.xlu0 %v4242, 49
    %v4317 = vpop.permute.xlu0 %4316
    %4318 = vrot.lane.b32.xlu0 %v4243, 49
    %v4319 = vpop.permute.xlu0 %4318
    %4320 = vrot.lane.b32.xlu0 %v4244, 49
    %v4321 = vpop.permute.xlu0 %4320
    %4322 = vrot.lane.b32.xlu0 %v4245, 49
    %v4323 = vpop.permute.xlu0 %4322
    %4324 = vrot.lane.b32.xlu0 %v4246, 49
    %v4325 = vpop.permute.xlu0 %4324
    %4326 = vrot.lane.b32.xlu0 %v4247, 49
    %v4327 = vpop.permute.xlu0 %4326
    %4328 = vrot.lane.b32.xlu0 %v4248, 49
    %v4329 = vpop.permute.xlu0 %4328
    %v4330 = vsel %vm2891, %v4315, %v4317
    %v4331 = vsel %vm2891, %v4317, %v4319
    %v4332 = vsel %vm2891, %v4319, %v4321
    %v4333 = vsel %vm2891, %v4321, %v4323
    %v4334 = vsel %vm2891, %v4323, %v4325
    %v4335 = vsel %vm2891, %v4325, %v4327
    %v4336 = vsel %vm2891, %v4327, %v4329
    %v4337 = vsel %vm2891, %v4329, %v4312
    %v4347 = vsel %vm2891, %v4312, %v4315
    %4348 = vset.pattern.permute.xlu0 1
    %4349 = vperm.xlu0 %4348, %v4250
    %v4350 = vpop.permute.xlu0 %4349
    %v4352 = vmul.f32 %v4347, %v4350
    %v4353 = vmul.f32 %v4330, %v4350
    %v4354 = vmul.f32 %v4331, %v4350
    %v4355 = vmul.f32 %v4332, %v4350
    %v4356 = vmul.f32 %v4333, %v4350
    %v4357 = vmul.f32 %v4334, %v4350
    %v4358 = vmul.f32 %v4335, %v4350
    %v4359 = vmul.f32 %v4336, %v4350
    %v4360 = vmul.f32 %v4337, %v4350
    %v4361 = vadd.f32 %v4302, %v4352
    %v4362 = vadd.f32 %v4303, %v4353
    %v4363 = vadd.f32 %v4304, %v4354
    %v4364 = vadd.f32 %v4305, %v4355
    %v4365 = vadd.f32 %v4306, %v4356
    %v4366 = vadd.f32 %v4307, %v4357
    %v4367 = vadd.f32 %v4308, %v4358
    %v4368 = vadd.f32 %v4309, %v4359
    %v4369 = vadd.f32 %v4310, %v4360
    %4370 = vrot.lane.b32.xlu0 %v4249, 48
    %v4371 = vpop.permute.xlu0 %4370
    %4373 = vrot.lane.b32.xlu0 %v4241, 48
    %v4374 = vpop.permute.xlu0 %4373
    %4375 = vrot.lane.b32.xlu0 %v4242, 48
    %v4376 = vpop.permute.xlu0 %4375
    %4377 = vrot.lane.b32.xlu0 %v4243, 48
    %v4378 = vpop.permute.xlu0 %4377
    %4379 = vrot.lane.b32.xlu0 %v4244, 48
    %v4380 = vpop.permute.xlu0 %4379
    %4381 = vrot.lane.b32.xlu0 %v4245, 48
    %v4382 = vpop.permute.xlu0 %4381
    %4383 = vrot.lane.b32.xlu0 %v4246, 48
    %v4384 = vpop.permute.xlu0 %4383
    %4385 = vrot.lane.b32.xlu0 %v4247, 48
    %v4386 = vpop.permute.xlu0 %4385
    %4387 = vrot.lane.b32.xlu0 %v4248, 48
    %v4388 = vpop.permute.xlu0 %4387
    %v4389 = vsel %vm2951, %v4374, %v4376
    %v4390 = vsel %vm2951, %v4376, %v4378
    %v4391 = vsel %vm2951, %v4378, %v4380
    %v4392 = vsel %vm2951, %v4380, %v4382
    %v4393 = vsel %vm2951, %v4382, %v4384
    %v4394 = vsel %vm2951, %v4384, %v4386
    %v4395 = vsel %vm2951, %v4386, %v4388
    %v4396 = vsel %vm2951, %v4388, %v4371
    %v4406 = vsel %vm2951, %v4371, %v4374
    %4407 = vset.pattern.permute.xlu0 2
    %4408 = vperm.xlu0 %4407, %v4250
    %v4409 = vpop.permute.xlu0 %4408
    %v4411 = vmul.f32 %v4406, %v4409
    %v4412 = vmul.f32 %v4389, %v4409
    %v4413 = vmul.f32 %v4390, %v4409
    %v4414 = vmul.f32 %v4391, %v4409
    %v4415 = vmul.f32 %v4392, %v4409
    %v4416 = vmul.f32 %v4393, %v4409
    %v4417 = vmul.f32 %v4394, %v4409
    %v4418 = vmul.f32 %v4395, %v4409
    %v4419 = vmul.f32 %v4396, %v4409
    %v4420 = vadd.f32 %v4361, %v4411
    %v4421 = vadd.f32 %v4362, %v4412
    %v4422 = vadd.f32 %v4363, %v4413
    %v4423 = vadd.f32 %v4364, %v4414
    %v4424 = vadd.f32 %v4365, %v4415
    %v4425 = vadd.f32 %v4366, %v4416
    %v4426 = vadd.f32 %v4367, %v4417
    %v4427 = vadd.f32 %v4368, %v4418
    %v4428 = vadd.f32 %v4369, %v4419
    %4429 = vrot.lane.b32.xlu0 %v4249, 47
    %v4430 = vpop.permute.xlu0 %4429
    %4432 = vrot.lane.b32.xlu0 %v4241, 47
    %v4433 = vpop.permute.xlu0 %4432
    %4434 = vrot.lane.b32.xlu0 %v4242, 47
    %v4435 = vpop.permute.xlu0 %4434
    %4436 = vrot.lane.b32.xlu0 %v4243, 47
    %v4437 = vpop.permute.xlu0 %4436
    %4438 = vrot.lane.b32.xlu0 %v4244, 47
    %v4439 = vpop.permute.xlu0 %4438
    %4440 = vrot.lane.b32.xlu0 %v4245, 47
    %v4441 = vpop.permute.xlu0 %4440
    %4442 = vrot.lane.b32.xlu0 %v4246, 47
    %v4443 = vpop.permute.xlu0 %4442
    %4444 = vrot.lane.b32.xlu0 %v4247, 47
    %v4445 = vpop.permute.xlu0 %4444
    %4446 = vrot.lane.b32.xlu0 %v4248, 47
    %v4447 = vpop.permute.xlu0 %4446
    %v4448 = vsel %vm3011, %v4433, %v4435
    %v4449 = vsel %vm3011, %v4435, %v4437
    %v4450 = vsel %vm3011, %v4437, %v4439
    %v4451 = vsel %vm3011, %v4439, %v4441
    %v4452 = vsel %vm3011, %v4441, %v4443
    %v4453 = vsel %vm3011, %v4443, %v4445
    %v4454 = vsel %vm3011, %v4445, %v4447
    %v4455 = vsel %vm3011, %v4447, %v4430
    %v4465 = vsel %vm3011, %v4430, %v4433
    %4466 = vset.pattern.permute.xlu0 3
    %4467 = vperm.xlu0 %4466, %v4250
    %v4468 = vpop.permute.xlu0 %4467
    %v4470 = vmul.f32 %v4465, %v4468
    %v4471 = vmul.f32 %v4448, %v4468
    %v4472 = vmul.f32 %v4449, %v4468
    %v4473 = vmul.f32 %v4450, %v4468
    %v4474 = vmul.f32 %v4451, %v4468
    %v4475 = vmul.f32 %v4452, %v4468
    %v4476 = vmul.f32 %v4453, %v4468
    %v4477 = vmul.f32 %v4454, %v4468
    %v4478 = vmul.f32 %v4455, %v4468
    %v4479 = vadd.f32 %v4420, %v4470
    %v4480 = vadd.f32 %v4421, %v4471
    %v4481 = vadd.f32 %v4422, %v4472
    %v4482 = vadd.f32 %v4423, %v4473
    %v4483 = vadd.f32 %v4424, %v4474
    %v4484 = vadd.f32 %v4425, %v4475
    %v4485 = vadd.f32 %v4426, %v4476
    %v4486 = vadd.f32 %v4427, %v4477
    %v4487 = vadd.f32 %v4428, %v4478
    %4488 = vrot.lane.b32.xlu0 %v4249, 46
    %v4489 = vpop.permute.xlu0 %4488
    %4491 = vrot.lane.b32.xlu0 %v4241, 46
    %v4492 = vpop.permute.xlu0 %4491
    %4493 = vrot.lane.b32.xlu0 %v4242, 46
    %v4494 = vpop.permute.xlu0 %4493
    %4495 = vrot.lane.b32.xlu0 %v4243, 46
    %v4496 = vpop.permute.xlu0 %4495
    %4497 = vrot.lane.b32.xlu0 %v4244, 46
    %v4498 = vpop.permute.xlu0 %4497
    %4499 = vrot.lane.b32.xlu0 %v4245, 46
    %v4500 = vpop.permute.xlu0 %4499
    %4501 = vrot.lane.b32.xlu0 %v4246, 46
    %v4502 = vpop.permute.xlu0 %4501
    %4503 = vrot.lane.b32.xlu0 %v4247, 46
    %v4504 = vpop.permute.xlu0 %4503
    %4505 = vrot.lane.b32.xlu0 %v4248, 46
    %v4506 = vpop.permute.xlu0 %4505
    %v4507 = vsel %vm3071, %v4492, %v4494
    %v4508 = vsel %vm3071, %v4494, %v4496
    %v4509 = vsel %vm3071, %v4496, %v4498
    %v4510 = vsel %vm3071, %v4498, %v4500
    %v4511 = vsel %vm3071, %v4500, %v4502
    %v4512 = vsel %vm3071, %v4502, %v4504
    %v4513 = vsel %vm3071, %v4504, %v4506
    %v4514 = vsel %vm3071, %v4506, %v4489
    %v4524 = vsel %vm3071, %v4489, %v4492
    %4525 = vset.pattern.permute.xlu0 4
    %4526 = vperm.xlu0 %4525, %v4250
    %v4527 = vpop.permute.xlu0 %4526
    %v4529 = vmul.f32 %v4524, %v4527
    %v4530 = vmul.f32 %v4507, %v4527
    %v4531 = vmul.f32 %v4508, %v4527
    %v4532 = vmul.f32 %v4509, %v4527
    %v4533 = vmul.f32 %v4510, %v4527
    %v4534 = vmul.f32 %v4511, %v4527
    %v4535 = vmul.f32 %v4512, %v4527
    %v4536 = vmul.f32 %v4513, %v4527
    %v4537 = vmul.f32 %v4514, %v4527
    %v4538 = vadd.f32 %v4479, %v4529
    %v4539 = vadd.f32 %v4480, %v4530
    %v4540 = vadd.f32 %v4481, %v4531
    %v4541 = vadd.f32 %v4482, %v4532
    %v4542 = vadd.f32 %v4483, %v4533
    %v4543 = vadd.f32 %v4484, %v4534
    %v4544 = vadd.f32 %v4485, %v4535
    %v4545 = vadd.f32 %v4486, %v4536
    %v4546 = vadd.f32 %v4487, %v4537
    %4547 = vrot.lane.b32.xlu0 %v4249, 26
    %v4548 = vpop.permute.xlu0 %4547
    %4550 = vrot.lane.b32.xlu0 %v4241, 26
    %v4551 = vpop.permute.xlu0 %4550
    %4552 = vrot.lane.b32.xlu0 %v4242, 26
    %v4553 = vpop.permute.xlu0 %4552
    %4554 = vrot.lane.b32.xlu0 %v4243, 26
    %v4555 = vpop.permute.xlu0 %4554
    %4556 = vrot.lane.b32.xlu0 %v4244, 26
    %v4557 = vpop.permute.xlu0 %4556
    %4558 = vrot.lane.b32.xlu0 %v4245, 26
    %v4559 = vpop.permute.xlu0 %4558
    %4560 = vrot.lane.b32.xlu0 %v4246, 26
    %v4561 = vpop.permute.xlu0 %4560
    %4562 = vrot.lane.b32.xlu0 %v4247, 26
    %v4563 = vpop.permute.xlu0 %4562
    %4564 = vrot.lane.b32.xlu0 %v4248, 26
    %v4565 = vpop.permute.xlu0 %4564
    %v4566 = vsel %vm3131, %v4551, %v4553
    %v4567 = vsel %vm3131, %v4553, %v4555
    %v4568 = vsel %vm3131, %v4555, %v4557
    %v4569 = vsel %vm3131, %v4557, %v4559
    %v4570 = vsel %vm3131, %v4559, %v4561
    %v4571 = vsel %vm3131, %v4561, %v4563
    %v4572 = vsel %vm3131, %v4563, %v4565
    %v4573 = vsel %vm3131, %v4565, %v4548
    %v4583 = vsel %vm3131, %v4548, %v4551
    %4584 = vset.pattern.permute.xlu0 5
    %4585 = vperm.xlu0 %4584, %v4250
    %v4586 = vpop.permute.xlu0 %4585
    %v4588 = vmul.f32 %v4583, %v4586
    %v4589 = vmul.f32 %v4566, %v4586
    %v4590 = vmul.f32 %v4567, %v4586
    %v4591 = vmul.f32 %v4568, %v4586
    %v4592 = vmul.f32 %v4569, %v4586
    %v4593 = vmul.f32 %v4570, %v4586
    %v4594 = vmul.f32 %v4571, %v4586
    %v4595 = vmul.f32 %v4572, %v4586
    %v4596 = vmul.f32 %v4573, %v4586
    %v4597 = vadd.f32 %v4538, %v4588
    %v4598 = vadd.f32 %v4539, %v4589
    %v4599 = vadd.f32 %v4540, %v4590
    %v4600 = vadd.f32 %v4541, %v4591
    %v4601 = vadd.f32 %v4542, %v4592
    %v4602 = vadd.f32 %v4543, %v4593
    %v4603 = vadd.f32 %v4544, %v4594
    %v4604 = vadd.f32 %v4545, %v4595
    %v4605 = vadd.f32 %v4546, %v4596
    %4606 = vrot.lane.b32.xlu0 %v4249, 25
    %v4607 = vpop.permute.xlu0 %4606
    %4609 = vrot.lane.b32.xlu0 %v4241, 25
    %v4610 = vpop.permute.xlu0 %4609
    %4611 = vrot.lane.b32.xlu0 %v4242, 25
    %v4612 = vpop.permute.xlu0 %4611
    %4613 = vrot.lane.b32.xlu0 %v4243, 25
    %v4614 = vpop.permute.xlu0 %4613
    %4615 = vrot.lane.b32.xlu0 %v4244, 25
    %v4616 = vpop.permute.xlu0 %4615
    %4617 = vrot.lane.b32.xlu0 %v4245, 25
    %v4618 = vpop.permute.xlu0 %4617
    %4619 = vrot.lane.b32.xlu0 %v4246, 25
    %v4620 = vpop.permute.xlu0 %4619
    %4621 = vrot.lane.b32.xlu0 %v4247, 25
    %v4622 = vpop.permute.xlu0 %4621
    %4623 = vrot.lane.b32.xlu0 %v4248, 25
    %v4624 = vpop.permute.xlu0 %4623
    %v4625 = vsel %vm147, %v4610, %v4612
    %v4626 = vsel %vm147, %v4612, %v4614
    %v4627 = vsel %vm147, %v4614, %v4616
    %v4628 = vsel %vm147, %v4616, %v4618
    %v4629 = vsel %vm147, %v4618, %v4620
    %v4630 = vsel %vm147, %v4620, %v4622
    %v4631 = vsel %vm147, %v4622, %v4624
    %v4632 = vsel %vm147, %v4624, %v4607
    %v4642 = vsel %vm147, %v4607, %v4610
    %4643 = vset.pattern.permute.xlu0 6
    %4644 = vperm.xlu0 %4643, %v4250
    %v4645 = vpop.permute.xlu0 %4644
    %v4647 = vmul.f32 %v4642, %v4645
    %v4648 = vmul.f32 %v4625, %v4645
    %v4649 = vmul.f32 %v4626, %v4645
    %v4650 = vmul.f32 %v4627, %v4645
    %v4651 = vmul.f32 %v4628, %v4645
    %v4652 = vmul.f32 %v4629, %v4645
    %v4653 = vmul.f32 %v4630, %v4645
    %v4654 = vmul.f32 %v4631, %v4645
    %v4655 = vmul.f32 %v4632, %v4645
    %v4656 = vadd.f32 %v4597, %v4647
    %v4657 = vadd.f32 %v4598, %v4648
    %v4658 = vadd.f32 %v4599, %v4649
    %v4659 = vadd.f32 %v4600, %v4650
    %v4660 = vadd.f32 %v4601, %v4651
    %v4661 = vadd.f32 %v4602, %v4652
    %v4662 = vadd.f32 %v4603, %v4653
    %v4663 = vadd.f32 %v4604, %v4654
    %v4664 = vadd.f32 %v4605, %v4655
    %4665 = vrot.lane.b32.xlu0 %v4249, 24
    %v4666 = vpop.permute.xlu0 %4665
    %4668 = vrot.lane.b32.xlu0 %v4241, 24
    %v4669 = vpop.permute.xlu0 %4668
    %4670 = vrot.lane.b32.xlu0 %v4242, 24
    %v4671 = vpop.permute.xlu0 %4670
    %4672 = vrot.lane.b32.xlu0 %v4243, 24
    %v4673 = vpop.permute.xlu0 %4672
    %4674 = vrot.lane.b32.xlu0 %v4244, 24
    %v4675 = vpop.permute.xlu0 %4674
    %4676 = vrot.lane.b32.xlu0 %v4245, 24
    %v4677 = vpop.permute.xlu0 %4676
    %4678 = vrot.lane.b32.xlu0 %v4246, 24
    %v4679 = vpop.permute.xlu0 %4678
    %4680 = vrot.lane.b32.xlu0 %v4247, 24
    %v4681 = vpop.permute.xlu0 %4680
    %4682 = vrot.lane.b32.xlu0 %v4248, 24
    %v4683 = vpop.permute.xlu0 %4682
    %v4684 = vsel %vm185, %v4669, %v4671
    %v4685 = vsel %vm185, %v4671, %v4673
    %v4686 = vsel %vm185, %v4673, %v4675
    %v4687 = vsel %vm185, %v4675, %v4677
    %v4688 = vsel %vm185, %v4677, %v4679
    %v4689 = vsel %vm185, %v4679, %v4681
    %v4690 = vsel %vm185, %v4681, %v4683
    %v4691 = vsel %vm185, %v4683, %v4666
    %v4701 = vsel %vm185, %v4666, %v4669
    %4702 = vset.pattern.permute.xlu0 7
    %4703 = vperm.xlu0 %4702, %v4250
    %v4704 = vpop.permute.xlu0 %4703
    %v4706 = vmul.f32 %v4701, %v4704
    %v4707 = vmul.f32 %v4684, %v4704
    %v4708 = vmul.f32 %v4685, %v4704
    %v4709 = vmul.f32 %v4686, %v4704
    %v4710 = vmul.f32 %v4687, %v4704
    %v4711 = vmul.f32 %v4688, %v4704
    %v4712 = vmul.f32 %v4689, %v4704
    %v4713 = vmul.f32 %v4690, %v4704
    %v4714 = vmul.f32 %v4691, %v4704
    %v4715 = vadd.f32 %v4656, %v4706
    %v4716 = vadd.f32 %v4657, %v4707
    %v4717 = vadd.f32 %v4658, %v4708
    %v4718 = vadd.f32 %v4659, %v4709
    %v4719 = vadd.f32 %v4660, %v4710
    %v4720 = vadd.f32 %v4661, %v4711
    %v4721 = vadd.f32 %v4662, %v4712
    %v4722 = vadd.f32 %v4663, %v4713
    %v4723 = vadd.f32 %v4664, %v4714
    %4724 = vrot.lane.b32.xlu0 %v4249, 23
    %v4725 = vpop.permute.xlu0 %4724
    %4727 = vrot.lane.b32.xlu0 %v4241, 23
    %v4728 = vpop.permute.xlu0 %4727
    %4729 = vrot.lane.b32.xlu0 %v4242, 23
    %v4730 = vpop.permute.xlu0 %4729
    %4731 = vrot.lane.b32.xlu0 %v4243, 23
    %v4732 = vpop.permute.xlu0 %4731
    %4733 = vrot.lane.b32.xlu0 %v4244, 23
    %v4734 = vpop.permute.xlu0 %4733
    %4735 = vrot.lane.b32.xlu0 %v4245, 23
    %v4736 = vpop.permute.xlu0 %4735
    %4737 = vrot.lane.b32.xlu0 %v4246, 23
    %v4738 = vpop.permute.xlu0 %4737
    %4739 = vrot.lane.b32.xlu0 %v4247, 23
    %v4740 = vpop.permute.xlu0 %4739
    %4741 = vrot.lane.b32.xlu0 %v4248, 23
    %v4742 = vpop.permute.xlu0 %4741
    %v4743 = vsel %vm232, %v4728, %v4730
    %v4744 = vsel %vm232, %v4730, %v4732
    %v4745 = vsel %vm232, %v4732, %v4734
    %v4746 = vsel %vm232, %v4734, %v4736
    %v4747 = vsel %vm232, %v4736, %v4738
    %v4748 = vsel %vm232, %v4738, %v4740
    %v4749 = vsel %vm232, %v4740, %v4742
    %v4750 = vsel %vm232, %v4742, %v4725
    %v4760 = vsel %vm232, %v4725, %v4728
    %4761 = vset.pattern.permute.xlu0 8
    %4762 = vperm.xlu0 %4761, %v4250
    %v4763 = vpop.permute.xlu0 %4762
    %v4765 = vmul.f32 %v4760, %v4763
    %v4766 = vmul.f32 %v4743, %v4763
    %v4767 = vmul.f32 %v4744, %v4763
    %v4768 = vmul.f32 %v4745, %v4763
    %v4769 = vmul.f32 %v4746, %v4763
    %v4770 = vmul.f32 %v4747, %v4763
    %v4771 = vmul.f32 %v4748, %v4763
    %v4772 = vmul.f32 %v4749, %v4763
    %v4773 = vmul.f32 %v4750, %v4763
    %v4774 = vadd.f32 %v4715, %v4765
    %v4775 = vadd.f32 %v4716, %v4766
    %v4776 = vadd.f32 %v4717, %v4767
    %v4777 = vadd.f32 %v4718, %v4768
    %v4778 = vadd.f32 %v4719, %v4769
    %v4779 = vadd.f32 %v4720, %v4770
    %v4780 = vadd.f32 %v4721, %v4771
    %v4781 = vadd.f32 %v4722, %v4772
    %v4782 = vadd.f32 %v4723, %v4773
    %4783 = vrot.lane.b32.xlu0 %v4249, 22
    %v4784 = vpop.permute.xlu0 %4783
    %4786 = vrot.lane.b32.xlu0 %v4241, 22
    %v4787 = vpop.permute.xlu0 %4786
    %4788 = vrot.lane.b32.xlu0 %v4242, 22
    %v4789 = vpop.permute.xlu0 %4788
    %4790 = vrot.lane.b32.xlu0 %v4243, 22
    %v4791 = vpop.permute.xlu0 %4790
    %4792 = vrot.lane.b32.xlu0 %v4244, 22
    %v4793 = vpop.permute.xlu0 %4792
    %4794 = vrot.lane.b32.xlu0 %v4245, 22
    %v4795 = vpop.permute.xlu0 %4794
    %4796 = vrot.lane.b32.xlu0 %v4246, 22
    %v4797 = vpop.permute.xlu0 %4796
    %4798 = vrot.lane.b32.xlu0 %v4247, 22
    %v4799 = vpop.permute.xlu0 %4798
    %4800 = vrot.lane.b32.xlu0 %v4248, 22
    %v4801 = vpop.permute.xlu0 %4800
    %v4802 = vsel %vm3257, %v4787, %v4789
    %v4803 = vsel %vm3257, %v4789, %v4791
    %v4804 = vsel %vm3257, %v4791, %v4793
    %v4805 = vsel %vm3257, %v4793, %v4795
    %v4806 = vsel %vm3257, %v4795, %v4797
    %v4807 = vsel %vm3257, %v4797, %v4799
    %v4808 = vsel %vm3257, %v4799, %v4801
    %v4809 = vsel %vm3257, %v4801, %v4784
    %v4819 = vsel %vm3257, %v4784, %v4787
    %4820 = vset.pattern.permute.xlu0 9
    %4821 = vperm.xlu0 %4820, %v4250
    %v4822 = vpop.permute.xlu0 %4821
    %v4824 = vmul.f32 %v4819, %v4822
    %v4825 = vmul.f32 %v4802, %v4822
    %v4826 = vmul.f32 %v4803, %v4822
    %v4827 = vmul.f32 %v4804, %v4822
    %v4828 = vmul.f32 %v4805, %v4822
    %v4829 = vmul.f32 %v4806, %v4822
    %v4830 = vmul.f32 %v4807, %v4822
    %v4831 = vmul.f32 %v4808, %v4822
    %v4832 = vmul.f32 %v4809, %v4822
    %v4833 = vadd.f32 %v4774, %v4824
    %v4834 = vadd.f32 %v4775, %v4825
    %v4835 = vadd.f32 %v4776, %v4826
    %v4836 = vadd.f32 %v4777, %v4827
    %v4837 = vadd.f32 %v4778, %v4828
    %v4838 = vadd.f32 %v4779, %v4829
    %v4839 = vadd.f32 %v4780, %v4830
    %v4840 = vadd.f32 %v4781, %v4831
    %v4841 = vadd.f32 %v4782, %v4832
    %4842 = vrot.lane.b32.xlu0 %v4249, 2
    %v4843 = vpop.permute.xlu0 %4842
    %4845 = vrot.lane.b32.xlu0 %v4241, 2
    %v4846 = vpop.permute.xlu0 %4845
    %4847 = vrot.lane.b32.xlu0 %v4242, 2
    %v4848 = vpop.permute.xlu0 %4847
    %4849 = vrot.lane.b32.xlu0 %v4243, 2
    %v4850 = vpop.permute.xlu0 %4849
    %4851 = vrot.lane.b32.xlu0 %v4244, 2
    %v4852 = vpop.permute.xlu0 %4851
    %4853 = vrot.lane.b32.xlu0 %v4245, 2
    %v4854 = vpop.permute.xlu0 %4853
    %4855 = vrot.lane.b32.xlu0 %v4246, 2
    %v4856 = vpop.permute.xlu0 %4855
    %4857 = vrot.lane.b32.xlu0 %v4247, 2
    %v4858 = vpop.permute.xlu0 %4857
    %4859 = vrot.lane.b32.xlu0 %v4248, 2
    %v4860 = vpop.permute.xlu0 %4859
    %v4861 = vsel %vm3317, %v4846, %v4848
    %v4862 = vsel %vm3317, %v4848, %v4850
    %v4863 = vsel %vm3317, %v4850, %v4852
    %v4864 = vsel %vm3317, %v4852, %v4854
    %v4865 = vsel %vm3317, %v4854, %v4856
    %v4866 = vsel %vm3317, %v4856, %v4858
    %v4867 = vsel %vm3317, %v4858, %v4860
    %v4868 = vsel %vm3317, %v4860, %v4843
    %v4878 = vsel %vm3317, %v4843, %v4846
    %4879 = vset.pattern.permute.xlu0 10
    %4880 = vperm.xlu0 %4879, %v4250
    %v4881 = vpop.permute.xlu0 %4880
    %v4883 = vmul.f32 %v4878, %v4881
    %v4884 = vmul.f32 %v4861, %v4881
    %v4885 = vmul.f32 %v4862, %v4881
    %v4886 = vmul.f32 %v4863, %v4881
    %v4887 = vmul.f32 %v4864, %v4881
    %v4888 = vmul.f32 %v4865, %v4881
    %v4889 = vmul.f32 %v4866, %v4881
    %v4890 = vmul.f32 %v4867, %v4881
    %v4891 = vmul.f32 %v4868, %v4881
    %v4892 = vadd.f32 %v4833, %v4883
    %v4893 = vadd.f32 %v4834, %v4884
    %v4894 = vadd.f32 %v4835, %v4885
    %v4895 = vadd.f32 %v4836, %v4886
    %v4896 = vadd.f32 %v4837, %v4887
    %v4897 = vadd.f32 %v4838, %v4888
    %v4898 = vadd.f32 %v4839, %v4889
    %v4899 = vadd.f32 %v4840, %v4890
    %v4900 = vadd.f32 %v4841, %v4891
    %4901 = vrot.lane.b32.xlu0 %v4249, 1
    %v4902 = vpop.permute.xlu0 %4901
    %4904 = vrot.lane.b32.xlu0 %v4241, 1
    %v4905 = vpop.permute.xlu0 %4904
    %4906 = vrot.lane.b32.xlu0 %v4242, 1
    %v4907 = vpop.permute.xlu0 %4906
    %4908 = vrot.lane.b32.xlu0 %v4243, 1
    %v4909 = vpop.permute.xlu0 %4908
    %4910 = vrot.lane.b32.xlu0 %v4244, 1
    %v4911 = vpop.permute.xlu0 %4910
    %4912 = vrot.lane.b32.xlu0 %v4245, 1
    %v4913 = vpop.permute.xlu0 %4912
    %4914 = vrot.lane.b32.xlu0 %v4246, 1
    %v4915 = vpop.permute.xlu0 %4914
    %4916 = vrot.lane.b32.xlu0 %v4247, 1
    %v4917 = vpop.permute.xlu0 %4916
    %4918 = vrot.lane.b32.xlu0 %v4248, 1
    %v4919 = vpop.permute.xlu0 %4918
    %v4920 = vsel %vm279, %v4905, %v4907
    %v4921 = vsel %vm279, %v4907, %v4909
    %v4922 = vsel %vm279, %v4909, %v4911
    %v4923 = vsel %vm279, %v4911, %v4913
    %v4924 = vsel %vm279, %v4913, %v4915
    %v4925 = vsel %vm279, %v4915, %v4917
    %v4926 = vsel %vm279, %v4917, %v4919
    %v4927 = vsel %vm279, %v4919, %v4902
    %v4937 = vsel %vm279, %v4902, %v4905
    %4938 = vset.pattern.permute.xlu0 11
    %4939 = vperm.xlu0 %4938, %v4250
    %v4940 = vpop.permute.xlu0 %4939
    %v4942 = vmul.f32 %v4937, %v4940
    %v4943 = vmul.f32 %v4920, %v4940
    %v4944 = vmul.f32 %v4921, %v4940
    %v4945 = vmul.f32 %v4922, %v4940
    %v4946 = vmul.f32 %v4923, %v4940
    %v4947 = vmul.f32 %v4924, %v4940
    %v4948 = vmul.f32 %v4925, %v4940
    %v4949 = vmul.f32 %v4926, %v4940
    %v4950 = vmul.f32 %v4927, %v4940
    %v4951 = vadd.f32 %v4892, %v4942
    %v4952 = vadd.f32 %v4893, %v4943
    %v4953 = vadd.f32 %v4894, %v4944
    %v4954 = vadd.f32 %v4895, %v4945
    %v4955 = vadd.f32 %v4896, %v4946
    %v4956 = vadd.f32 %v4897, %v4947
    %v4957 = vadd.f32 %v4898, %v4948
    %v4958 = vadd.f32 %v4899, %v4949
    %v4959 = vadd.f32 %v4900, %v4950
    %4960 = vset.pattern.permute.xlu0 12
    %4961 = vperm.xlu0 %4960, %v4250
    %v4962 = vpop.permute.xlu0 %4961
    %v4964 = vmul.f32 %v4241, %v4962
    %v4965 = vmul.f32 %v4242, %v4962
    %v4966 = vmul.f32 %v4243, %v4962
    %v4967 = vmul.f32 %v4244, %v4962
    %v4968 = vmul.f32 %v4245, %v4962
    %v4969 = vmul.f32 %v4246, %v4962
    %v4970 = vmul.f32 %v4247, %v4962
    %v4971 = vmul.f32 %v4248, %v4962
    %v4972 = vmul.f32 %v4249, %v4962
    %v4973 = vadd.f32 %v4951, %v4964
    %v4974 = vadd.f32 %v4952, %v4965
    %v4975 = vadd.f32 %v4953, %v4966
    %v4976 = vadd.f32 %v4954, %v4967
    %v4977 = vadd.f32 %v4955, %v4968
    %v4978 = vadd.f32 %v4956, %v4969
    %v4979 = vadd.f32 %v4957, %v4970
    %v4980 = vadd.f32 %v4958, %v4971
    %v4981 = vadd.f32 %v4959, %v4972
    %4982 = vrot.lane.b32.xlu0 %v4241, 127
    %v4983 = vpop.permute.xlu0 %4982
    %4984 = vrot.lane.b32.xlu0 %v4242, 127
    %v4985 = vpop.permute.xlu0 %4984
    %4986 = vrot.lane.b32.xlu0 %v4243, 127
    %v4987 = vpop.permute.xlu0 %4986
    %4988 = vrot.lane.b32.xlu0 %v4244, 127
    %v4989 = vpop.permute.xlu0 %4988
    %4990 = vrot.lane.b32.xlu0 %v4245, 127
    %v4991 = vpop.permute.xlu0 %4990
    %4992 = vrot.lane.b32.xlu0 %v4246, 127
    %v4993 = vpop.permute.xlu0 %4992
    %4994 = vrot.lane.b32.xlu0 %v4247, 127
    %v4995 = vpop.permute.xlu0 %4994
    %4996 = vrot.lane.b32.xlu0 %v4248, 127
    %v4997 = vpop.permute.xlu0 %4996
    %4998 = vrot.lane.b32.xlu0 %v4249, 127
    %v4999 = vpop.permute.xlu0 %4998
    %v5000 = vsel %vm334, %v4983, %v4985
    %v5001 = vsel %vm334, %v4985, %v4987
    %v5002 = vsel %vm334, %v4987, %v4989
    %v5003 = vsel %vm334, %v4989, %v4991
    %v5004 = vsel %vm334, %v4991, %v4993
    %v5005 = vsel %vm334, %v4993, %v4995
    %v5006 = vsel %vm334, %v4995, %v4997
    %v5007 = vsel %vm334, %v4997, %v4999
    %v5018 = vsel %vm334, %v4999, %v4983
    %5019 = vset.pattern.permute.xlu0 13
    %5020 = vperm.xlu0 %5019, %v4250
    %v5021 = vpop.permute.xlu0 %5020
    %v5023 = vmul.f32 %v5000, %v5021
    %v5024 = vmul.f32 %v5001, %v5021
    %v5025 = vmul.f32 %v5002, %v5021
    %v5026 = vmul.f32 %v5003, %v5021
    %v5027 = vmul.f32 %v5004, %v5021
    %v5028 = vmul.f32 %v5005, %v5021
    %v5029 = vmul.f32 %v5006, %v5021
    %v5030 = vmul.f32 %v5007, %v5021
    %v5031 = vmul.f32 %v5018, %v5021
    %v5032 = vadd.f32 %v4973, %v5023
    %v5033 = vadd.f32 %v4974, %v5024
    %v5034 = vadd.f32 %v4975, %v5025
    %v5035 = vadd.f32 %v4976, %v5026
    %v5036 = vadd.f32 %v4977, %v5027
    %v5037 = vadd.f32 %v4978, %v5028
    %v5038 = vadd.f32 %v4979, %v5029
    %v5039 = vadd.f32 %v4980, %v5030
    %v5040 = vadd.f32 %v4981, %v5031
    %5041 = vrot.lane.b32.xlu0 %v4241, 126
    %v5042 = vpop.permute.xlu0 %5041
    %5043 = vrot.lane.b32.xlu0 %v4242, 126
    %v5044 = vpop.permute.xlu0 %5043
    %5045 = vrot.lane.b32.xlu0 %v4243, 126
    %v5046 = vpop.permute.xlu0 %5045
    %5047 = vrot.lane.b32.xlu0 %v4244, 126
    %v5048 = vpop.permute.xlu0 %5047
    %5049 = vrot.lane.b32.xlu0 %v4245, 126
    %v5050 = vpop.permute.xlu0 %5049
    %5051 = vrot.lane.b32.xlu0 %v4246, 126
    %v5052 = vpop.permute.xlu0 %5051
    %5053 = vrot.lane.b32.xlu0 %v4247, 126
    %v5054 = vpop.permute.xlu0 %5053
    %5055 = vrot.lane.b32.xlu0 %v4248, 126
    %v5056 = vpop.permute.xlu0 %5055
    %5057 = vrot.lane.b32.xlu0 %v4249, 126
    %v5058 = vpop.permute.xlu0 %5057
    %v5059 = vsel %vm3442, %v5042, %v5044
    %v5060 = vsel %vm3442, %v5044, %v5046
    %v5061 = vsel %vm3442, %v5046, %v5048
    %v5062 = vsel %vm3442, %v5048, %v5050
    %v5063 = vsel %vm3442, %v5050, %v5052
    %v5064 = vsel %vm3442, %v5052, %v5054
    %v5065 = vsel %vm3442, %v5054, %v5056
    %v5066 = vsel %vm3442, %v5056, %v5058
    %v5077 = vsel %vm3442, %v5058, %v5042
    %5078 = vset.pattern.permute.xlu0 14
    %5079 = vperm.xlu0 %5078, %v4250
    %v5080 = vpop.permute.xlu0 %5079
    %v5082 = vmul.f32 %v5059, %v5080
    %v5083 = vmul.f32 %v5060, %v5080
    %v5084 = vmul.f32 %v5061, %v5080
    %v5085 = vmul.f32 %v5062, %v5080
    %v5086 = vmul.f32 %v5063, %v5080
    %v5087 = vmul.f32 %v5064, %v5080
    %v5088 = vmul.f32 %v5065, %v5080
    %v5089 = vmul.f32 %v5066, %v5080
    %v5090 = vmul.f32 %v5077, %v5080
    %v5091 = vadd.f32 %v5032, %v5082
    %v5092 = vadd.f32 %v5033, %v5083
    %v5093 = vadd.f32 %v5034, %v5084
    %v5094 = vadd.f32 %v5035, %v5085
    %v5095 = vadd.f32 %v5036, %v5086
    %v5096 = vadd.f32 %v5037, %v5087
    %v5097 = vadd.f32 %v5038, %v5088
    %v5098 = vadd.f32 %v5039, %v5089
    %v5099 = vadd.f32 %v5040, %v5090
    %5100 = vrot.lane.b32.xlu0 %v4241, 106
    %v5101 = vpop.permute.xlu0 %5100
    %5102 = vrot.lane.b32.xlu0 %v4242, 106
    %v5103 = vpop.permute.xlu0 %5102
    %5104 = vrot.lane.b32.xlu0 %v4243, 106
    %v5105 = vpop.permute.xlu0 %5104
    %5106 = vrot.lane.b32.xlu0 %v4244, 106
    %v5107 = vpop.permute.xlu0 %5106
    %5108 = vrot.lane.b32.xlu0 %v4245, 106
    %v5109 = vpop.permute.xlu0 %5108
    %5110 = vrot.lane.b32.xlu0 %v4246, 106
    %v5111 = vpop.permute.xlu0 %5110
    %5112 = vrot.lane.b32.xlu0 %v4247, 106
    %v5113 = vpop.permute.xlu0 %5112
    %5114 = vrot.lane.b32.xlu0 %v4248, 106
    %v5115 = vpop.permute.xlu0 %5114
    %5116 = vrot.lane.b32.xlu0 %v4249, 106
    %v5117 = vpop.permute.xlu0 %5116
    %v5118 = vsel %vm3502, %v5101, %v5103
    %v5119 = vsel %vm3502, %v5103, %v5105
    %v5120 = vsel %vm3502, %v5105, %v5107
    %v5121 = vsel %vm3502, %v5107, %v5109
    %v5122 = vsel %vm3502, %v5109, %v5111
    %v5123 = vsel %vm3502, %v5111, %v5113
    %v5124 = vsel %vm3502, %v5113, %v5115
    %v5125 = vsel %vm3502, %v5115, %v5117
    %v5136 = vsel %vm3502, %v5117, %v5101
    %5137 = vset.pattern.permute.xlu0 15
    %5138 = vperm.xlu0 %5137, %v4250
    %v5139 = vpop.permute.xlu0 %5138
    %v5141 = vmul.f32 %v5118, %v5139
    %v5142 = vmul.f32 %v5119, %v5139
    %v5143 = vmul.f32 %v5120, %v5139
    %v5144 = vmul.f32 %v5121, %v5139
    %v5145 = vmul.f32 %v5122, %v5139
    %v5146 = vmul.f32 %v5123, %v5139
    %v5147 = vmul.f32 %v5124, %v5139
    %v5148 = vmul.f32 %v5125, %v5139
    %v5149 = vmul.f32 %v5136, %v5139
    %v5150 = vadd.f32 %v5091, %v5141
    %v5151 = vadd.f32 %v5092, %v5142
    %v5152 = vadd.f32 %v5093, %v5143
    %v5153 = vadd.f32 %v5094, %v5144
    %v5154 = vadd.f32 %v5095, %v5145
    %v5155 = vadd.f32 %v5096, %v5146
    %v5156 = vadd.f32 %v5097, %v5147
    %v5157 = vadd.f32 %v5098, %v5148
    %v5158 = vadd.f32 %v5099, %v5149
    %5159 = vrot.lane.b32.xlu0 %v4241, 105
    %v5160 = vpop.permute.xlu0 %5159
    %5161 = vrot.lane.b32.xlu0 %v4242, 105
    %v5162 = vpop.permute.xlu0 %5161
    %5163 = vrot.lane.b32.xlu0 %v4243, 105
    %v5164 = vpop.permute.xlu0 %5163
    %5165 = vrot.lane.b32.xlu0 %v4244, 105
    %v5166 = vpop.permute.xlu0 %5165
    %5167 = vrot.lane.b32.xlu0 %v4245, 105
    %v5168 = vpop.permute.xlu0 %5167
    %5169 = vrot.lane.b32.xlu0 %v4246, 105
    %v5170 = vpop.permute.xlu0 %5169
    %5171 = vrot.lane.b32.xlu0 %v4247, 105
    %v5172 = vpop.permute.xlu0 %5171
    %5173 = vrot.lane.b32.xlu0 %v4248, 105
    %v5174 = vpop.permute.xlu0 %5173
    %5175 = vrot.lane.b32.xlu0 %v4249, 105
    %v5176 = vpop.permute.xlu0 %5175
    %v5177 = vsel %vm381, %v5160, %v5162
    %v5178 = vsel %vm381, %v5162, %v5164
    %v5179 = vsel %vm381, %v5164, %v5166
    %v5180 = vsel %vm381, %v5166, %v5168
    %v5181 = vsel %vm381, %v5168, %v5170
    %v5182 = vsel %vm381, %v5170, %v5172
    %v5183 = vsel %vm381, %v5172, %v5174
    %v5184 = vsel %vm381, %v5174, %v5176
    %v5195 = vsel %vm381, %v5176, %v5160
    %5196 = vset.pattern.permute.xlu0 16
    %5197 = vperm.xlu0 %5196, %v4250
    %v5198 = vpop.permute.xlu0 %5197
    %v5200 = vmul.f32 %v5177, %v5198
    %v5201 = vmul.f32 %v5178, %v5198
    %v5202 = vmul.f32 %v5179, %v5198
    %v5203 = vmul.f32 %v5180, %v5198
    %v5204 = vmul.f32 %v5181, %v5198
    %v5205 = vmul.f32 %v5182, %v5198
    %v5206 = vmul.f32 %v5183, %v5198
    %v5207 = vmul.f32 %v5184, %v5198
    %v5208 = vmul.f32 %v5195, %v5198
    %v5209 = vadd.f32 %v5150, %v5200
    %v5210 = vadd.f32 %v5151, %v5201
    %v5211 = vadd.f32 %v5152, %v5202
    %v5212 = vadd.f32 %v5153, %v5203
    %v5213 = vadd.f32 %v5154, %v5204
    %v5214 = vadd.f32 %v5155, %v5205
    %v5215 = vadd.f32 %v5156, %v5206
    %v5216 = vadd.f32 %v5157, %v5207
    %v5217 = vadd.f32 %v5158, %v5208
    %5218 = vrot.lane.b32.xlu0 %v4241, 104
    %v5219 = vpop.permute.xlu0 %5218
    %5220 = vrot.lane.b32.xlu0 %v4242, 104
    %v5221 = vpop.permute.xlu0 %5220
    %5222 = vrot.lane.b32.xlu0 %v4243, 104
    %v5223 = vpop.permute.xlu0 %5222
    %5224 = vrot.lane.b32.xlu0 %v4244, 104
    %v5225 = vpop.permute.xlu0 %5224
    %5226 = vrot.lane.b32.xlu0 %v4245, 104
    %v5227 = vpop.permute.xlu0 %5226
    %5228 = vrot.lane.b32.xlu0 %v4246, 104
    %v5229 = vpop.permute.xlu0 %5228
    %5230 = vrot.lane.b32.xlu0 %v4247, 104
    %v5231 = vpop.permute.xlu0 %5230
    %5232 = vrot.lane.b32.xlu0 %v4248, 104
    %v5233 = vpop.permute.xlu0 %5232
    %5234 = vrot.lane.b32.xlu0 %v4249, 104
    %v5235 = vpop.permute.xlu0 %5234
    %v5236 = vsel %vm428, %v5219, %v5221
    %v5237 = vsel %vm428, %v5221, %v5223
    %v5238 = vsel %vm428, %v5223, %v5225
    %v5239 = vsel %vm428, %v5225, %v5227
    %v5240 = vsel %vm428, %v5227, %v5229
    %v5241 = vsel %vm428, %v5229, %v5231
    %v5242 = vsel %vm428, %v5231, %v5233
    %v5243 = vsel %vm428, %v5233, %v5235
    %v5254 = vsel %vm428, %v5235, %v5219
    %5255 = vset.pattern.permute.xlu0 17
    %5256 = vperm.xlu0 %5255, %v4250
    %v5257 = vpop.permute.xlu0 %5256
    %v5259 = vmul.f32 %v5236, %v5257
    %v5260 = vmul.f32 %v5237, %v5257
    %v5261 = vmul.f32 %v5238, %v5257
    %v5262 = vmul.f32 %v5239, %v5257
    %v5263 = vmul.f32 %v5240, %v5257
    %v5264 = vmul.f32 %v5241, %v5257
    %v5265 = vmul.f32 %v5242, %v5257
    %v5266 = vmul.f32 %v5243, %v5257
    %v5267 = vmul.f32 %v5254, %v5257
    %v5268 = vadd.f32 %v5209, %v5259
    %v5269 = vadd.f32 %v5210, %v5260
    %v5270 = vadd.f32 %v5211, %v5261
    %v5271 = vadd.f32 %v5212, %v5262
    %v5272 = vadd.f32 %v5213, %v5263
    %v5273 = vadd.f32 %v5214, %v5264
    %v5274 = vadd.f32 %v5215, %v5265
    %v5275 = vadd.f32 %v5216, %v5266
    %v5276 = vadd.f32 %v5217, %v5267
    %5277 = vrot.lane.b32.xlu0 %v4241, 103
    %v5278 = vpop.permute.xlu0 %5277
    %5279 = vrot.lane.b32.xlu0 %v4242, 103
    %v5280 = vpop.permute.xlu0 %5279
    %5281 = vrot.lane.b32.xlu0 %v4243, 103
    %v5282 = vpop.permute.xlu0 %5281
    %5283 = vrot.lane.b32.xlu0 %v4244, 103
    %v5284 = vpop.permute.xlu0 %5283
    %5285 = vrot.lane.b32.xlu0 %v4245, 103
    %v5286 = vpop.permute.xlu0 %5285
    %5287 = vrot.lane.b32.xlu0 %v4246, 103
    %v5288 = vpop.permute.xlu0 %5287
    %5289 = vrot.lane.b32.xlu0 %v4247, 103
    %v5290 = vpop.permute.xlu0 %5289
    %5291 = vrot.lane.b32.xlu0 %v4248, 103
    %v5292 = vpop.permute.xlu0 %5291
    %5293 = vrot.lane.b32.xlu0 %v4249, 103
    %v5294 = vpop.permute.xlu0 %5293
    %v5295 = vsel %vm475, %v5278, %v5280
    %v5296 = vsel %vm475, %v5280, %v5282
    %v5297 = vsel %vm475, %v5282, %v5284
    %v5298 = vsel %vm475, %v5284, %v5286
    %v5299 = vsel %vm475, %v5286, %v5288
    %v5300 = vsel %vm475, %v5288, %v5290
    %v5301 = vsel %vm475, %v5290, %v5292
    %v5302 = vsel %vm475, %v5292, %v5294
    %v5313 = vsel %vm475, %v5294, %v5278
    %5314 = vset.pattern.permute.xlu0 18
    %5315 = vperm.xlu0 %5314, %v4250
    %v5316 = vpop.permute.xlu0 %5315
    %v5318 = vmul.f32 %v5295, %v5316
    %v5319 = vmul.f32 %v5296, %v5316
    %v5320 = vmul.f32 %v5297, %v5316
    %v5321 = vmul.f32 %v5298, %v5316
    %v5322 = vmul.f32 %v5299, %v5316
    %v5323 = vmul.f32 %v5300, %v5316
    %v5324 = vmul.f32 %v5301, %v5316
    %v5325 = vmul.f32 %v5302, %v5316
    %v5326 = vmul.f32 %v5313, %v5316
    %v5327 = vadd.f32 %v5268, %v5318
    %v5328 = vadd.f32 %v5269, %v5319
    %v5329 = vadd.f32 %v5270, %v5320
    %v5330 = vadd.f32 %v5271, %v5321
    %v5331 = vadd.f32 %v5272, %v5322
    %v5332 = vadd.f32 %v5273, %v5323
    %v5333 = vadd.f32 %v5274, %v5324
    %v5334 = vadd.f32 %v5275, %v5325
    %v5335 = vadd.f32 %v5276, %v5326
    %5336 = vrot.lane.b32.xlu0 %v4241, 102
    %v5337 = vpop.permute.xlu0 %5336
    %5338 = vrot.lane.b32.xlu0 %v4242, 102
    %v5339 = vpop.permute.xlu0 %5338
    %5340 = vrot.lane.b32.xlu0 %v4243, 102
    %v5341 = vpop.permute.xlu0 %5340
    %5342 = vrot.lane.b32.xlu0 %v4244, 102
    %v5343 = vpop.permute.xlu0 %5342
    %5344 = vrot.lane.b32.xlu0 %v4245, 102
    %v5345 = vpop.permute.xlu0 %5344
    %5346 = vrot.lane.b32.xlu0 %v4246, 102
    %v5347 = vpop.permute.xlu0 %5346
    %5348 = vrot.lane.b32.xlu0 %v4247, 102
    %v5349 = vpop.permute.xlu0 %5348
    %5350 = vrot.lane.b32.xlu0 %v4248, 102
    %v5351 = vpop.permute.xlu0 %5350
    %5352 = vrot.lane.b32.xlu0 %v4249, 102
    %v5353 = vpop.permute.xlu0 %5352
    %v5354 = vsel %vm3628, %v5337, %v5339
    %v5355 = vsel %vm3628, %v5339, %v5341
    %v5356 = vsel %vm3628, %v5341, %v5343
    %v5357 = vsel %vm3628, %v5343, %v5345
    %v5358 = vsel %vm3628, %v5345, %v5347
    %v5359 = vsel %vm3628, %v5347, %v5349
    %v5360 = vsel %vm3628, %v5349, %v5351
    %v5361 = vsel %vm3628, %v5351, %v5353
    %v5372 = vsel %vm3628, %v5353, %v5337
    %5373 = vset.pattern.permute.xlu0 19
    %5374 = vperm.xlu0 %5373, %v4250
    %v5375 = vpop.permute.xlu0 %5374
    %v5377 = vmul.f32 %v5354, %v5375
    %v5378 = vmul.f32 %v5355, %v5375
    %v5379 = vmul.f32 %v5356, %v5375
    %v5380 = vmul.f32 %v5357, %v5375
    %v5381 = vmul.f32 %v5358, %v5375
    %v5382 = vmul.f32 %v5359, %v5375
    %v5383 = vmul.f32 %v5360, %v5375
    %v5384 = vmul.f32 %v5361, %v5375
    %v5385 = vmul.f32 %v5372, %v5375
    %v5386 = vadd.f32 %v5327, %v5377
    %v5387 = vadd.f32 %v5328, %v5378
    %v5388 = vadd.f32 %v5329, %v5379
    %v5389 = vadd.f32 %v5330, %v5380
    %v5390 = vadd.f32 %v5331, %v5381
    %v5391 = vadd.f32 %v5332, %v5382
    %v5392 = vadd.f32 %v5333, %v5383
    %v5393 = vadd.f32 %v5334, %v5384
    %v5394 = vadd.f32 %v5335, %v5385
    %5395 = vrot.lane.b32.xlu0 %v4241, 82
    %v5396 = vpop.permute.xlu0 %5395
    %5397 = vrot.lane.b32.xlu0 %v4242, 82
    %v5398 = vpop.permute.xlu0 %5397
    %5399 = vrot.lane.b32.xlu0 %v4243, 82
    %v5400 = vpop.permute.xlu0 %5399
    %5401 = vrot.lane.b32.xlu0 %v4244, 82
    %v5402 = vpop.permute.xlu0 %5401
    %5403 = vrot.lane.b32.xlu0 %v4245, 82
    %v5404 = vpop.permute.xlu0 %5403
    %5405 = vrot.lane.b32.xlu0 %v4246, 82
    %v5406 = vpop.permute.xlu0 %5405
    %5407 = vrot.lane.b32.xlu0 %v4247, 82
    %v5408 = vpop.permute.xlu0 %5407
    %5409 = vrot.lane.b32.xlu0 %v4248, 82
    %v5410 = vpop.permute.xlu0 %5409
    %5411 = vrot.lane.b32.xlu0 %v4249, 82
    %v5412 = vpop.permute.xlu0 %5411
    %v5413 = vsel %vm3688, %v5396, %v5398
    %v5414 = vsel %vm3688, %v5398, %v5400
    %v5415 = vsel %vm3688, %v5400, %v5402
    %v5416 = vsel %vm3688, %v5402, %v5404
    %v5417 = vsel %vm3688, %v5404, %v5406
    %v5418 = vsel %vm3688, %v5406, %v5408
    %v5419 = vsel %vm3688, %v5408, %v5410
    %v5420 = vsel %vm3688, %v5410, %v5412
    %v5431 = vsel %vm3688, %v5412, %v5396
    %5432 = vset.pattern.permute.xlu0 20
    %5433 = vperm.xlu0 %5432, %v4250
    %v5434 = vpop.permute.xlu0 %5433
    %v5436 = vmul.f32 %v5413, %v5434
    %v5437 = vmul.f32 %v5414, %v5434
    %v5438 = vmul.f32 %v5415, %v5434
    %v5439 = vmul.f32 %v5416, %v5434
    %v5440 = vmul.f32 %v5417, %v5434
    %v5441 = vmul.f32 %v5418, %v5434
    %v5442 = vmul.f32 %v5419, %v5434
    %v5443 = vmul.f32 %v5420, %v5434
    %v5444 = vmul.f32 %v5431, %v5434
    %v5445 = vadd.f32 %v5386, %v5436
    %v5446 = vadd.f32 %v5387, %v5437
    %v5447 = vadd.f32 %v5388, %v5438
    %v5448 = vadd.f32 %v5389, %v5439
    %v5449 = vadd.f32 %v5390, %v5440
    %v5450 = vadd.f32 %v5391, %v5441
    %v5451 = vadd.f32 %v5392, %v5442
    %v5452 = vadd.f32 %v5393, %v5443
    %v5453 = vadd.f32 %v5394, %v5444
    %5454 = vrot.lane.b32.xlu0 %v4241, 81
    %v5455 = vpop.permute.xlu0 %5454
    %5456 = vrot.lane.b32.xlu0 %v4242, 81
    %v5457 = vpop.permute.xlu0 %5456
    %5458 = vrot.lane.b32.xlu0 %v4243, 81
    %v5459 = vpop.permute.xlu0 %5458
    %5460 = vrot.lane.b32.xlu0 %v4244, 81
    %v5461 = vpop.permute.xlu0 %5460
    %5462 = vrot.lane.b32.xlu0 %v4245, 81
    %v5463 = vpop.permute.xlu0 %5462
    %5464 = vrot.lane.b32.xlu0 %v4246, 81
    %v5465 = vpop.permute.xlu0 %5464
    %5466 = vrot.lane.b32.xlu0 %v4247, 81
    %v5467 = vpop.permute.xlu0 %5466
    %5468 = vrot.lane.b32.xlu0 %v4248, 81
    %v5469 = vpop.permute.xlu0 %5468
    %5470 = vrot.lane.b32.xlu0 %v4249, 81
    %v5471 = vpop.permute.xlu0 %5470
    %v5472 = vsel %vm3748, %v5455, %v5457
    %v5473 = vsel %vm3748, %v5457, %v5459
    %v5474 = vsel %vm3748, %v5459, %v5461
    %v5475 = vsel %vm3748, %v5461, %v5463
    %v5476 = vsel %vm3748, %v5463, %v5465
    %v5477 = vsel %vm3748, %v5465, %v5467
    %v5478 = vsel %vm3748, %v5467, %v5469
    %v5479 = vsel %vm3748, %v5469, %v5471
    %v5490 = vsel %vm3748, %v5471, %v5455
    %5491 = vset.pattern.permute.xlu0 21
    %5492 = vperm.xlu0 %5491, %v4250
    %v5493 = vpop.permute.xlu0 %5492
    %v5495 = vmul.f32 %v5472, %v5493
    %v5496 = vmul.f32 %v5473, %v5493
    %v5497 = vmul.f32 %v5474, %v5493
    %v5498 = vmul.f32 %v5475, %v5493
    %v5499 = vmul.f32 %v5476, %v5493
    %v5500 = vmul.f32 %v5477, %v5493
    %v5501 = vmul.f32 %v5478, %v5493
    %v5502 = vmul.f32 %v5479, %v5493
    %v5503 = vmul.f32 %v5490, %v5493
    %v5504 = vadd.f32 %v5445, %v5495
    %v5505 = vadd.f32 %v5446, %v5496
    %v5506 = vadd.f32 %v5447, %v5497
    %v5507 = vadd.f32 %v5448, %v5498
    %v5508 = vadd.f32 %v5449, %v5499
    %v5509 = vadd.f32 %v5450, %v5500
    %v5510 = vadd.f32 %v5451, %v5501
    %v5511 = vadd.f32 %v5452, %v5502
    %v5512 = vadd.f32 %v5453, %v5503
    %5513 = vrot.lane.b32.xlu0 %v4241, 80
    %v5514 = vpop.permute.xlu0 %5513
    %5515 = vrot.lane.b32.xlu0 %v4242, 80
    %v5516 = vpop.permute.xlu0 %5515
    %5517 = vrot.lane.b32.xlu0 %v4243, 80
    %v5518 = vpop.permute.xlu0 %5517
    %5519 = vrot.lane.b32.xlu0 %v4244, 80
    %v5520 = vpop.permute.xlu0 %5519
    %5521 = vrot.lane.b32.xlu0 %v4245, 80
    %v5522 = vpop.permute.xlu0 %5521
    %5523 = vrot.lane.b32.xlu0 %v4246, 80
    %v5524 = vpop.permute.xlu0 %5523
    %5525 = vrot.lane.b32.xlu0 %v4247, 80
    %v5526 = vpop.permute.xlu0 %5525
    %5527 = vrot.lane.b32.xlu0 %v4248, 80
    %v5528 = vpop.permute.xlu0 %5527
    %5529 = vrot.lane.b32.xlu0 %v4249, 80
    %v5530 = vpop.permute.xlu0 %5529
    %v5531 = vsel %vm3808, %v5514, %v5516
    %v5532 = vsel %vm3808, %v5516, %v5518
    %v5533 = vsel %vm3808, %v5518, %v5520
    %v5534 = vsel %vm3808, %v5520, %v5522
    %v5535 = vsel %vm3808, %v5522, %v5524
    %v5536 = vsel %vm3808, %v5524, %v5526
    %v5537 = vsel %vm3808, %v5526, %v5528
    %v5538 = vsel %vm3808, %v5528, %v5530
    %v5549 = vsel %vm3808, %v5530, %v5514
    %5550 = vset.pattern.permute.xlu0 22
    %5551 = vperm.xlu0 %5550, %v4250
    %v5552 = vpop.permute.xlu0 %5551
    %v5554 = vmul.f32 %v5531, %v5552
    %v5555 = vmul.f32 %v5532, %v5552
    %v5556 = vmul.f32 %v5533, %v5552
    %v5557 = vmul.f32 %v5534, %v5552
    %v5558 = vmul.f32 %v5535, %v5552
    %v5559 = vmul.f32 %v5536, %v5552
    %v5560 = vmul.f32 %v5537, %v5552
    %v5561 = vmul.f32 %v5538, %v5552
    %v5562 = vmul.f32 %v5549, %v5552
    %v5563 = vadd.f32 %v5504, %v5554
    %v5564 = vadd.f32 %v5505, %v5555
    %v5565 = vadd.f32 %v5506, %v5556
    %v5566 = vadd.f32 %v5507, %v5557
    %v5567 = vadd.f32 %v5508, %v5558
    %v5568 = vadd.f32 %v5509, %v5559
    %v5569 = vadd.f32 %v5510, %v5560
    %v5570 = vadd.f32 %v5511, %v5561
    %v5571 = vadd.f32 %v5512, %v5562
    %5572 = vrot.lane.b32.xlu0 %v4241, 79
    %v5573 = vpop.permute.xlu0 %5572
    %5574 = vrot.lane.b32.xlu0 %v4242, 79
    %v5575 = vpop.permute.xlu0 %5574
    %5576 = vrot.lane.b32.xlu0 %v4243, 79
    %v5577 = vpop.permute.xlu0 %5576
    %5578 = vrot.lane.b32.xlu0 %v4244, 79
    %v5579 = vpop.permute.xlu0 %5578
    %5580 = vrot.lane.b32.xlu0 %v4245, 79
    %v5581 = vpop.permute.xlu0 %5580
    %5582 = vrot.lane.b32.xlu0 %v4246, 79
    %v5583 = vpop.permute.xlu0 %5582
    %5584 = vrot.lane.b32.xlu0 %v4247, 79
    %v5585 = vpop.permute.xlu0 %5584
    %5586 = vrot.lane.b32.xlu0 %v4248, 79
    %v5587 = vpop.permute.xlu0 %5586
    %5588 = vrot.lane.b32.xlu0 %v4249, 79
    %v5589 = vpop.permute.xlu0 %5588
    %v5590 = vsel %vm3868, %v5573, %v5575
    %v5591 = vsel %vm3868, %v5575, %v5577
    %v5592 = vsel %vm3868, %v5577, %v5579
    %v5593 = vsel %vm3868, %v5579, %v5581
    %v5594 = vsel %vm3868, %v5581, %v5583
    %v5595 = vsel %vm3868, %v5583, %v5585
    %v5596 = vsel %vm3868, %v5585, %v5587
    %v5597 = vsel %vm3868, %v5587, %v5589
    %v5608 = vsel %vm3868, %v5589, %v5573
    %5609 = vset.pattern.permute.xlu0 23
    %5610 = vperm.xlu0 %5609, %v4250
    %v5611 = vpop.permute.xlu0 %5610
    %v5613 = vmul.f32 %v5590, %v5611
    %v5614 = vmul.f32 %v5591, %v5611
    %v5615 = vmul.f32 %v5592, %v5611
    %v5616 = vmul.f32 %v5593, %v5611
    %v5617 = vmul.f32 %v5594, %v5611
    %v5618 = vmul.f32 %v5595, %v5611
    %v5619 = vmul.f32 %v5596, %v5611
    %v5620 = vmul.f32 %v5597, %v5611
    %v5621 = vmul.f32 %v5608, %v5611
    %v5622 = vadd.f32 %v5563, %v5613
    %v5623 = vadd.f32 %v5564, %v5614
    %v5624 = vadd.f32 %v5565, %v5615
    %v5625 = vadd.f32 %v5566, %v5616
    %v5626 = vadd.f32 %v5567, %v5617
    %v5627 = vadd.f32 %v5568, %v5618
    %v5628 = vadd.f32 %v5569, %v5619
    %v5629 = vadd.f32 %v5570, %v5620
    %v5630 = vadd.f32 %v5571, %v5621
    %5631 = vrot.lane.b32.xlu0 %v4241, 78
    %v5632 = vpop.permute.xlu0 %5631
    %5633 = vrot.lane.b32.xlu0 %v4242, 78
    %v5634 = vpop.permute.xlu0 %5633
    %5635 = vrot.lane.b32.xlu0 %v4243, 78
    %v5636 = vpop.permute.xlu0 %5635
    %5637 = vrot.lane.b32.xlu0 %v4244, 78
    %v5638 = vpop.permute.xlu0 %5637
    %5639 = vrot.lane.b32.xlu0 %v4245, 78
    %v5640 = vpop.permute.xlu0 %5639
    %5641 = vrot.lane.b32.xlu0 %v4246, 78
    %v5642 = vpop.permute.xlu0 %5641
    %5643 = vrot.lane.b32.xlu0 %v4247, 78
    %v5644 = vpop.permute.xlu0 %5643
    %5645 = vrot.lane.b32.xlu0 %v4248, 78
    %v5646 = vpop.permute.xlu0 %5645
    %5647 = vrot.lane.b32.xlu0 %v4249, 78
    %v5648 = vpop.permute.xlu0 %5647
    %v5649 = vsel %vm3928, %v5632, %v5634
    %v5650 = vsel %vm3928, %v5634, %v5636
    %v5651 = vsel %vm3928, %v5636, %v5638
    %v5652 = vsel %vm3928, %v5638, %v5640
    %v5653 = vsel %vm3928, %v5640, %v5642
    %v5654 = vsel %vm3928, %v5642, %v5644
    %v5655 = vsel %vm3928, %v5644, %v5646
    %v5656 = vsel %vm3928, %v5646, %v5648
    %v5667 = vsel %vm3928, %v5648, %v5632
    %5668 = vset.pattern.permute.xlu0 24
    %5669 = vperm.xlu0 %5668, %v4250
    %v5670 = vpop.permute.xlu0 %5669
    %v5672 = vmul.f32 %v5649, %v5670
    %v5673 = vmul.f32 %v5650, %v5670
    %v5674 = vmul.f32 %v5651, %v5670
    %v5675 = vmul.f32 %v5652, %v5670
    %v5676 = vmul.f32 %v5653, %v5670
    %v5677 = vmul.f32 %v5654, %v5670
    %v5678 = vmul.f32 %v5655, %v5670
    %v5679 = vmul.f32 %v5656, %v5670
    %v5680 = vmul.f32 %v5667, %v5670
    %v5681 = vadd.f32 %v5622, %v5672
    %v5682 = vadd.f32 %v5623, %v5673
    %v5683 = vadd.f32 %v5624, %v5674
    %v5684 = vadd.f32 %v5625, %v5675
    %v5685 = vadd.f32 %v5626, %v5676
    %v5686 = vadd.f32 %v5627, %v5677
    %v5687 = vadd.f32 %v5628, %v5678
    %v5688 = vadd.f32 %v5629, %v5679
    %v5689 = vadd.f32 %v5630, %v5680
    %v5690 = vld [vmem:[%s10] sm:$0xff]
    %v5692 = vsel %vm1761, %v5690, 0
    %5694 = vmatpush.msra.mxu0 0.0
    %5695 = vmatpush.msra.mxu0 0.0
    %5696 = vmatpush.msra.mxu0 0.0
    %5697 = vmatpush.msra.mxu0 0.0
    %5698 = vmatpush.msra.mxu0 0.0
    %5699 = vmatpush.msra.mxu0 0.0
    %5700 = vmatpush.msra.mxu0 0.0
    %5701 = vmatpush.msra.mxu0 0.0
    %5702 = vmatpush.msra.mxu0 0.0
    %5703 = vmatpush.msra.mxu0 0.0
    %5704 = vmatpush.msra.mxu0 0.0
    %5705 = vmatpush.msra.mxu0 0.0
    %5706 = vmatpush.msra.mxu0 0.0
    %5707 = vmatpush.msra.mxu0 0.0
    %5708 = vmatpush.msra.mxu0 0.0
    %5709 = vmatpush.msra.mxu0 %v5681
    %5710 = vmatmul.f32.gmra.mxu0 %v5692
    %v5711 = vpop.f32.mrf.mxu0
    %v5712 = vadd.f32 0.0, %v5711
    %5713 = vdwg.mxu0
    %5714 = vmatpush.msra.mxu0 0.0
    %5715 = vmatpush.msra.mxu0 0.0
    %5716 = vmatpush.msra.mxu0 0.0
    %5717 = vmatpush.msra.mxu0 0.0
    %5718 = vmatpush.msra.mxu0 0.0
    %5719 = vmatpush.msra.mxu0 0.0
    %5720 = vmatpush.msra.mxu0 0.0
    %5721 = vmatpush.msra.mxu0 0.0
    %5722 = vmatpush.msra.mxu0 0.0
    %5723 = vmatpush.msra.mxu0 0.0
    %5724 = vmatpush.msra.mxu0 0.0
    %5725 = vmatpush.msra.mxu0 0.0
    %5726 = vmatpush.msra.mxu0 0.0
    %5727 = vmatpush.msra.mxu0 0.0
    %5728 = vmatpush.msra.mxu0 0.0
    %5729 = vmatpush.msra.mxu0 %v5682
    %5730 = vmatmul.f32.gmra.mxu0 %v5692
    %v5731 = vpop.f32.mrf.mxu0
    %v5732 = vadd.f32 0.0, %v5731
    %5733 = vdwg.mxu0
    %5734 = vmatpush.msra.mxu0 0.0
    %5735 = vmatpush.msra.mxu0 0.0
    %5736 = vmatpush.msra.mxu0 0.0
    %5737 = vmatpush.msra.mxu0 0.0
    %5738 = vmatpush.msra.mxu0 0.0
    %5739 = vmatpush.msra.mxu0 0.0
    %5740 = vmatpush.msra.mxu0 0.0
    %5741 = vmatpush.msra.mxu0 0.0
    %5742 = vmatpush.msra.mxu0 0.0
    %5743 = vmatpush.msra.mxu0 0.0
    %5744 = vmatpush.msra.mxu0 0.0
    %5745 = vmatpush.msra.mxu0 0.0
    %5746 = vmatpush.msra.mxu0 0.0
    %5747 = vmatpush.msra.mxu0 0.0
    %5748 = vmatpush.msra.mxu0 0.0
    %5749 = vmatpush.msra.mxu0 %v5683
    %5750 = vmatmul.f32.gmra.mxu0 %v5692
    %v5751 = vpop.f32.mrf.mxu0
    %v5752 = vadd.f32 0.0, %v5751
    %5753 = vdwg.mxu0
    %5754 = vmatpush.msra.mxu0 0.0
    %5755 = vmatpush.msra.mxu0 0.0
    %5756 = vmatpush.msra.mxu0 0.0
    %5757 = vmatpush.msra.mxu0 0.0
    %5758 = vmatpush.msra.mxu0 0.0
    %5759 = vmatpush.msra.mxu0 0.0
    %5760 = vmatpush.msra.mxu0 0.0
    %5761 = vmatpush.msra.mxu0 0.0
    %5762 = vmatpush.msra.mxu0 0.0
    %5763 = vmatpush.msra.mxu0 0.0
    %5764 = vmatpush.msra.mxu0 0.0
    %5765 = vmatpush.msra.mxu0 0.0
    %5766 = vmatpush.msra.mxu0 0.0
    %5767 = vmatpush.msra.mxu0 0.0
    %5768 = vmatpush.msra.mxu0 0.0
    %5769 = vmatpush.msra.mxu0 %v5684
    %5770 = vmatmul.f32.gmra.mxu0 %v5692
    %v5771 = vpop.f32.mrf.mxu0
    %v5772 = vadd.f32 0.0, %v5771
    %5773 = vdwg.mxu0
    %5774 = vmatpush.msra.mxu0 0.0
    %5775 = vmatpush.msra.mxu0 0.0
    %5776 = vmatpush.msra.mxu0 0.0
    %5777 = vmatpush.msra.mxu0 0.0
    %5778 = vmatpush.msra.mxu0 0.0
    %5779 = vmatpush.msra.mxu0 0.0
    %5780 = vmatpush.msra.mxu0 0.0
    %5781 = vmatpush.msra.mxu0 0.0
    %5782 = vmatpush.msra.mxu0 0.0
    %5783 = vmatpush.msra.mxu0 0.0
    %5784 = vmatpush.msra.mxu0 0.0
    %5785 = vmatpush.msra.mxu0 0.0
    %5786 = vmatpush.msra.mxu0 0.0
    %5787 = vmatpush.msra.mxu0 0.0
    %5788 = vmatpush.msra.mxu0 0.0
    %5789 = vmatpush.msra.mxu0 %v5685
    %5790 = vmatmul.f32.gmra.mxu0 %v5692
    %v5791 = vpop.f32.mrf.mxu0
    %v5792 = vadd.f32 0.0, %v5791
    %5793 = vdwg.mxu0
    %5794 = vmatpush.msra.mxu0 0.0
    %5795 = vmatpush.msra.mxu0 0.0
    %5796 = vmatpush.msra.mxu0 0.0
    %5797 = vmatpush.msra.mxu0 0.0
    %5798 = vmatpush.msra.mxu0 0.0
    %5799 = vmatpush.msra.mxu0 0.0
    %5800 = vmatpush.msra.mxu0 0.0
    %5801 = vmatpush.msra.mxu0 0.0
    %5802 = vmatpush.msra.mxu0 0.0
    %5803 = vmatpush.msra.mxu0 0.0
    %5804 = vmatpush.msra.mxu0 0.0
    %5805 = vmatpush.msra.mxu0 0.0
    %5806 = vmatpush.msra.mxu0 0.0
    %5807 = vmatpush.msra.mxu0 0.0
    %5808 = vmatpush.msra.mxu0 0.0
    %5809 = vmatpush.msra.mxu0 %v5686
    %5810 = vmatmul.f32.gmra.mxu0 %v5692
    %v5811 = vpop.f32.mrf.mxu0
    %v5812 = vadd.f32 0.0, %v5811
    %5813 = vdwg.mxu0
    %5814 = vmatpush.msra.mxu0 0.0
    %5815 = vmatpush.msra.mxu0 0.0
    %5816 = vmatpush.msra.mxu0 0.0
    %5817 = vmatpush.msra.mxu0 0.0
    %5818 = vmatpush.msra.mxu0 0.0
    %5819 = vmatpush.msra.mxu0 0.0
    %5820 = vmatpush.msra.mxu0 0.0
    %5821 = vmatpush.msra.mxu0 0.0
    %5822 = vmatpush.msra.mxu0 0.0
    %5823 = vmatpush.msra.mxu0 0.0
    %5824 = vmatpush.msra.mxu0 0.0
    %5825 = vmatpush.msra.mxu0 0.0
    %5826 = vmatpush.msra.mxu0 0.0
    %5827 = vmatpush.msra.mxu0 0.0
    %5828 = vmatpush.msra.mxu0 0.0
    %5829 = vmatpush.msra.mxu0 %v5687
    %5830 = vmatmul.f32.gmra.mxu0 %v5692
    %v5831 = vpop.f32.mrf.mxu0
    %v5832 = vadd.f32 0.0, %v5831
    %5833 = vdwg.mxu0
    %5834 = vmatpush.msra.mxu0 0.0
    %5835 = vmatpush.msra.mxu0 0.0
    %5836 = vmatpush.msra.mxu0 0.0
    %5837 = vmatpush.msra.mxu0 0.0
    %5838 = vmatpush.msra.mxu0 0.0
    %5839 = vmatpush.msra.mxu0 0.0
    %5840 = vmatpush.msra.mxu0 0.0
    %5841 = vmatpush.msra.mxu0 0.0
    %5842 = vmatpush.msra.mxu0 0.0
    %5843 = vmatpush.msra.mxu0 0.0
    %5844 = vmatpush.msra.mxu0 0.0
    %5845 = vmatpush.msra.mxu0 0.0
    %5846 = vmatpush.msra.mxu0 0.0
    %5847 = vmatpush.msra.mxu0 0.0
    %5848 = vmatpush.msra.mxu0 0.0
    %5849 = vmatpush.msra.mxu0 %v5688
    %5850 = vmatmul.f32.gmra.mxu0 %v5692
    %v5851 = vpop.f32.mrf.mxu0
    %v5852 = vadd.f32 0.0, %v5851
    %5853 = vdwg.mxu0
    %5854 = vmatpush.msra.mxu0 0.0
    %5855 = vmatpush.msra.mxu0 0.0
    %5856 = vmatpush.msra.mxu0 0.0
    %5857 = vmatpush.msra.mxu0 0.0
    %5858 = vmatpush.msra.mxu0 0.0
    %5859 = vmatpush.msra.mxu0 0.0
    %5860 = vmatpush.msra.mxu0 0.0
    %5861 = vmatpush.msra.mxu0 0.0
    %5862 = vmatpush.msra.mxu0 0.0
    %5863 = vmatpush.msra.mxu0 0.0
    %5864 = vmatpush.msra.mxu0 0.0
    %5865 = vmatpush.msra.mxu0 0.0
    %5866 = vmatpush.msra.mxu0 0.0
    %5867 = vmatpush.msra.mxu0 0.0
    %5868 = vmatpush.msra.mxu0 0.0
    %5869 = vmatpush.msra.mxu0 %v5689
    %5870 = vmatmul.f32.gmra.mxu0 %v5692
    %v5871 = vpop.f32.mrf.mxu0
    %v5872 = vadd.f32 0.0, %v5871
    %5873 = vdwg.mxu0
    %v5874 = vmul.f32 %v5712, %v506
    %v5875 = vmul.f32 %v5732, %v507
    %v5876 = vmul.f32 %v5752, %v508
    %v5877 = vmul.f32 %v5772, %v509
    %v5878 = vmul.f32 %v5792, %v510
    %v5879 = vmul.f32 %v5812, %v511
    %v5880 = vmul.f32 %v5832, %v512
    %v5881 = vmul.f32 %v5852, %v513
    %v5882 = vmul.f32 %v5872, %v514
    %v5883 = vadd.f32 %v5874, %v5875
    %v5884 = vadd.f32 %v5883, %v5876
    %v5885 = vadd.f32 %v5884, %v5877
    %v5886 = vadd.f32 %v5885, %v5878
    %v5887 = vadd.f32 %v5886, %v5879
    %v5888 = vadd.f32 %v5887, %v5880
    %v5889 = vadd.f32 %v5888, %v5881
    %v5890 = vadd.f32 %v5889, %v5882
    %5891 = vadd.xlane.f32.xlu0 %v5890
    %v5892 = vpop.xlane.xlu0 %5891
    %v5893 = vmul.f32 %v5892, 0.001953125
    %v5894 = vsub.f32 %v5712, %v5893
    %v5895 = vsub.f32 %v5732, %v5893
    %v5896 = vsub.f32 %v5752, %v5893
    %v5897 = vsub.f32 %v5772, %v5893
    %v5898 = vsub.f32 %v5792, %v5893
    %v5899 = vsub.f32 %v5812, %v5893
    %v5900 = vsub.f32 %v5832, %v5893
    %v5901 = vsub.f32 %v5852, %v5893
    %v5902 = vsub.f32 %v5872, %v5893
    %v5903 = vmul.f32 %v5894, %v506
    %v5904 = vmul.f32 %v5895, %v507
    %v5905 = vmul.f32 %v5896, %v508
    %v5906 = vmul.f32 %v5897, %v509
    %v5907 = vmul.f32 %v5898, %v510
    %v5908 = vmul.f32 %v5899, %v511
    %v5909 = vmul.f32 %v5900, %v512
    %v5910 = vmul.f32 %v5901, %v513
    %v5911 = vmul.f32 %v5902, %v514
    %v5912 = vmul.f32 %v5903, %v5903
    %v5913 = vmul.f32 %v5904, %v5904
    %v5914 = vmul.f32 %v5905, %v5905
    %v5915 = vmul.f32 %v5906, %v5906
    %v5916 = vmul.f32 %v5907, %v5907
    %v5917 = vmul.f32 %v5908, %v5908
    %v5918 = vmul.f32 %v5909, %v5909
    %v5919 = vmul.f32 %v5910, %v5910
    %v5920 = vmul.f32 %v5911, %v5911
    %v5921 = vadd.f32 %v5912, %v5913
    %v5922 = vadd.f32 %v5921, %v5914
    %v5923 = vadd.f32 %v5922, %v5915
    %v5924 = vadd.f32 %v5923, %v5916
    %v5925 = vadd.f32 %v5924, %v5917
    %v5926 = vadd.f32 %v5925, %v5918
    %v5927 = vadd.f32 %v5926, %v5919
    %v5928 = vadd.f32 %v5927, %v5920
    %5929 = vadd.xlane.f32.xlu0 %v5928
    %v5930 = vpop.xlane.xlu0 %5929
    %v5931 = vmul.f32 %v5930, 0.001953125
    %v5932 = vadd.f32 %v5931, 1e-05
    %v5933 = vrsqrt.pop %v5932
    %v5934 = vmul.f32 %v5933, %v5932
    %v5935 = vmul.f32 %v5934, %v5933
    %v5936 = vmul.f32 0.5, %v5935
    %v5937 = vsub.f32 1.5, %v5936
    %v5938 = vmul.f32 %v5933, %v5937
    %vm5939 = vweird.f32 %v5932
    %vm5940 = vweird.f32 %v5933
    %vm5941 = vmor %vm5939, %vm5940
    %v5942 = vsel %vm5941, %v5933, %v5938
    %v5943 = vmul.f32 %v5894, %v5942
    %v5944 = vmul.f32 %v5895, %v5942
    %v5945 = vmul.f32 %v5896, %v5942
    %v5946 = vmul.f32 %v5897, %v5942
    %v5947 = vmul.f32 %v5898, %v5942
    %v5948 = vmul.f32 %v5899, %v5942
    %v5949 = vmul.f32 %v5900, %v5942
    %v5950 = vmul.f32 %v5901, %v5942
    %v5951 = vmul.f32 %v5902, %v5942
    %v5952 = vstv %s2818
    %v5953 = vmul.f32 %v5952, %v5943
    %v5954 = vmul.f32 %v5952, %v5944
    %v5955 = vmul.f32 %v5952, %v5945
    %v5956 = vmul.f32 %v5952, %v5946
    %v5957 = vmul.f32 %v5952, %v5947
    %v5958 = vmul.f32 %v5952, %v5948
    %v5959 = vmul.f32 %v5952, %v5949
    %v5960 = vmul.f32 %v5952, %v5950
    %v5961 = vmul.f32 %v5952, %v5951
    %v5962 = vadd.f32 %v2809, %v5953
    %v5963 = vadd.f32 %v2810, %v5954
    %v5964 = vadd.f32 %v2811, %v5955
    %v5965 = vadd.f32 %v2812, %v5956
    %v5966 = vadd.f32 %v2813, %v5957
    %v5967 = vadd.f32 %v2814, %v5958
    %v5968 = vadd.f32 %v2815, %v5959
    %v5969 = vadd.f32 %v2816, %v5960
    %v5970 = vadd.f32 %v2817, %v5961
    %s5971 = sld [smem:[#allocation2 + $0x6]]
    %v5972 = vld [vmem:[%s11] sm:$0xff]
    %5974 = vset.pattern.permute.xlu0 0
    %5975 = vperm.xlu0 %5974, %v5972
    %v5976 = vpop.permute.xlu0 %5975
    %v5978 = vmul.f32 %v2857, %v5976
    %v5979 = vmul.f32 %v2840, %v5976
    %v5980 = vmul.f32 %v2841, %v5976
    %v5981 = vmul.f32 %v2842, %v5976
    %v5982 = vmul.f32 %v2843, %v5976
    %v5983 = vmul.f32 %v2844, %v5976
    %v5984 = vmul.f32 %v2845, %v5976
    %v5985 = vmul.f32 %v2846, %v5976
    %v5986 = vmul.f32 %v2847, %v5976
    %5987 = vset.pattern.permute.xlu0 1
    %5988 = vperm.xlu0 %5987, %v5972
    %v5989 = vpop.permute.xlu0 %5988
    %v5991 = vmul.f32 %v2969, %v5989
    %v5992 = vmul.f32 %v2952, %v5989
    %v5993 = vmul.f32 %v2953, %v5989
    %v5994 = vmul.f32 %v2954, %v5989
    %v5995 = vmul.f32 %v2955, %v5989
    %v5996 = vmul.f32 %v2956, %v5989
    %v5997 = vmul.f32 %v2957, %v5989
    %v5998 = vmul.f32 %v2958, %v5989
    %v5999 = vmul.f32 %v2959, %v5989
    %v6000 = vadd.f32 %v5978, %v5991
    %v6001 = vadd.f32 %v5979, %v5992
    %v6002 = vadd.f32 %v5980, %v5993
    %v6003 = vadd.f32 %v5981, %v5994
    %v6004 = vadd.f32 %v5982, %v5995
    %v6005 = vadd.f32 %v5983, %v5996
    %v6006 = vadd.f32 %v5984, %v5997
    %v6007 = vadd.f32 %v5985, %v5998
    %v6008 = vadd.f32 %v5986, %v5999
    %6009 = vset.pattern.permute.xlu0 2
    %6010 = vperm.xlu0 %6009, %v5972
    %v6011 = vpop.permute.xlu0 %6010
    %v6013 = vmul.f32 %v3089, %v6011
    %v6014 = vmul.f32 %v3072, %v6011
    %v6015 = vmul.f32 %v3073, %v6011
    %v6016 = vmul.f32 %v3074, %v6011
    %v6017 = vmul.f32 %v3075, %v6011
    %v6018 = vmul.f32 %v3076, %v6011
    %v6019 = vmul.f32 %v3077, %v6011
    %v6020 = vmul.f32 %v3078, %v6011
    %v6021 = vmul.f32 %v3079, %v6011
    %v6022 = vadd.f32 %v6000, %v6013
    %v6023 = vadd.f32 %v6001, %v6014
    %v6024 = vadd.f32 %v6002, %v6015
    %v6025 = vadd.f32 %v6003, %v6016
    %v6026 = vadd.f32 %v6004, %v6017
    %v6027 = vadd.f32 %v6005, %v6018
    %v6028 = vadd.f32 %v6006, %v6019
    %v6029 = vadd.f32 %v6007, %v6020
    %v6030 = vadd.f32 %v6008, %v6021
    %6031 = vset.pattern.permute.xlu0 3
    %6032 = vperm.xlu0 %6031, %v5972
    %v6033 = vpop.permute.xlu0 %6032
    %v6035 = vmul.f32 %v3335, %v6033
    %v6036 = vmul.f32 %v3318, %v6033
    %v6037 = vmul.f32 %v3319, %v6033
    %v6038 = vmul.f32 %v3320, %v6033
    %v6039 = vmul.f32 %v3321, %v6033
    %v6040 = vmul.f32 %v3322, %v6033
    %v6041 = vmul.f32 %v3323, %v6033
    %v6042 = vmul.f32 %v3324, %v6033
    %v6043 = vmul.f32 %v3325, %v6033
    %v6044 = vadd.f32 %v6022, %v6035
    %v6045 = vadd.f32 %v6023, %v6036
    %v6046 = vadd.f32 %v6024, %v6037
    %v6047 = vadd.f32 %v6025, %v6038
    %v6048 = vadd.f32 %v6026, %v6039
    %v6049 = vadd.f32 %v6027, %v6040
    %v6050 = vadd.f32 %v6028, %v6041
    %v6051 = vadd.f32 %v6029, %v6042
    %v6052 = vadd.f32 %v6030, %v6043
    %6053 = vset.pattern.permute.xlu0 4
    %6054 = vperm.xlu0 %6053, %v5972
    %v6055 = vpop.permute.xlu0 %6054
    %v6057 = vmul.f32 %v79, %v6055
    %v6058 = vmul.f32 %v80, %v6055
    %v6059 = vmul.f32 %v81, %v6055
    %v6060 = vmul.f32 %v82, %v6055
    %v6061 = vmul.f32 %v83, %v6055
    %v6062 = vmul.f32 %v84, %v6055
    %v6063 = vmul.f32 %v85, %v6055
    %v6064 = vmul.f32 %v86, %v6055
    %v6065 = vmul.f32 %v87, %v6055
    %v6066 = vadd.f32 %v6044, %v6057
    %v6067 = vadd.f32 %v6045, %v6058
    %v6068 = vadd.f32 %v6046, %v6059
    %v6069 = vadd.f32 %v6047, %v6060
    %v6070 = vadd.f32 %v6048, %v6061
    %v6071 = vadd.f32 %v6049, %v6062
    %v6072 = vadd.f32 %v6050, %v6063
    %v6073 = vadd.f32 %v6051, %v6064
    %v6074 = vadd.f32 %v6052, %v6065
    %6075 = vset.pattern.permute.xlu0 5
    %6076 = vperm.xlu0 %6075, %v5972
    %v6077 = vpop.permute.xlu0 %6076
    %v6079 = vmul.f32 %v3443, %v6077
    %v6080 = vmul.f32 %v3444, %v6077
    %v6081 = vmul.f32 %v3445, %v6077
    %v6082 = vmul.f32 %v3446, %v6077
    %v6083 = vmul.f32 %v3447, %v6077
    %v6084 = vmul.f32 %v3448, %v6077
    %v6085 = vmul.f32 %v3449, %v6077
    %v6086 = vmul.f32 %v3450, %v6077
    %v6087 = vmul.f32 %v3461, %v6077
    %v6088 = vadd.f32 %v6066, %v6079
    %v6089 = vadd.f32 %v6067, %v6080
    %v6090 = vadd.f32 %v6068, %v6081
    %v6091 = vadd.f32 %v6069, %v6082
    %v6092 = vadd.f32 %v6070, %v6083
    %v6093 = vadd.f32 %v6071, %v6084
    %v6094 = vadd.f32 %v6072, %v6085
    %v6095 = vadd.f32 %v6073, %v6086
    %v6096 = vadd.f32 %v6074, %v6087
    %6097 = vset.pattern.permute.xlu0 6
    %6098 = vperm.xlu0 %6097, %v5972
    %v6099 = vpop.permute.xlu0 %6098
    %v6101 = vmul.f32 %v3689, %v6099
    %v6102 = vmul.f32 %v3690, %v6099
    %v6103 = vmul.f32 %v3691, %v6099
    %v6104 = vmul.f32 %v3692, %v6099
    %v6105 = vmul.f32 %v3693, %v6099
    %v6106 = vmul.f32 %v3694, %v6099
    %v6107 = vmul.f32 %v3695, %v6099
    %v6108 = vmul.f32 %v3696, %v6099
    %v6109 = vmul.f32 %v3707, %v6099
    %v6110 = vadd.f32 %v6088, %v6101
    %v6111 = vadd.f32 %v6089, %v6102
    %v6112 = vadd.f32 %v6090, %v6103
    %v6113 = vadd.f32 %v6091, %v6104
    %v6114 = vadd.f32 %v6092, %v6105
    %v6115 = vadd.f32 %v6093, %v6106
    %v6116 = vadd.f32 %v6094, %v6107
    %v6117 = vadd.f32 %v6095, %v6108
    %v6118 = vadd.f32 %v6096, %v6109
    %6119 = vset.pattern.permute.xlu0 7
    %6120 = vperm.xlu0 %6119, %v5972
    %v6121 = vpop.permute.xlu0 %6120
    %v6123 = vmul.f32 %v3809, %v6121
    %v6124 = vmul.f32 %v3810, %v6121
    %v6125 = vmul.f32 %v3811, %v6121
    %v6126 = vmul.f32 %v3812, %v6121
    %v6127 = vmul.f32 %v3813, %v6121
    %v6128 = vmul.f32 %v3814, %v6121
    %v6129 = vmul.f32 %v3815, %v6121
    %v6130 = vmul.f32 %v3816, %v6121
    %v6131 = vmul.f32 %v3827, %v6121
    %v6132 = vadd.f32 %v6110, %v6123
    %v6133 = vadd.f32 %v6111, %v6124
    %v6134 = vadd.f32 %v6112, %v6125
    %v6135 = vadd.f32 %v6113, %v6126
    %v6136 = vadd.f32 %v6114, %v6127
    %v6137 = vadd.f32 %v6115, %v6128
    %v6138 = vadd.f32 %v6116, %v6129
    %v6139 = vadd.f32 %v6117, %v6130
    %v6140 = vadd.f32 %v6118, %v6131
    %6141 = vset.pattern.permute.xlu0 8
    %6142 = vperm.xlu0 %6141, %v5972
    %v6143 = vpop.permute.xlu0 %6142
    %v6145 = vmul.f32 %v3929, %v6143
    %v6146 = vmul.f32 %v3930, %v6143
    %v6147 = vmul.f32 %v3931, %v6143
    %v6148 = vmul.f32 %v3932, %v6143
    %v6149 = vmul.f32 %v3933, %v6143
    %v6150 = vmul.f32 %v3934, %v6143
    %v6151 = vmul.f32 %v3935, %v6143
    %v6152 = vmul.f32 %v3936, %v6143
    %v6153 = vmul.f32 %v3947, %v6143
    %v6154 = vadd.f32 %v6132, %v6145
    %v6155 = vadd.f32 %v6133, %v6146
    %v6156 = vadd.f32 %v6134, %v6147
    %v6157 = vadd.f32 %v6135, %v6148
    %v6158 = vadd.f32 %v6136, %v6149
    %v6159 = vadd.f32 %v6137, %v6150
    %v6160 = vadd.f32 %v6138, %v6151
    %v6161 = vadd.f32 %v6139, %v6152
    %v6162 = vadd.f32 %v6140, %v6153
    %v6163 = vld [vmem:[%s12] sm:$0xff]
    %v6165 = vsel %vm1761, %v6163, 0
    %6167 = vmatpush.msra.mxu0 0.0
    %6168 = vmatpush.msra.mxu0 0.0
    %6169 = vmatpush.msra.mxu0 0.0
    %6170 = vmatpush.msra.mxu0 0.0
    %6171 = vmatpush.msra.mxu0 0.0
    %6172 = vmatpush.msra.mxu0 0.0
    %6173 = vmatpush.msra.mxu0 0.0
    %6174 = vmatpush.msra.mxu0 0.0
    %6175 = vmatpush.msra.mxu0 0.0
    %6176 = vmatpush.msra.mxu0 0.0
    %6177 = vmatpush.msra.mxu0 0.0
    %6178 = vmatpush.msra.mxu0 0.0
    %6179 = vmatpush.msra.mxu0 0.0
    %6180 = vmatpush.msra.mxu0 0.0
    %6181 = vmatpush.msra.mxu0 0.0
    %6182 = vmatpush.msra.mxu0 %v6154
    %6183 = vmatmul.f32.gmra.mxu0 %v6165
    %v6184 = vpop.f32.mrf.mxu0
    %v6185 = vadd.f32 0.0, %v6184
    %6186 = vdwg.mxu0
    %6187 = vmatpush.msra.mxu0 0.0
    %6188 = vmatpush.msra.mxu0 0.0
    %6189 = vmatpush.msra.mxu0 0.0
    %6190 = vmatpush.msra.mxu0 0.0
    %6191 = vmatpush.msra.mxu0 0.0
    %6192 = vmatpush.msra.mxu0 0.0
    %6193 = vmatpush.msra.mxu0 0.0
    %6194 = vmatpush.msra.mxu0 0.0
    %6195 = vmatpush.msra.mxu0 0.0
    %6196 = vmatpush.msra.mxu0 0.0
    %6197 = vmatpush.msra.mxu0 0.0
    %6198 = vmatpush.msra.mxu0 0.0
    %6199 = vmatpush.msra.mxu0 0.0
    %6200 = vmatpush.msra.mxu0 0.0
    %6201 = vmatpush.msra.mxu0 0.0
    %6202 = vmatpush.msra.mxu0 %v6155
    %6203 = vmatmul.f32.gmra.mxu0 %v6165
    %v6204 = vpop.f32.mrf.mxu0
    %v6205 = vadd.f32 0.0, %v6204
    %6206 = vdwg.mxu0
    %6207 = vmatpush.msra.mxu0 0.0
    %6208 = vmatpush.msra.mxu0 0.0
    %6209 = vmatpush.msra.mxu0 0.0
    %6210 = vmatpush.msra.mxu0 0.0
    %6211 = vmatpush.msra.mxu0 0.0
    %6212 = vmatpush.msra.mxu0 0.0
    %6213 = vmatpush.msra.mxu0 0.0
    %6214 = vmatpush.msra.mxu0 0.0
    %6215 = vmatpush.msra.mxu0 0.0
    %6216 = vmatpush.msra.mxu0 0.0
    %6217 = vmatpush.msra.mxu0 0.0
    %6218 = vmatpush.msra.mxu0 0.0
    %6219 = vmatpush.msra.mxu0 0.0
    %6220 = vmatpush.msra.mxu0 0.0
    %6221 = vmatpush.msra.mxu0 0.0
    %6222 = vmatpush.msra.mxu0 %v6156
    %6223 = vmatmul.f32.gmra.mxu0 %v6165
    %v6224 = vpop.f32.mrf.mxu0
    %v6225 = vadd.f32 0.0, %v6224
    %6226 = vdwg.mxu0
    %6227 = vmatpush.msra.mxu0 0.0
    %6228 = vmatpush.msra.mxu0 0.0
    %6229 = vmatpush.msra.mxu0 0.0
    %6230 = vmatpush.msra.mxu0 0.0
    %6231 = vmatpush.msra.mxu0 0.0
    %6232 = vmatpush.msra.mxu0 0.0
    %6233 = vmatpush.msra.mxu0 0.0
    %6234 = vmatpush.msra.mxu0 0.0
    %6235 = vmatpush.msra.mxu0 0.0
    %6236 = vmatpush.msra.mxu0 0.0
    %6237 = vmatpush.msra.mxu0 0.0
    %6238 = vmatpush.msra.mxu0 0.0
    %6239 = vmatpush.msra.mxu0 0.0
    %6240 = vmatpush.msra.mxu0 0.0
    %6241 = vmatpush.msra.mxu0 0.0
    %6242 = vmatpush.msra.mxu0 %v6157
    %6243 = vmatmul.f32.gmra.mxu0 %v6165
    %v6244 = vpop.f32.mrf.mxu0
    %v6245 = vadd.f32 0.0, %v6244
    %6246 = vdwg.mxu0
    %6247 = vmatpush.msra.mxu0 0.0
    %6248 = vmatpush.msra.mxu0 0.0
    %6249 = vmatpush.msra.mxu0 0.0
    %6250 = vmatpush.msra.mxu0 0.0
    %6251 = vmatpush.msra.mxu0 0.0
    %6252 = vmatpush.msra.mxu0 0.0
    %6253 = vmatpush.msra.mxu0 0.0
    %6254 = vmatpush.msra.mxu0 0.0
    %6255 = vmatpush.msra.mxu0 0.0
    %6256 = vmatpush.msra.mxu0 0.0
    %6257 = vmatpush.msra.mxu0 0.0
    %6258 = vmatpush.msra.mxu0 0.0
    %6259 = vmatpush.msra.mxu0 0.0
    %6260 = vmatpush.msra.mxu0 0.0
    %6261 = vmatpush.msra.mxu0 0.0
    %6262 = vmatpush.msra.mxu0 %v6158
    %6263 = vmatmul.f32.gmra.mxu0 %v6165
    %v6264 = vpop.f32.mrf.mxu0
    %v6265 = vadd.f32 0.0, %v6264
    %6266 = vdwg.mxu0
    %6267 = vmatpush.msra.mxu0 0.0
    %6268 = vmatpush.msra.mxu0 0.0
    %6269 = vmatpush.msra.mxu0 0.0
    %6270 = vmatpush.msra.mxu0 0.0
    %6271 = vmatpush.msra.mxu0 0.0
    %6272 = vmatpush.msra.mxu0 0.0
    %6273 = vmatpush.msra.mxu0 0.0
    %6274 = vmatpush.msra.mxu0 0.0
    %6275 = vmatpush.msra.mxu0 0.0
    %6276 = vmatpush.msra.mxu0 0.0
    %6277 = vmatpush.msra.mxu0 0.0
    %6278 = vmatpush.msra.mxu0 0.0
    %6279 = vmatpush.msra.mxu0 0.0
    %6280 = vmatpush.msra.mxu0 0.0
    %6281 = vmatpush.msra.mxu0 0.0
    %6282 = vmatpush.msra.mxu0 %v6159
    %6283 = vmatmul.f32.gmra.mxu0 %v6165
    %v6284 = vpop.f32.mrf.mxu0
    %v6285 = vadd.f32 0.0, %v6284
    %6286 = vdwg.mxu0
    %6287 = vmatpush.msra.mxu0 0.0
    %6288 = vmatpush.msra.mxu0 0.0
    %6289 = vmatpush.msra.mxu0 0.0
    %6290 = vmatpush.msra.mxu0 0.0
    %6291 = vmatpush.msra.mxu0 0.0
    %6292 = vmatpush.msra.mxu0 0.0
    %6293 = vmatpush.msra.mxu0 0.0
    %6294 = vmatpush.msra.mxu0 0.0
    %6295 = vmatpush.msra.mxu0 0.0
    %6296 = vmatpush.msra.mxu0 0.0
    %6297 = vmatpush.msra.mxu0 0.0
    %6298 = vmatpush.msra.mxu0 0.0
    %6299 = vmatpush.msra.mxu0 0.0
    %6300 = vmatpush.msra.mxu0 0.0
    %6301 = vmatpush.msra.mxu0 0.0
    %6302 = vmatpush.msra.mxu0 %v6160
    %6303 = vmatmul.f32.gmra.mxu0 %v6165
    %v6304 = vpop.f32.mrf.mxu0
    %v6305 = vadd.f32 0.0, %v6304
    %6306 = vdwg.mxu0
    %6307 = vmatpush.msra.mxu0 0.0
    %6308 = vmatpush.msra.mxu0 0.0
    %6309 = vmatpush.msra.mxu0 0.0
    %6310 = vmatpush.msra.mxu0 0.0
    %6311 = vmatpush.msra.mxu0 0.0
    %6312 = vmatpush.msra.mxu0 0.0
    %6313 = vmatpush.msra.mxu0 0.0
    %6314 = vmatpush.msra.mxu0 0.0
    %6315 = vmatpush.msra.mxu0 0.0
    %6316 = vmatpush.msra.mxu0 0.0
    %6317 = vmatpush.msra.mxu0 0.0
    %6318 = vmatpush.msra.mxu0 0.0
    %6319 = vmatpush.msra.mxu0 0.0
    %6320 = vmatpush.msra.mxu0 0.0
    %6321 = vmatpush.msra.mxu0 0.0
    %6322 = vmatpush.msra.mxu0 %v6161
    %6323 = vmatmul.f32.gmra.mxu0 %v6165
    %v6324 = vpop.f32.mrf.mxu0
    %v6325 = vadd.f32 0.0, %v6324
    %6326 = vdwg.mxu0
    %6327 = vmatpush.msra.mxu0 0.0
    %6328 = vmatpush.msra.mxu0 0.0
    %6329 = vmatpush.msra.mxu0 0.0
    %6330 = vmatpush.msra.mxu0 0.0
    %6331 = vmatpush.msra.mxu0 0.0
    %6332 = vmatpush.msra.mxu0 0.0
    %6333 = vmatpush.msra.mxu0 0.0
    %6334 = vmatpush.msra.mxu0 0.0
    %6335 = vmatpush.msra.mxu0 0.0
    %6336 = vmatpush.msra.mxu0 0.0
    %6337 = vmatpush.msra.mxu0 0.0
    %6338 = vmatpush.msra.mxu0 0.0
    %6339 = vmatpush.msra.mxu0 0.0
    %6340 = vmatpush.msra.mxu0 0.0
    %6341 = vmatpush.msra.mxu0 0.0
    %6342 = vmatpush.msra.mxu0 %v6162
    %6343 = vmatmul.f32.gmra.mxu0 %v6165
    %v6344 = vpop.f32.mrf.mxu0
    %v6345 = vadd.f32 0.0, %v6344
    %6346 = vdwg.mxu0
    %v6347 = vmul.f32 %v6185, %v506
    %v6348 = vmul.f32 %v6205, %v507
    %v6349 = vmul.f32 %v6225, %v508
    %v6350 = vmul.f32 %v6245, %v509
    %v6351 = vmul.f32 %v6265, %v510
    %v6352 = vmul.f32 %v6285, %v511
    %v6353 = vmul.f32 %v6305, %v512
    %v6354 = vmul.f32 %v6325, %v513
    %v6355 = vmul.f32 %v6345, %v514
    %v6356 = vadd.f32 %v6347, %v6348
    %v6357 = vadd.f32 %v6356, %v6349
    %v6358 = vadd.f32 %v6357, %v6350
    %v6359 = vadd.f32 %v6358, %v6351
    %v6360 = vadd.f32 %v6359, %v6352
    %v6361 = vadd.f32 %v6360, %v6353
    %v6362 = vadd.f32 %v6361, %v6354
    %v6363 = vadd.f32 %v6362, %v6355
    %6364 = vadd.xlane.f32.xlu0 %v6363
    %v6365 = vpop.xlane.xlu0 %6364
    %v6366 = vmul.f32 %v6365, 0.001953125
    %v6367 = vsub.f32 %v6185, %v6366
    %v6368 = vsub.f32 %v6205, %v6366
    %v6369 = vsub.f32 %v6225, %v6366
    %v6370 = vsub.f32 %v6245, %v6366
    %v6371 = vsub.f32 %v6265, %v6366
    %v6372 = vsub.f32 %v6285, %v6366
    %v6373 = vsub.f32 %v6305, %v6366
    %v6374 = vsub.f32 %v6325, %v6366
    %v6375 = vsub.f32 %v6345, %v6366
    %v6376 = vmul.f32 %v6367, %v506
    %v6377 = vmul.f32 %v6368, %v507
    %v6378 = vmul.f32 %v6369, %v508
    %v6379 = vmul.f32 %v6370, %v509
    %v6380 = vmul.f32 %v6371, %v510
    %v6381 = vmul.f32 %v6372, %v511
    %v6382 = vmul.f32 %v6373, %v512
    %v6383 = vmul.f32 %v6374, %v513
    %v6384 = vmul.f32 %v6375, %v514
    %v6385 = vmul.f32 %v6376, %v6376
    %v6386 = vmul.f32 %v6377, %v6377
    %v6387 = vmul.f32 %v6378, %v6378
    %v6388 = vmul.f32 %v6379, %v6379
    %v6389 = vmul.f32 %v6380, %v6380
    %v6390 = vmul.f32 %v6381, %v6381
    %v6391 = vmul.f32 %v6382, %v6382
    %v6392 = vmul.f32 %v6383, %v6383
    %v6393 = vmul.f32 %v6384, %v6384
    %v6394 = vadd.f32 %v6385, %v6386
    %v6395 = vadd.f32 %v6394, %v6387
    %v6396 = vadd.f32 %v6395, %v6388
    %v6397 = vadd.f32 %v6396, %v6389
    %v6398 = vadd.f32 %v6397, %v6390
    %v6399 = vadd.f32 %v6398, %v6391
    %v6400 = vadd.f32 %v6399, %v6392
    %v6401 = vadd.f32 %v6400, %v6393
    %6402 = vadd.xlane.f32.xlu0 %v6401
    %v6403 = vpop.xlane.xlu0 %6402
    %v6404 = vmul.f32 %v6403, 0.001953125
    %v6405 = vadd.f32 %v6404, 1e-05
    %v6406 = vrsqrt.pop %v6405
    %v6407 = vmul.f32 %v6406, %v6405
    %v6408 = vmul.f32 %v6407, %v6406
    %v6409 = vmul.f32 0.5, %v6408
    %v6410 = vsub.f32 1.5, %v6409
    %v6411 = vmul.f32 %v6406, %v6410
    %vm6412 = vweird.f32 %v6405
    %vm6413 = vweird.f32 %v6406
    %vm6414 = vmor %vm6412, %vm6413
    %v6415 = vsel %vm6414, %v6406, %v6411
    %v6416 = vmul.f32 %v6367, %v6415
    %v6417 = vmul.f32 %v6368, %v6415
    %v6418 = vmul.f32 %v6369, %v6415
    %v6419 = vmul.f32 %v6370, %v6415
    %v6420 = vmul.f32 %v6371, %v6415
    %v6421 = vmul.f32 %v6372, %v6415
    %v6422 = vmul.f32 %v6373, %v6415
    %v6423 = vmul.f32 %v6374, %v6415
    %v6424 = vmul.f32 %v6375, %v6415
    %v6425 = vstv %s5971
    %v6426 = vmul.f32 %v6425, %v6416
    %v6427 = vmul.f32 %v6425, %v6417
    %v6428 = vmul.f32 %v6425, %v6418
    %v6429 = vmul.f32 %v6425, %v6419
    %v6430 = vmul.f32 %v6425, %v6420
    %v6431 = vmul.f32 %v6425, %v6421
    %v6432 = vmul.f32 %v6425, %v6422
    %v6433 = vmul.f32 %v6425, %v6423
    %v6434 = vmul.f32 %v6425, %v6424
    %v6435 = vadd.f32 %v5962, %v6426
    %v6436 = vadd.f32 %v5963, %v6427
    %v6437 = vadd.f32 %v5964, %v6428
    %v6438 = vadd.f32 %v5965, %v6429
    %v6439 = vadd.f32 %v5966, %v6430
    %v6440 = vadd.f32 %v5967, %v6431
    %v6441 = vadd.f32 %v5968, %v6432
    %v6442 = vadd.f32 %v5969, %v6433
    %v6443 = vadd.f32 %v5970, %v6434
    %s6444 = sld [smem:[#allocation2 + $0x7]]
    %v6445 = vld [vmem:[%s13] sm:$0xff]
    %6446 = vrot.lane.b32.xlu0 %v87, 100
    %v6447 = vpop.permute.xlu0 %6446
    %6449 = vrot.lane.b32.xlu0 %v79, 100
    %v6450 = vpop.permute.xlu0 %6449
    %6451 = vrot.lane.b32.xlu0 %v80, 100
    %v6452 = vpop.permute.xlu0 %6451
    %6453 = vrot.lane.b32.xlu0 %v81, 100
    %v6454 = vpop.permute.xlu0 %6453
    %6455 = vrot.lane.b32.xlu0 %v82, 100
    %v6456 = vpop.permute.xlu0 %6455
    %6457 = vrot.lane.b32.xlu0 %v83, 100
    %v6458 = vpop.permute.xlu0 %6457
    %6459 = vrot.lane.b32.xlu0 %v84, 100
    %v6460 = vpop.permute.xlu0 %6459
    %6461 = vrot.lane.b32.xlu0 %v85, 100
    %v6462 = vpop.permute.xlu0 %6461
    %6463 = vrot.lane.b32.xlu0 %v86, 100
    %v6464 = vpop.permute.xlu0 %6463
    %vm6465 = vcmask 818176
    %v6466 = vsel %vm6465, %v6450, %v6452
    %v6467 = vsel %vm6465, %v6452, %v6454
    %v6468 = vsel %vm6465, %v6454, %v6456
    %v6469 = vsel %vm6465, %v6456, %v6458
    %v6470 = vsel %vm6465, %v6458, %v6460
    %v6471 = vsel %vm6465, %v6460, %v6462
    %v6472 = vsel %vm6465, %v6462, %v6464
    %v6473 = vsel %vm6465, %v6464, %v6447
    %v6483 = vsel %vm6465, %v6447, %v6450
    %6485 = vset.pattern.permute.xlu0 0
    %6486 = vperm.xlu0 %6485, %v6445
    %v6487 = vpop.permute.xlu0 %6486
    %v6489 = vmul.f32 %v6483, %v6487
    %v6490 = vmul.f32 %v6466, %v6487
    %v6491 = vmul.f32 %v6467, %v6487
    %v6492 = vmul.f32 %v6468, %v6487
    %v6493 = vmul.f32 %v6469, %v6487
    %v6494 = vmul.f32 %v6470, %v6487
    %v6495 = vmul.f32 %v6471, %v6487
    %v6496 = vmul.f32 %v6472, %v6487
    %v6497 = vmul.f32 %v6473, %v6487
    %6498 = vrot.lane.b32.xlu0 %v87, 98
    %v6499 = vpop.permute.xlu0 %6498
    %6501 = vrot.lane.b32.xlu0 %v79, 98
    %v6502 = vpop.permute.xlu0 %6501
    %6503 = vrot.lane.b32.xlu0 %v80, 98
    %v6504 = vpop.permute.xlu0 %6503
    %6505 = vrot.lane.b32.xlu0 %v81, 98
    %v6506 = vpop.permute.xlu0 %6505
    %6507 = vrot.lane.b32.xlu0 %v82, 98
    %v6508 = vpop.permute.xlu0 %6507
    %6509 = vrot.lane.b32.xlu0 %v83, 98
    %v6510 = vpop.permute.xlu0 %6509
    %6511 = vrot.lane.b32.xlu0 %v84, 98
    %v6512 = vpop.permute.xlu0 %6511
    %6513 = vrot.lane.b32.xlu0 %v85, 98
    %v6514 = vpop.permute.xlu0 %6513
    %6515 = vrot.lane.b32.xlu0 %v86, 98
    %v6516 = vpop.permute.xlu0 %6515
    %vm6517 = vcmask 801792
    %v6518 = vsel %vm6517, %v6502, %v6504
    %v6519 = vsel %vm6517, %v6504, %v6506
    %v6520 = vsel %vm6517, %v6506, %v6508
    %v6521 = vsel %vm6517, %v6508, %v6510
    %v6522 = vsel %vm6517, %v6510, %v6512
    %v6523 = vsel %vm6517, %v6512, %v6514
    %v6524 = vsel %vm6517, %v6514, %v6516
    %v6525 = vsel %vm6517, %v6516, %v6499
    %v6535 = vsel %vm6517, %v6499, %v6502
    %6536 = vset.pattern.permute.xlu0 1
    %6537 = vperm.xlu0 %6536, %v6445
    %v6538 = vpop.permute.xlu0 %6537
    %v6540 = vmul.f32 %v6535, %v6538
    %v6541 = vmul.f32 %v6518, %v6538
    %v6542 = vmul.f32 %v6519, %v6538
    %v6543 = vmul.f32 %v6520, %v6538
    %v6544 = vmul.f32 %v6521, %v6538
    %v6545 = vmul.f32 %v6522, %v6538
    %v6546 = vmul.f32 %v6523, %v6538
    %v6547 = vmul.f32 %v6524, %v6538
    %v6548 = vmul.f32 %v6525, %v6538
    %v6549 = vadd.f32 %v6489, %v6540
    %v6550 = vadd.f32 %v6490, %v6541
    %v6551 = vadd.f32 %v6491, %v6542
    %v6552 = vadd.f32 %v6492, %v6543
    %v6553 = vadd.f32 %v6493, %v6544
    %v6554 = vadd.f32 %v6494, %v6545
    %v6555 = vadd.f32 %v6495, %v6546
    %v6556 = vadd.f32 %v6496, %v6547
    %v6557 = vadd.f32 %v6497, %v6548
    %6558 = vrot.lane.b32.xlu0 %v87, 96
    %v6559 = vpop.permute.xlu0 %6558
    %6561 = vrot.lane.b32.xlu0 %v79, 96
    %v6562 = vpop.permute.xlu0 %6561
    %6563 = vrot.lane.b32.xlu0 %v80, 96
    %v6564 = vpop.permute.xlu0 %6563
    %6565 = vrot.lane.b32.xlu0 %v81, 96
    %v6566 = vpop.permute.xlu0 %6565
    %6567 = vrot.lane.b32.xlu0 %v82, 96
    %v6568 = vpop.permute.xlu0 %6567
    %6569 = vrot.lane.b32.xlu0 %v83, 96
    %v6570 = vpop.permute.xlu0 %6569
    %6571 = vrot.lane.b32.xlu0 %v84, 96
    %v6572 = vpop.permute.xlu0 %6571
    %6573 = vrot.lane.b32.xlu0 %v85, 96
    %v6574 = vpop.permute.xlu0 %6573
    %6575 = vrot.lane.b32.xlu0 %v86, 96
    %v6576 = vpop.permute.xlu0 %6575
    %vm6577 = vcmask 785408
    %v6578 = vsel %vm6577, %v6562, %v6564
    %v6579 = vsel %vm6577, %v6564, %v6566
    %v6580 = vsel %vm6577, %v6566, %v6568
    %v6581 = vsel %vm6577, %v6568, %v6570
    %v6582 = vsel %vm6577, %v6570, %v6572
    %v6583 = vsel %vm6577, %v6572, %v6574
    %v6584 = vsel %vm6577, %v6574, %v6576
    %v6585 = vsel %vm6577, %v6576, %v6559
    %v6595 = vsel %vm6577, %v6559, %v6562
    %6596 = vset.pattern.permute.xlu0 2
    %6597 = vperm.xlu0 %6596, %v6445
    %v6598 = vpop.permute.xlu0 %6597
    %v6600 = vmul.f32 %v6595, %v6598
    %v6601 = vmul.f32 %v6578, %v6598
    %v6602 = vmul.f32 %v6579, %v6598
    %v6603 = vmul.f32 %v6580, %v6598
    %v6604 = vmul.f32 %v6581, %v6598
    %v6605 = vmul.f32 %v6582, %v6598
    %v6606 = vmul.f32 %v6583, %v6598
    %v6607 = vmul.f32 %v6584, %v6598
    %v6608 = vmul.f32 %v6585, %v6598
    %v6609 = vadd.f32 %v6549, %v6600
    %v6610 = vadd.f32 %v6550, %v6601
    %v6611 = vadd.f32 %v6551, %v6602
    %v6612 = vadd.f32 %v6552, %v6603
    %v6613 = vadd.f32 %v6553, %v6604
    %v6614 = vadd.f32 %v6554, %v6605
    %v6615 = vadd.f32 %v6555, %v6606
    %v6616 = vadd.f32 %v6556, %v6607
    %v6617 = vadd.f32 %v6557, %v6608
    %6618 = vrot.lane.b32.xlu0 %v87, 94
    %v6619 = vpop.permute.xlu0 %6618
    %6621 = vrot.lane.b32.xlu0 %v79, 94
    %v6622 = vpop.permute.xlu0 %6621
    %6623 = vrot.lane.b32.xlu0 %v80, 94
    %v6624 = vpop.permute.xlu0 %6623
    %6625 = vrot.lane.b32.xlu0 %v81, 94
    %v6626 = vpop.permute.xlu0 %6625
    %6627 = vrot.lane.b32.xlu0 %v82, 94
    %v6628 = vpop.permute.xlu0 %6627
    %6629 = vrot.lane.b32.xlu0 %v83, 94
    %v6630 = vpop.permute.xlu0 %6629
    %6631 = vrot.lane.b32.xlu0 %v84, 94
    %v6632 = vpop.permute.xlu0 %6631
    %6633 = vrot.lane.b32.xlu0 %v85, 94
    %v6634 = vpop.permute.xlu0 %6633
    %6635 = vrot.lane.b32.xlu0 %v86, 94
    %v6636 = vpop.permute.xlu0 %6635
    %vm6637 = vcmask 769024
    %v6638 = vsel %vm6637, %v6622, %v6624
    %v6639 = vsel %vm6637, %v6624, %v6626
    %v6640 = vsel %vm6637, %v6626, %v6628
    %v6641 = vsel %vm6637, %v6628, %v6630
    %v6642 = vsel %vm6637, %v6630, %v6632
    %v6643 = vsel %vm6637, %v6632, %v6634
    %v6644 = vsel %vm6637, %v6634, %v6636
    %v6645 = vsel %vm6637, %v6636, %v6619
    %v6655 = vsel %vm6637, %v6619, %v6622
    %6656 = vset.pattern.permute.xlu0 3
    %6657 = vperm.xlu0 %6656, %v6445
    %v6658 = vpop.permute.xlu0 %6657
    %v6660 = vmul.f32 %v6655, %v6658
    %v6661 = vmul.f32 %v6638, %v6658
    %v6662 = vmul.f32 %v6639, %v6658
    %v6663 = vmul.f32 %v6640, %v6658
    %v6664 = vmul.f32 %v6641, %v6658
    %v6665 = vmul.f32 %v6642, %v6658
    %v6666 = vmul.f32 %v6643, %v6658
    %v6667 = vmul.f32 %v6644, %v6658
    %v6668 = vmul.f32 %v6645, %v6658
    %v6669 = vadd.f32 %v6609, %v6660
    %v6670 = vadd.f32 %v6610, %v6661
    %v6671 = vadd.f32 %v6611, %v6662
    %v6672 = vadd.f32 %v6612, %v6663
    %v6673 = vadd.f32 %v6613, %v6664
    %v6674 = vadd.f32 %v6614, %v6665
    %v6675 = vadd.f32 %v6615, %v6666
    %v6676 = vadd.f32 %v6616, %v6667
    %v6677 = vadd.f32 %v6617, %v6668
    %6678 = vrot.lane.b32.xlu0 %v87, 92
    %v6679 = vpop.permute.xlu0 %6678
    %6681 = vrot.lane.b32.xlu0 %v79, 92
    %v6682 = vpop.permute.xlu0 %6681
    %6683 = vrot.lane.b32.xlu0 %v80, 92
    %v6684 = vpop.permute.xlu0 %6683
    %6685 = vrot.lane.b32.xlu0 %v81, 92
    %v6686 = vpop.permute.xlu0 %6685
    %6687 = vrot.lane.b32.xlu0 %v82, 92
    %v6688 = vpop.permute.xlu0 %6687
    %6689 = vrot.lane.b32.xlu0 %v83, 92
    %v6690 = vpop.permute.xlu0 %6689
    %6691 = vrot.lane.b32.xlu0 %v84, 92
    %v6692 = vpop.permute.xlu0 %6691
    %6693 = vrot.lane.b32.xlu0 %v85, 92
    %v6694 = vpop.permute.xlu0 %6693
    %6695 = vrot.lane.b32.xlu0 %v86, 92
    %v6696 = vpop.permute.xlu0 %6695
    %vm6697 = vcmask 752640
    %v6698 = vsel %vm6697, %v6682, %v6684
    %v6699 = vsel %vm6697, %v6684, %v6686
    %v6700 = vsel %vm6697, %v6686, %v6688
    %v6701 = vsel %vm6697, %v6688, %v6690
    %v6702 = vsel %vm6697, %v6690, %v6692
    %v6703 = vsel %vm6697, %v6692, %v6694
    %v6704 = vsel %vm6697, %v6694, %v6696
    %v6705 = vsel %vm6697, %v6696, %v6679
    %v6715 = vsel %vm6697, %v6679, %v6682
    %6716 = vset.pattern.permute.xlu0 4
    %6717 = vperm.xlu0 %6716, %v6445
    %v6718 = vpop.permute.xlu0 %6717
    %v6720 = vmul.f32 %v6715, %v6718
    %v6721 = vmul.f32 %v6698, %v6718
    %v6722 = vmul.f32 %v6699, %v6718
    %v6723 = vmul.f32 %v6700, %v6718
    %v6724 = vmul.f32 %v6701, %v6718
    %v6725 = vmul.f32 %v6702, %v6718
    %v6726 = vmul.f32 %v6703, %v6718
    %v6727 = vmul.f32 %v6704, %v6718
    %v6728 = vmul.f32 %v6705, %v6718
    %v6729 = vadd.f32 %v6669, %v6720
    %v6730 = vadd.f32 %v6670, %v6721
    %v6731 = vadd.f32 %v6671, %v6722
    %v6732 = vadd.f32 %v6672, %v6723
    %v6733 = vadd.f32 %v6673, %v6724
    %v6734 = vadd.f32 %v6674, %v6725
    %v6735 = vadd.f32 %v6675, %v6726
    %v6736 = vadd.f32 %v6676, %v6727
    %v6737 = vadd.f32 %v6677, %v6728
    %6738 = vrot.lane.b32.xlu0 %v87, 52
    %v6739 = vpop.permute.xlu0 %6738
    %6741 = vrot.lane.b32.xlu0 %v79, 52
    %v6742 = vpop.permute.xlu0 %6741
    %6743 = vrot.lane.b32.xlu0 %v80, 52
    %v6744 = vpop.permute.xlu0 %6743
    %6745 = vrot.lane.b32.xlu0 %v81, 52
    %v6746 = vpop.permute.xlu0 %6745
    %6747 = vrot.lane.b32.xlu0 %v82, 52
    %v6748 = vpop.permute.xlu0 %6747
    %6749 = vrot.lane.b32.xlu0 %v83, 52
    %v6750 = vpop.permute.xlu0 %6749
    %6751 = vrot.lane.b32.xlu0 %v84, 52
    %v6752 = vpop.permute.xlu0 %6751
    %6753 = vrot.lane.b32.xlu0 %v85, 52
    %v6754 = vpop.permute.xlu0 %6753
    %6755 = vrot.lane.b32.xlu0 %v86, 52
    %v6756 = vpop.permute.xlu0 %6755
    %vm6757 = vcmask 424960
    %v6758 = vsel %vm6757, %v6742, %v6744
    %v6759 = vsel %vm6757, %v6744, %v6746
    %v6760 = vsel %vm6757, %v6746, %v6748
    %v6761 = vsel %vm6757, %v6748, %v6750
    %v6762 = vsel %vm6757, %v6750, %v6752
    %v6763 = vsel %vm6757, %v6752, %v6754
    %v6764 = vsel %vm6757, %v6754, %v6756
    %v6765 = vsel %vm6757, %v6756, %v6739
    %v6775 = vsel %vm6757, %v6739, %v6742
    %6776 = vset.pattern.permute.xlu0 5
    %6777 = vperm.xlu0 %6776, %v6445
    %v6778 = vpop.permute.xlu0 %6777
    %v6780 = vmul.f32 %v6775, %v6778
    %v6781 = vmul.f32 %v6758, %v6778
    %v6782 = vmul.f32 %v6759, %v6778
    %v6783 = vmul.f32 %v6760, %v6778
    %v6784 = vmul.f32 %v6761, %v6778
    %v6785 = vmul.f32 %v6762, %v6778
    %v6786 = vmul.f32 %v6763, %v6778
    %v6787 = vmul.f32 %v6764, %v6778
    %v6788 = vmul.f32 %v6765, %v6778
    %v6789 = vadd.f32 %v6729, %v6780
    %v6790 = vadd.f32 %v6730, %v6781
    %v6791 = vadd.f32 %v6731, %v6782
    %v6792 = vadd.f32 %v6732, %v6783
    %v6793 = vadd.f32 %v6733, %v6784
    %v6794 = vadd.f32 %v6734, %v6785
    %v6795 = vadd.f32 %v6735, %v6786
    %v6796 = vadd.f32 %v6736, %v6787
    %v6797 = vadd.f32 %v6737, %v6788
    %6798 = vset.pattern.permute.xlu0 6
    %6799 = vperm.xlu0 %6798, %v6445
    %v6800 = vpop.permute.xlu0 %6799
    %v6802 = vmul.f32 %v2857, %v6800
    %v6803 = vmul.f32 %v2840, %v6800
    %v6804 = vmul.f32 %v2841, %v6800
    %v6805 = vmul.f32 %v2842, %v6800
    %v6806 = vmul.f32 %v2843, %v6800
    %v6807 = vmul.f32 %v2844, %v6800
    %v6808 = vmul.f32 %v2845, %v6800
    %v6809 = vmul.f32 %v2846, %v6800
    %v6810 = vmul.f32 %v2847, %v6800
    %v6811 = vadd.f32 %v6789, %v6802
    %v6812 = vadd.f32 %v6790, %v6803
    %v6813 = vadd.f32 %v6791, %v6804
    %v6814 = vadd.f32 %v6792, %v6805
    %v6815 = vadd.f32 %v6793, %v6806
    %v6816 = vadd.f32 %v6794, %v6807
    %v6817 = vadd.f32 %v6795, %v6808
    %v6818 = vadd.f32 %v6796, %v6809
    %v6819 = vadd.f32 %v6797, %v6810
    %6820 = vset.pattern.permute.xlu0 7
    %6821 = vperm.xlu0 %6820, %v6445
    %v6822 = vpop.permute.xlu0 %6821
    %v6824 = vmul.f32 %v2969, %v6822
    %v6825 = vmul.f32 %v2952, %v6822
    %v6826 = vmul.f32 %v2953, %v6822
    %v6827 = vmul.f32 %v2954, %v6822
    %v6828 = vmul.f32 %v2955, %v6822
    %v6829 = vmul.f32 %v2956, %v6822
    %v6830 = vmul.f32 %v2957, %v6822
    %v6831 = vmul.f32 %v2958, %v6822
    %v6832 = vmul.f32 %v2959, %v6822
    %v6833 = vadd.f32 %v6811, %v6824
    %v6834 = vadd.f32 %v6812, %v6825
    %v6835 = vadd.f32 %v6813, %v6826
    %v6836 = vadd.f32 %v6814, %v6827
    %v6837 = vadd.f32 %v6815, %v6828
    %v6838 = vadd.f32 %v6816, %v6829
    %v6839 = vadd.f32 %v6817, %v6830
    %v6840 = vadd.f32 %v6818, %v6831
    %v6841 = vadd.f32 %v6819, %v6832
    %6842 = vset.pattern.permute.xlu0 8
    %6843 = vperm.xlu0 %6842, %v6445
    %v6844 = vpop.permute.xlu0 %6843
    %v6846 = vmul.f32 %v3089, %v6844
    %v6847 = vmul.f32 %v3072, %v6844
    %v6848 = vmul.f32 %v3073, %v6844
    %v6849 = vmul.f32 %v3074, %v6844
    %v6850 = vmul.f32 %v3075, %v6844
    %v6851 = vmul.f32 %v3076, %v6844
    %v6852 = vmul.f32 %v3077, %v6844
    %v6853 = vmul.f32 %v3078, %v6844
    %v6854 = vmul.f32 %v3079, %v6844
    %v6855 = vadd.f32 %v6833, %v6846
    %v6856 = vadd.f32 %v6834, %v6847
    %v6857 = vadd.f32 %v6835, %v6848
    %v6858 = vadd.f32 %v6836, %v6849
    %v6859 = vadd.f32 %v6837, %v6850
    %v6860 = vadd.f32 %v6838, %v6851
    %v6861 = vadd.f32 %v6839, %v6852
    %v6862 = vadd.f32 %v6840, %v6853
    %v6863 = vadd.f32 %v6841, %v6854
    %6864 = vrot.lane.b32.xlu0 %v87, 44
    %v6865 = vpop.permute.xlu0 %6864
    %6867 = vrot.lane.b32.xlu0 %v79, 44
    %v6868 = vpop.permute.xlu0 %6867
    %6869 = vrot.lane.b32.xlu0 %v80, 44
    %v6870 = vpop.permute.xlu0 %6869
    %6871 = vrot.lane.b32.xlu0 %v81, 44
    %v6872 = vpop.permute.xlu0 %6871
    %6873 = vrot.lane.b32.xlu0 %v82, 44
    %v6874 = vpop.permute.xlu0 %6873
    %6875 = vrot.lane.b32.xlu0 %v83, 44
    %v6876 = vpop.permute.xlu0 %6875
    %6877 = vrot.lane.b32.xlu0 %v84, 44
    %v6878 = vpop.permute.xlu0 %6877
    %6879 = vrot.lane.b32.xlu0 %v85, 44
    %v6880 = vpop.permute.xlu0 %6879
    %6881 = vrot.lane.b32.xlu0 %v86, 44
    %v6882 = vpop.permute.xlu0 %6881
    %vm6883 = vcmask 359424
    %v6884 = vsel %vm6883, %v6868, %v6870
    %v6885 = vsel %vm6883, %v6870, %v6872
    %v6886 = vsel %vm6883, %v6872, %v6874
    %v6887 = vsel %vm6883, %v6874, %v6876
    %v6888 = vsel %vm6883, %v6876, %v6878
    %v6889 = vsel %vm6883, %v6878, %v6880
    %v6890 = vsel %vm6883, %v6880, %v6882
    %v6891 = vsel %vm6883, %v6882, %v6865
    %v6901 = vsel %vm6883, %v6865, %v6868
    %6902 = vset.pattern.permute.xlu0 9
    %6903 = vperm.xlu0 %6902, %v6445
    %v6904 = vpop.permute.xlu0 %6903
    %v6906 = vmul.f32 %v6901, %v6904
    %v6907 = vmul.f32 %v6884, %v6904
    %v6908 = vmul.f32 %v6885, %v6904
    %v6909 = vmul.f32 %v6886, %v6904
    %v6910 = vmul.f32 %v6887, %v6904
    %v6911 = vmul.f32 %v6888, %v6904
    %v6912 = vmul.f32 %v6889, %v6904
    %v6913 = vmul.f32 %v6890, %v6904
    %v6914 = vmul.f32 %v6891, %v6904
    %v6915 = vadd.f32 %v6855, %v6906
    %v6916 = vadd.f32 %v6856, %v6907
    %v6917 = vadd.f32 %v6857, %v6908
    %v6918 = vadd.f32 %v6858, %v6909
    %v6919 = vadd.f32 %v6859, %v6910
    %v6920 = vadd.f32 %v6860, %v6911
    %v6921 = vadd.f32 %v6861, %v6912
    %v6922 = vadd.f32 %v6862, %v6913
    %v6923 = vadd.f32 %v6863, %v6914
    %6924 = vrot.lane.b32.xlu0 %v87, 4
    %v6925 = vpop.permute.xlu0 %6924
    %6927 = vrot.lane.b32.xlu0 %v79, 4
    %v6928 = vpop.permute.xlu0 %6927
    %6929 = vrot.lane.b32.xlu0 %v80, 4
    %v6930 = vpop.permute.xlu0 %6929
    %6931 = vrot.lane.b32.xlu0 %v81, 4
    %v6932 = vpop.permute.xlu0 %6931
    %6933 = vrot.lane.b32.xlu0 %v82, 4
    %v6934 = vpop.permute.xlu0 %6933
    %6935 = vrot.lane.b32.xlu0 %v83, 4
    %v6936 = vpop.permute.xlu0 %6935
    %6937 = vrot.lane.b32.xlu0 %v84, 4
    %v6938 = vpop.permute.xlu0 %6937
    %6939 = vrot.lane.b32.xlu0 %v85, 4
    %v6940 = vpop.permute.xlu0 %6939
    %6941 = vrot.lane.b32.xlu0 %v86, 4
    %v6942 = vpop.permute.xlu0 %6941
    %vm6943 = vcmask 31744
    %v6944 = vsel %vm6943, %v6928, %v6930
    %v6945 = vsel %vm6943, %v6930, %v6932
    %v6946 = vsel %vm6943, %v6932, %v6934
    %v6947 = vsel %vm6943, %v6934, %v6936
    %v6948 = vsel %vm6943, %v6936, %v6938
    %v6949 = vsel %vm6943, %v6938, %v6940
    %v6950 = vsel %vm6943, %v6940, %v6942
    %v6951 = vsel %vm6943, %v6942, %v6925
    %v6961 = vsel %vm6943, %v6925, %v6928
    %6962 = vset.pattern.permute.xlu0 10
    %6963 = vperm.xlu0 %6962, %v6445
    %v6964 = vpop.permute.xlu0 %6963
    %v6966 = vmul.f32 %v6961, %v6964
    %v6967 = vmul.f32 %v6944, %v6964
    %v6968 = vmul.f32 %v6945, %v6964
    %v6969 = vmul.f32 %v6946, %v6964
    %v6970 = vmul.f32 %v6947, %v6964
    %v6971 = vmul.f32 %v6948, %v6964
    %v6972 = vmul.f32 %v6949, %v6964
    %v6973 = vmul.f32 %v6950, %v6964
    %v6974 = vmul.f32 %v6951, %v6964
    %v6975 = vadd.f32 %v6915, %v6966
    %v6976 = vadd.f32 %v6916, %v6967
    %v6977 = vadd.f32 %v6917, %v6968
    %v6978 = vadd.f32 %v6918, %v6969
    %v6979 = vadd.f32 %v6919, %v6970
    %v6980 = vadd.f32 %v6920, %v6971
    %v6981 = vadd.f32 %v6921, %v6972
    %v6982 = vadd.f32 %v6922, %v6973
    %v6983 = vadd.f32 %v6923, %v6974
    %6984 = vset.pattern.permute.xlu0 11
    %6985 = vperm.xlu0 %6984, %v6445
    %v6986 = vpop.permute.xlu0 %6985
    %v6988 = vmul.f32 %v3335, %v6986
    %v6989 = vmul.f32 %v3318, %v6986
    %v6990 = vmul.f32 %v3319, %v6986
    %v6991 = vmul.f32 %v3320, %v6986
    %v6992 = vmul.f32 %v3321, %v6986
    %v6993 = vmul.f32 %v3322, %v6986
    %v6994 = vmul.f32 %v3323, %v6986
    %v6995 = vmul.f32 %v3324, %v6986
    %v6996 = vmul.f32 %v3325, %v6986
    %v6997 = vadd.f32 %v6975, %v6988
    %v6998 = vadd.f32 %v6976, %v6989
    %v6999 = vadd.f32 %v6977, %v6990
    %v7000 = vadd.f32 %v6978, %v6991
    %v7001 = vadd.f32 %v6979, %v6992
    %v7002 = vadd.f32 %v6980, %v6993
    %v7003 = vadd.f32 %v6981, %v6994
    %v7004 = vadd.f32 %v6982, %v6995
    %v7005 = vadd.f32 %v6983, %v6996
    %7006 = vset.pattern.permute.xlu0 12
    %7007 = vperm.xlu0 %7006, %v6445
    %v7008 = vpop.permute.xlu0 %7007
    %v7010 = vmul.f32 %v79, %v7008
    %v7011 = vmul.f32 %v80, %v7008
    %v7012 = vmul.f32 %v81, %v7008
    %v7013 = vmul.f32 %v82, %v7008
    %v7014 = vmul.f32 %v83, %v7008
    %v7015 = vmul.f32 %v84, %v7008
    %v7016 = vmul.f32 %v85, %v7008
    %v7017 = vmul.f32 %v86, %v7008
    %v7018 = vmul.f32 %v87, %v7008
    %v7019 = vadd.f32 %v6997, %v7010
    %v7020 = vadd.f32 %v6998, %v7011
    %v7021 = vadd.f32 %v6999, %v7012
    %v7022 = vadd.f32 %v7000, %v7013
    %v7023 = vadd.f32 %v7001, %v7014
    %v7024 = vadd.f32 %v7002, %v7015
    %v7025 = vadd.f32 %v7003, %v7016
    %v7026 = vadd.f32 %v7004, %v7017
    %v7027 = vadd.f32 %v7005, %v7018
    %7028 = vset.pattern.permute.xlu0 13
    %7029 = vperm.xlu0 %7028, %v6445
    %v7030 = vpop.permute.xlu0 %7029
    %v7032 = vmul.f32 %v3443, %v7030
    %v7033 = vmul.f32 %v3444, %v7030
    %v7034 = vmul.f32 %v3445, %v7030
    %v7035 = vmul.f32 %v3446, %v7030
    %v7036 = vmul.f32 %v3447, %v7030
    %v7037 = vmul.f32 %v3448, %v7030
    %v7038 = vmul.f32 %v3449, %v7030
    %v7039 = vmul.f32 %v3450, %v7030
    %v7040 = vmul.f32 %v3461, %v7030
    %v7041 = vadd.f32 %v7019, %v7032
    %v7042 = vadd.f32 %v7020, %v7033
    %v7043 = vadd.f32 %v7021, %v7034
    %v7044 = vadd.f32 %v7022, %v7035
    %v7045 = vadd.f32 %v7023, %v7036
    %v7046 = vadd.f32 %v7024, %v7037
    %v7047 = vadd.f32 %v7025, %v7038
    %v7048 = vadd.f32 %v7026, %v7039
    %v7049 = vadd.f32 %v7027, %v7040
    %7050 = vrot.lane.b32.xlu0 %v79, 124
    %v7051 = vpop.permute.xlu0 %7050
    %7052 = vrot.lane.b32.xlu0 %v80, 124
    %v7053 = vpop.permute.xlu0 %7052
    %7054 = vrot.lane.b32.xlu0 %v81, 124
    %v7055 = vpop.permute.xlu0 %7054
    %7056 = vrot.lane.b32.xlu0 %v82, 124
    %v7057 = vpop.permute.xlu0 %7056
    %7058 = vrot.lane.b32.xlu0 %v83, 124
    %v7059 = vpop.permute.xlu0 %7058
    %7060 = vrot.lane.b32.xlu0 %v84, 124
    %v7061 = vpop.permute.xlu0 %7060
    %7062 = vrot.lane.b32.xlu0 %v85, 124
    %v7063 = vpop.permute.xlu0 %7062
    %7064 = vrot.lane.b32.xlu0 %v86, 124
    %v7065 = vpop.permute.xlu0 %7064
    %7066 = vrot.lane.b32.xlu0 %v87, 124
    %v7067 = vpop.permute.xlu0 %7066
    %vm7068 = vcmask 1014784
    %v7069 = vsel %vm7068, %v7051, %v7053
    %v7070 = vsel %vm7068, %v7053, %v7055
    %v7071 = vsel %vm7068, %v7055, %v7057
    %v7072 = vsel %vm7068, %v7057, %v7059
    %v7073 = vsel %vm7068, %v7059, %v7061
    %v7074 = vsel %vm7068, %v7061, %v7063
    %v7075 = vsel %vm7068, %v7063, %v7065
    %v7076 = vsel %vm7068, %v7065, %v7067
    %v7087 = vsel %vm7068, %v7067, %v7051
    %7088 = vset.pattern.permute.xlu0 14
    %7089 = vperm.xlu0 %7088, %v6445
    %v7090 = vpop.permute.xlu0 %7089
    %v7092 = vmul.f32 %v7069, %v7090
    %v7093 = vmul.f32 %v7070, %v7090
    %v7094 = vmul.f32 %v7071, %v7090
    %v7095 = vmul.f32 %v7072, %v7090
    %v7096 = vmul.f32 %v7073, %v7090
    %v7097 = vmul.f32 %v7074, %v7090
    %v7098 = vmul.f32 %v7075, %v7090
    %v7099 = vmul.f32 %v7076, %v7090
    %v7100 = vmul.f32 %v7087, %v7090
    %v7101 = vadd.f32 %v7041, %v7092
    %v7102 = vadd.f32 %v7042, %v7093
    %v7103 = vadd.f32 %v7043, %v7094
    %v7104 = vadd.f32 %v7044, %v7095
    %v7105 = vadd.f32 %v7045, %v7096
    %v7106 = vadd.f32 %v7046, %v7097
    %v7107 = vadd.f32 %v7047, %v7098
    %v7108 = vadd.f32 %v7048, %v7099
    %v7109 = vadd.f32 %v7049, %v7100
    %7110 = vrot.lane.b32.xlu0 %v79, 84
    %v7111 = vpop.permute.xlu0 %7110
    %7112 = vrot.lane.b32.xlu0 %v80, 84
    %v7113 = vpop.permute.xlu0 %7112
    %7114 = vrot.lane.b32.xlu0 %v81, 84
    %v7115 = vpop.permute.xlu0 %7114
    %7116 = vrot.lane.b32.xlu0 %v82, 84
    %v7117 = vpop.permute.xlu0 %7116
    %7118 = vrot.lane.b32.xlu0 %v83, 84
    %v7119 = vpop.permute.xlu0 %7118
    %7120 = vrot.lane.b32.xlu0 %v84, 84
    %v7121 = vpop.permute.xlu0 %7120
    %7122 = vrot.lane.b32.xlu0 %v85, 84
    %v7123 = vpop.permute.xlu0 %7122
    %7124 = vrot.lane.b32.xlu0 %v86, 84
    %v7125 = vpop.permute.xlu0 %7124
    %7126 = vrot.lane.b32.xlu0 %v87, 84
    %v7127 = vpop.permute.xlu0 %7126
    %vm7128 = vcmask 687104
    %v7129 = vsel %vm7128, %v7111, %v7113
    %v7130 = vsel %vm7128, %v7113, %v7115
    %v7131 = vsel %vm7128, %v7115, %v7117
    %v7132 = vsel %vm7128, %v7117, %v7119
    %v7133 = vsel %vm7128, %v7119, %v7121
    %v7134 = vsel %vm7128, %v7121, %v7123
    %v7135 = vsel %vm7128, %v7123, %v7125
    %v7136 = vsel %vm7128, %v7125, %v7127
    %v7147 = vsel %vm7128, %v7127, %v7111
    %7148 = vset.pattern.permute.xlu0 15
    %7149 = vperm.xlu0 %7148, %v6445
    %v7150 = vpop.permute.xlu0 %7149
    %v7152 = vmul.f32 %v7129, %v7150
    %v7153 = vmul.f32 %v7130, %v7150
    %v7154 = vmul.f32 %v7131, %v7150
    %v7155 = vmul.f32 %v7132, %v7150
    %v7156 = vmul.f32 %v7133, %v7150
    %v7157 = vmul.f32 %v7134, %v7150
    %v7158 = vmul.f32 %v7135, %v7150
    %v7159 = vmul.f32 %v7136, %v7150
    %v7160 = vmul.f32 %v7147, %v7150
    %v7161 = vadd.f32 %v7101, %v7152
    %v7162 = vadd.f32 %v7102, %v7153
    %v7163 = vadd.f32 %v7103, %v7154
    %v7164 = vadd.f32 %v7104, %v7155
    %v7165 = vadd.f32 %v7105, %v7156
    %v7166 = vadd.f32 %v7106, %v7157
    %v7167 = vadd.f32 %v7107, %v7158
    %v7168 = vadd.f32 %v7108, %v7159
    %v7169 = vadd.f32 %v7109, %v7160
    %7170 = vset.pattern.permute.xlu0 16
    %7171 = vperm.xlu0 %7170, %v6445
    %v7172 = vpop.permute.xlu0 %7171
    %v7174 = vmul.f32 %v3689, %v7172
    %v7175 = vmul.f32 %v3690, %v7172
    %v7176 = vmul.f32 %v3691, %v7172
    %v7177 = vmul.f32 %v3692, %v7172
    %v7178 = vmul.f32 %v3693, %v7172
    %v7179 = vmul.f32 %v3694, %v7172
    %v7180 = vmul.f32 %v3695, %v7172
    %v7181 = vmul.f32 %v3696, %v7172
    %v7182 = vmul.f32 %v3707, %v7172
    %v7183 = vadd.f32 %v7161, %v7174
    %v7184 = vadd.f32 %v7162, %v7175
    %v7185 = vadd.f32 %v7163, %v7176
    %v7186 = vadd.f32 %v7164, %v7177
    %v7187 = vadd.f32 %v7165, %v7178
    %v7188 = vadd.f32 %v7166, %v7179
    %v7189 = vadd.f32 %v7167, %v7180
    %v7190 = vadd.f32 %v7168, %v7181
    %v7191 = vadd.f32 %v7169, %v7182
    %7192 = vset.pattern.permute.xlu0 17
    %7193 = vperm.xlu0 %7192, %v6445
    %v7194 = vpop.permute.xlu0 %7193
    %v7196 = vmul.f32 %v3809, %v7194
    %v7197 = vmul.f32 %v3810, %v7194
    %v7198 = vmul.f32 %v3811, %v7194
    %v7199 = vmul.f32 %v3812, %v7194
    %v7200 = vmul.f32 %v3813, %v7194
    %v7201 = vmul.f32 %v3814, %v7194
    %v7202 = vmul.f32 %v3815, %v7194
    %v7203 = vmul.f32 %v3816, %v7194
    %v7204 = vmul.f32 %v3827, %v7194
    %v7205 = vadd.f32 %v7183, %v7196
    %v7206 = vadd.f32 %v7184, %v7197
    %v7207 = vadd.f32 %v7185, %v7198
    %v7208 = vadd.f32 %v7186, %v7199
    %v7209 = vadd.f32 %v7187, %v7200
    %v7210 = vadd.f32 %v7188, %v7201
    %v7211 = vadd.f32 %v7189, %v7202
    %v7212 = vadd.f32 %v7190, %v7203
    %v7213 = vadd.f32 %v7191, %v7204
    %7214 = vset.pattern.permute.xlu0 18
    %7215 = vperm.xlu0 %7214, %v6445
    %v7216 = vpop.permute.xlu0 %7215
    %v7218 = vmul.f32 %v3929, %v7216
    %v7219 = vmul.f32 %v3930, %v7216
    %v7220 = vmul.f32 %v3931, %v7216
    %v7221 = vmul.f32 %v3932, %v7216
    %v7222 = vmul.f32 %v3933, %v7216
    %v7223 = vmul.f32 %v3934, %v7216
    %v7224 = vmul.f32 %v3935, %v7216
    %v7225 = vmul.f32 %v3936, %v7216
    %v7226 = vmul.f32 %v3947, %v7216
    %v7227 = vadd.f32 %v7205, %v7218
    %v7228 = vadd.f32 %v7206, %v7219
    %v7229 = vadd.f32 %v7207, %v7220
    %v7230 = vadd.f32 %v7208, %v7221
    %v7231 = vadd.f32 %v7209, %v7222
    %v7232 = vadd.f32 %v7210, %v7223
    %v7233 = vadd.f32 %v7211, %v7224
    %v7234 = vadd.f32 %v7212, %v7225
    %v7235 = vadd.f32 %v7213, %v7226
    %7236 = vrot.lane.b32.xlu0 %v79, 76
    %v7237 = vpop.permute.xlu0 %7236
    %7238 = vrot.lane.b32.xlu0 %v80, 76
    %v7239 = vpop.permute.xlu0 %7238
    %7240 = vrot.lane.b32.xlu0 %v81, 76
    %v7241 = vpop.permute.xlu0 %7240
    %7242 = vrot.lane.b32.xlu0 %v82, 76
    %v7243 = vpop.permute.xlu0 %7242
    %7244 = vrot.lane.b32.xlu0 %v83, 76
    %v7245 = vpop.permute.xlu0 %7244
    %7246 = vrot.lane.b32.xlu0 %v84, 76
    %v7247 = vpop.permute.xlu0 %7246
    %7248 = vrot.lane.b32.xlu0 %v85, 76
    %v7249 = vpop.permute.xlu0 %7248
    %7250 = vrot.lane.b32.xlu0 %v86, 76
    %v7251 = vpop.permute.xlu0 %7250
    %7252 = vrot.lane.b32.xlu0 %v87, 76
    %v7253 = vpop.permute.xlu0 %7252
    %vm7254 = vcmask 621568
    %v7255 = vsel %vm7254, %v7237, %v7239
    %v7256 = vsel %vm7254, %v7239, %v7241
    %v7257 = vsel %vm7254, %v7241, %v7243
    %v7258 = vsel %vm7254, %v7243, %v7245
    %v7259 = vsel %vm7254, %v7245, %v7247
    %v7260 = vsel %vm7254, %v7247, %v7249
    %v7261 = vsel %vm7254, %v7249, %v7251
    %v7262 = vsel %vm7254, %v7251, %v7253
    %v7273 = vsel %vm7254, %v7253, %v7237
    %7274 = vset.pattern.permute.xlu0 19
    %7275 = vperm.xlu0 %7274, %v6445
    %v7276 = vpop.permute.xlu0 %7275
    %v7278 = vmul.f32 %v7255, %v7276
    %v7279 = vmul.f32 %v7256, %v7276
    %v7280 = vmul.f32 %v7257, %v7276
    %v7281 = vmul.f32 %v7258, %v7276
    %v7282 = vmul.f32 %v7259, %v7276
    %v7283 = vmul.f32 %v7260, %v7276
    %v7284 = vmul.f32 %v7261, %v7276
    %v7285 = vmul.f32 %v7262, %v7276
    %v7286 = vmul.f32 %v7273, %v7276
    %v7287 = vadd.f32 %v7227, %v7278
    %v7288 = vadd.f32 %v7228, %v7279
    %v7289 = vadd.f32 %v7229, %v7280
    %v7290 = vadd.f32 %v7230, %v7281
    %v7291 = vadd.f32 %v7231, %v7282
    %v7292 = vadd.f32 %v7232, %v7283
    %v7293 = vadd.f32 %v7233, %v7284
    %v7294 = vadd.f32 %v7234, %v7285
    %v7295 = vadd.f32 %v7235, %v7286
    %7296 = vrot.lane.b32.xlu0 %v79, 36
    %v7297 = vpop.permute.xlu0 %7296
    %7298 = vrot.lane.b32.xlu0 %v80, 36
    %v7299 = vpop.permute.xlu0 %7298
    %7300 = vrot.lane.b32.xlu0 %v81, 36
    %v7301 = vpop.permute.xlu0 %7300
    %7302 = vrot.lane.b32.xlu0 %v82, 36
    %v7303 = vpop.permute.xlu0 %7302
    %7304 = vrot.lane.b32.xlu0 %v83, 36
    %v7305 = vpop.permute.xlu0 %7304
    %7306 = vrot.lane.b32.xlu0 %v84, 36
    %v7307 = vpop.permute.xlu0 %7306
    %7308 = vrot.lane.b32.xlu0 %v85, 36
    %v7309 = vpop.permute.xlu0 %7308
    %7310 = vrot.lane.b32.xlu0 %v86, 36
    %v7311 = vpop.permute.xlu0 %7310
    %7312 = vrot.lane.b32.xlu0 %v87, 36
    %v7313 = vpop.permute.xlu0 %7312
    %vm7314 = vcmask 293888
    %v7315 = vsel %vm7314, %v7297, %v7299
    %v7316 = vsel %vm7314, %v7299, %v7301
    %v7317 = vsel %vm7314, %v7301, %v7303
    %v7318 = vsel %vm7314, %v7303, %v7305
    %v7319 = vsel %vm7314, %v7305, %v7307
    %v7320 = vsel %vm7314, %v7307, %v7309
    %v7321 = vsel %vm7314, %v7309, %v7311
    %v7322 = vsel %vm7314, %v7311, %v7313
    %v7333 = vsel %vm7314, %v7313, %v7297
    %7334 = vset.pattern.permute.xlu0 20
    %7335 = vperm.xlu0 %7334, %v6445
    %v7336 = vpop.permute.xlu0 %7335
    %v7338 = vmul.f32 %v7315, %v7336
    %v7339 = vmul.f32 %v7316, %v7336
    %v7340 = vmul.f32 %v7317, %v7336
    %v7341 = vmul.f32 %v7318, %v7336
    %v7342 = vmul.f32 %v7319, %v7336
    %v7343 = vmul.f32 %v7320, %v7336
    %v7344 = vmul.f32 %v7321, %v7336
    %v7345 = vmul.f32 %v7322, %v7336
    %v7346 = vmul.f32 %v7333, %v7336
    %v7347 = vadd.f32 %v7287, %v7338
    %v7348 = vadd.f32 %v7288, %v7339
    %v7349 = vadd.f32 %v7289, %v7340
    %v7350 = vadd.f32 %v7290, %v7341
    %v7351 = vadd.f32 %v7291, %v7342
    %v7352 = vadd.f32 %v7292, %v7343
    %v7353 = vadd.f32 %v7293, %v7344
    %v7354 = vadd.f32 %v7294, %v7345
    %v7355 = vadd.f32 %v7295, %v7346
    %7356 = vrot.lane.b32.xlu0 %v79, 34
    %v7357 = vpop.permute.xlu0 %7356
    %7358 = vrot.lane.b32.xlu0 %v80, 34
    %v7359 = vpop.permute.xlu0 %7358
    %7360 = vrot.lane.b32.xlu0 %v81, 34
    %v7361 = vpop.permute.xlu0 %7360
    %7362 = vrot.lane.b32.xlu0 %v82, 34
    %v7363 = vpop.permute.xlu0 %7362
    %7364 = vrot.lane.b32.xlu0 %v83, 34
    %v7365 = vpop.permute.xlu0 %7364
    %7366 = vrot.lane.b32.xlu0 %v84, 34
    %v7367 = vpop.permute.xlu0 %7366
    %7368 = vrot.lane.b32.xlu0 %v85, 34
    %v7369 = vpop.permute.xlu0 %7368
    %7370 = vrot.lane.b32.xlu0 %v86, 34
    %v7371 = vpop.permute.xlu0 %7370
    %7372 = vrot.lane.b32.xlu0 %v87, 34
    %v7373 = vpop.permute.xlu0 %7372
    %vm7374 = vcmask 277504
    %v7375 = vsel %vm7374, %v7357, %v7359
    %v7376 = vsel %vm7374, %v7359, %v7361
    %v7377 = vsel %vm7374, %v7361, %v7363
    %v7378 = vsel %vm7374, %v7363, %v7365
    %v7379 = vsel %vm7374, %v7365, %v7367
    %v7380 = vsel %vm7374, %v7367, %v7369
    %v7381 = vsel %vm7374, %v7369, %v7371
    %v7382 = vsel %vm7374, %v7371, %v7373
    %v7393 = vsel %vm7374, %v7373, %v7357
    %7394 = vset.pattern.permute.xlu0 21
    %7395 = vperm.xlu0 %7394, %v6445
    %v7396 = vpop.permute.xlu0 %7395
    %v7398 = vmul.f32 %v7375, %v7396
    %v7399 = vmul.f32 %v7376, %v7396
    %v7400 = vmul.f32 %v7377, %v7396
    %v7401 = vmul.f32 %v7378, %v7396
    %v7402 = vmul.f32 %v7379, %v7396
    %v7403 = vmul.f32 %v7380, %v7396
    %v7404 = vmul.f32 %v7381, %v7396
    %v7405 = vmul.f32 %v7382, %v7396
    %v7406 = vmul.f32 %v7393, %v7396
    %v7407 = vadd.f32 %v7347, %v7398
    %v7408 = vadd.f32 %v7348, %v7399
    %v7409 = vadd.f32 %v7349, %v7400
    %v7410 = vadd.f32 %v7350, %v7401
    %v7411 = vadd.f32 %v7351, %v7402
    %v7412 = vadd.f32 %v7352, %v7403
    %v7413 = vadd.f32 %v7353, %v7404
    %v7414 = vadd.f32 %v7354, %v7405
    %v7415 = vadd.f32 %v7355, %v7406
    %7416 = vrot.lane.b32.xlu0 %v79, 32
    %v7417 = vpop.permute.xlu0 %7416
    %7418 = vrot.lane.b32.xlu0 %v80, 32
    %v7419 = vpop.permute.xlu0 %7418
    %7420 = vrot.lane.b32.xlu0 %v81, 32
    %v7421 = vpop.permute.xlu0 %7420
    %7422 = vrot.lane.b32.xlu0 %v82, 32
    %v7423 = vpop.permute.xlu0 %7422
    %7424 = vrot.lane.b32.xlu0 %v83, 32
    %v7425 = vpop.permute.xlu0 %7424
    %7426 = vrot.lane.b32.xlu0 %v84, 32
    %v7427 = vpop.permute.xlu0 %7426
    %7428 = vrot.lane.b32.xlu0 %v85, 32
    %v7429 = vpop.permute.xlu0 %7428
    %7430 = vrot.lane.b32.xlu0 %v86, 32
    %v7431 = vpop.permute.xlu0 %7430
    %7432 = vrot.lane.b32.xlu0 %v87, 32
    %v7433 = vpop.permute.xlu0 %7432
    %vm7434 = vcmask 261120
    %v7435 = vsel %vm7434, %v7417, %v7419
    %v7436 = vsel %vm7434, %v7419, %v7421
    %v7437 = vsel %vm7434, %v7421, %v7423
    %v7438 = vsel %vm7434, %v7423, %v7425
    %v7439 = vsel %vm7434, %v7425, %v7427
    %v7440 = vsel %vm7434, %v7427, %v7429
    %v7441 = vsel %vm7434, %v7429, %v7431
    %v7442 = vsel %vm7434, %v7431, %v7433
    %v7453 = vsel %vm7434, %v7433, %v7417
    %7454 = vset.pattern.permute.xlu0 22
    %7455 = vperm.xlu0 %7454, %v6445
    %v7456 = vpop.permute.xlu0 %7455
    %v7458 = vmul.f32 %v7435, %v7456
    %v7459 = vmul.f32 %v7436, %v7456
    %v7460 = vmul.f32 %v7437, %v7456
    %v7461 = vmul.f32 %v7438, %v7456
    %v7462 = vmul.f32 %v7439, %v7456
    %v7463 = vmul.f32 %v7440, %v7456
    %v7464 = vmul.f32 %v7441, %v7456
    %v7465 = vmul.f32 %v7442, %v7456
    %v7466 = vmul.f32 %v7453, %v7456
    %v7467 = vadd.f32 %v7407, %v7458
    %v7468 = vadd.f32 %v7408, %v7459
    %v7469 = vadd.f32 %v7409, %v7460
    %v7470 = vadd.f32 %v7410, %v7461
    %v7471 = vadd.f32 %v7411, %v7462
    %v7472 = vadd.f32 %v7412, %v7463
    %v7473 = vadd.f32 %v7413, %v7464
    %v7474 = vadd.f32 %v7414, %v7465
    %v7475 = vadd.f32 %v7415, %v7466
    %7476 = vrot.lane.b32.xlu0 %v79, 30
    %v7477 = vpop.permute.xlu0 %7476
    %7478 = vrot.lane.b32.xlu0 %v80, 30
    %v7479 = vpop.permute.xlu0 %7478
    %7480 = vrot.lane.b32.xlu0 %v81, 30
    %v7481 = vpop.permute.xlu0 %7480
    %7482 = vrot.lane.b32.xlu0 %v82, 30
    %v7483 = vpop.permute.xlu0 %7482
    %7484 = vrot.lane.b32.xlu0 %v83, 30
    %v7485 = vpop.permute.xlu0 %7484
    %7486 = vrot.lane.b32.xlu0 %v84, 30
    %v7487 = vpop.permute.xlu0 %7486
    %7488 = vrot.lane.b32.xlu0 %v85, 30
    %v7489 = vpop.permute.xlu0 %7488
    %7490 = vrot.lane.b32.xlu0 %v86, 30
    %v7491 = vpop.permute.xlu0 %7490
    %7492 = vrot.lane.b32.xlu0 %v87, 30
    %v7493 = vpop.permute.xlu0 %7492
    %vm7494 = vcmask 244736
    %v7495 = vsel %vm7494, %v7477, %v7479
    %v7496 = vsel %vm7494, %v7479, %v7481
    %v7497 = vsel %vm7494, %v7481, %v7483
    %v7498 = vsel %vm7494, %v7483, %v7485
    %v7499 = vsel %vm7494, %v7485, %v7487
    %v7500 = vsel %vm7494, %v7487, %v7489
    %v7501 = vsel %vm7494, %v7489, %v7491
    %v7502 = vsel %vm7494, %v7491, %v7493
    %v7513 = vsel %vm7494, %v7493, %v7477
    %7514 = vset.pattern.permute.xlu0 23
    %7515 = vperm.xlu0 %7514, %v6445
    %v7516 = vpop.permute.xlu0 %7515
    %v7518 = vmul.f32 %v7495, %v7516
    %v7519 = vmul.f32 %v7496, %v7516
    %v7520 = vmul.f32 %v7497, %v7516
    %v7521 = vmul.f32 %v7498, %v7516
    %v7522 = vmul.f32 %v7499, %v7516
    %v7523 = vmul.f32 %v7500, %v7516
    %v7524 = vmul.f32 %v7501, %v7516
    %v7525 = vmul.f32 %v7502, %v7516
    %v7526 = vmul.f32 %v7513, %v7516
    %v7527 = vadd.f32 %v7467, %v7518
    %v7528 = vadd.f32 %v7468, %v7519
    %v7529 = vadd.f32 %v7469, %v7520
    %v7530 = vadd.f32 %v7470, %v7521
    %v7531 = vadd.f32 %v7471, %v7522
    %v7532 = vadd.f32 %v7472, %v7523
    %v7533 = vadd.f32 %v7473, %v7524
    %v7534 = vadd.f32 %v7474, %v7525
    %v7535 = vadd.f32 %v7475, %v7526
    %7536 = vrot.lane.b32.xlu0 %v79, 28
    %v7537 = vpop.permute.xlu0 %7536
    %7538 = vrot.lane.b32.xlu0 %v80, 28
    %v7539 = vpop.permute.xlu0 %7538
    %7540 = vrot.lane.b32.xlu0 %v81, 28
    %v7541 = vpop.permute.xlu0 %7540
    %7542 = vrot.lane.b32.xlu0 %v82, 28
    %v7543 = vpop.permute.xlu0 %7542
    %7544 = vrot.lane.b32.xlu0 %v83, 28
    %v7545 = vpop.permute.xlu0 %7544
    %7546 = vrot.lane.b32.xlu0 %v84, 28
    %v7547 = vpop.permute.xlu0 %7546
    %7548 = vrot.lane.b32.xlu0 %v85, 28
    %v7549 = vpop.permute.xlu0 %7548
    %7550 = vrot.lane.b32.xlu0 %v86, 28
    %v7551 = vpop.permute.xlu0 %7550
    %7552 = vrot.lane.b32.xlu0 %v87, 28
    %v7553 = vpop.permute.xlu0 %7552
    %vm7554 = vcmask 228352
    %v7555 = vsel %vm7554, %v7537, %v7539
    %v7556 = vsel %vm7554, %v7539, %v7541
    %v7557 = vsel %vm7554, %v7541, %v7543
    %v7558 = vsel %vm7554, %v7543, %v7545
    %v7559 = vsel %vm7554, %v7545, %v7547
    %v7560 = vsel %vm7554, %v7547, %v7549
    %v7561 = vsel %vm7554, %v7549, %v7551
    %v7562 = vsel %vm7554, %v7551, %v7553
    %v7573 = vsel %vm7554, %v7553, %v7537
    %7574 = vset.pattern.permute.xlu0 24
    %7575 = vperm.xlu0 %7574, %v6445
    %v7576 = vpop.permute.xlu0 %7575
    %v7578 = vmul.f32 %v7555, %v7576
    %v7579 = vmul.f32 %v7556, %v7576
    %v7580 = vmul.f32 %v7557, %v7576
    %v7581 = vmul.f32 %v7558, %v7576
    %v7582 = vmul.f32 %v7559, %v7576
    %v7583 = vmul.f32 %v7560, %v7576
    %v7584 = vmul.f32 %v7561, %v7576
    %v7585 = vmul.f32 %v7562, %v7576
    %v7586 = vmul.f32 %v7573, %v7576
    %v7587 = vadd.f32 %v7527, %v7578
    %v7588 = vadd.f32 %v7528, %v7579
    %v7589 = vadd.f32 %v7529, %v7580
    %v7590 = vadd.f32 %v7530, %v7581
    %v7591 = vadd.f32 %v7531, %v7582
    %v7592 = vadd.f32 %v7532, %v7583
    %v7593 = vadd.f32 %v7533, %v7584
    %v7594 = vadd.f32 %v7534, %v7585
    %v7595 = vadd.f32 %v7535, %v7586
    %v7596 = vld [vmem:[%s14] sm:$0xff]
    %v7598 = vsel %vm1761, %v7596, 0
    %7600 = vmatpush.msra.mxu0 0.0
    %7601 = vmatpush.msra.mxu0 0.0
    %7602 = vmatpush.msra.mxu0 0.0
    %7603 = vmatpush.msra.mxu0 0.0
    %7604 = vmatpush.msra.mxu0 0.0
    %7605 = vmatpush.msra.mxu0 0.0
    %7606 = vmatpush.msra.mxu0 0.0
    %7607 = vmatpush.msra.mxu0 0.0
    %7608 = vmatpush.msra.mxu0 0.0
    %7609 = vmatpush.msra.mxu0 0.0
    %7610 = vmatpush.msra.mxu0 0.0
    %7611 = vmatpush.msra.mxu0 0.0
    %7612 = vmatpush.msra.mxu0 0.0
    %7613 = vmatpush.msra.mxu0 0.0
    %7614 = vmatpush.msra.mxu0 0.0
    %7615 = vmatpush.msra.mxu0 %v7587
    %7616 = vmatmul.f32.gmra.mxu0 %v7598
    %v7617 = vpop.f32.mrf.mxu0
    %v7618 = vadd.f32 0.0, %v7617
    %7619 = vdwg.mxu0
    %7620 = vmatpush.msra.mxu0 0.0
    %7621 = vmatpush.msra.mxu0 0.0
    %7622 = vmatpush.msra.mxu0 0.0
    %7623 = vmatpush.msra.mxu0 0.0
    %7624 = vmatpush.msra.mxu0 0.0
    %7625 = vmatpush.msra.mxu0 0.0
    %7626 = vmatpush.msra.mxu0 0.0
    %7627 = vmatpush.msra.mxu0 0.0
    %7628 = vmatpush.msra.mxu0 0.0
    %7629 = vmatpush.msra.mxu0 0.0
    %7630 = vmatpush.msra.mxu0 0.0
    %7631 = vmatpush.msra.mxu0 0.0
    %7632 = vmatpush.msra.mxu0 0.0
    %7633 = vmatpush.msra.mxu0 0.0
    %7634 = vmatpush.msra.mxu0 0.0
    %7635 = vmatpush.msra.mxu0 %v7588
    %7636 = vmatmul.f32.gmra.mxu0 %v7598
    %v7637 = vpop.f32.mrf.mxu0
    %v7638 = vadd.f32 0.0, %v7637
    %7639 = vdwg.mxu0
    %7640 = vmatpush.msra.mxu0 0.0
    %7641 = vmatpush.msra.mxu0 0.0
    %7642 = vmatpush.msra.mxu0 0.0
    %7643 = vmatpush.msra.mxu0 0.0
    %7644 = vmatpush.msra.mxu0 0.0
    %7645 = vmatpush.msra.mxu0 0.0
    %7646 = vmatpush.msra.mxu0 0.0
    %7647 = vmatpush.msra.mxu0 0.0
    %7648 = vmatpush.msra.mxu0 0.0
    %7649 = vmatpush.msra.mxu0 0.0
    %7650 = vmatpush.msra.mxu0 0.0
    %7651 = vmatpush.msra.mxu0 0.0
    %7652 = vmatpush.msra.mxu0 0.0
    %7653 = vmatpush.msra.mxu0 0.0
    %7654 = vmatpush.msra.mxu0 0.0
    %7655 = vmatpush.msra.mxu0 %v7589
    %7656 = vmatmul.f32.gmra.mxu0 %v7598
    %v7657 = vpop.f32.mrf.mxu0
    %v7658 = vadd.f32 0.0, %v7657
    %7659 = vdwg.mxu0
    %7660 = vmatpush.msra.mxu0 0.0
    %7661 = vmatpush.msra.mxu0 0.0
    %7662 = vmatpush.msra.mxu0 0.0
    %7663 = vmatpush.msra.mxu0 0.0
    %7664 = vmatpush.msra.mxu0 0.0
    %7665 = vmatpush.msra.mxu0 0.0
    %7666 = vmatpush.msra.mxu0 0.0
    %7667 = vmatpush.msra.mxu0 0.0
    %7668 = vmatpush.msra.mxu0 0.0
    %7669 = vmatpush.msra.mxu0 0.0
    %7670 = vmatpush.msra.mxu0 0.0
    %7671 = vmatpush.msra.mxu0 0.0
    %7672 = vmatpush.msra.mxu0 0.0
    %7673 = vmatpush.msra.mxu0 0.0
    %7674 = vmatpush.msra.mxu0 0.0
    %7675 = vmatpush.msra.mxu0 %v7590
    %7676 = vmatmul.f32.gmra.mxu0 %v7598
    %v7677 = vpop.f32.mrf.mxu0
    %v7678 = vadd.f32 0.0, %v7677
    %7679 = vdwg.mxu0
    %7680 = vmatpush.msra.mxu0 0.0
    %7681 = vmatpush.msra.mxu0 0.0
    %7682 = vmatpush.msra.mxu0 0.0
    %7683 = vmatpush.msra.mxu0 0.0
    %7684 = vmatpush.msra.mxu0 0.0
    %7685 = vmatpush.msra.mxu0 0.0
    %7686 = vmatpush.msra.mxu0 0.0
    %7687 = vmatpush.msra.mxu0 0.0
    %7688 = vmatpush.msra.mxu0 0.0
    %7689 = vmatpush.msra.mxu0 0.0
    %7690 = vmatpush.msra.mxu0 0.0
    %7691 = vmatpush.msra.mxu0 0.0
    %7692 = vmatpush.msra.mxu0 0.0
    %7693 = vmatpush.msra.mxu0 0.0
    %7694 = vmatpush.msra.mxu0 0.0
    %7695 = vmatpush.msra.mxu0 %v7591
    %7696 = vmatmul.f32.gmra.mxu0 %v7598
    %v7697 = vpop.f32.mrf.mxu0
    %v7698 = vadd.f32 0.0, %v7697
    %7699 = vdwg.mxu0
    %7700 = vmatpush.msra.mxu0 0.0
    %7701 = vmatpush.msra.mxu0 0.0
    %7702 = vmatpush.msra.mxu0 0.0
    %7703 = vmatpush.msra.mxu0 0.0
    %7704 = vmatpush.msra.mxu0 0.0
    %7705 = vmatpush.msra.mxu0 0.0
    %7706 = vmatpush.msra.mxu0 0.0
    %7707 = vmatpush.msra.mxu0 0.0
    %7708 = vmatpush.msra.mxu0 0.0
    %7709 = vmatpush.msra.mxu0 0.0
    %7710 = vmatpush.msra.mxu0 0.0
    %7711 = vmatpush.msra.mxu0 0.0
    %7712 = vmatpush.msra.mxu0 0.0
    %7713 = vmatpush.msra.mxu0 0.0
    %7714 = vmatpush.msra.mxu0 0.0
    %7715 = vmatpush.msra.mxu0 %v7592
    %7716 = vmatmul.f32.gmra.mxu0 %v7598
    %v7717 = vpop.f32.mrf.mxu0
    %v7718 = vadd.f32 0.0, %v7717
    %7719 = vdwg.mxu0
    %7720 = vmatpush.msra.mxu0 0.0
    %7721 = vmatpush.msra.mxu0 0.0
    %7722 = vmatpush.msra.mxu0 0.0
    %7723 = vmatpush.msra.mxu0 0.0
    %7724 = vmatpush.msra.mxu0 0.0
    %7725 = vmatpush.msra.mxu0 0.0
    %7726 = vmatpush.msra.mxu0 0.0
    %7727 = vmatpush.msra.mxu0 0.0
    %7728 = vmatpush.msra.mxu0 0.0
    %7729 = vmatpush.msra.mxu0 0.0
    %7730 = vmatpush.msra.mxu0 0.0
    %7731 = vmatpush.msra.mxu0 0.0
    %7732 = vmatpush.msra.mxu0 0.0
    %7733 = vmatpush.msra.mxu0 0.0
    %7734 = vmatpush.msra.mxu0 0.0
    %7735 = vmatpush.msra.mxu0 %v7593
    %7736 = vmatmul.f32.gmra.mxu0 %v7598
    %v7737 = vpop.f32.mrf.mxu0
    %v7738 = vadd.f32 0.0, %v7737
    %7739 = vdwg.mxu0
    %7740 = vmatpush.msra.mxu0 0.0
    %7741 = vmatpush.msra.mxu0 0.0
    %7742 = vmatpush.msra.mxu0 0.0
    %7743 = vmatpush.msra.mxu0 0.0
    %7744 = vmatpush.msra.mxu0 0.0
    %7745 = vmatpush.msra.mxu0 0.0
    %7746 = vmatpush.msra.mxu0 0.0
    %7747 = vmatpush.msra.mxu0 0.0
    %7748 = vmatpush.msra.mxu0 0.0
    %7749 = vmatpush.msra.mxu0 0.0
    %7750 = vmatpush.msra.mxu0 0.0
    %7751 = vmatpush.msra.mxu0 0.0
    %7752 = vmatpush.msra.mxu0 0.0
    %7753 = vmatpush.msra.mxu0 0.0
    %7754 = vmatpush.msra.mxu0 0.0
    %7755 = vmatpush.msra.mxu0 %v7594
    %7756 = vmatmul.f32.gmra.mxu0 %v7598
    %v7757 = vpop.f32.mrf.mxu0
    %v7758 = vadd.f32 0.0, %v7757
    %7759 = vdwg.mxu0
    %7760 = vmatpush.msra.mxu0 0.0
    %7761 = vmatpush.msra.mxu0 0.0
    %7762 = vmatpush.msra.mxu0 0.0
    %7763 = vmatpush.msra.mxu0 0.0
    %7764 = vmatpush.msra.mxu0 0.0
    %7765 = vmatpush.msra.mxu0 0.0
    %7766 = vmatpush.msra.mxu0 0.0
    %7767 = vmatpush.msra.mxu0 0.0
    %7768 = vmatpush.msra.mxu0 0.0
    %7769 = vmatpush.msra.mxu0 0.0
    %7770 = vmatpush.msra.mxu0 0.0
    %7771 = vmatpush.msra.mxu0 0.0
    %7772 = vmatpush.msra.mxu0 0.0
    %7773 = vmatpush.msra.mxu0 0.0
    %7774 = vmatpush.msra.mxu0 0.0
    %7775 = vmatpush.msra.mxu0 %v7595
    %7776 = vmatmul.f32.gmra.mxu0 %v7598
    %v7777 = vpop.f32.mrf.mxu0
    %v7778 = vadd.f32 0.0, %v7777
    %7779 = vdwg.mxu0
    %v7780 = vmul.f32 %v7618, %v506
    %v7781 = vmul.f32 %v7638, %v507
    %v7782 = vmul.f32 %v7658, %v508
    %v7783 = vmul.f32 %v7678, %v509
    %v7784 = vmul.f32 %v7698, %v510
    %v7785 = vmul.f32 %v7718, %v511
    %v7786 = vmul.f32 %v7738, %v512
    %v7787 = vmul.f32 %v7758, %v513
    %v7788 = vmul.f32 %v7778, %v514
    %v7789 = vadd.f32 %v7780, %v7781
    %v7790 = vadd.f32 %v7789, %v7782
    %v7791 = vadd.f32 %v7790, %v7783
    %v7792 = vadd.f32 %v7791, %v7784
    %v7793 = vadd.f32 %v7792, %v7785
    %v7794 = vadd.f32 %v7793, %v7786
    %v7795 = vadd.f32 %v7794, %v7787
    %v7796 = vadd.f32 %v7795, %v7788
    %7797 = vadd.xlane.f32.xlu0 %v7796
    %v7798 = vpop.xlane.xlu0 %7797
    %v7799 = vmul.f32 %v7798, 0.001953125
    %v7800 = vsub.f32 %v7618, %v7799
    %v7801 = vsub.f32 %v7638, %v7799
    %v7802 = vsub.f32 %v7658, %v7799
    %v7803 = vsub.f32 %v7678, %v7799
    %v7804 = vsub.f32 %v7698, %v7799
    %v7805 = vsub.f32 %v7718, %v7799
    %v7806 = vsub.f32 %v7738, %v7799
    %v7807 = vsub.f32 %v7758, %v7799
    %v7808 = vsub.f32 %v7778, %v7799
    %v7809 = vmul.f32 %v7800, %v506
    %v7810 = vmul.f32 %v7801, %v507
    %v7811 = vmul.f32 %v7802, %v508
    %v7812 = vmul.f32 %v7803, %v509
    %v7813 = vmul.f32 %v7804, %v510
    %v7814 = vmul.f32 %v7805, %v511
    %v7815 = vmul.f32 %v7806, %v512
    %v7816 = vmul.f32 %v7807, %v513
    %v7817 = vmul.f32 %v7808, %v514
    %v7818 = vmul.f32 %v7809, %v7809
    %v7819 = vmul.f32 %v7810, %v7810
    %v7820 = vmul.f32 %v7811, %v7811
    %v7821 = vmul.f32 %v7812, %v7812
    %v7822 = vmul.f32 %v7813, %v7813
    %v7823 = vmul.f32 %v7814, %v7814
    %v7824 = vmul.f32 %v7815, %v7815
    %v7825 = vmul.f32 %v7816, %v7816
    %v7826 = vmul.f32 %v7817, %v7817
    %v7827 = vadd.f32 %v7818, %v7819
    %v7828 = vadd.f32 %v7827, %v7820
    %v7829 = vadd.f32 %v7828, %v7821
    %v7830 = vadd.f32 %v7829, %v7822
    %v7831 = vadd.f32 %v7830, %v7823
    %v7832 = vadd.f32 %v7831, %v7824
    %v7833 = vadd.f32 %v7832, %v7825
    %v7834 = vadd.f32 %v7833, %v7826
    %7835 = vadd.xlane.f32.xlu0 %v7834
    %v7836 = vpop.xlane.xlu0 %7835
    %v7837 = vmul.f32 %v7836, 0.001953125
    %v7838 = vadd.f32 %v7837, 1e-05
    %v7839 = vrsqrt.pop %v7838
    %v7840 = vmul.f32 %v7839, %v7838
    %v7841 = vmul.f32 %v7840, %v7839
    %v7842 = vmul.f32 0.5, %v7841
    %v7843 = vsub.f32 1.5, %v7842
    %v7844 = vmul.f32 %v7839, %v7843
    %vm7845 = vweird.f32 %v7838
    %vm7846 = vweird.f32 %v7839
    %vm7847 = vmor %vm7845, %vm7846
    %v7848 = vsel %vm7847, %v7839, %v7844
    %v7849 = vmul.f32 %v7800, %v7848
    %v7850 = vmul.f32 %v7801, %v7848
    %v7851 = vmul.f32 %v7802, %v7848
    %v7852 = vmul.f32 %v7803, %v7848
    %v7853 = vmul.f32 %v7804, %v7848
    %v7854 = vmul.f32 %v7805, %v7848
    %v7855 = vmul.f32 %v7806, %v7848
    %v7856 = vmul.f32 %v7807, %v7848
    %v7857 = vmul.f32 %v7808, %v7848
    %v7858 = vstv %s6444
    %v7859 = vmul.f32 %v7858, %v7849
    %v7860 = vmul.f32 %v7858, %v7850
    %v7861 = vmul.f32 %v7858, %v7851
    %v7862 = vmul.f32 %v7858, %v7852
    %v7863 = vmul.f32 %v7858, %v7853
    %v7864 = vmul.f32 %v7858, %v7854
    %v7865 = vmul.f32 %v7858, %v7855
    %v7866 = vmul.f32 %v7858, %v7856
    %v7867 = vmul.f32 %v7858, %v7857
    %v7868 = vadd.f32 %v6435, %v7859
    %v7869 = vadd.f32 %v6436, %v7860
    %v7870 = vadd.f32 %v6437, %v7861
    %v7871 = vadd.f32 %v6438, %v7862
    %v7872 = vadd.f32 %v6439, %v7863
    %v7873 = vadd.f32 %v6440, %v7864
    %v7874 = vadd.f32 %v6441, %v7865
    %v7875 = vadd.f32 %v6442, %v7866
    %v7876 = vadd.f32 %v6443, %v7867
    %v7877 = vmul.f32 %v7868, %v506
    %v7878 = vmul.f32 %v7869, %v507
    %v7879 = vmul.f32 %v7870, %v508
    %v7880 = vmul.f32 %v7871, %v509
    %v7881 = vmul.f32 %v7872, %v510
    %v7882 = vmul.f32 %v7873, %v511
    %v7883 = vmul.f32 %v7874, %v512
    %v7884 = vmul.f32 %v7875, %v513
    %v7885 = vmul.f32 %v7876, %v514
    %7886 = vst [vmem:[%s15] sm:$0xff] %v7877
    %7887 = vst [vmem:[%s15 + $0x8] sm:$0xff] %v7878
    %7888 = vst [vmem:[%s15 + $0x10] sm:$0xff] %v7879
    %7889 = vst [vmem:[%s15 + $0x18] sm:$0xff] %v7880
    %7890 = vst [vmem:[%s15 + $0x20] sm:$0xff] %v7881
    %7891 = vst [vmem:[%s15 + $0x28] sm:$0xff] %v7882
    %7892 = vst [vmem:[%s15 + $0x30] sm:$0xff] %v7883
    %7893 = vst [vmem:[%s15 + $0x38] sm:$0xff] %v7884
    %7894 = vst [vmem:[%s15 + $0x40] sm:$0xff] %v7885
    // Predicated region
    $region66: #{clean_cell_forward.12} parent=1 // pred_check
      _
    $region67: #{clean_cell_forward.12} parent=1 // pred_check_branch
      %7896 = sbr.rel (0) target = $region69
    $region68: #{clean_cell_forward.12} parent=1 // pred_region
      _
    $region69: #{clean_cell_forward.12} parent=1 // pred_fallthru
      _
    // Predicated region
    $region70: #{clean_cell_forward.12} parent=1 // pred_check
      _
    $region71: #{clean_cell_forward.12} parent=1 // pred_check_branch
      %7898 = sbr.rel (0) target = $region73
    $region72: #{clean_cell_forward.12} parent=1 // pred_region
      _
    $region73: #{clean_cell_forward.12} parent=1 // pred_fallthru
      _
    %7899 = vsyncpa [#allocation3], 1

</llo_original>
